<compile_context>
chip_gen: v7x
topology: tpu7x:2x2x1
jax: 0.10.0
libtpu: 0.0.40
codegen_flags: <defaults>
</compile_context>

<pallas_src>
import jax
import jax.numpy as jnp
from jax import lax
from jax.experimental import pallas as pl
from jax.experimental.pallas import tpu as pltpu


def _lse(x, axis=-1, keepdims=False):
    """Numerically-stable logsumexp (matches torch.logsumexp semantics)."""
    m = jnp.max(x, axis=axis, keepdims=True)
    out = m + jnp.log(jnp.sum(jnp.exp(x - m), axis=axis, keepdims=True))
    if not keepdims:
        out = jnp.squeeze(out, axis=axis)
    return out


def neural_hmm_kernel(priors_ref, trans_ref, emiss_ref, obs_ref, out_ref,
                      s_ref, es_ref, alpha_ref, beta_ref):
    # priors_ref: (1, H)  trans_ref: (H, H)  emiss_ref: (H, O)  obs_ref: (L, O)
    # scratch (all (L, H) float32 VMEM):
    #   s_ref     = S          (log-space emission scores, kept for log_emis)
    #   es_ref    = exp(S)
    #   alpha_ref = linear alpha history (per-t max-normalized)
    #   beta_ref  = linear beta history  (per-t max-normalized)
    L = obs_ref.shape[0]
    H = trans_ref.shape[0]
    f32 = jnp.float32
    HIGH = lax.Precision.HIGHEST
    tiny = f32(1e-30)

    # ----- _initialize_states(): log_softmax, temperature = 1.0 --------------
    priors = priors_ref[...]
    log_state_priors = priors - _lse(priors, -1, keepdims=True)        # (1, H)
    trans = trans_ref[...]
    log_trans = trans - _lse(trans, -1, keepdims=True)                 # (H, H)
    emiss = emiss_ref[...]
    log_emiss = emiss - _lse(emiss, -1, keepdims=True)                 # (H, O)

    trans_prob = jnp.exp(log_trans)                                    # (H, H)

    # ----- emission scores on the MXU ----------------------------------------
    # obs rows are one-hot, so the log-space "log_matmul" collapses to an
    # ordinary inner product: S[t, j] = sum_o obs[t, o] * log_emiss[j, o].
    # dot_general contracts against log_emiss's 2nd axis (no transpose).
    obs = obs_ref[...].astype(f32)
    S = lax.dot_general(obs, log_emiss, (((1,), (1,)), ((), ())),
                        preferred_element_type=f32, precision=HIGH)    # (L, H)
    s_ref[...] = S
    es_ref[...] = jnp.exp(S)          # batched EUP; loop re-loads rows from VMEM

    # ----- forward / backward recursions (interleaved, scaled linear space) --
    # Per-t positive scales on alpha/beta cancel in gamma (row-normalized) and
    # xi (z_t-normalized), so max-normalizing with an approx reciprocal is
    # exactly semantics-preserving.
    a0 = jnp.exp(log_state_priors) * es_ref[0:1, :]                    # (1, H)
    a0 = a0 * pl.reciprocal(
        jnp.maximum(jnp.max(a0, axis=-1, keepdims=True), tiny), approx=True)
    alpha_ref[0:1, :] = a0

    bL = jnp.ones((1, H), f32)                                         # exp(0)
    beta_ref[L - 1:L, :] = bL

    def step_body(k, carry):
        a_prev, b_next = carry

        # -- forward step t = k + 1:
        #    a[t, j] = expS[t, j] * sum_i a[t-1, i] * trans_prob[i, j]
        tf = k + 1
        a_t = lax.dot_general(a_prev, trans_prob, (((1,), (0,)), ((), ())),
                              preferred_element_type=f32, precision=HIGH)
        a_t = a_t * es_ref[pl.ds(tf, 1), :]
        a_t = a_t * pl.reciprocal(
            jnp.maximum(jnp.max(a_t, axis=-1, keepdims=True), tiny), approx=True)
        alpha_ref[pl.ds(tf, 1), :] = a_t

        # -- backward step t = L - 2 - k (reference uses emission at time t):
        #    b[t, i] = sum_j trans_prob[i, j] * expS[t, j] * b[t+1, j]
        tb = L - 2 - k
        w = es_ref[pl.ds(tb, 1), :] * b_next                           # (1, H)
        b_t = lax.dot_general(w, trans_prob, (((1,), (1,)), ((), ())),
                              preferred_element_type=f32, precision=HIGH)
        b_t = b_t * pl.reciprocal(
            jnp.maximum(jnp.max(b_t, axis=-1, keepdims=True), tiny), approx=True)
        beta_ref[pl.ds(tb, 1), :] = b_t
        return a_t, b_t

    unroll = True if L <= 32 else 8
    _ = lax.fori_loop(0, L - 1, step_body, (a0, bL), unroll=unroll)

    # ----- expected complete log-likelihood -----------------------------------
    # Re-load from scratch: S / expS were NOT kept live across the loop.
    S = s_ref[...]                                                     # (L, H)
    expS = es_ref[...]                                                 # (L, H)
    alpha = alpha_ref[...]                                             # (L, H)
    beta = beta_ref[...]                                               # (L, H)

    # gamma (row-normalized, so per-t alpha/beta scales cancel)
    gamma = alpha * beta                                               # (L, H)
    g = gamma / jnp.maximum(jnp.sum(gamma, axis=-1, keepdims=True), tiny)

    log_prior = jnp.sum(g[0:1, :] * log_state_priors, keepdims=True)   # (1, 1)
    log_emis = jnp.sum(g * S, keepdims=True)                           # (1, 1)

    # xi term, batched over t = 1..L-1:
    #   sum_ij exp(xi_t - z_t) * log_trans
    #     = (A_t @ (trans_prob*log_trans) . E_t) / (A_t @ trans_prob . E_t)
    # with A_t = scaled exp(log_alpha[t-1]) and E_t = scaled exp(S[t]+beta[t]);
    # all per-t scales cancel in the ratio, so this equals the reference.
    trans_prob_logtrans = trans_prob * log_trans                       # xi-only
    A = alpha[:L - 1, :]                                               # (L-1, H)
    E = expS[1:, :] * beta[1:, :]                                      # (L-1, H)
    E = E * pl.reciprocal(
        jnp.maximum(jnp.max(E, axis=-1, keepdims=True), tiny), approx=True)
    P = lax.dot_general(A, trans_prob, (((1,), (0,)), ((), ())),
                        preferred_element_type=f32, precision=HIGH)    # (L-1, H)
    Q = lax.dot_general(A, trans_prob_logtrans, (((1,), (0,)), ((), ())),
                        preferred_element_type=f32, precision=HIGH)    # (L-1, H)
    den = jnp.maximum(jnp.sum(P * E, axis=-1, keepdims=True), tiny)    # (L-1, 1)
    num = jnp.sum(Q * E, axis=-1, keepdims=True)                       # (L-1, 1)
    log_tran = jnp.sum(num / den, keepdims=True)                       # (1, 1)

    out_ref[...] = log_prior + log_tran + log_emis


def _round_up(n, m):
    return ((n + m - 1) // m) * m


def _vmem_estimate_bytes(L, H, O):
    """Rough padded-VMEM footprint (scratch + double-buffered inputs)."""
    lane_h = _round_up(H, 128)
    lane_o = _round_up(O, 128)
    sub_l = _round_up(L, 8)
    sub_h = _round_up(H, 8)
    scratch = 4 * sub_l * lane_h * 4                # S, expS, alpha, beta (f32)
    inputs = (8 * lane_h * 4                        # priors (1, H) -> (8, lane)
              + sub_h * lane_h * 4                  # trans
              + sub_h * lane_o * 4                  # emiss
              + sub_l * lane_o * 2)                 # obs (bf16)
    return scratch + 2 * inputs + (4 << 20)         # margin


def neural_hmm_forward(state_priors, unnormalized_trans, unnormalized_emiss, obs):
    """Pallas-backed equivalent of NeuralHMM.forward(obs) for one-hot obs."""
    L, O = obs.shape
    H = unnormalized_trans.shape[0]

    # Stay at/above the 32 MiB scoped default, below v7x's 64 MiB physical VMEM.
    vmem_limit = int(min(max(32 << 20, _vmem_estimate_bytes(L, H, O)), 60 << 20))

    call = pl.pallas_call(
        neural_hmm_kernel,
        out_shape=jax.ShapeDtypeStruct((1, 1), jnp.float32),
        in_specs=[
            pl.BlockSpec(memory_space=pltpu.MemorySpace.VMEM),
            pl.BlockSpec(memory_space=pltpu.MemorySpace.VMEM),
            pl.BlockSpec(memory_space=pltpu.MemorySpace.VMEM),
            pl.BlockSpec(memory_space=pltpu.MemorySpace.VMEM),
        ],
        out_specs=pl.BlockSpec(memory_space=pltpu.MemorySpace.VMEM),
        scratch_shapes=[
            pltpu.VMEM((L, H), jnp.float32),   # S   (log emission scores)
            pltpu.VMEM((L, H), jnp.float32),   # exp(S)
            pltpu.VMEM((L, H), jnp.float32),   # linear alpha history
            pltpu.VMEM((L, H), jnp.float32),   # linear beta history
        ],
        compiler_params=pltpu.CompilerParams(vmem_limit_bytes=vmem_limit),
    )
    out = call(
        state_priors.reshape(1, H).astype(jnp.float32),
        unnormalized_trans.astype(jnp.float32),
        unnormalized_emiss.astype(jnp.float32),
        obs.astype(jnp.bfloat16),              # one-hot 0/1 is exact in bf16
    )
    return out[0, 0]


def neural_hmm_reference(state_priors, unnormalized_trans, unnormalized_emiss, obs):
    """Pure-JAX mirror of the torch forward pass (for correctness checking)."""
    lse = jax.scipy.special.logsumexp
    log_state_priors = jax.nn.log_softmax(state_priors)
    log_trans = jax.nn.log_softmax(unnormalized_trans, axis=-1)
    log_emiss = jax.nn.log_softmax(unnormalized_emiss, axis=-1)
    L, _ = obs.shape
    H = log_trans.shape[0]
    log_obs = jnp.log(obs)
    S = lse(log_obs[:, None, :] + log_emiss[None, :, :], axis=-1)      # (L, H)

    alphas = []
    a = log_state_priors + S[0]
    a = a - lse(a)
    alphas.append(a)
    for t in range(1, L):
        tt = lse(a[:, None] + log_trans, axis=0)
        a = S[t] + tt
        a = a - lse(a)
        alphas.append(a)
    log_alpha = jnp.stack(alphas)

    betas = [None] * L
    betas[L - 1] = jnp.zeros((H,), jnp.float32)
    for t in range(L - 2, -1, -1):
        x = log_trans + S[t][None, :] + betas[t + 1][None, :]
        betas[t] = lse(x, axis=-1)
    log_beta = jnp.stack(betas)

    log_gamma = log_alpha + log_beta
    lg = log_gamma - lse(log_gamma, axis=-1, keepdims=True)
    log_prior = jnp.sum(jnp.exp(lg[0]) * log_state_priors)
    log_emis = jnp.sum(jnp.exp(lg) * S)
    log_tran = jnp.float32(0.0)
    for t in range(1, L):
        xi = log_trans + log_alpha[t - 1][:, None] + (S[t] + log_beta[t])[None, :]
        z = lse(xi)
        log_tran = log_tran + jnp.sum(jnp.exp(xi - z) * log_trans)
    return log_prior + log_tran + log_emis


if __name__ == "__main__":
    n_hidden, n_obs, seq_len = 32, 16, 8

    key = jax.random.PRNGKey(0)
    k_trans, k_emiss, k_obs = jax.random.split(key, 3)

    # Deterministic parameter init mirroring NeuralHMM.__init__ defaults.
    priors = jnp.zeros((n_hidden,), jnp.float32) + 0.001
    priors = priors.at[0].set(1.0)
    state_priors = jnp.log(priors)                                     # (H,)
    unnormalized_trans = jax.random.normal(k_trans, (n_hidden, n_hidden), jnp.float32)
    unnormalized_emiss = jax.random.normal(k_emiss, (n_hidden, n_obs), jnp.float32)

    # One-hot observation sequence (satisfies the torch assert obs.sum(-1)==1;
    # one-hot structure is required for the in-kernel obs @ log_emiss^T trick).
    obs_idx = jax.random.randint(k_obs, (seq_len,), 0, n_obs)
    obs = jax.nn.one_hot(obs_idx, n_obs, dtype=jnp.float32)            # (L, O)
    assert bool(jnp.all(obs.sum(axis=-1) == 1))

    ll = jax.jit(neural_hmm_forward)(state_priors, unnormalized_trans,
                                     unnormalized_emiss, obs)
    ll = jax.block_until_ready(ll)

    ll_ref = neural_hmm_reference(state_priors, unnormalized_trans,
                                  unnormalized_emiss, obs)
    assert bool(jnp.isfinite(ll)), "non-finite log likelihood"
    assert bool(jnp.allclose(ll, ll_ref, rtol=1e-4, atol=1e-4)), (float(ll), float(ll_ref))

    print("KERNEL_OK")
</pallas_src>

<mosaic_0001>
module attributes {stable_mosaic.version = 11 : i64} {
  func.func @neural_hmm_kernel(%arg0: memref<1x32xf32, #tpu.memory_space<vmem>>, %arg1: memref<32x32xf32, #tpu.memory_space<vmem>>, %arg2: memref<32x16xf32, #tpu.memory_space<vmem>>, %arg3: memref<8x16xbf16, #tpu.memory_space<vmem>>, %arg4: memref<1x1xf32, #tpu.memory_space<vmem>>, %arg5: memref<8x32xf32, #tpu.memory_space<vmem>>, %arg6: memref<8x32xf32, #tpu.memory_space<vmem>>, %arg7: memref<8x32xf32, #tpu.memory_space<vmem>>, %arg8: memref<8x32xf32, #tpu.memory_space<vmem>>) attributes {dimension_semantics = [], scalar_prefetch = 0 : i64, scratch_operands = 4 : i64, tpu.core_type = #tpu.core_type<tc>} {
    %c0 = arith.constant 0 : index
    %c0_0 = arith.constant 0 : index
    %0 = vector.load %arg0[%c0, %c0_0] : memref<1x32xf32, #tpu.memory_space<vmem>>, vector<1x32xf32>
    %cst = arith.constant dense<0xFF800000> : vector<1xf32>
    %1 = vector.multi_reduction <maximumf>, %0, %cst [1] : vector<1x32xf32> to vector<1xf32>
    %2 = vector.shape_cast %1 : vector<1xf32> to vector<1x1xf32>
    %3 = vector.broadcast %2 : vector<1x1xf32> to vector<1x32xf32>
    %4 = arith.subf %0, %3 : vector<1x32xf32>
    %5 = math.exp %4 : vector<1x32xf32>
    %cst_1 = arith.constant dense<0.000000e+00> : vector<1xf32>
    %6 = vector.multi_reduction <add>, %5, %cst_1 [1] : vector<1x32xf32> to vector<1xf32>
    %7 = vector.shape_cast %6 : vector<1xf32> to vector<1x1xf32>
    %8 = math.log %7 : vector<1x1xf32>
    %9 = arith.addf %2, %8 : vector<1x1xf32>
    %10 = vector.broadcast %9 : vector<1x1xf32> to vector<1x32xf32>
    %11 = arith.subf %0, %10 : vector<1x32xf32>
    %c0_2 = arith.constant 0 : index
    %c0_3 = arith.constant 0 : index
    %12 = vector.load %arg1[%c0_2, %c0_3] : memref<32x32xf32, #tpu.memory_space<vmem>>, vector<32x32xf32>
    %cst_4 = arith.constant dense<0xFF800000> : vector<32xf32>
    %13 = vector.multi_reduction <maximumf>, %12, %cst_4 [1] : vector<32x32xf32> to vector<32xf32>
    %14 = vector.shape_cast %13 : vector<32xf32> to vector<32x1xf32>
    %15 = vector.broadcast %14 : vector<32x1xf32> to vector<32x32xf32>
    %16 = arith.subf %12, %15 : vector<32x32xf32>
    %17 = math.exp %16 : vector<32x32xf32>
    %cst_5 = arith.constant dense<0.000000e+00> : vector<32xf32>
    %18 = vector.multi_reduction <add>, %17, %cst_5 [1] : vector<32x32xf32> to vector<32xf32>
    %19 = vector.shape_cast %18 : vector<32xf32> to vector<32x1xf32>
    %20 = math.log %19 : vector<32x1xf32>
    %21 = arith.addf %14, %20 : vector<32x1xf32>
    %22 = vector.broadcast %21 : vector<32x1xf32> to vector<32x32xf32>
    %23 = arith.subf %12, %22 : vector<32x32xf32>
    %c0_6 = arith.constant 0 : index
    %c0_7 = arith.constant 0 : index
    %24 = vector.load %arg2[%c0_6, %c0_7] : memref<32x16xf32, #tpu.memory_space<vmem>>, vector<32x16xf32>
    %cst_8 = arith.constant dense<0xFF800000> : vector<32xf32>
    %25 = vector.multi_reduction <maximumf>, %24, %cst_8 [1] : vector<32x16xf32> to vector<32xf32>
    %26 = vector.shape_cast %25 : vector<32xf32> to vector<32x1xf32>
    %27 = vector.broadcast %26 : vector<32x1xf32> to vector<32x16xf32>
    %28 = arith.subf %24, %27 : vector<32x16xf32>
    %29 = math.exp %28 : vector<32x16xf32>
    %cst_9 = arith.constant dense<0.000000e+00> : vector<32xf32>
    %30 = vector.multi_reduction <add>, %29, %cst_9 [1] : vector<32x16xf32> to vector<32xf32>
    %31 = vector.shape_cast %30 : vector<32xf32> to vector<32x1xf32>
    %32 = math.log %31 : vector<32x1xf32>
    %33 = arith.addf %26, %32 : vector<32x1xf32>
    %34 = vector.broadcast %33 : vector<32x1xf32> to vector<32x16xf32>
    %35 = arith.subf %24, %34 : vector<32x16xf32>
    %36 = math.exp %23 : vector<32x32xf32>
    %c0_10 = arith.constant 0 : index
    %c0_11 = arith.constant 0 : index
    %37 = vector.load %arg3[%c0_10, %c0_11] : memref<8x16xbf16, #tpu.memory_space<vmem>>, vector<8x16xbf16>
    %38 = arith.extf %37 : vector<8x16xbf16> to vector<8x16xf32>
    %cst_12 = arith.constant dense<0.000000e+00> : vector<8x32xf32>
    %39 = tpu.matmul %38, %35, %cst_12 {dimension_numbers = #tpu.dot_dimension_numbers<[1], [1], [0], [0], [0, 0, 1, 0], [], []>, precision = #tpu.contract_precision<fp32>} : vector<8x16xf32>, vector<32x16xf32>, vector<8x32xf32> -> vector<8x32xf32>
    %c0_13 = arith.constant 0 : index
    %c0_14 = arith.constant 0 : index
    %40 = vector.load %arg5[%c0_13, %c0_14] : memref<8x32xf32, #tpu.memory_space<vmem>>, vector<8x32xf32>
    tpu.vector_store %arg5[%c0_13, %c0_14], %39 {strides = array<i32>} : memref<8x32xf32, #tpu.memory_space<vmem>>, vector<8x32xf32>,
    %41 = math.exp %39 : vector<8x32xf32>
    %c0_15 = arith.constant 0 : index
    %c0_16 = arith.constant 0 : index
    %42 = vector.load %arg6[%c0_15, %c0_16] : memref<8x32xf32, #tpu.memory_space<vmem>>, vector<8x32xf32>
    tpu.vector_store %arg6[%c0_15, %c0_16], %41 {strides = array<i32>} : memref<8x32xf32, #tpu.memory_space<vmem>>, vector<8x32xf32>,
    %43 = math.exp %11 : vector<1x32xf32>
    %c0_17 = arith.constant 0 : index
    %c0_18 = arith.constant 0 : index
    %44 = vector.load %arg6[%c0_17, %c0_18] : memref<8x32xf32, #tpu.memory_space<vmem>>, vector<1x32xf32>
    %45 = arith.mulf %43, %44 : vector<1x32xf32>
    %cst_19 = arith.constant dense<0xFF800000> : vector<1xf32>
    %46 = vector.multi_reduction <maximumf>, %45, %cst_19 [1] : vector<1x32xf32> to vector<1xf32>
    %47 = vector.shape_cast %46 : vector<1xf32> to vector<1x1xf32>
    %cst_20 = arith.constant 1.000000e-30 : f32
    %48 = vector.broadcast %cst_20 : f32 to vector<1x1xf32>
    %49 = arith.maximumf %47, %48 : vector<1x1xf32>
    %50 = tpu.reciprocal %49 {approx = true} : vector<1x1xf32> -> vector<1x1xf32>
    %51 = vector.broadcast %50 : vector<1x1xf32> to vector<1x32xf32>
    %52 = arith.mulf %45, %51 : vector<1x32xf32>
    %c0_21 = arith.constant 0 : index
    %c0_22 = arith.constant 0 : index
    %53 = vector.load %arg7[%c0_21, %c0_22] : memref<8x32xf32, #tpu.memory_space<vmem>>, vector<1x32xf32>
    tpu.vector_store %arg7[%c0_21, %c0_22], %52 {strides = array<i32>} : memref<8x32xf32, #tpu.memory_space<vmem>>, vector<1x32xf32>,
    %cst_23 = arith.constant 1.000000e+00 : f32
    %54 = vector.broadcast %cst_23 : f32 to vector<1x32xf32>
    %c7 = arith.constant 7 : index
    %c0_24 = arith.constant 0 : index
    %55 = vector.load %arg8[%c7, %c0_24] : memref<8x32xf32, #tpu.memory_space<vmem>>, vector<1x32xf32>
    tpu.vector_store %arg8[%c7, %c0_24], %54 {strides = array<i32>} : memref<8x32xf32, #tpu.memory_space<vmem>>, vector<1x32xf32>,
    %cst_25 = arith.constant 1.000000e-30 : f32
    %c0_i32 = arith.constant 0 : i32
    %c1_i32 = arith.constant 1 : i32
    %56 = arith.addi %c0_i32, %c1_i32 : i32
    %cst_26 = arith.constant dense<0.000000e+00> : vector<1x32xf32>
    %57 = tpu.matmul %52, %36, %cst_26 {dimension_numbers = #tpu.dot_dimension_numbers<[1], [0], [0], [1], [0, 0, 1, 1], [], []>, precision = #tpu.contract_precision<fp32>} : vector<1x32xf32>, vector<32x32xf32>, vector<1x32xf32> -> vector<1x32xf32>
    %58 = arith.index_cast %56 : i32 to index
    %c0_27 = arith.constant 0 : index
    %59 = vector.load %arg6[%58, %c0_27] : memref<8x32xf32, #tpu.memory_space<vmem>>, vector<1x32xf32>
    %60 = arith.mulf %57, %59 : vector<1x32xf32>
    %cst_28 = arith.constant dense<0xFF800000> : vector<1xf32>
    %61 = vector.multi_reduction <maximumf>, %60, %cst_28 [1] : vector<1x32xf32> to vector<1xf32>
    %62 = vector.shape_cast %61 : vector<1xf32> to vector<1x1xf32>
    %63 = vector.broadcast %cst_25 : f32 to vector<1x1xf32>
    %64 = arith.maximumf %62, %63 : vector<1x1xf32>
    %65 = tpu.reciprocal %64 {approx = true} : vector<1x1xf32> -> vector<1x1xf32>
    %66 = vector.broadcast %65 : vector<1x1xf32> to vector<1x32xf32>
    %67 = arith.mulf %60, %66 : vector<1x32xf32>
    %68 = arith.index_cast %56 : i32 to index
    %c0_29 = arith.constant 0 : index
    %69 = vector.load %arg7[%68, %c0_29] : memref<8x32xf32, #tpu.memory_space<vmem>>, vector<1x32xf32>
    tpu.vector_store %arg7[%68, %c0_29], %67 {strides = array<i32>} : memref<8x32xf32, #tpu.memory_space<vmem>>, vector<1x32xf32>,
    %c6_i32 = arith.constant 6 : i32
    %70 = arith.subi %c6_i32, %c0_i32 : i32
    %71 = arith.index_cast %70 : i32 to index
    %c0_30 = arith.constant 0 : index
    %72 = vector.load %arg6[%71, %c0_30] : memref<8x32xf32, #tpu.memory_space<vmem>>, vector<1x32xf32>
    %73 = arith.mulf %72, %54 : vector<1x32xf32>
    %cst_31 = arith.constant dense<0.000000e+00> : vector<1x32xf32>
    %74 = tpu.matmul %73, %36, %cst_31 {dimension_numbers = #tpu.dot_dimension_numbers<[1], [1], [0], [0], [0, 0, 1, 0], [], []>, precision = #tpu.contract_precision<fp32>} : vector<1x32xf32>, vector<32x32xf32>, vector<1x32xf32> -> vector<1x32xf32>
    %cst_32 = arith.constant dense<0xFF800000> : vector<1xf32>
    %75 = vector.multi_reduction <maximumf>, %74, %cst_32 [1] : vector<1x32xf32> to vector<1xf32>
    %76 = vector.shape_cast %75 : vector<1xf32> to vector<1x1xf32>
    %77 = vector.broadcast %cst_25 : f32 to vector<1x1xf32>
    %78 = arith.maximumf %76, %77 : vector<1x1xf32>
    %79 = tpu.reciprocal %78 {approx = true} : vector<1x1xf32> -> vector<1x1xf32>
    %80 = vector.broadcast %79 : vector<1x1xf32> to vector<1x32xf32>
    %81 = arith.mulf %74, %80 : vector<1x32xf32>
    %82 = arith.index_cast %70 : i32 to index
    %c0_33 = arith.constant 0 : index
    %83 = vector.load %arg8[%82, %c0_33] : memref<8x32xf32, #tpu.memory_space<vmem>>, vector<1x32xf32>
    tpu.vector_store %arg8[%82, %c0_33], %81 {strides = array<i32>} : memref<8x32xf32, #tpu.memory_space<vmem>>, vector<1x32xf32>,
    %c1_i32_34 = arith.constant 1 : i32
    %c1_i32_35 = arith.constant 1 : i32
    %84 = arith.addi %c1_i32_34, %c1_i32_35 : i32
    %cst_36 = arith.constant dense<0.000000e+00> : vector<1x32xf32>
    %85 = tpu.matmul %67, %36, %cst_36 {dimension_numbers = #tpu.dot_dimension_numbers<[1], [0], [0], [1], [0, 0, 1, 1], [], []>, precision = #tpu.contract_precision<fp32>} : vector<1x32xf32>, vector<32x32xf32>, vector<1x32xf32> -> vector<1x32xf32>
    %86 = arith.index_cast %84 : i32 to index
    %c0_37 = arith.constant 0 : index
    %87 = vector.load %arg6[%86, %c0_37] : memref<8x32xf32, #tpu.memory_space<vmem>>, vector<1x32xf32>
    %88 = arith.mulf %85, %87 : vector<1x32xf32>
    %cst_38 = arith.constant dense<0xFF800000> : vector<1xf32>
    %89 = vector.multi_reduction <maximumf>, %88, %cst_38 [1] : vector<1x32xf32> to vector<1xf32>
    %90 = vector.shape_cast %89 : vector<1xf32> to vector<1x1xf32>
    %91 = vector.broadcast %cst_25 : f32 to vector<1x1xf32>
    %92 = arith.maximumf %90, %91 : vector<1x1xf32>
    %93 = tpu.reciprocal %92 {approx = true} : vector<1x1xf32> -> vector<1x1xf32>
    %94 = vector.broadcast %93 : vector<1x1xf32> to vector<1x32xf32>
    %95 = arith.mulf %88, %94 : vector<1x32xf32>
    %96 = arith.index_cast %84 : i32 to index
    %c0_39 = arith.constant 0 : index
    %97 = vector.load %arg7[%96, %c0_39] : memref<8x32xf32, #tpu.memory_space<vmem>>, vector<1x32xf32>
    tpu.vector_store %arg7[%96, %c0_39], %95 {strides = array<i32>} : memref<8x32xf32, #tpu.memory_space<vmem>>, vector<1x32xf32>,
    %c6_i32_40 = arith.constant 6 : i32
    %98 = arith.subi %c6_i32_40, %c1_i32_34 : i32
    %99 = arith.index_cast %98 : i32 to index
    %c0_41 = arith.constant 0 : index
    %100 = vector.load %arg6[%99, %c0_41] : memref<8x32xf32, #tpu.memory_space<vmem>>, vector<1x32xf32>
    %101 = arith.mulf %100, %81 : vector<1x32xf32>
    %cst_42 = arith.constant dense<0.000000e+00> : vector<1x32xf32>
    %102 = tpu.matmul %101, %36, %cst_42 {dimension_numbers = #tpu.dot_dimension_numbers<[1], [1], [0], [0], [0, 0, 1, 0], [], []>, precision = #tpu.contract_precision<fp32>} : vector<1x32xf32>, vector<32x32xf32>, vector<1x32xf32> -> vector<1x32xf32>
    %cst_43 = arith.constant dense<0xFF800000> : vector<1xf32>
    %103 = vector.multi_reduction <maximumf>, %102, %cst_43 [1] : vector<1x32xf32> to vector<1xf32>
    %104 = vector.shape_cast %103 : vector<1xf32> to vector<1x1xf32>
    %105 = vector.broadcast %cst_25 : f32 to vector<1x1xf32>
    %106 = arith.maximumf %104, %105 : vector<1x1xf32>
    %107 = tpu.reciprocal %106 {approx = true} : vector<1x1xf32> -> vector<1x1xf32>
    %108 = vector.broadcast %107 : vector<1x1xf32> to vector<1x32xf32>
    %109 = arith.mulf %102, %108 : vector<1x32xf32>
    %110 = arith.index_cast %98 : i32 to index
    %c0_44 = arith.constant 0 : index
    %111 = vector.load %arg8[%110, %c0_44] : memref<8x32xf32, #tpu.memory_space<vmem>>, vector<1x32xf32>
    tpu.vector_store %arg8[%110, %c0_44], %109 {strides = array<i32>} : memref<8x32xf32, #tpu.memory_space<vmem>>, vector<1x32xf32>,
    %c2_i32 = arith.constant 2 : i32
    %c1_i32_45 = arith.constant 1 : i32
    %112 = arith.addi %c2_i32, %c1_i32_45 : i32
    %cst_46 = arith.constant dense<0.000000e+00> : vector<1x32xf32>
    %113 = tpu.matmul %95, %36, %cst_46 {dimension_numbers = #tpu.dot_dimension_numbers<[1], [0], [0], [1], [0, 0, 1, 1], [], []>, precision = #tpu.contract_precision<fp32>} : vector<1x32xf32>, vector<32x32xf32>, vector<1x32xf32> -> vector<1x32xf32>
    %114 = arith.index_cast %112 : i32 to index
    %c0_47 = arith.constant 0 : index
    %115 = vector.load %arg6[%114, %c0_47] : memref<8x32xf32, #tpu.memory_space<vmem>>, vector<1x32xf32>
    %116 = arith.mulf %113, %115 : vector<1x32xf32>
    %cst_48 = arith.constant dense<0xFF800000> : vector<1xf32>
    %117 = vector.multi_reduction <maximumf>, %116, %cst_48 [1] : vector<1x32xf32> to vector<1xf32>
    %118 = vector.shape_cast %117 : vector<1xf32> to vector<1x1xf32>
    %119 = vector.broadcast %cst_25 : f32 to vector<1x1xf32>
    %120 = arith.maximumf %118, %119 : vector<1x1xf32>
    %121 = tpu.reciprocal %120 {approx = true} : vector<1x1xf32> -> vector<1x1xf32>
    %122 = vector.broadcast %121 : vector<1x1xf32> to vector<1x32xf32>
    %123 = arith.mulf %116, %122 : vector<1x32xf32>
    %124 = arith.index_cast %112 : i32 to index
    %c0_49 = arith.constant 0 : index
    %125 = vector.load %arg7[%124, %c0_49] : memref<8x32xf32, #tpu.memory_space<vmem>>, vector<1x32xf32>
    tpu.vector_store %arg7[%124, %c0_49], %123 {strides = array<i32>} : memref<8x32xf32, #tpu.memory_space<vmem>>, vector<1x32xf32>,
    %c6_i32_50 = arith.constant 6 : i32
    %126 = arith.subi %c6_i32_50, %c2_i32 : i32
    %127 = arith.index_cast %126 : i32 to index
    %c0_51 = arith.constant 0 : index
    %128 = vector.load %arg6[%127, %c0_51] : memref<8x32xf32, #tpu.memory_space<vmem>>, vector<1x32xf32>
    %129 = arith.mulf %128, %109 : vector<1x32xf32>
    %cst_52 = arith.constant dense<0.000000e+00> : vector<1x32xf32>
    %130 = tpu.matmul %129, %36, %cst_52 {dimension_numbers = #tpu.dot_dimension_numbers<[1], [1], [0], [0], [0, 0, 1, 0], [], []>, precision = #tpu.contract_precision<fp32>} : vector<1x32xf32>, vector<32x32xf32>, vector<1x32xf32> -> vector<1x32xf32>
    %cst_53 = arith.constant dense<0xFF800000> : vector<1xf32>
    %131 = vector.multi_reduction <maximumf>, %130, %cst_53 [1] : vector<1x32xf32> to vector<1xf32>
    %132 = vector.shape_cast %131 : vector<1xf32> to vector<1x1xf32>
    %133 = vector.broadcast %cst_25 : f32 to vector<1x1xf32>
    %134 = arith.maximumf %132, %133 : vector<1x1xf32>
    %135 = tpu.reciprocal %134 {approx = true} : vector<1x1xf32> -> vector<1x1xf32>
    %136 = vector.broadcast %135 : vector<1x1xf32> to vector<1x32xf32>
    %137 = arith.mulf %130, %136 : vector<1x32xf32>
    %138 = arith.index_cast %126 : i32 to index
    %c0_54 = arith.constant 0 : index
    %139 = vector.load %arg8[%138, %c0_54] : memref<8x32xf32, #tpu.memory_space<vmem>>, vector<1x32xf32>
    tpu.vector_store %arg8[%138, %c0_54], %137 {strides = array<i32>} : memref<8x32xf32, #tpu.memory_space<vmem>>, vector<1x32xf32>,
    %c3_i32 = arith.constant 3 : i32
    %c1_i32_55 = arith.constant 1 : i32
    %140 = arith.addi %c3_i32, %c1_i32_55 : i32
    %cst_56 = arith.constant dense<0.000000e+00> : vector<1x32xf32>
    %141 = tpu.matmul %123, %36, %cst_56 {dimension_numbers = #tpu.dot_dimension_numbers<[1], [0], [0], [1], [0, 0, 1, 1], [], []>, precision = #tpu.contract_precision<fp32>} : vector<1x32xf32>, vector<32x32xf32>, vector<1x32xf32> -> vector<1x32xf32>
    %142 = arith.index_cast %140 : i32 to index
    %c0_57 = arith.constant 0 : index
    %143 = vector.load %arg6[%142, %c0_57] : memref<8x32xf32, #tpu.memory_space<vmem>>, vector<1x32xf32>
    %144 = arith.mulf %141, %143 : vector<1x32xf32>
    %cst_58 = arith.constant dense<0xFF800000> : vector<1xf32>
    %145 = vector.multi_reduction <maximumf>, %144, %cst_58 [1] : vector<1x32xf32> to vector<1xf32>
    %146 = vector.shape_cast %145 : vector<1xf32> to vector<1x1xf32>
    %147 = vector.broadcast %cst_25 : f32 to vector<1x1xf32>
    %148 = arith.maximumf %146, %147 : vector<1x1xf32>
    %149 = tpu.reciprocal %148 {approx = true} : vector<1x1xf32> -> vector<1x1xf32>
    %150 = vector.broadcast %149 : vector<1x1xf32> to vector<1x32xf32>
    %151 = arith.mulf %144, %150 : vector<1x32xf32>
    %152 = arith.index_cast %140 : i32 to index
    %c0_59 = arith.constant 0 : index
    %153 = vector.load %arg7[%152, %c0_59] : memref<8x32xf32, #tpu.memory_space<vmem>>, vector<1x32xf32>
    tpu.vector_store %arg7[%152, %c0_59], %151 {strides = array<i32>} : memref<8x32xf32, #tpu.memory_space<vmem>>, vector<1x32xf32>,
    %c6_i32_60 = arith.constant 6 : i32
    %154 = arith.subi %c6_i32_60, %c3_i32 : i32
    %155 = arith.index_cast %154 : i32 to index
    %c0_61 = arith.constant 0 : index
    %156 = vector.load %arg6[%155, %c0_61] : memref<8x32xf32, #tpu.memory_space<vmem>>, vector<1x32xf32>
    %157 = arith.mulf %156, %137 : vector<1x32xf32>
    %cst_62 = arith.constant dense<0.000000e+00> : vector<1x32xf32>
    %158 = tpu.matmul %157, %36, %cst_62 {dimension_numbers = #tpu.dot_dimension_numbers<[1], [1], [0], [0], [0, 0, 1, 0], [], []>, precision = #tpu.contract_precision<fp32>} : vector<1x32xf32>, vector<32x32xf32>, vector<1x32xf32> -> vector<1x32xf32>
    %cst_63 = arith.constant dense<0xFF800000> : vector<1xf32>
    %159 = vector.multi_reduction <maximumf>, %158, %cst_63 [1] : vector<1x32xf32> to vector<1xf32>
    %160 = vector.shape_cast %159 : vector<1xf32> to vector<1x1xf32>
    %161 = vector.broadcast %cst_25 : f32 to vector<1x1xf32>
    %162 = arith.maximumf %160, %161 : vector<1x1xf32>
    %163 = tpu.reciprocal %162 {approx = true} : vector<1x1xf32> -> vector<1x1xf32>
    %164 = vector.broadcast %163 : vector<1x1xf32> to vector<1x32xf32>
    %165 = arith.mulf %158, %164 : vector<1x32xf32>
    %166 = arith.index_cast %154 : i32 to index
    %c0_64 = arith.constant 0 : index
    %167 = vector.load %arg8[%166, %c0_64] : memref<8x32xf32, #tpu.memory_space<vmem>>, vector<1x32xf32>
    tpu.vector_store %arg8[%166, %c0_64], %165 {strides = array<i32>} : memref<8x32xf32, #tpu.memory_space<vmem>>, vector<1x32xf32>,
    %c4_i32 = arith.constant 4 : i32
    %c1_i32_65 = arith.constant 1 : i32
    %168 = arith.addi %c4_i32, %c1_i32_65 : i32
    %cst_66 = arith.constant dense<0.000000e+00> : vector<1x32xf32>
    %169 = tpu.matmul %151, %36, %cst_66 {dimension_numbers = #tpu.dot_dimension_numbers<[1], [0], [0], [1], [0, 0, 1, 1], [], []>, precision = #tpu.contract_precision<fp32>} : vector<1x32xf32>, vector<32x32xf32>, vector<1x32xf32> -> vector<1x32xf32>
    %170 = arith.index_cast %168 : i32 to index
    %c0_67 = arith.constant 0 : index
    %171 = vector.load %arg6[%170, %c0_67] : memref<8x32xf32, #tpu.memory_space<vmem>>, vector<1x32xf32>
    %172 = arith.mulf %169, %171 : vector<1x32xf32>
    %cst_68 = arith.constant dense<0xFF800000> : vector<1xf32>
    %173 = vector.multi_reduction <maximumf>, %172, %cst_68 [1] : vector<1x32xf32> to vector<1xf32>
    %174 = vector.shape_cast %173 : vector<1xf32> to vector<1x1xf32>
    %175 = vector.broadcast %cst_25 : f32 to vector<1x1xf32>
    %176 = arith.maximumf %174, %175 : vector<1x1xf32>
    %177 = tpu.reciprocal %176 {approx = true} : vector<1x1xf32> -> vector<1x1xf32>
    %178 = vector.broadcast %177 : vector<1x1xf32> to vector<1x32xf32>
    %179 = arith.mulf %172, %178 : vector<1x32xf32>
    %180 = arith.index_cast %168 : i32 to index
    %c0_69 = arith.constant 0 : index
    %181 = vector.load %arg7[%180, %c0_69] : memref<8x32xf32, #tpu.memory_space<vmem>>, vector<1x32xf32>
    tpu.vector_store %arg7[%180, %c0_69], %179 {strides = array<i32>} : memref<8x32xf32, #tpu.memory_space<vmem>>, vector<1x32xf32>,
    %c6_i32_70 = arith.constant 6 : i32
    %182 = arith.subi %c6_i32_70, %c4_i32 : i32
    %183 = arith.index_cast %182 : i32 to index
    %c0_71 = arith.constant 0 : index
    %184 = vector.load %arg6[%183, %c0_71] : memref<8x32xf32, #tpu.memory_space<vmem>>, vector<1x32xf32>
    %185 = arith.mulf %184, %165 : vector<1x32xf32>
    %cst_72 = arith.constant dense<0.000000e+00> : vector<1x32xf32>
    %186 = tpu.matmul %185, %36, %cst_72 {dimension_numbers = #tpu.dot_dimension_numbers<[1], [1], [0], [0], [0, 0, 1, 0], [], []>, precision = #tpu.contract_precision<fp32>} : vector<1x32xf32>, vector<32x32xf32>, vector<1x32xf32> -> vector<1x32xf32>
    %cst_73 = arith.constant dense<0xFF800000> : vector<1xf32>
    %187 = vector.multi_reduction <maximumf>, %186, %cst_73 [1] : vector<1x32xf32> to vector<1xf32>
    %188 = vector.shape_cast %187 : vector<1xf32> to vector<1x1xf32>
    %189 = vector.broadcast %cst_25 : f32 to vector<1x1xf32>
    %190 = arith.maximumf %188, %189 : vector<1x1xf32>
    %191 = tpu.reciprocal %190 {approx = true} : vector<1x1xf32> -> vector<1x1xf32>
    %192 = vector.broadcast %191 : vector<1x1xf32> to vector<1x32xf32>
    %193 = arith.mulf %186, %192 : vector<1x32xf32>
    %194 = arith.index_cast %182 : i32 to index
    %c0_74 = arith.constant 0 : index
    %195 = vector.load %arg8[%194, %c0_74] : memref<8x32xf32, #tpu.memory_space<vmem>>, vector<1x32xf32>
    tpu.vector_store %arg8[%194, %c0_74], %193 {strides = array<i32>} : memref<8x32xf32, #tpu.memory_space<vmem>>, vector<1x32xf32>,
    %c5_i32 = arith.constant 5 : i32
    %c1_i32_75 = arith.constant 1 : i32
    %196 = arith.addi %c5_i32, %c1_i32_75 : i32
    %cst_76 = arith.constant dense<0.000000e+00> : vector<1x32xf32>
    %197 = tpu.matmul %179, %36, %cst_76 {dimension_numbers = #tpu.dot_dimension_numbers<[1], [0], [0], [1], [0, 0, 1, 1], [], []>, precision = #tpu.contract_precision<fp32>} : vector<1x32xf32>, vector<32x32xf32>, vector<1x32xf32> -> vector<1x32xf32>
    %198 = arith.index_cast %196 : i32 to index
    %c0_77 = arith.constant 0 : index
    %199 = vector.load %arg6[%198, %c0_77] : memref<8x32xf32, #tpu.memory_space<vmem>>, vector<1x32xf32>
    %200 = arith.mulf %197, %199 : vector<1x32xf32>
    %cst_78 = arith.constant dense<0xFF800000> : vector<1xf32>
    %201 = vector.multi_reduction <maximumf>, %200, %cst_78 [1] : vector<1x32xf32> to vector<1xf32>
    %202 = vector.shape_cast %201 : vector<1xf32> to vector<1x1xf32>
    %203 = vector.broadcast %cst_25 : f32 to vector<1x1xf32>
    %204 = arith.maximumf %202, %203 : vector<1x1xf32>
    %205 = tpu.reciprocal %204 {approx = true} : vector<1x1xf32> -> vector<1x1xf32>
    %206 = vector.broadcast %205 : vector<1x1xf32> to vector<1x32xf32>
    %207 = arith.mulf %200, %206 : vector<1x32xf32>
    %208 = arith.index_cast %196 : i32 to index
    %c0_79 = arith.constant 0 : index
    %209 = vector.load %arg7[%208, %c0_79] : memref<8x32xf32, #tpu.memory_space<vmem>>, vector<1x32xf32>
    tpu.vector_store %arg7[%208, %c0_79], %207 {strides = array<i32>} : memref<8x32xf32, #tpu.memory_space<vmem>>, vector<1x32xf32>,
    %c6_i32_80 = arith.constant 6 : i32
    %210 = arith.subi %c6_i32_80, %c5_i32 : i32
    %211 = arith.index_cast %210 : i32 to index
    %c0_81 = arith.constant 0 : index
    %212 = vector.load %arg6[%211, %c0_81] : memref<8x32xf32, #tpu.memory_space<vmem>>, vector<1x32xf32>
    %213 = arith.mulf %212, %193 : vector<1x32xf32>
    %cst_82 = arith.constant dense<0.000000e+00> : vector<1x32xf32>
    %214 = tpu.matmul %213, %36, %cst_82 {dimension_numbers = #tpu.dot_dimension_numbers<[1], [1], [0], [0], [0, 0, 1, 0], [], []>, precision = #tpu.contract_precision<fp32>} : vector<1x32xf32>, vector<32x32xf32>, vector<1x32xf32> -> vector<1x32xf32>
    %cst_83 = arith.constant dense<0xFF800000> : vector<1xf32>
    %215 = vector.multi_reduction <maximumf>, %214, %cst_83 [1] : vector<1x32xf32> to vector<1xf32>
    %216 = vector.shape_cast %215 : vector<1xf32> to vector<1x1xf32>
    %217 = vector.broadcast %cst_25 : f32 to vector<1x1xf32>
    %218 = arith.maximumf %216, %217 : vector<1x1xf32>
    %219 = tpu.reciprocal %218 {approx = true} : vector<1x1xf32> -> vector<1x1xf32>
    %220 = vector.broadcast %219 : vector<1x1xf32> to vector<1x32xf32>
    %221 = arith.mulf %214, %220 : vector<1x32xf32>
    %222 = arith.index_cast %210 : i32 to index
    %c0_84 = arith.constant 0 : index
    %223 = vector.load %arg8[%222, %c0_84] : memref<8x32xf32, #tpu.memory_space<vmem>>, vector<1x32xf32>
    tpu.vector_store %arg8[%222, %c0_84], %221 {strides = array<i32>} : memref<8x32xf32, #tpu.memory_space<vmem>>, vector<1x32xf32>,
    %c6_i32_85 = arith.constant 6 : i32
    %c1_i32_86 = arith.constant 1 : i32
    %224 = arith.addi %c6_i32_85, %c1_i32_86 : i32
    %cst_87 = arith.constant dense<0.000000e+00> : vector<1x32xf32>
    %225 = tpu.matmul %207, %36, %cst_87 {dimension_numbers = #tpu.dot_dimension_numbers<[1], [0], [0], [1], [0, 0, 1, 1], [], []>, precision = #tpu.contract_precision<fp32>} : vector<1x32xf32>, vector<32x32xf32>, vector<1x32xf32> -> vector<1x32xf32>
    %226 = arith.index_cast %224 : i32 to index
    %c0_88 = arith.constant 0 : index
    %227 = vector.load %arg6[%226, %c0_88] : memref<8x32xf32, #tpu.memory_space<vmem>>, vector<1x32xf32>
    %228 = arith.mulf %225, %227 : vector<1x32xf32>
    %cst_89 = arith.constant dense<0xFF800000> : vector<1xf32>
    %229 = vector.multi_reduction <maximumf>, %228, %cst_89 [1] : vector<1x32xf32> to vector<1xf32>
    %230 = vector.shape_cast %229 : vector<1xf32> to vector<1x1xf32>
    %231 = vector.broadcast %cst_25 : f32 to vector<1x1xf32>
    %232 = arith.maximumf %230, %231 : vector<1x1xf32>
    %233 = tpu.reciprocal %232 {approx = true} : vector<1x1xf32> -> vector<1x1xf32>
    %234 = vector.broadcast %233 : vector<1x1xf32> to vector<1x32xf32>
    %235 = arith.mulf %228, %234 : vector<1x32xf32>
    %236 = arith.index_cast %224 : i32 to index
    %c0_90 = arith.constant 0 : index
    %237 = vector.load %arg7[%236, %c0_90] : memref<8x32xf32, #tpu.memory_space<vmem>>, vector<1x32xf32>
    tpu.vector_store %arg7[%236, %c0_90], %235 {strides = array<i32>} : memref<8x32xf32, #tpu.memory_space<vmem>>, vector<1x32xf32>,
    %c6_i32_91 = arith.constant 6 : i32
    %238 = arith.subi %c6_i32_91, %c6_i32_85 : i32
    %239 = arith.index_cast %238 : i32 to index
    %c0_92 = arith.constant 0 : index
    %240 = vector.load %arg6[%239, %c0_92] : memref<8x32xf32, #tpu.memory_space<vmem>>, vector<1x32xf32>
    %241 = arith.mulf %240, %221 : vector<1x32xf32>
    %cst_93 = arith.constant dense<0.000000e+00> : vector<1x32xf32>
    %242 = tpu.matmul %241, %36, %cst_93 {dimension_numbers = #tpu.dot_dimension_numbers<[1], [1], [0], [0], [0, 0, 1, 0], [], []>, precision = #tpu.contract_precision<fp32>} : vector<1x32xf32>, vector<32x32xf32>, vector<1x32xf32> -> vector<1x32xf32>
    %cst_94 = arith.constant dense<0xFF800000> : vector<1xf32>
    %243 = vector.multi_reduction <maximumf>, %242, %cst_94 [1] : vector<1x32xf32> to vector<1xf32>
    %244 = vector.shape_cast %243 : vector<1xf32> to vector<1x1xf32>
    %245 = vector.broadcast %cst_25 : f32 to vector<1x1xf32>
    %246 = arith.maximumf %244, %245 : vector<1x1xf32>
    %247 = tpu.reciprocal %246 {approx = true} : vector<1x1xf32> -> vector<1x1xf32>
    %248 = vector.broadcast %247 : vector<1x1xf32> to vector<1x32xf32>
    %249 = arith.mulf %242, %248 : vector<1x32xf32>
    %250 = arith.index_cast %238 : i32 to index
    %c0_95 = arith.constant 0 : index
    %251 = vector.load %arg8[%250, %c0_95] : memref<8x32xf32, #tpu.memory_space<vmem>>, vector<1x32xf32>
    tpu.vector_store %arg8[%250, %c0_95], %249 {strides = array<i32>} : memref<8x32xf32, #tpu.memory_space<vmem>>, vector<1x32xf32>,
    %c7_i32 = arith.constant 7 : i32
    %c0_96 = arith.constant 0 : index
    %c0_97 = arith.constant 0 : index
    %252 = vector.load %arg5[%c0_96, %c0_97] : memref<8x32xf32, #tpu.memory_space<vmem>>, vector<8x32xf32>
    %c0_98 = arith.constant 0 : index
    %c0_99 = arith.constant 0 : index
    %253 = vector.load %arg6[%c0_98, %c0_99] : memref<8x32xf32, #tpu.memory_space<vmem>>, vector<8x32xf32>
    %c0_100 = arith.constant 0 : index
    %c0_101 = arith.constant 0 : index
    %254 = vector.load %arg7[%c0_100, %c0_101] : memref<8x32xf32, #tpu.memory_space<vmem>>, vector<8x32xf32>
    %c0_102 = arith.constant 0 : index
    %c0_103 = arith.constant 0 : index
    %255 = vector.load %arg8[%c0_102, %c0_103] : memref<8x32xf32, #tpu.memory_space<vmem>>, vector<8x32xf32>
    %256 = arith.mulf %254, %255 : vector<8x32xf32>
    %cst_104 = arith.constant dense<0.000000e+00> : vector<8xf32>
    %257 = vector.multi_reduction <add>, %256, %cst_104 [1] : vector<8x32xf32> to vector<8xf32>
    %258 = vector.shape_cast %257 : vector<8xf32> to vector<8x1xf32>
    %cst_105 = arith.constant 1.000000e-30 : f32
    %259 = vector.broadcast %cst_105 : f32 to vector<8x1xf32>
    %260 = arith.maximumf %258, %259 : vector<8x1xf32>
    %261 = vector.broadcast %260 : vector<8x1xf32> to vector<8x32xf32>
    %262 = arith.divf %256, %261 : vector<8x32xf32>
    %263 = vector.extract_strided_slice %262 {offsets = [0, 0], sizes = [1, 32], strides = [1, 1]} : vector<8x32xf32> to vector<1x32xf32>
    %264 = arith.mulf %263, %11 : vector<1x32xf32>
    %265 = vector.shape_cast %264 : vector<1x32xf32> to vector<1x1x32xf32>
    %cst_106 = arith.constant dense<0.000000e+00> : vector<1xf32>
    %266 = vector.multi_reduction <add>, %265, %cst_106 [1, 2] : vector<1x1x32xf32> to vector<1xf32>
    %267 = vector.shape_cast %266 : vector<1xf32> to vector<1x1x1xf32>
    %268 = vector.extract %267[0, 0, 0] : f32 from vector<1x1x1xf32>
    %269 = vector.broadcast %268 : f32 to vector<1x1xf32>
    %270 = arith.mulf %262, %252 : vector<8x32xf32>
    %271 = vector.shape_cast %270 : vector<8x32xf32> to vector<1x8x32xf32>
    %cst_107 = arith.constant dense<0.000000e+00> : vector<1xf32>
    %272 = vector.multi_reduction <add>, %271, %cst_107 [1, 2] : vector<1x8x32xf32> to vector<1xf32>
    %273 = vector.shape_cast %272 : vector<1xf32> to vector<1x1x1xf32>
    %274 = vector.extract %273[0, 0, 0] : f32 from vector<1x1x1xf32>
    %275 = vector.broadcast %274 : f32 to vector<1x1xf32>
    %276 = arith.mulf %36, %23 : vector<32x32xf32>
    %277 = vector.extract_strided_slice %254 {offsets = [0, 0], sizes = [7, 32], strides = [1, 1]} : vector<8x32xf32> to vector<7x32xf32>
    %278 = vector.extract_strided_slice %253 {offsets = [1, 0], sizes = [7, 32], strides = [1, 1]} : vector<8x32xf32> to vector<7x32xf32>
    %279 = vector.extract_strided_slice %255 {offsets = [1, 0], sizes = [7, 32], strides = [1, 1]} : vector<8x32xf32> to vector<7x32xf32>
    %280 = arith.mulf %278, %279 : vector<7x32xf32>
    %cst_108 = arith.constant dense<0xFF800000> : vector<7xf32>
    %281 = vector.multi_reduction <maximumf>, %280, %cst_108 [1] : vector<7x32xf32> to vector<7xf32>
    %282 = vector.shape_cast %281 : vector<7xf32> to vector<7x1xf32>
    %cst_109 = arith.constant 1.000000e-30 : f32
    %283 = vector.broadcast %cst_109 : f32 to vector<7x1xf32>
    %284 = arith.maximumf %282, %283 : vector<7x1xf32>
    %285 = tpu.reciprocal %284 {approx = true} : vector<7x1xf32> -> vector<7x1xf32>
    %286 = vector.broadcast %285 : vector<7x1xf32> to vector<7x32xf32>
    %287 = arith.mulf %280, %286 : vector<7x32xf32>
    %cst_110 = arith.constant dense<0.000000e+00> : vector<7x32xf32>
    %288 = tpu.matmul %277, %36, %cst_110 {dimension_numbers = #tpu.dot_dimension_numbers<[1], [0], [0], [1], [0, 0, 1, 1], [], []>, precision = #tpu.contract_precision<fp32>} : vector<7x32xf32>, vector<32x32xf32>, vector<7x32xf32> -> vector<7x32xf32>
    %cst_111 = arith.constant dense<0.000000e+00> : vector<7x32xf32>
    %289 = tpu.matmul %277, %276, %cst_111 {dimension_numbers = #tpu.dot_dimension_numbers<[1], [0], [0], [1], [0, 0, 1, 1], [], []>, precision = #tpu.contract_precision<fp32>} : vector<7x32xf32>, vector<32x32xf32>, vector<7x32xf32> -> vector<7x32xf32>
    %290 = arith.mulf %288, %287 : vector<7x32xf32>
    %cst_112 = arith.constant dense<0.000000e+00> : vector<7xf32>
    %291 = vector.multi_reduction <add>, %290, %cst_112 [1] : vector<7x32xf32> to vector<7xf32>
    %292 = vector.shape_cast %291 : vector<7xf32> to vector<7x1xf32>
    %cst_113 = arith.constant 1.000000e-30 : f32
    %293 = vector.broadcast %cst_113 : f32 to vector<7x1xf32>
    %294 = arith.maximumf %292, %293 : vector<7x1xf32>
    %295 = arith.mulf %289, %287 : vector<7x32xf32>
    %cst_114 = arith.constant dense<0.000000e+00> : vector<7xf32>
    %296 = vector.multi_reduction <add>, %295, %cst_114 [1] : vector<7x32xf32> to vector<7xf32>
    %297 = vector.shape_cast %296 : vector<7xf32> to vector<7x1xf32>
    %298 = arith.divf %297, %294 : vector<7x1xf32>
    %299 = vector.shape_cast %298 : vector<7x1xf32> to vector<1x7x1xf32>
    %cst_115 = arith.constant dense<0.000000e+00> : vector<1xf32>
    %300 = vector.multi_reduction <add>, %299, %cst_115 [1, 2] : vector<1x7x1xf32> to vector<1xf32>
    %301 = vector.shape_cast %300 : vector<1xf32> to vector<1x1x1xf32>
    %302 = vector.extract %301[0, 0, 0] : f32 from vector<1x1x1xf32>
    %303 = vector.broadcast %302 : f32 to vector<1x1xf32>
    %304 = arith.addf %269, %303 : vector<1x1xf32>
    %305 = arith.addf %304, %275 : vector<1x1xf32>
    %c0_116 = arith.constant 0 : index
    %c0_117 = arith.constant 0 : index
    %306 = vector.load %arg4[%c0_116, %c0_117] : memref<1x1xf32, #tpu.memory_space<vmem>>, vector<1x1xf32>
    tpu.vector_store %arg4[%c0_116, %c0_117], %305 {strides = array<i32>} : memref<1x1xf32, #tpu.memory_space<vmem>>, vector<1x1xf32>,
    return
  }
}

</mosaic_0001>

<llo_original>
// kernel: neural_hmm_forward.1
$region0: #{neural_hmm_forward.1}
  #allocation0 [shape = 'u32[]', space=smem, size = 0x4, offset = 0x4, fixed_abs, tag = 'smem constant byte address 0x4 - core index']
  #allocation1 [shape = 'u32[144,128]{1,0:T(1,128)}', space=vmem, size = 0x12000, scoped, tag = 'internal scratch']
  #allocation2 [shape = 'f32[8,32]{1,0:T(8,128)}', space=vmem, size = 0x1000, scoped, tag = 'scratch operand']
  #allocation3 [shape = 'f32[8,32]{1,0:T(8,128)}', space=vmem, size = 0x1000, scoped, tag = 'scratch operand']
  #allocation4 [shape = 'f32[8,32]{1,0:T(8,128)}', space=vmem, size = 0x1000, scoped, tag = 'scratch operand']
  #allocation5 [shape = 'f32[8,32]{1,0:T(8,128)}', space=vmem, size = 0x1000, scoped, tag = 'scratch operand']
  %s0 = inlined_call_operand.vmem [shape: f32[1,32], index: 0, kind: input, shape index: {}]
  %s1 = inlined_call_operand.vmem [shape: f32[32,32], index: 1, kind: input, shape index: {}]
  %s2 = inlined_call_operand.vmem [shape: f32[32,16], index: 2, kind: input, shape index: {}]
  %s3 = inlined_call_operand.vmem [shape: bf16[8,16], index: 3, kind: input, shape index: {}]
  %s4 = inlined_call_operand.hbm [shape: f32[1,1], index: 4, kind: output, shape index: {}]
  %s5 = sld [smem:[#allocation0]]
  $region26: #{neural_hmm_forward.1} parent=0
    _
  %s7 = ssub.s32 1, %s5
  %s8 = scalar_select 0, %s7, %s5
  $region1: #{neural_hmm_forward.1} parent=0
    #allocation6 [shape = 'u8[512]{0}', space=vmem, size = 0x400, scoped, tag = 'output window, operand 0, single buffered']
    #allocation7 [shape = 's32[1]{0}', space=sflag, size = 0x4, scoped, tag = 'scoped memory for neural_hmm_forward.1']
    %9 = vsyncpa [#allocation7], 0
    // Predicated region
    $region2: #{neural_hmm_forward.1} parent=1 // pred_check
      _
    $region3: #{neural_hmm_forward.1} parent=1 // pred_check_branch
      %11 = sbr.rel (0) target = $region5
    $region4: #{neural_hmm_forward.1} parent=1 // pred_region
      _
    $region5: #{neural_hmm_forward.1} parent=1 // pred_fallthru
      _
    // Predicated region
    $region6: #{neural_hmm_forward.1} parent=1 // pred_check
      _
    $region7: #{neural_hmm_forward.1} parent=1 // pred_check_branch
      %13 = sbr.rel (0) target = $region9
    $region8: #{neural_hmm_forward.1} parent=1 // pred_region
      _
    $region9: #{neural_hmm_forward.1} parent=1 // pred_fallthru
      _
    // Predicated region
    $region10: #{neural_hmm_forward.1} parent=1 // pred_check
      _
    $region11: #{neural_hmm_forward.1} parent=1 // pred_check_branch
      %15 = sbr.rel (0) target = $region13
    $region12: #{neural_hmm_forward.1} parent=1 // pred_region
      _
    $region13: #{neural_hmm_forward.1} parent=1 // pred_fallthru
      _
    // Predicated region
    $region14: #{neural_hmm_forward.1} parent=1 // pred_check
      _
    $region15: #{neural_hmm_forward.1} parent=1 // pred_check_branch
      %17 = sbr.rel (0) target = $region17
    $region16: #{neural_hmm_forward.1} parent=1 // pred_region
      _
    $region17: #{neural_hmm_forward.1} parent=1 // pred_fallthru
      _
    %v18 = vld [vmem:[%s0] sm:$0x1]
    %vm19 = vcmask 253952
    %v20 = vsel %vm19, %v18, -inf
    %21 = vmax.xlane.f32.xlu0 %v20
    %v22 = vpop.xlane.xlu0 %21
    %v23 = vsub.f32 %v18, %v22
    %v24 = vmul.f32 %v23, 1.442695
    %v25 = vpow.pop %v24
    %v26 = vsel %vm19, %v25, 0.0
    %27 = vadd.xlane.f32.xlu0 %v26
    %v28 = vpop.xlane.xlu0 %27
    %v29 = vlog2.pop %v28
    %v30 = vmul.f32 %v29, 0.6931472
    %v31 = vadd.f32 %v22, %v30
    %v32 = vsub.f32 %v18, %v31
    %v33 = vld [vmem:[%s1] sm:$0xff]
    %v34 = vld [vmem:[%s1 + $0x8] sm:$0xff]
    %v35 = vld [vmem:[%s1 + $0x10] sm:$0xff]
    %v36 = vld [vmem:[%s1 + $0x18] sm:$0xff]
    %vm37 = vcmask 261120
    %v38 = vsel %vm37, %v33, -inf
    %39 = vmax.xlane.f32.xlu0 %v38
    %v40 = vpop.xlane.xlu0 %39
    %v41 = vsel %vm37, %v34, -inf
    %42 = vmax.xlane.f32.xlu0 %v41
    %v43 = vpop.xlane.xlu0 %42
    %v44 = vsel %vm37, %v35, -inf
    %45 = vmax.xlane.f32.xlu0 %v44
    %v46 = vpop.xlane.xlu0 %45
    %v47 = vsel %vm37, %v36, -inf
    %48 = vmax.xlane.f32.xlu0 %v47
    %v49 = vpop.xlane.xlu0 %48
    %v50 = vsub.f32 %v33, %v40
    %v51 = vsub.f32 %v34, %v43
    %v52 = vsub.f32 %v35, %v46
    %v53 = vsub.f32 %v36, %v49
    %v54 = vmul.f32 %v50, 1.442695
    %v55 = vpow.pop %v54
    %v56 = vmul.f32 %v51, 1.442695
    %v57 = vpow.pop %v56
    %v58 = vmul.f32 %v52, 1.442695
    %v59 = vpow.pop %v58
    %v60 = vmul.f32 %v53, 1.442695
    %v61 = vpow.pop %v60
    %v62 = vsel %vm37, %v55, 0.0
    %63 = vadd.xlane.f32.xlu0 %v62
    %v64 = vpop.xlane.xlu0 %63
    %v65 = vsel %vm37, %v57, 0.0
    %66 = vadd.xlane.f32.xlu0 %v65
    %v67 = vpop.xlane.xlu0 %66
    %v68 = vsel %vm37, %v59, 0.0
    %69 = vadd.xlane.f32.xlu0 %v68
    %v70 = vpop.xlane.xlu0 %69
    %v71 = vsel %vm37, %v61, 0.0
    %72 = vadd.xlane.f32.xlu0 %v71
    %v73 = vpop.xlane.xlu0 %72
    %v74 = vlog2.pop %v64
    %v75 = vmul.f32 %v74, 0.6931472
    %v76 = vlog2.pop %v67
    %v77 = vmul.f32 %v76, 0.6931472
    %v78 = vlog2.pop %v70
    %v79 = vmul.f32 %v78, 0.6931472
    %v80 = vlog2.pop %v73
    %v81 = vmul.f32 %v80, 0.6931472
    %v82 = vadd.f32 %v40, %v75
    %v83 = vadd.f32 %v43, %v77
    %v84 = vadd.f32 %v46, %v79
    %v85 = vadd.f32 %v49, %v81
    %v86 = vsub.f32 %v33, %v82
    %v87 = vsub.f32 %v34, %v83
    %v88 = vsub.f32 %v35, %v84
    %v89 = vsub.f32 %v36, %v85
    %v90 = vld [vmem:[%s2] sm:$0xff]
    %v91 = vld [vmem:[%s2 + $0x8] sm:$0xff]
    %v92 = vld [vmem:[%s2 + $0x10] sm:$0xff]
    %v93 = vld [vmem:[%s2 + $0x18] sm:$0xff]
    %vm94 = vcmask 130048
    %v95 = vsel %vm94, %v90, -inf
    %96 = vmax.xlane.f32.xlu0 %v95
    %v97 = vpop.xlane.xlu0 %96
    %v98 = vsel %vm94, %v91, -inf
    %99 = vmax.xlane.f32.xlu0 %v98
    %v100 = vpop.xlane.xlu0 %99
    %v101 = vsel %vm94, %v92, -inf
    %102 = vmax.xlane.f32.xlu0 %v101
    %v103 = vpop.xlane.xlu0 %102
    %v104 = vsel %vm94, %v93, -inf
    %105 = vmax.xlane.f32.xlu0 %v104
    %v106 = vpop.xlane.xlu0 %105
    %v107 = vsub.f32 %v90, %v97
    %v108 = vsub.f32 %v91, %v100
    %v109 = vsub.f32 %v92, %v103
    %v110 = vsub.f32 %v93, %v106
    %v111 = vmul.f32 %v107, 1.442695
    %v112 = vpow.pop %v111
    %v113 = vmul.f32 %v108, 1.442695
    %v114 = vpow.pop %v113
    %v115 = vmul.f32 %v109, 1.442695
    %v116 = vpow.pop %v115
    %v117 = vmul.f32 %v110, 1.442695
    %v118 = vpow.pop %v117
    %v119 = vsel %vm94, %v112, 0.0
    %120 = vadd.xlane.f32.xlu0 %v119
    %v121 = vpop.xlane.xlu0 %120
    %v122 = vsel %vm94, %v114, 0.0
    %123 = vadd.xlane.f32.xlu0 %v122
    %v124 = vpop.xlane.xlu0 %123
    %v125 = vsel %vm94, %v116, 0.0
    %126 = vadd.xlane.f32.xlu0 %v125
    %v127 = vpop.xlane.xlu0 %126
    %v128 = vsel %vm94, %v118, 0.0
    %129 = vadd.xlane.f32.xlu0 %v128
    %v130 = vpop.xlane.xlu0 %129
    %v131 = vlog2.pop %v121
    %v132 = vmul.f32 %v131, 0.6931472
    %v133 = vlog2.pop %v124
    %v134 = vmul.f32 %v133, 0.6931472
    %v135 = vlog2.pop %v127
    %v136 = vmul.f32 %v135, 0.6931472
    %v137 = vlog2.pop %v130
    %v138 = vmul.f32 %v137, 0.6931472
    %v139 = vadd.f32 %v97, %v132
    %v140 = vadd.f32 %v100, %v134
    %v141 = vadd.f32 %v103, %v136
    %v142 = vadd.f32 %v106, %v138
    %v143 = vsub.f32 %v90, %v139
    %v144 = vsub.f32 %v91, %v140
    %v145 = vsub.f32 %v92, %v141
    %v146 = vsub.f32 %v93, %v142
    %v147 = vmul.f32 %v86, 1.442695
    %v148 = vpow.pop %v147
    %v149 = vmul.f32 %v87, 1.442695
    %v150 = vpow.pop %v149
    %v151 = vmul.f32 %v88, 1.442695
    %v152 = vpow.pop %v151
    %v153 = vmul.f32 %v89, 1.442695
    %v154 = vpow.pop %v153
    %v155 = vld [vmem:[%s3] sm:$0xf]
    %v156 = vunpack.c.l.bf16 %v155
    %v158 = vsel %vm94, %v156, 0
    %v161 = vsel %vm94, %v143, 0
    %v164 = vsel %vm94, %v144, 0
    %v167 = vsel %vm94, %v145, 0
    %v170 = vsel %vm94, %v146, 0
    %172 = vmatprep.subr.mxu0 0.0
    %v173 = vand.u32 %v161, 4294901760
    %174 = vmatpush1.xpose.msra.mxu0 %v173
    %175 = vmatprep.subr.mxu0 0.0
    %v176 = vand.u32 %v164, 4294901760
    %177 = vmatpush1.xpose.msra.mxu0 %v176
    %178 = vmatprep.subr.mxu0 0.0
    %v179 = vand.u32 %v167, 4294901760
    %180 = vmatpush1.xpose.msra.mxu0 %v179
    %181 = vmatprep.subr.mxu0 0.0
    %v182 = vand.u32 %v170, 4294901760
    %183 = vmatpush1.xpose.msra.mxu0 %v182
    %184 = vmatprep.subr.mxu0 0.0
    %185 = vmatpush1.xpose.msra.mxu0 0.0
    %186 = vmatprep.subr.mxu0 0.0
    %187 = vmatpush1.xpose.msra.mxu0 0.0
    %188 = vmatprep.subr.mxu0 0.0
    %189 = vmatpush1.xpose.msra.mxu0 0.0
    %190 = vmatprep.subr.mxu0 0.0
    %191 = vmatpush1.xpose.msra.mxu0 0.0
    %192 = vmatprep.subr.mxu0 0.0
    %193 = vmatpush1.xpose.msra.mxu0 0.0
    %194 = vmatprep.subr.mxu0 0.0
    %195 = vmatpush1.xpose.msra.mxu0 0.0
    %196 = vmatprep.subr.mxu0 0.0
    %197 = vmatpush1.xpose.msra.mxu0 0.0
    %198 = vmatprep.subr.mxu0 0.0
    %199 = vmatpush1.xpose.msra.mxu0 0.0
    %200 = vmatprep.subr.mxu0 0.0
    %201 = vmatpush1.xpose.msra.mxu0 0.0
    %202 = vmatprep.subr.mxu0 0.0
    %203 = vmatpush1.xpose.msra.mxu0 0.0
    %204 = vmatprep.subr.mxu0 0.0
    %205 = vmatpush1.xpose.msra.mxu0 0.0
    %206 = vmatprep.subr.mxu0 0.0
    %207 = vmatpush1.xpose.msra.mxu0 0.0
    %208 = vmatprep.subr.mxu0 0.0
    %209 = vmatpush1.xpose.msra.mxu0 0.0
    %210 = vmatprep.subr.mxu0 0.0
    %211 = vmatpush1.xpose.msra.mxu0 0.0
    %212 = vmatprep.subr.mxu0 0.0
    %213 = vmatpush1.xpose.msra.mxu0 0.0
    %214 = vmatprep.subr.mxu0 0.0
    %215 = vmatpush1.xpose.msra.mxu0 0.0
    %216 = vmatprep.subr.mxu0 0.0
    %217 = vmatpush1.xpose.msra.mxu0 0.0
    %218 = vmatprep.subr.mxu0 0.0
    %219 = vmatpush1.xpose.msra.mxu0 0.0
    %220 = vmatprep.subr.mxu0 0.0
    %221 = vmatpush1.xpose.msra.mxu0 0.0
    %222 = vmatprep.subr.mxu0 0.0
    %223 = vmatpush1.xpose.msra.mxu0 0.0
    %224 = vmatprep.subr.mxu0 0.0
    %225 = vmatpush1.xpose.msra.mxu0 0.0
    %226 = vmatprep.subr.mxu0 0.0
    %227 = vmatpush1.xpose.msra.mxu0 0.0
    %228 = vmatprep.subr.mxu0 0.0
    %229 = vmatpush1.xpose.msra.mxu0 0.0
    %230 = vmatprep.subr.mxu0 0.0
    %231 = vmatpush1.xpose.msra.mxu0 0.0
    %232 = vmatprep.subr.mxu0 0.0
    %233 = vmatpush1.xpose.msra.mxu0 0.0
    %234 = vmatprep.subr.mxu0 0.0
    %235 = vmatpush1.xpose.msra.mxu0 0.0
    %236 = vmatprep.subr.mxu0 0.0
    %237 = vmatpush1.xpose.msra.mxu0 0.0
    %238 = vmatprep.subr.mxu0 0.0
    %239 = vmatpush1.xpose.msra.mxu0 0.0
    %240 = vmatprep.mubr.f32.mxu0 0.0
    %v241 = vand.u32 %v158, 4294901760
    %v242 = vsub.f32 %v158, %v241
    %v243 = vand.u32 %v242, 4294901760
    %v244 = vsub.f32 %v242, %v243
    %v245 = vand.u32 %v244, 4294901760
    %246 = vmatmul.mubr.f32.gmra.mrb[0].mxu0 %v245
    %v247 = vpop.f32.mrb[0].mxu0
    %v248 = vadd.f32 0.0, %v247
    %v249 = vpop.f32.mrb[0].mxu0
    %250 = vdwg.mxu0
    %251 = vmatprep.subr.mxu0 0.0
    %v252 = vand.u32 %v161, 4294901760
    %v253 = vsub.f32 %v161, %v252
    %v254 = vand.u32 %v253, 4294901760
    %v255 = vsub.f32 %v253, %v254
    %v256 = vand.u32 %v255, 4294901760
    %257 = vmatpush1.xpose.msra.mxu0 %v256
    %258 = vmatprep.subr.mxu0 0.0
    %v259 = vand.u32 %v164, 4294901760
    %v260 = vsub.f32 %v164, %v259
    %v261 = vand.u32 %v260, 4294901760
    %v262 = vsub.f32 %v260, %v261
    %v263 = vand.u32 %v262, 4294901760
    %264 = vmatpush1.xpose.msra.mxu0 %v263
    %265 = vmatprep.subr.mxu0 0.0
    %v266 = vand.u32 %v167, 4294901760
    %v267 = vsub.f32 %v167, %v266
    %v268 = vand.u32 %v267, 4294901760
    %v269 = vsub.f32 %v267, %v268
    %v270 = vand.u32 %v269, 4294901760
    %271 = vmatpush1.xpose.msra.mxu0 %v270
    %272 = vmatprep.subr.mxu0 0.0
    %v273 = vand.u32 %v170, 4294901760
    %v274 = vsub.f32 %v170, %v273
    %v275 = vand.u32 %v274, 4294901760
    %v276 = vsub.f32 %v274, %v275
    %v277 = vand.u32 %v276, 4294901760
    %278 = vmatpush1.xpose.msra.mxu0 %v277
    %279 = vmatprep.subr.mxu0 0.0
    %280 = vmatpush1.xpose.msra.mxu0 0.0
    %281 = vmatprep.subr.mxu0 0.0
    %282 = vmatpush1.xpose.msra.mxu0 0.0
    %283 = vmatprep.subr.mxu0 0.0
    %284 = vmatpush1.xpose.msra.mxu0 0.0
    %285 = vmatprep.subr.mxu0 0.0
    %286 = vmatpush1.xpose.msra.mxu0 0.0
    %287 = vmatprep.subr.mxu0 0.0
    %288 = vmatpush1.xpose.msra.mxu0 0.0
    %289 = vmatprep.subr.mxu0 0.0
    %290 = vmatpush1.xpose.msra.mxu0 0.0
    %291 = vmatprep.subr.mxu0 0.0
    %292 = vmatpush1.xpose.msra.mxu0 0.0
    %293 = vmatprep.subr.mxu0 0.0
    %294 = vmatpush1.xpose.msra.mxu0 0.0
    %295 = vmatprep.subr.mxu0 0.0
    %296 = vmatpush1.xpose.msra.mxu0 0.0
    %297 = vmatprep.subr.mxu0 0.0
    %298 = vmatpush1.xpose.msra.mxu0 0.0
    %299 = vmatprep.subr.mxu0 0.0
    %300 = vmatpush1.xpose.msra.mxu0 0.0
    %301 = vmatprep.subr.mxu0 0.0
    %302 = vmatpush1.xpose.msra.mxu0 0.0
    %303 = vmatprep.subr.mxu0 0.0
    %304 = vmatpush1.xpose.msra.mxu0 0.0
    %305 = vmatprep.subr.mxu0 0.0
    %306 = vmatpush1.xpose.msra.mxu0 0.0
    %307 = vmatprep.subr.mxu0 0.0
    %308 = vmatpush1.xpose.msra.mxu0 0.0
    %309 = vmatprep.subr.mxu0 0.0
    %310 = vmatpush1.xpose.msra.mxu0 0.0
    %311 = vmatprep.subr.mxu0 0.0
    %312 = vmatpush1.xpose.msra.mxu0 0.0
    %313 = vmatprep.subr.mxu0 0.0
    %314 = vmatpush1.xpose.msra.mxu0 0.0
    %315 = vmatprep.subr.mxu0 0.0
    %316 = vmatpush1.xpose.msra.mxu0 0.0
    %317 = vmatprep.subr.mxu0 0.0
    %318 = vmatpush1.xpose.msra.mxu0 0.0
    %319 = vmatprep.subr.mxu0 0.0
    %320 = vmatpush1.xpose.msra.mxu0 0.0
    %321 = vmatprep.subr.mxu0 0.0
    %322 = vmatpush1.xpose.msra.mxu0 0.0
    %323 = vmatprep.subr.mxu0 0.0
    %324 = vmatpush1.xpose.msra.mxu0 0.0
    %325 = vmatprep.subr.mxu0 0.0
    %326 = vmatpush1.xpose.msra.mxu0 0.0
    %327 = vmatprep.subr.mxu0 0.0
    %328 = vmatpush1.xpose.msra.mxu0 0.0
    %329 = vmatprep.subr.mxu0 0.0
    %330 = vmatpush1.xpose.msra.mxu0 0.0
    %331 = vmatprep.subr.mxu0 0.0
    %332 = vmatpush1.xpose.msra.mxu0 0.0
    %333 = vmatprep.subr.mxu0 0.0
    %334 = vmatpush1.xpose.msra.mxu0 0.0
    %335 = vmatprep.mubr.f32.mxu0 0.0
    %v336 = vand.u32 %v158, 4294901760
    %337 = vmatmul.mubr.f32.gmra.mrb[0].mxu0 %v336
    %v338 = vpop.f32.mrb[0].mxu0
    %v339 = vadd.f32 %v248, %v338
    %v340 = vpop.f32.mrb[0].mxu0
    %341 = vdwg.mxu0
    %342 = vmatprep.subr.mxu0 0.0
    %v343 = vand.u32 %v161, 4294901760
    %v344 = vsub.f32 %v161, %v343
    %345 = vmatpush1.xpose.msra.mxu0 %v344
    %346 = vmatprep.subr.mxu0 0.0
    %v347 = vand.u32 %v164, 4294901760
    %v348 = vsub.f32 %v164, %v347
    %349 = vmatpush1.xpose.msra.mxu0 %v348
    %350 = vmatprep.subr.mxu0 0.0
    %v351 = vand.u32 %v167, 4294901760
    %v352 = vsub.f32 %v167, %v351
    %353 = vmatpush1.xpose.msra.mxu0 %v352
    %354 = vmatprep.subr.mxu0 0.0
    %v355 = vand.u32 %v170, 4294901760
    %v356 = vsub.f32 %v170, %v355
    %357 = vmatpush1.xpose.msra.mxu0 %v356
    %358 = vmatprep.subr.mxu0 0.0
    %359 = vmatpush1.xpose.msra.mxu0 0.0
    %360 = vmatprep.subr.mxu0 0.0
    %361 = vmatpush1.xpose.msra.mxu0 0.0
    %362 = vmatprep.subr.mxu0 0.0
    %363 = vmatpush1.xpose.msra.mxu0 0.0
    %364 = vmatprep.subr.mxu0 0.0
    %365 = vmatpush1.xpose.msra.mxu0 0.0
    %366 = vmatprep.subr.mxu0 0.0
    %367 = vmatpush1.xpose.msra.mxu0 0.0
    %368 = vmatprep.subr.mxu0 0.0
    %369 = vmatpush1.xpose.msra.mxu0 0.0
    %370 = vmatprep.subr.mxu0 0.0
    %371 = vmatpush1.xpose.msra.mxu0 0.0
    %372 = vmatprep.subr.mxu0 0.0
    %373 = vmatpush1.xpose.msra.mxu0 0.0
    %374 = vmatprep.subr.mxu0 0.0
    %375 = vmatpush1.xpose.msra.mxu0 0.0
    %376 = vmatprep.subr.mxu0 0.0
    %377 = vmatpush1.xpose.msra.mxu0 0.0
    %378 = vmatprep.subr.mxu0 0.0
    %379 = vmatpush1.xpose.msra.mxu0 0.0
    %380 = vmatprep.subr.mxu0 0.0
    %381 = vmatpush1.xpose.msra.mxu0 0.0
    %382 = vmatprep.subr.mxu0 0.0
    %383 = vmatpush1.xpose.msra.mxu0 0.0
    %384 = vmatprep.subr.mxu0 0.0
    %385 = vmatpush1.xpose.msra.mxu0 0.0
    %386 = vmatprep.subr.mxu0 0.0
    %387 = vmatpush1.xpose.msra.mxu0 0.0
    %388 = vmatprep.subr.mxu0 0.0
    %389 = vmatpush1.xpose.msra.mxu0 0.0
    %390 = vmatprep.subr.mxu0 0.0
    %391 = vmatpush1.xpose.msra.mxu0 0.0
    %392 = vmatprep.subr.mxu0 0.0
    %393 = vmatpush1.xpose.msra.mxu0 0.0
    %394 = vmatprep.subr.mxu0 0.0
    %395 = vmatpush1.xpose.msra.mxu0 0.0
    %396 = vmatprep.subr.mxu0 0.0
    %397 = vmatpush1.xpose.msra.mxu0 0.0
    %398 = vmatprep.subr.mxu0 0.0
    %399 = vmatpush1.xpose.msra.mxu0 0.0
    %400 = vmatprep.subr.mxu0 0.0
    %401 = vmatpush1.xpose.msra.mxu0 0.0
    %402 = vmatprep.subr.mxu0 0.0
    %403 = vmatpush1.xpose.msra.mxu0 0.0
    %404 = vmatprep.subr.mxu0 0.0
    %405 = vmatpush1.xpose.msra.mxu0 0.0
    %406 = vmatprep.subr.mxu0 0.0
    %407 = vmatpush1.xpose.msra.mxu0 0.0
    %408 = vmatprep.subr.mxu0 0.0
    %409 = vmatpush1.xpose.msra.mxu0 0.0
    %410 = vmatprep.subr.mxu0 0.0
    %411 = vmatpush1.xpose.msra.mxu0 0.0
    %412 = vmatprep.subr.mxu0 0.0
    %413 = vmatpush1.xpose.msra.mxu0 0.0
    %414 = vmatprep.mubr.f32.mxu0 0.0
    %v415 = vand.u32 %v158, 4294901760
    %v416 = vsub.f32 %v158, %v415
    %417 = vmatmul.mubr.f32.gmra.mrb[0].mxu0 %v416
    %v418 = vpop.f32.mrb[0].mxu0
    %v419 = vadd.f32 %v339, %v418
    %v420 = vpop.f32.mrb[0].mxu0
    %421 = vdwg.mxu0
    %422 = vmatprep.subr.mxu0 0.0
    %v423 = vand.u32 %v161, 4294901760
    %424 = vmatpush1.xpose.msra.mxu0 %v423
    %425 = vmatprep.subr.mxu0 0.0
    %v426 = vand.u32 %v164, 4294901760
    %427 = vmatpush1.xpose.msra.mxu0 %v426
    %428 = vmatprep.subr.mxu0 0.0
    %v429 = vand.u32 %v167, 4294901760
    %430 = vmatpush1.xpose.msra.mxu0 %v429
    %431 = vmatprep.subr.mxu0 0.0
    %v432 = vand.u32 %v170, 4294901760
    %433 = vmatpush1.xpose.msra.mxu0 %v432
    %434 = vmatprep.subr.mxu0 0.0
    %435 = vmatpush1.xpose.msra.mxu0 0.0
    %436 = vmatprep.subr.mxu0 0.0
    %437 = vmatpush1.xpose.msra.mxu0 0.0
    %438 = vmatprep.subr.mxu0 0.0
    %439 = vmatpush1.xpose.msra.mxu0 0.0
    %440 = vmatprep.subr.mxu0 0.0
    %441 = vmatpush1.xpose.msra.mxu0 0.0
    %442 = vmatprep.subr.mxu0 0.0
    %443 = vmatpush1.xpose.msra.mxu0 0.0
    %444 = vmatprep.subr.mxu0 0.0
    %445 = vmatpush1.xpose.msra.mxu0 0.0
    %446 = vmatprep.subr.mxu0 0.0
    %447 = vmatpush1.xpose.msra.mxu0 0.0
    %448 = vmatprep.subr.mxu0 0.0
    %449 = vmatpush1.xpose.msra.mxu0 0.0
    %450 = vmatprep.subr.mxu0 0.0
    %451 = vmatpush1.xpose.msra.mxu0 0.0
    %452 = vmatprep.subr.mxu0 0.0
    %453 = vmatpush1.xpose.msra.mxu0 0.0
    %454 = vmatprep.subr.mxu0 0.0
    %455 = vmatpush1.xpose.msra.mxu0 0.0
    %456 = vmatprep.subr.mxu0 0.0
    %457 = vmatpush1.xpose.msra.mxu0 0.0
    %458 = vmatprep.subr.mxu0 0.0
    %459 = vmatpush1.xpose.msra.mxu0 0.0
    %460 = vmatprep.subr.mxu0 0.0
    %461 = vmatpush1.xpose.msra.mxu0 0.0
    %462 = vmatprep.subr.mxu0 0.0
    %463 = vmatpush1.xpose.msra.mxu0 0.0
    %464 = vmatprep.subr.mxu0 0.0
    %465 = vmatpush1.xpose.msra.mxu0 0.0
    %466 = vmatprep.subr.mxu0 0.0
    %467 = vmatpush1.xpose.msra.mxu0 0.0
    %468 = vmatprep.subr.mxu0 0.0
    %469 = vmatpush1.xpose.msra.mxu0 0.0
    %470 = vmatprep.subr.mxu0 0.0
    %471 = vmatpush1.xpose.msra.mxu0 0.0
    %472 = vmatprep.subr.mxu0 0.0
    %473 = vmatpush1.xpose.msra.mxu0 0.0
    %474 = vmatprep.subr.mxu0 0.0
    %475 = vmatpush1.xpose.msra.mxu0 0.0
    %476 = vmatprep.subr.mxu0 0.0
    %477 = vmatpush1.xpose.msra.mxu0 0.0
    %478 = vmatprep.subr.mxu0 0.0
    %479 = vmatpush1.xpose.msra.mxu0 0.0
    %480 = vmatprep.subr.mxu0 0.0
    %481 = vmatpush1.xpose.msra.mxu0 0.0
    %482 = vmatprep.subr.mxu0 0.0
    %483 = vmatpush1.xpose.msra.mxu0 0.0
    %484 = vmatprep.subr.mxu0 0.0
    %485 = vmatpush1.xpose.msra.mxu0 0.0
    %486 = vmatprep.subr.mxu0 0.0
    %487 = vmatpush1.xpose.msra.mxu0 0.0
    %488 = vmatprep.subr.mxu0 0.0
    %489 = vmatpush1.xpose.msra.mxu0 0.0
    %490 = vmatprep.mubr.f32.mxu0 0.0
    %v491 = vand.u32 %v158, 4294901760
    %v492 = vsub.f32 %v158, %v491
    %v493 = vand.u32 %v492, 4294901760
    %494 = vmatmul.mubr.f32.gmra.mrb[0].mxu0 %v493
    %v495 = vpop.f32.mrb[0].mxu0
    %v496 = vadd.f32 %v419, %v495
    %v497 = vpop.f32.mrb[0].mxu0
    %498 = vdwg.mxu0
    %499 = vmatprep.subr.mxu0 0.0
    %v500 = vand.u32 %v161, 4294901760
    %v501 = vsub.f32 %v161, %v500
    %v502 = vand.u32 %v501, 4294901760
    %503 = vmatpush1.xpose.msra.mxu0 %v502
    %504 = vmatprep.subr.mxu0 0.0
    %v505 = vand.u32 %v164, 4294901760
    %v506 = vsub.f32 %v164, %v505
    %v507 = vand.u32 %v506, 4294901760
    %508 = vmatpush1.xpose.msra.mxu0 %v507
    %509 = vmatprep.subr.mxu0 0.0
    %v510 = vand.u32 %v167, 4294901760
    %v511 = vsub.f32 %v167, %v510
    %v512 = vand.u32 %v511, 4294901760
    %513 = vmatpush1.xpose.msra.mxu0 %v512
    %514 = vmatprep.subr.mxu0 0.0
    %v515 = vand.u32 %v170, 4294901760
    %v516 = vsub.f32 %v170, %v515
    %v517 = vand.u32 %v516, 4294901760
    %518 = vmatpush1.xpose.msra.mxu0 %v517
    %519 = vmatprep.subr.mxu0 0.0
    %520 = vmatpush1.xpose.msra.mxu0 0.0
    %521 = vmatprep.subr.mxu0 0.0
    %522 = vmatpush1.xpose.msra.mxu0 0.0
    %523 = vmatprep.subr.mxu0 0.0
    %524 = vmatpush1.xpose.msra.mxu0 0.0
    %525 = vmatprep.subr.mxu0 0.0
    %526 = vmatpush1.xpose.msra.mxu0 0.0
    %527 = vmatprep.subr.mxu0 0.0
    %528 = vmatpush1.xpose.msra.mxu0 0.0
    %529 = vmatprep.subr.mxu0 0.0
    %530 = vmatpush1.xpose.msra.mxu0 0.0
    %531 = vmatprep.subr.mxu0 0.0
    %532 = vmatpush1.xpose.msra.mxu0 0.0
    %533 = vmatprep.subr.mxu0 0.0
    %534 = vmatpush1.xpose.msra.mxu0 0.0
    %535 = vmatprep.subr.mxu0 0.0
    %536 = vmatpush1.xpose.msra.mxu0 0.0
    %537 = vmatprep.subr.mxu0 0.0
    %538 = vmatpush1.xpose.msra.mxu0 0.0
    %539 = vmatprep.subr.mxu0 0.0
    %540 = vmatpush1.xpose.msra.mxu0 0.0
    %541 = vmatprep.subr.mxu0 0.0
    %542 = vmatpush1.xpose.msra.mxu0 0.0
    %543 = vmatprep.subr.mxu0 0.0
    %544 = vmatpush1.xpose.msra.mxu0 0.0
    %545 = vmatprep.subr.mxu0 0.0
    %546 = vmatpush1.xpose.msra.mxu0 0.0
    %547 = vmatprep.subr.mxu0 0.0
    %548 = vmatpush1.xpose.msra.mxu0 0.0
    %549 = vmatprep.subr.mxu0 0.0
    %550 = vmatpush1.xpose.msra.mxu0 0.0
    %551 = vmatprep.subr.mxu0 0.0
    %552 = vmatpush1.xpose.msra.mxu0 0.0
    %553 = vmatprep.subr.mxu0 0.0
    %554 = vmatpush1.xpose.msra.mxu0 0.0
    %555 = vmatprep.subr.mxu0 0.0
    %556 = vmatpush1.xpose.msra.mxu0 0.0
    %557 = vmatprep.subr.mxu0 0.0
    %558 = vmatpush1.xpose.msra.mxu0 0.0
    %559 = vmatprep.subr.mxu0 0.0
    %560 = vmatpush1.xpose.msra.mxu0 0.0
    %561 = vmatprep.subr.mxu0 0.0
    %562 = vmatpush1.xpose.msra.mxu0 0.0
    %563 = vmatprep.subr.mxu0 0.0
    %564 = vmatpush1.xpose.msra.mxu0 0.0
    %565 = vmatprep.subr.mxu0 0.0
    %566 = vmatpush1.xpose.msra.mxu0 0.0
    %567 = vmatprep.subr.mxu0 0.0
    %568 = vmatpush1.xpose.msra.mxu0 0.0
    %569 = vmatprep.subr.mxu0 0.0
    %570 = vmatpush1.xpose.msra.mxu0 0.0
    %571 = vmatprep.subr.mxu0 0.0
    %572 = vmatpush1.xpose.msra.mxu0 0.0
    %573 = vmatprep.subr.mxu0 0.0
    %574 = vmatpush1.xpose.msra.mxu0 0.0
    %575 = vmatprep.mubr.f32.mxu0 0.0
    %v576 = vand.u32 %v158, 4294901760
    %577 = vmatmul.mubr.f32.gmra.mrb[0].mxu0 %v576
    %v578 = vpop.f32.mrb[0].mxu0
    %v579 = vadd.f32 %v496, %v578
    %v580 = vpop.f32.mrb[0].mxu0
    %581 = vdwg.mxu0
    %582 = vmatprep.subr.mxu0 0.0
    %v583 = vand.u32 %v161, 4294901760
    %584 = vmatpush1.xpose.msra.mxu0 %v583
    %585 = vmatprep.subr.mxu0 0.0
    %v586 = vand.u32 %v164, 4294901760
    %587 = vmatpush1.xpose.msra.mxu0 %v586
    %588 = vmatprep.subr.mxu0 0.0
    %v589 = vand.u32 %v167, 4294901760
    %590 = vmatpush1.xpose.msra.mxu0 %v589
    %591 = vmatprep.subr.mxu0 0.0
    %v592 = vand.u32 %v170, 4294901760
    %593 = vmatpush1.xpose.msra.mxu0 %v592
    %594 = vmatprep.subr.mxu0 0.0
    %595 = vmatpush1.xpose.msra.mxu0 0.0
    %596 = vmatprep.subr.mxu0 0.0
    %597 = vmatpush1.xpose.msra.mxu0 0.0
    %598 = vmatprep.subr.mxu0 0.0
    %599 = vmatpush1.xpose.msra.mxu0 0.0
    %600 = vmatprep.subr.mxu0 0.0
    %601 = vmatpush1.xpose.msra.mxu0 0.0
    %602 = vmatprep.subr.mxu0 0.0
    %603 = vmatpush1.xpose.msra.mxu0 0.0
    %604 = vmatprep.subr.mxu0 0.0
    %605 = vmatpush1.xpose.msra.mxu0 0.0
    %606 = vmatprep.subr.mxu0 0.0
    %607 = vmatpush1.xpose.msra.mxu0 0.0
    %608 = vmatprep.subr.mxu0 0.0
    %609 = vmatpush1.xpose.msra.mxu0 0.0
    %610 = vmatprep.subr.mxu0 0.0
    %611 = vmatpush1.xpose.msra.mxu0 0.0
    %612 = vmatprep.subr.mxu0 0.0
    %613 = vmatpush1.xpose.msra.mxu0 0.0
    %614 = vmatprep.subr.mxu0 0.0
    %615 = vmatpush1.xpose.msra.mxu0 0.0
    %616 = vmatprep.subr.mxu0 0.0
    %617 = vmatpush1.xpose.msra.mxu0 0.0
    %618 = vmatprep.subr.mxu0 0.0
    %619 = vmatpush1.xpose.msra.mxu0 0.0
    %620 = vmatprep.subr.mxu0 0.0
    %621 = vmatpush1.xpose.msra.mxu0 0.0
    %622 = vmatprep.subr.mxu0 0.0
    %623 = vmatpush1.xpose.msra.mxu0 0.0
    %624 = vmatprep.subr.mxu0 0.0
    %625 = vmatpush1.xpose.msra.mxu0 0.0
    %626 = vmatprep.subr.mxu0 0.0
    %627 = vmatpush1.xpose.msra.mxu0 0.0
    %628 = vmatprep.subr.mxu0 0.0
    %629 = vmatpush1.xpose.msra.mxu0 0.0
    %630 = vmatprep.subr.mxu0 0.0
    %631 = vmatpush1.xpose.msra.mxu0 0.0
    %632 = vmatprep.subr.mxu0 0.0
    %633 = vmatpush1.xpose.msra.mxu0 0.0
    %634 = vmatprep.subr.mxu0 0.0
    %635 = vmatpush1.xpose.msra.mxu0 0.0
    %636 = vmatprep.subr.mxu0 0.0
    %637 = vmatpush1.xpose.msra.mxu0 0.0
    %638 = vmatprep.subr.mxu0 0.0
    %639 = vmatpush1.xpose.msra.mxu0 0.0
    %640 = vmatprep.subr.mxu0 0.0
    %641 = vmatpush1.xpose.msra.mxu0 0.0
    %642 = vmatprep.subr.mxu0 0.0
    %643 = vmatpush1.xpose.msra.mxu0 0.0
    %644 = vmatprep.subr.mxu0 0.0
    %645 = vmatpush1.xpose.msra.mxu0 0.0
    %646 = vmatprep.subr.mxu0 0.0
    %647 = vmatpush1.xpose.msra.mxu0 0.0
    %648 = vmatprep.subr.mxu0 0.0
    %649 = vmatpush1.xpose.msra.mxu0 0.0
    %650 = vmatprep.mubr.f32.mxu0 0.0
    %v651 = vand.u32 %v158, 4294901760
    %652 = vmatmul.mubr.f32.gmra.mrb[0].mxu0 %v651
    %v653 = vpop.f32.mrb[0].mxu0
    %v654 = vadd.f32 %v579, %v653
    %v655 = vpop.f32.mrb[0].mxu0
    %656 = vdwg.mxu0
    %657 = vst.msk [vmem:[#allocation2] sm:$0xff] %vm37, %v654
    %v658 = vmul.f32 %v654, 1.442695
    %v659 = vpow.pop %v658
    %660 = vst.msk [vmem:[#allocation3] sm:$0xff] %vm37, %v659
    %v661 = vmul.f32 %v32, 1.442695
    %v662 = vpow.pop %v661
    %v663 = vld [vmem:[#allocation3] sm:$0x1]
    %v664 = vmul.f32 %v662, %v663
    %v665 = vsel %vm19, %v664, -inf
    %666 = vmax.xlane.f32.xlu0 %v665
    %v667 = vpop.xlane.xlu0 %666
    %v668 = vmax.f32 %v667, 1e-30
    %v669 = vrcp.pop %v668
    %v670 = vmul.f32 %v664, %v669
    %671 = vst.msk [vmem:[#allocation4] sm:$0x1] %vm19, %v670
    %672 = vst.msk [vmem:[#allocation5 + $0x7] sm:$0x1] %vm19, 1.0
    %v674 = vsel %vm37, %v670, 0
    %676 = vmatprep.subr.mxu0 0.0
    %v677 = vand.u32 %v148, 4294901760
    %678 = vmatpush1.msra.mxu0 %v677
    %679 = vmatprep.subr.mxu0 0.0
    %v680 = vand.u32 %v150, 4294901760
    %681 = vmatpush1.msra.mxu0 %v680
    %682 = vmatprep.subr.mxu0 0.0
    %v683 = vand.u32 %v152, 4294901760
    %684 = vmatpush1.msra.mxu0 %v683
    %685 = vmatprep.subr.mxu0 0.0
    %v686 = vand.u32 %v154, 4294901760
    %687 = vmatpush1.msra.mxu0 %v686
    %688 = vmatprep.subr.mxu0 0.0
    %689 = vmatpush1.msra.mxu0 0.0
    %690 = vmatprep.subr.mxu0 0.0
    %691 = vmatpush1.msra.mxu0 0.0
    %692 = vmatprep.subr.mxu0 0.0
    %693 = vmatpush1.msra.mxu0 0.0
    %694 = vmatprep.subr.mxu0 0.0
    %695 = vmatpush1.msra.mxu0 0.0
    %696 = vmatprep.subr.mxu0 0.0
    %697 = vmatpush1.msra.mxu0 0.0
    %698 = vmatprep.subr.mxu0 0.0
    %699 = vmatpush1.msra.mxu0 0.0
    %700 = vmatprep.subr.mxu0 0.0
    %701 = vmatpush1.msra.mxu0 0.0
    %702 = vmatprep.subr.mxu0 0.0
    %703 = vmatpush1.msra.mxu0 0.0
    %704 = vmatprep.subr.mxu0 0.0
    %705 = vmatpush1.msra.mxu0 0.0
    %706 = vmatprep.subr.mxu0 0.0
    %707 = vmatpush1.msra.mxu0 0.0
    %708 = vmatprep.subr.mxu0 0.0
    %709 = vmatpush1.msra.mxu0 0.0
    %710 = vmatprep.subr.mxu0 0.0
    %711 = vmatpush1.msra.mxu0 0.0
    %712 = vmatprep.subr.mxu0 0.0
    %713 = vmatpush1.msra.mxu0 0.0
    %714 = vmatprep.subr.mxu0 0.0
    %715 = vmatpush1.msra.mxu0 0.0
    %716 = vmatprep.subr.mxu0 0.0
    %717 = vmatpush1.msra.mxu0 0.0
    %718 = vmatprep.subr.mxu0 0.0
    %719 = vmatpush1.msra.mxu0 0.0
    %720 = vmatprep.subr.mxu0 0.0
    %721 = vmatpush1.msra.mxu0 0.0
    %722 = vmatprep.subr.mxu0 0.0
    %723 = vmatpush1.msra.mxu0 0.0
    %724 = vmatprep.subr.mxu0 0.0
    %725 = vmatpush1.msra.mxu0 0.0
    %726 = vmatprep.subr.mxu0 0.0
    %727 = vmatpush1.msra.mxu0 0.0
    %728 = vmatprep.subr.mxu0 0.0
    %729 = vmatpush1.msra.mxu0 0.0
    %730 = vmatprep.subr.mxu0 0.0
    %731 = vmatpush1.msra.mxu0 0.0
    %732 = vmatprep.subr.mxu0 0.0
    %733 = vmatpush1.msra.mxu0 0.0
    %734 = vmatprep.subr.mxu0 0.0
    %735 = vmatpush1.msra.mxu0 0.0
    %736 = vmatprep.subr.mxu0 0.0
    %737 = vmatpush1.msra.mxu0 0.0
    %738 = vmatprep.subr.mxu0 0.0
    %739 = vmatpush1.msra.mxu0 0.0
    %740 = vmatprep.subr.mxu0 0.0
    %741 = vmatpush1.msra.mxu0 0.0
    %742 = vmatprep.subr.mxu0 0.0
    %743 = vmatpush1.msra.mxu0 0.0
    %744 = vmatprep.mubr.f32.mxu0 0.0
    %v745 = vand.u32 %v674, 4294901760
    %v746 = vsub.f32 %v674, %v745
    %v747 = vand.u32 %v746, 4294901760
    %v748 = vsub.f32 %v746, %v747
    %v749 = vand.u32 %v748, 4294901760
    %750 = vmatmul.mubr.f32.gmra.mrb[0].mxu0 %v749
    %v751 = vpop.f32.mrb[0].mxu0
    %v752 = vadd.f32 0.0, %v751
    %v753 = vpop.f32.mrb[0].mxu0
    %754 = vdwg.mxu0
    %755 = vmatprep.subr.mxu0 0.0
    %v756 = vand.u32 %v148, 4294901760
    %v757 = vsub.f32 %v148, %v756
    %v758 = vand.u32 %v757, 4294901760
    %v759 = vsub.f32 %v757, %v758
    %v760 = vand.u32 %v759, 4294901760
    %761 = vmatpush1.msra.mxu0 %v760
    %762 = vmatprep.subr.mxu0 0.0
    %v763 = vand.u32 %v150, 4294901760
    %v764 = vsub.f32 %v150, %v763
    %v765 = vand.u32 %v764, 4294901760
    %v766 = vsub.f32 %v764, %v765
    %v767 = vand.u32 %v766, 4294901760
    %768 = vmatpush1.msra.mxu0 %v767
    %769 = vmatprep.subr.mxu0 0.0
    %v770 = vand.u32 %v152, 4294901760
    %v771 = vsub.f32 %v152, %v770
    %v772 = vand.u32 %v771, 4294901760
    %v773 = vsub.f32 %v771, %v772
    %v774 = vand.u32 %v773, 4294901760
    %775 = vmatpush1.msra.mxu0 %v774
    %776 = vmatprep.subr.mxu0 0.0
    %v777 = vand.u32 %v154, 4294901760
    %v778 = vsub.f32 %v154, %v777
    %v779 = vand.u32 %v778, 4294901760
    %v780 = vsub.f32 %v778, %v779
    %v781 = vand.u32 %v780, 4294901760
    %782 = vmatpush1.msra.mxu0 %v781
    %783 = vmatprep.subr.mxu0 0.0
    %784 = vmatpush1.msra.mxu0 0.0
    %785 = vmatprep.subr.mxu0 0.0
    %786 = vmatpush1.msra.mxu0 0.0
    %787 = vmatprep.subr.mxu0 0.0
    %788 = vmatpush1.msra.mxu0 0.0
    %789 = vmatprep.subr.mxu0 0.0
    %790 = vmatpush1.msra.mxu0 0.0
    %791 = vmatprep.subr.mxu0 0.0
    %792 = vmatpush1.msra.mxu0 0.0
    %793 = vmatprep.subr.mxu0 0.0
    %794 = vmatpush1.msra.mxu0 0.0
    %795 = vmatprep.subr.mxu0 0.0
    %796 = vmatpush1.msra.mxu0 0.0
    %797 = vmatprep.subr.mxu0 0.0
    %798 = vmatpush1.msra.mxu0 0.0
    %799 = vmatprep.subr.mxu0 0.0
    %800 = vmatpush1.msra.mxu0 0.0
    %801 = vmatprep.subr.mxu0 0.0
    %802 = vmatpush1.msra.mxu0 0.0
    %803 = vmatprep.subr.mxu0 0.0
    %804 = vmatpush1.msra.mxu0 0.0
    %805 = vmatprep.subr.mxu0 0.0
    %806 = vmatpush1.msra.mxu0 0.0
    %807 = vmatprep.subr.mxu0 0.0
    %808 = vmatpush1.msra.mxu0 0.0
    %809 = vmatprep.subr.mxu0 0.0
    %810 = vmatpush1.msra.mxu0 0.0
    %811 = vmatprep.subr.mxu0 0.0
    %812 = vmatpush1.msra.mxu0 0.0
    %813 = vmatprep.subr.mxu0 0.0
    %814 = vmatpush1.msra.mxu0 0.0
    %815 = vmatprep.subr.mxu0 0.0
    %816 = vmatpush1.msra.mxu0 0.0
    %817 = vmatprep.subr.mxu0 0.0
    %818 = vmatpush1.msra.mxu0 0.0
    %819 = vmatprep.subr.mxu0 0.0
    %820 = vmatpush1.msra.mxu0 0.0
    %821 = vmatprep.subr.mxu0 0.0
    %822 = vmatpush1.msra.mxu0 0.0
    %823 = vmatprep.subr.mxu0 0.0
    %824 = vmatpush1.msra.mxu0 0.0
    %825 = vmatprep.subr.mxu0 0.0
    %826 = vmatpush1.msra.mxu0 0.0
    %827 = vmatprep.subr.mxu0 0.0
    %828 = vmatpush1.msra.mxu0 0.0
    %829 = vmatprep.subr.mxu0 0.0
    %830 = vmatpush1.msra.mxu0 0.0
    %831 = vmatprep.subr.mxu0 0.0
    %832 = vmatpush1.msra.mxu0 0.0
    %833 = vmatprep.subr.mxu0 0.0
    %834 = vmatpush1.msra.mxu0 0.0
    %835 = vmatprep.subr.mxu0 0.0
    %836 = vmatpush1.msra.mxu0 0.0
    %837 = vmatprep.subr.mxu0 0.0
    %838 = vmatpush1.msra.mxu0 0.0
    %839 = vmatprep.mubr.f32.mxu0 0.0
    %v840 = vand.u32 %v674, 4294901760
    %841 = vmatmul.mubr.f32.gmra.mrb[0].mxu0 %v840
    %v842 = vpop.f32.mrb[0].mxu0
    %v843 = vadd.f32 %v752, %v842
    %v844 = vpop.f32.mrb[0].mxu0
    %845 = vdwg.mxu0
    %846 = vmatprep.subr.mxu0 0.0
    %v847 = vand.u32 %v148, 4294901760
    %v848 = vsub.f32 %v148, %v847
    %849 = vmatpush1.msra.mxu0 %v848
    %850 = vmatprep.subr.mxu0 0.0
    %v851 = vand.u32 %v150, 4294901760
    %v852 = vsub.f32 %v150, %v851
    %853 = vmatpush1.msra.mxu0 %v852
    %854 = vmatprep.subr.mxu0 0.0
    %v855 = vand.u32 %v152, 4294901760
    %v856 = vsub.f32 %v152, %v855
    %857 = vmatpush1.msra.mxu0 %v856
    %858 = vmatprep.subr.mxu0 0.0
    %v859 = vand.u32 %v154, 4294901760
    %v860 = vsub.f32 %v154, %v859
    %861 = vmatpush1.msra.mxu0 %v860
    %862 = vmatprep.subr.mxu0 0.0
    %863 = vmatpush1.msra.mxu0 0.0
    %864 = vmatprep.subr.mxu0 0.0
    %865 = vmatpush1.msra.mxu0 0.0
    %866 = vmatprep.subr.mxu0 0.0
    %867 = vmatpush1.msra.mxu0 0.0
    %868 = vmatprep.subr.mxu0 0.0
    %869 = vmatpush1.msra.mxu0 0.0
    %870 = vmatprep.subr.mxu0 0.0
    %871 = vmatpush1.msra.mxu0 0.0
    %872 = vmatprep.subr.mxu0 0.0
    %873 = vmatpush1.msra.mxu0 0.0
    %874 = vmatprep.subr.mxu0 0.0
    %875 = vmatpush1.msra.mxu0 0.0
    %876 = vmatprep.subr.mxu0 0.0
    %877 = vmatpush1.msra.mxu0 0.0
    %878 = vmatprep.subr.mxu0 0.0
    %879 = vmatpush1.msra.mxu0 0.0
    %880 = vmatprep.subr.mxu0 0.0
    %881 = vmatpush1.msra.mxu0 0.0
    %882 = vmatprep.subr.mxu0 0.0
    %883 = vmatpush1.msra.mxu0 0.0
    %884 = vmatprep.subr.mxu0 0.0
    %885 = vmatpush1.msra.mxu0 0.0
    %886 = vmatprep.subr.mxu0 0.0
    %887 = vmatpush1.msra.mxu0 0.0
    %888 = vmatprep.subr.mxu0 0.0
    %889 = vmatpush1.msra.mxu0 0.0
    %890 = vmatprep.subr.mxu0 0.0
    %891 = vmatpush1.msra.mxu0 0.0
    %892 = vmatprep.subr.mxu0 0.0
    %893 = vmatpush1.msra.mxu0 0.0
    %894 = vmatprep.subr.mxu0 0.0
    %895 = vmatpush1.msra.mxu0 0.0
    %896 = vmatprep.subr.mxu0 0.0
    %897 = vmatpush1.msra.mxu0 0.0
    %898 = vmatprep.subr.mxu0 0.0
    %899 = vmatpush1.msra.mxu0 0.0
    %900 = vmatprep.subr.mxu0 0.0
    %901 = vmatpush1.msra.mxu0 0.0
    %902 = vmatprep.subr.mxu0 0.0
    %903 = vmatpush1.msra.mxu0 0.0
    %904 = vmatprep.subr.mxu0 0.0
    %905 = vmatpush1.msra.mxu0 0.0
    %906 = vmatprep.subr.mxu0 0.0
    %907 = vmatpush1.msra.mxu0 0.0
    %908 = vmatprep.subr.mxu0 0.0
    %909 = vmatpush1.msra.mxu0 0.0
    %910 = vmatprep.subr.mxu0 0.0
    %911 = vmatpush1.msra.mxu0 0.0
    %912 = vmatprep.subr.mxu0 0.0
    %913 = vmatpush1.msra.mxu0 0.0
    %914 = vmatprep.subr.mxu0 0.0
    %915 = vmatpush1.msra.mxu0 0.0
    %916 = vmatprep.subr.mxu0 0.0
    %917 = vmatpush1.msra.mxu0 0.0
    %918 = vmatprep.mubr.f32.mxu0 0.0
    %v919 = vand.u32 %v674, 4294901760
    %v920 = vsub.f32 %v674, %v919
    %921 = vmatmul.mubr.f32.gmra.mrb[0].mxu0 %v920
    %v922 = vpop.f32.mrb[0].mxu0
    %v923 = vadd.f32 %v843, %v922
    %v924 = vpop.f32.mrb[0].mxu0
    %925 = vdwg.mxu0
    %926 = vmatprep.subr.mxu0 0.0
    %v927 = vand.u32 %v148, 4294901760
    %928 = vmatpush1.msra.mxu0 %v927
    %929 = vmatprep.subr.mxu0 0.0
    %v930 = vand.u32 %v150, 4294901760
    %931 = vmatpush1.msra.mxu0 %v930
    %932 = vmatprep.subr.mxu0 0.0
    %v933 = vand.u32 %v152, 4294901760
    %934 = vmatpush1.msra.mxu0 %v933
    %935 = vmatprep.subr.mxu0 0.0
    %v936 = vand.u32 %v154, 4294901760
    %937 = vmatpush1.msra.mxu0 %v936
    %938 = vmatprep.subr.mxu0 0.0
    %939 = vmatpush1.msra.mxu0 0.0
    %940 = vmatprep.subr.mxu0 0.0
    %941 = vmatpush1.msra.mxu0 0.0
    %942 = vmatprep.subr.mxu0 0.0
    %943 = vmatpush1.msra.mxu0 0.0
    %944 = vmatprep.subr.mxu0 0.0
    %945 = vmatpush1.msra.mxu0 0.0
    %946 = vmatprep.subr.mxu0 0.0
    %947 = vmatpush1.msra.mxu0 0.0
    %948 = vmatprep.subr.mxu0 0.0
    %949 = vmatpush1.msra.mxu0 0.0
    %950 = vmatprep.subr.mxu0 0.0
    %951 = vmatpush1.msra.mxu0 0.0
    %952 = vmatprep.subr.mxu0 0.0
    %953 = vmatpush1.msra.mxu0 0.0
    %954 = vmatprep.subr.mxu0 0.0
    %955 = vmatpush1.msra.mxu0 0.0
    %956 = vmatprep.subr.mxu0 0.0
    %957 = vmatpush1.msra.mxu0 0.0
    %958 = vmatprep.subr.mxu0 0.0
    %959 = vmatpush1.msra.mxu0 0.0
    %960 = vmatprep.subr.mxu0 0.0
    %961 = vmatpush1.msra.mxu0 0.0
    %962 = vmatprep.subr.mxu0 0.0
    %963 = vmatpush1.msra.mxu0 0.0
    %964 = vmatprep.subr.mxu0 0.0
    %965 = vmatpush1.msra.mxu0 0.0
    %966 = vmatprep.subr.mxu0 0.0
    %967 = vmatpush1.msra.mxu0 0.0
    %968 = vmatprep.subr.mxu0 0.0
    %969 = vmatpush1.msra.mxu0 0.0
    %970 = vmatprep.subr.mxu0 0.0
    %971 = vmatpush1.msra.mxu0 0.0
    %972 = vmatprep.subr.mxu0 0.0
    %973 = vmatpush1.msra.mxu0 0.0
    %974 = vmatprep.subr.mxu0 0.0
    %975 = vmatpush1.msra.mxu0 0.0
    %976 = vmatprep.subr.mxu0 0.0
    %977 = vmatpush1.msra.mxu0 0.0
    %978 = vmatprep.subr.mxu0 0.0
    %979 = vmatpush1.msra.mxu0 0.0
    %980 = vmatprep.subr.mxu0 0.0
    %981 = vmatpush1.msra.mxu0 0.0
    %982 = vmatprep.subr.mxu0 0.0
    %983 = vmatpush1.msra.mxu0 0.0
    %984 = vmatprep.subr.mxu0 0.0
    %985 = vmatpush1.msra.mxu0 0.0
    %986 = vmatprep.subr.mxu0 0.0
    %987 = vmatpush1.msra.mxu0 0.0
    %988 = vmatprep.subr.mxu0 0.0
    %989 = vmatpush1.msra.mxu0 0.0
    %990 = vmatprep.subr.mxu0 0.0
    %991 = vmatpush1.msra.mxu0 0.0
    %992 = vmatprep.subr.mxu0 0.0
    %993 = vmatpush1.msra.mxu0 0.0
    %994 = vmatprep.mubr.f32.mxu0 0.0
    %v995 = vand.u32 %v674, 4294901760
    %v996 = vsub.f32 %v674, %v995
    %v997 = vand.u32 %v996, 4294901760
    %998 = vmatmul.mubr.f32.gmra.mrb[0].mxu0 %v997
    %v999 = vpop.f32.mrb[0].mxu0
    %v1000 = vadd.f32 %v923, %v999
    %v1001 = vpop.f32.mrb[0].mxu0
    %1002 = vdwg.mxu0
    %1003 = vmatprep.subr.mxu0 0.0
    %v1004 = vand.u32 %v148, 4294901760
    %v1005 = vsub.f32 %v148, %v1004
    %v1006 = vand.u32 %v1005, 4294901760
    %1007 = vmatpush1.msra.mxu0 %v1006
    %1008 = vmatprep.subr.mxu0 0.0
    %v1009 = vand.u32 %v150, 4294901760
    %v1010 = vsub.f32 %v150, %v1009
    %v1011 = vand.u32 %v1010, 4294901760
    %1012 = vmatpush1.msra.mxu0 %v1011
    %1013 = vmatprep.subr.mxu0 0.0
    %v1014 = vand.u32 %v152, 4294901760
    %v1015 = vsub.f32 %v152, %v1014
    %v1016 = vand.u32 %v1015, 4294901760
    %1017 = vmatpush1.msra.mxu0 %v1016
    %1018 = vmatprep.subr.mxu0 0.0
    %v1019 = vand.u32 %v154, 4294901760
    %v1020 = vsub.f32 %v154, %v1019
    %v1021 = vand.u32 %v1020, 4294901760
    %1022 = vmatpush1.msra.mxu0 %v1021
    %1023 = vmatprep.subr.mxu0 0.0
    %1024 = vmatpush1.msra.mxu0 0.0
    %1025 = vmatprep.subr.mxu0 0.0
    %1026 = vmatpush1.msra.mxu0 0.0
    %1027 = vmatprep.subr.mxu0 0.0
    %1028 = vmatpush1.msra.mxu0 0.0
    %1029 = vmatprep.subr.mxu0 0.0
    %1030 = vmatpush1.msra.mxu0 0.0
    %1031 = vmatprep.subr.mxu0 0.0
    %1032 = vmatpush1.msra.mxu0 0.0
    %1033 = vmatprep.subr.mxu0 0.0
    %1034 = vmatpush1.msra.mxu0 0.0
    %1035 = vmatprep.subr.mxu0 0.0
    %1036 = vmatpush1.msra.mxu0 0.0
    %1037 = vmatprep.subr.mxu0 0.0
    %1038 = vmatpush1.msra.mxu0 0.0
    %1039 = vmatprep.subr.mxu0 0.0
    %1040 = vmatpush1.msra.mxu0 0.0
    %1041 = vmatprep.subr.mxu0 0.0
    %1042 = vmatpush1.msra.mxu0 0.0
    %1043 = vmatprep.subr.mxu0 0.0
    %1044 = vmatpush1.msra.mxu0 0.0
    %1045 = vmatprep.subr.mxu0 0.0
    %1046 = vmatpush1.msra.mxu0 0.0
    %1047 = vmatprep.subr.mxu0 0.0
    %1048 = vmatpush1.msra.mxu0 0.0
    %1049 = vmatprep.subr.mxu0 0.0
    %1050 = vmatpush1.msra.mxu0 0.0
    %1051 = vmatprep.subr.mxu0 0.0
    %1052 = vmatpush1.msra.mxu0 0.0
    %1053 = vmatprep.subr.mxu0 0.0
    %1054 = vmatpush1.msra.mxu0 0.0
    %1055 = vmatprep.subr.mxu0 0.0
    %1056 = vmatpush1.msra.mxu0 0.0
    %1057 = vmatprep.subr.mxu0 0.0
    %1058 = vmatpush1.msra.mxu0 0.0
    %1059 = vmatprep.subr.mxu0 0.0
    %1060 = vmatpush1.msra.mxu0 0.0
    %1061 = vmatprep.subr.mxu0 0.0
    %1062 = vmatpush1.msra.mxu0 0.0
    %1063 = vmatprep.subr.mxu0 0.0
    %1064 = vmatpush1.msra.mxu0 0.0
    %1065 = vmatprep.subr.mxu0 0.0
    %1066 = vmatpush1.msra.mxu0 0.0
    %1067 = vmatprep.subr.mxu0 0.0
    %1068 = vmatpush1.msra.mxu0 0.0
    %1069 = vmatprep.subr.mxu0 0.0
    %1070 = vmatpush1.msra.mxu0 0.0
    %1071 = vmatprep.subr.mxu0 0.0
    %1072 = vmatpush1.msra.mxu0 0.0
    %1073 = vmatprep.subr.mxu0 0.0
    %1074 = vmatpush1.msra.mxu0 0.0
    %1075 = vmatprep.subr.mxu0 0.0
    %1076 = vmatpush1.msra.mxu0 0.0
    %1077 = vmatprep.subr.mxu0 0.0
    %1078 = vmatpush1.msra.mxu0 0.0
    %1079 = vmatprep.mubr.f32.mxu0 0.0
    %v1080 = vand.u32 %v674, 4294901760
    %1081 = vmatmul.mubr.f32.gmra.mrb[0].mxu0 %v1080
    %v1082 = vpop.f32.mrb[0].mxu0
    %v1083 = vadd.f32 %v1000, %v1082
    %v1084 = vpop.f32.mrb[0].mxu0
    %1085 = vdwg.mxu0
    %1086 = vmatprep.subr.mxu0 0.0
    %v1087 = vand.u32 %v148, 4294901760
    %1088 = vmatpush1.msra.mxu0 %v1087
    %1089 = vmatprep.subr.mxu0 0.0
    %v1090 = vand.u32 %v150, 4294901760
    %1091 = vmatpush1.msra.mxu0 %v1090
    %1092 = vmatprep.subr.mxu0 0.0
    %v1093 = vand.u32 %v152, 4294901760
    %1094 = vmatpush1.msra.mxu0 %v1093
    %1095 = vmatprep.subr.mxu0 0.0
    %v1096 = vand.u32 %v154, 4294901760
    %1097 = vmatpush1.msra.mxu0 %v1096
    %1098 = vmatprep.subr.mxu0 0.0
    %1099 = vmatpush1.msra.mxu0 0.0
    %1100 = vmatprep.subr.mxu0 0.0
    %1101 = vmatpush1.msra.mxu0 0.0
    %1102 = vmatprep.subr.mxu0 0.0
    %1103 = vmatpush1.msra.mxu0 0.0
    %1104 = vmatprep.subr.mxu0 0.0
    %1105 = vmatpush1.msra.mxu0 0.0
    %1106 = vmatprep.subr.mxu0 0.0
    %1107 = vmatpush1.msra.mxu0 0.0
    %1108 = vmatprep.subr.mxu0 0.0
    %1109 = vmatpush1.msra.mxu0 0.0
    %1110 = vmatprep.subr.mxu0 0.0
    %1111 = vmatpush1.msra.mxu0 0.0
    %1112 = vmatprep.subr.mxu0 0.0
    %1113 = vmatpush1.msra.mxu0 0.0
    %1114 = vmatprep.subr.mxu0 0.0
    %1115 = vmatpush1.msra.mxu0 0.0
    %1116 = vmatprep.subr.mxu0 0.0
    %1117 = vmatpush1.msra.mxu0 0.0
    %1118 = vmatprep.subr.mxu0 0.0
    %1119 = vmatpush1.msra.mxu0 0.0
    %1120 = vmatprep.subr.mxu0 0.0
    %1121 = vmatpush1.msra.mxu0 0.0
    %1122 = vmatprep.subr.mxu0 0.0
    %1123 = vmatpush1.msra.mxu0 0.0
    %1124 = vmatprep.subr.mxu0 0.0
    %1125 = vmatpush1.msra.mxu0 0.0
    %1126 = vmatprep.subr.mxu0 0.0
    %1127 = vmatpush1.msra.mxu0 0.0
    %1128 = vmatprep.subr.mxu0 0.0
    %1129 = vmatpush1.msra.mxu0 0.0
    %1130 = vmatprep.subr.mxu0 0.0
    %1131 = vmatpush1.msra.mxu0 0.0
    %1132 = vmatprep.subr.mxu0 0.0
    %1133 = vmatpush1.msra.mxu0 0.0
    %1134 = vmatprep.subr.mxu0 0.0
    %1135 = vmatpush1.msra.mxu0 0.0
    %1136 = vmatprep.subr.mxu0 0.0
    %1137 = vmatpush1.msra.mxu0 0.0
    %1138 = vmatprep.subr.mxu0 0.0
    %1139 = vmatpush1.msra.mxu0 0.0
    %1140 = vmatprep.subr.mxu0 0.0
    %1141 = vmatpush1.msra.mxu0 0.0
    %1142 = vmatprep.subr.mxu0 0.0
    %1143 = vmatpush1.msra.mxu0 0.0
    %1144 = vmatprep.subr.mxu0 0.0
    %1145 = vmatpush1.msra.mxu0 0.0
    %1146 = vmatprep.subr.mxu0 0.0
    %1147 = vmatpush1.msra.mxu0 0.0
    %1148 = vmatprep.subr.mxu0 0.0
    %1149 = vmatpush1.msra.mxu0 0.0
    %1150 = vmatprep.subr.mxu0 0.0
    %1151 = vmatpush1.msra.mxu0 0.0
    %1152 = vmatprep.subr.mxu0 0.0
    %1153 = vmatpush1.msra.mxu0 0.0
    %1154 = vmatprep.mubr.f32.mxu0 0.0
    %v1155 = vand.u32 %v674, 4294901760
    %1156 = vmatmul.mubr.f32.gmra.mrb[0].mxu0 %v1155
    %v1157 = vpop.f32.mrb[0].mxu0
    %v1158 = vadd.f32 %v1083, %v1157
    %v1159 = vpop.f32.mrb[0].mxu0
    %1160 = vdwg.mxu0
    %v1161 = vld [vmem:[#allocation3 + $0x1] sm:$0x1]
    %v1162 = vmul.f32 %v1158, %v1161
    %v1163 = vsel %vm19, %v1162, -inf
    %1164 = vmax.xlane.f32.xlu0 %v1163
    %v1165 = vpop.xlane.xlu0 %1164
    %v1166 = vmax.f32 %v1165, 1e-30
    %v1167 = vrcp.pop %v1166
    %v1168 = vmul.f32 %v1162, %v1167
    %1169 = vst.msk [vmem:[#allocation4 + $0x1] sm:$0x1] %vm19, %v1168
    %v1170 = vld [vmem:[#allocation3 + $0x6] sm:$0x1]
    %v1172 = vsel %vm37, %v1170, 0
    %v1175 = vsel %vm37, %v148, 0
    %v1178 = vsel %vm37, %v150, 0
    %v1181 = vsel %vm37, %v152, 0
    %v1184 = vsel %vm37, %v154, 0
    %1186 = vmatprep.subr.mxu0 0.0
    %v1187 = vand.u32 %v1175, 4294901760
    %1188 = vmatpush1.xpose.msra.mxu0 %v1187
    %1189 = vmatprep.subr.mxu0 0.0
    %v1190 = vand.u32 %v1178, 4294901760
    %1191 = vmatpush1.xpose.msra.mxu0 %v1190
    %1192 = vmatprep.subr.mxu0 0.0
    %v1193 = vand.u32 %v1181, 4294901760
    %1194 = vmatpush1.xpose.msra.mxu0 %v1193
    %1195 = vmatprep.subr.mxu0 0.0
    %v1196 = vand.u32 %v1184, 4294901760
    %1197 = vmatpush1.xpose.msra.mxu0 %v1196
    %1198 = vmatprep.subr.mxu0 0.0
    %1199 = vmatpush1.xpose.msra.mxu0 0.0
    %1200 = vmatprep.subr.mxu0 0.0
    %1201 = vmatpush1.xpose.msra.mxu0 0.0
    %1202 = vmatprep.subr.mxu0 0.0
    %1203 = vmatpush1.xpose.msra.mxu0 0.0
    %1204 = vmatprep.subr.mxu0 0.0
    %1205 = vmatpush1.xpose.msra.mxu0 0.0
    %1206 = vmatprep.subr.mxu0 0.0
    %1207 = vmatpush1.xpose.msra.mxu0 0.0
    %1208 = vmatprep.subr.mxu0 0.0
    %1209 = vmatpush1.xpose.msra.mxu0 0.0
    %1210 = vmatprep.subr.mxu0 0.0
    %1211 = vmatpush1.xpose.msra.mxu0 0.0
    %1212 = vmatprep.subr.mxu0 0.0
    %1213 = vmatpush1.xpose.msra.mxu0 0.0
    %1214 = vmatprep.subr.mxu0 0.0
    %1215 = vmatpush1.xpose.msra.mxu0 0.0
    %1216 = vmatprep.subr.mxu0 0.0
    %1217 = vmatpush1.xpose.msra.mxu0 0.0
    %1218 = vmatprep.subr.mxu0 0.0
    %1219 = vmatpush1.xpose.msra.mxu0 0.0
    %1220 = vmatprep.subr.mxu0 0.0
    %1221 = vmatpush1.xpose.msra.mxu0 0.0
    %1222 = vmatprep.subr.mxu0 0.0
    %1223 = vmatpush1.xpose.msra.mxu0 0.0
    %1224 = vmatprep.subr.mxu0 0.0
    %1225 = vmatpush1.xpose.msra.mxu0 0.0
    %1226 = vmatprep.subr.mxu0 0.0
    %1227 = vmatpush1.xpose.msra.mxu0 0.0
    %1228 = vmatprep.subr.mxu0 0.0
    %1229 = vmatpush1.xpose.msra.mxu0 0.0
    %1230 = vmatprep.subr.mxu0 0.0
    %1231 = vmatpush1.xpose.msra.mxu0 0.0
    %1232 = vmatprep.subr.mxu0 0.0
    %1233 = vmatpush1.xpose.msra.mxu0 0.0
    %1234 = vmatprep.subr.mxu0 0.0
    %1235 = vmatpush1.xpose.msra.mxu0 0.0
    %1236 = vmatprep.subr.mxu0 0.0
    %1237 = vmatpush1.xpose.msra.mxu0 0.0
    %1238 = vmatprep.subr.mxu0 0.0
    %1239 = vmatpush1.xpose.msra.mxu0 0.0
    %1240 = vmatprep.subr.mxu0 0.0
    %1241 = vmatpush1.xpose.msra.mxu0 0.0
    %1242 = vmatprep.subr.mxu0 0.0
    %1243 = vmatpush1.xpose.msra.mxu0 0.0
    %1244 = vmatprep.subr.mxu0 0.0
    %1245 = vmatpush1.xpose.msra.mxu0 0.0
    %1246 = vmatprep.subr.mxu0 0.0
    %1247 = vmatpush1.xpose.msra.mxu0 0.0
    %1248 = vmatprep.subr.mxu0 0.0
    %1249 = vmatpush1.xpose.msra.mxu0 0.0
    %1250 = vmatprep.subr.mxu0 0.0
    %1251 = vmatpush1.xpose.msra.mxu0 0.0
    %1252 = vmatprep.subr.mxu0 0.0
    %1253 = vmatpush1.xpose.msra.mxu0 0.0
    %1254 = vmatprep.mubr.f32.mxu0 0.0
    %v1255 = vand.u32 %v1172, 4294901760
    %v1256 = vsub.f32 %v1172, %v1255
    %v1257 = vand.u32 %v1256, 4294901760
    %v1258 = vsub.f32 %v1256, %v1257
    %v1259 = vand.u32 %v1258, 4294901760
    %1260 = vmatmul.mubr.f32.gmra.mrb[0].mxu0 %v1259
    %v1261 = vpop.f32.mrb[0].mxu0
    %v1262 = vadd.f32 0.0, %v1261
    %v1263 = vpop.f32.mrb[0].mxu0
    %1264 = vdwg.mxu0
    %1265 = vmatprep.subr.mxu0 0.0
    %v1266 = vand.u32 %v1175, 4294901760
    %v1267 = vsub.f32 %v1175, %v1266
    %v1268 = vand.u32 %v1267, 4294901760
    %v1269 = vsub.f32 %v1267, %v1268
    %v1270 = vand.u32 %v1269, 4294901760
    %1271 = vmatpush1.xpose.msra.mxu0 %v1270
    %1272 = vmatprep.subr.mxu0 0.0
    %v1273 = vand.u32 %v1178, 4294901760
    %v1274 = vsub.f32 %v1178, %v1273
    %v1275 = vand.u32 %v1274, 4294901760
    %v1276 = vsub.f32 %v1274, %v1275
    %v1277 = vand.u32 %v1276, 4294901760
    %1278 = vmatpush1.xpose.msra.mxu0 %v1277
    %1279 = vmatprep.subr.mxu0 0.0
    %v1280 = vand.u32 %v1181, 4294901760
    %v1281 = vsub.f32 %v1181, %v1280
    %v1282 = vand.u32 %v1281, 4294901760
    %v1283 = vsub.f32 %v1281, %v1282
    %v1284 = vand.u32 %v1283, 4294901760
    %1285 = vmatpush1.xpose.msra.mxu0 %v1284
    %1286 = vmatprep.subr.mxu0 0.0
    %v1287 = vand.u32 %v1184, 4294901760
    %v1288 = vsub.f32 %v1184, %v1287
    %v1289 = vand.u32 %v1288, 4294901760
    %v1290 = vsub.f32 %v1288, %v1289
    %v1291 = vand.u32 %v1290, 4294901760
    %1292 = vmatpush1.xpose.msra.mxu0 %v1291
    %1293 = vmatprep.subr.mxu0 0.0
    %1294 = vmatpush1.xpose.msra.mxu0 0.0
    %1295 = vmatprep.subr.mxu0 0.0
    %1296 = vmatpush1.xpose.msra.mxu0 0.0
    %1297 = vmatprep.subr.mxu0 0.0
    %1298 = vmatpush1.xpose.msra.mxu0 0.0
    %1299 = vmatprep.subr.mxu0 0.0
    %1300 = vmatpush1.xpose.msra.mxu0 0.0
    %1301 = vmatprep.subr.mxu0 0.0
    %1302 = vmatpush1.xpose.msra.mxu0 0.0
    %1303 = vmatprep.subr.mxu0 0.0
    %1304 = vmatpush1.xpose.msra.mxu0 0.0
    %1305 = vmatprep.subr.mxu0 0.0
    %1306 = vmatpush1.xpose.msra.mxu0 0.0
    %1307 = vmatprep.subr.mxu0 0.0
    %1308 = vmatpush1.xpose.msra.mxu0 0.0
    %1309 = vmatprep.subr.mxu0 0.0
    %1310 = vmatpush1.xpose.msra.mxu0 0.0
    %1311 = vmatprep.subr.mxu0 0.0
    %1312 = vmatpush1.xpose.msra.mxu0 0.0
    %1313 = vmatprep.subr.mxu0 0.0
    %1314 = vmatpush1.xpose.msra.mxu0 0.0
    %1315 = vmatprep.subr.mxu0 0.0
    %1316 = vmatpush1.xpose.msra.mxu0 0.0
    %1317 = vmatprep.subr.mxu0 0.0
    %1318 = vmatpush1.xpose.msra.mxu0 0.0
    %1319 = vmatprep.subr.mxu0 0.0
    %1320 = vmatpush1.xpose.msra.mxu0 0.0
    %1321 = vmatprep.subr.mxu0 0.0
    %1322 = vmatpush1.xpose.msra.mxu0 0.0
    %1323 = vmatprep.subr.mxu0 0.0
    %1324 = vmatpush1.xpose.msra.mxu0 0.0
    %1325 = vmatprep.subr.mxu0 0.0
    %1326 = vmatpush1.xpose.msra.mxu0 0.0
    %1327 = vmatprep.subr.mxu0 0.0
    %1328 = vmatpush1.xpose.msra.mxu0 0.0
    %1329 = vmatprep.subr.mxu0 0.0
    %1330 = vmatpush1.xpose.msra.mxu0 0.0
    %1331 = vmatprep.subr.mxu0 0.0
    %1332 = vmatpush1.xpose.msra.mxu0 0.0
    %1333 = vmatprep.subr.mxu0 0.0
    %1334 = vmatpush1.xpose.msra.mxu0 0.0
    %1335 = vmatprep.subr.mxu0 0.0
    %1336 = vmatpush1.xpose.msra.mxu0 0.0
    %1337 = vmatprep.subr.mxu0 0.0
    %1338 = vmatpush1.xpose.msra.mxu0 0.0
    %1339 = vmatprep.subr.mxu0 0.0
    %1340 = vmatpush1.xpose.msra.mxu0 0.0
    %1341 = vmatprep.subr.mxu0 0.0
    %1342 = vmatpush1.xpose.msra.mxu0 0.0
    %1343 = vmatprep.subr.mxu0 0.0
    %1344 = vmatpush1.xpose.msra.mxu0 0.0
    %1345 = vmatprep.subr.mxu0 0.0
    %1346 = vmatpush1.xpose.msra.mxu0 0.0
    %1347 = vmatprep.subr.mxu0 0.0
    %1348 = vmatpush1.xpose.msra.mxu0 0.0
    %1349 = vmatprep.mubr.f32.mxu0 0.0
    %v1350 = vand.u32 %v1172, 4294901760
    %1351 = vmatmul.mubr.f32.gmra.mrb[0].mxu0 %v1350
    %v1352 = vpop.f32.mrb[0].mxu0
    %v1353 = vadd.f32 %v1262, %v1352
    %v1354 = vpop.f32.mrb[0].mxu0
    %1355 = vdwg.mxu0
    %1356 = vmatprep.subr.mxu0 0.0
    %v1357 = vand.u32 %v1175, 4294901760
    %v1358 = vsub.f32 %v1175, %v1357
    %1359 = vmatpush1.xpose.msra.mxu0 %v1358
    %1360 = vmatprep.subr.mxu0 0.0
    %v1361 = vand.u32 %v1178, 4294901760
    %v1362 = vsub.f32 %v1178, %v1361
    %1363 = vmatpush1.xpose.msra.mxu0 %v1362
    %1364 = vmatprep.subr.mxu0 0.0
    %v1365 = vand.u32 %v1181, 4294901760
    %v1366 = vsub.f32 %v1181, %v1365
    %1367 = vmatpush1.xpose.msra.mxu0 %v1366
    %1368 = vmatprep.subr.mxu0 0.0
    %v1369 = vand.u32 %v1184, 4294901760
    %v1370 = vsub.f32 %v1184, %v1369
    %1371 = vmatpush1.xpose.msra.mxu0 %v1370
    %1372 = vmatprep.subr.mxu0 0.0
    %1373 = vmatpush1.xpose.msra.mxu0 0.0
    %1374 = vmatprep.subr.mxu0 0.0
    %1375 = vmatpush1.xpose.msra.mxu0 0.0
    %1376 = vmatprep.subr.mxu0 0.0
    %1377 = vmatpush1.xpose.msra.mxu0 0.0
    %1378 = vmatprep.subr.mxu0 0.0
    %1379 = vmatpush1.xpose.msra.mxu0 0.0
    %1380 = vmatprep.subr.mxu0 0.0
    %1381 = vmatpush1.xpose.msra.mxu0 0.0
    %1382 = vmatprep.subr.mxu0 0.0
    %1383 = vmatpush1.xpose.msra.mxu0 0.0
    %1384 = vmatprep.subr.mxu0 0.0
    %1385 = vmatpush1.xpose.msra.mxu0 0.0
    %1386 = vmatprep.subr.mxu0 0.0
    %1387 = vmatpush1.xpose.msra.mxu0 0.0
    %1388 = vmatprep.subr.mxu0 0.0
    %1389 = vmatpush1.xpose.msra.mxu0 0.0
    %1390 = vmatprep.subr.mxu0 0.0
    %1391 = vmatpush1.xpose.msra.mxu0 0.0
    %1392 = vmatprep.subr.mxu0 0.0
    %1393 = vmatpush1.xpose.msra.mxu0 0.0
    %1394 = vmatprep.subr.mxu0 0.0
    %1395 = vmatpush1.xpose.msra.mxu0 0.0
    %1396 = vmatprep.subr.mxu0 0.0
    %1397 = vmatpush1.xpose.msra.mxu0 0.0
    %1398 = vmatprep.subr.mxu0 0.0
    %1399 = vmatpush1.xpose.msra.mxu0 0.0
    %1400 = vmatprep.subr.mxu0 0.0
    %1401 = vmatpush1.xpose.msra.mxu0 0.0
    %1402 = vmatprep.subr.mxu0 0.0
    %1403 = vmatpush1.xpose.msra.mxu0 0.0
    %1404 = vmatprep.subr.mxu0 0.0
    %1405 = vmatpush1.xpose.msra.mxu0 0.0
    %1406 = vmatprep.subr.mxu0 0.0
    %1407 = vmatpush1.xpose.msra.mxu0 0.0
    %1408 = vmatprep.subr.mxu0 0.0
    %1409 = vmatpush1.xpose.msra.mxu0 0.0
    %1410 = vmatprep.subr.mxu0 0.0
    %1411 = vmatpush1.xpose.msra.mxu0 0.0
    %1412 = vmatprep.subr.mxu0 0.0
    %1413 = vmatpush1.xpose.msra.mxu0 0.0
    %1414 = vmatprep.subr.mxu0 0.0
    %1415 = vmatpush1.xpose.msra.mxu0 0.0
    %1416 = vmatprep.subr.mxu0 0.0
    %1417 = vmatpush1.xpose.msra.mxu0 0.0
    %1418 = vmatprep.subr.mxu0 0.0
    %1419 = vmatpush1.xpose.msra.mxu0 0.0
    %1420 = vmatprep.subr.mxu0 0.0
    %1421 = vmatpush1.xpose.msra.mxu0 0.0
    %1422 = vmatprep.subr.mxu0 0.0
    %1423 = vmatpush1.xpose.msra.mxu0 0.0
    %1424 = vmatprep.subr.mxu0 0.0
    %1425 = vmatpush1.xpose.msra.mxu0 0.0
    %1426 = vmatprep.subr.mxu0 0.0
    %1427 = vmatpush1.xpose.msra.mxu0 0.0
    %1428 = vmatprep.mubr.f32.mxu0 0.0
    %v1429 = vand.u32 %v1172, 4294901760
    %v1430 = vsub.f32 %v1172, %v1429
    %1431 = vmatmul.mubr.f32.gmra.mrb[0].mxu0 %v1430
    %v1432 = vpop.f32.mrb[0].mxu0
    %v1433 = vadd.f32 %v1353, %v1432
    %v1434 = vpop.f32.mrb[0].mxu0
    %1435 = vdwg.mxu0
    %1436 = vmatprep.subr.mxu0 0.0
    %v1437 = vand.u32 %v1175, 4294901760
    %1438 = vmatpush1.xpose.msra.mxu0 %v1437
    %1439 = vmatprep.subr.mxu0 0.0
    %v1440 = vand.u32 %v1178, 4294901760
    %1441 = vmatpush1.xpose.msra.mxu0 %v1440
    %1442 = vmatprep.subr.mxu0 0.0
    %v1443 = vand.u32 %v1181, 4294901760
    %1444 = vmatpush1.xpose.msra.mxu0 %v1443
    %1445 = vmatprep.subr.mxu0 0.0
    %v1446 = vand.u32 %v1184, 4294901760
    %1447 = vmatpush1.xpose.msra.mxu0 %v1446
    %1448 = vmatprep.subr.mxu0 0.0
    %1449 = vmatpush1.xpose.msra.mxu0 0.0
    %1450 = vmatprep.subr.mxu0 0.0
    %1451 = vmatpush1.xpose.msra.mxu0 0.0
    %1452 = vmatprep.subr.mxu0 0.0
    %1453 = vmatpush1.xpose.msra.mxu0 0.0
    %1454 = vmatprep.subr.mxu0 0.0
    %1455 = vmatpush1.xpose.msra.mxu0 0.0
    %1456 = vmatprep.subr.mxu0 0.0
    %1457 = vmatpush1.xpose.msra.mxu0 0.0
    %1458 = vmatprep.subr.mxu0 0.0
    %1459 = vmatpush1.xpose.msra.mxu0 0.0
    %1460 = vmatprep.subr.mxu0 0.0
    %1461 = vmatpush1.xpose.msra.mxu0 0.0
    %1462 = vmatprep.subr.mxu0 0.0
    %1463 = vmatpush1.xpose.msra.mxu0 0.0
    %1464 = vmatprep.subr.mxu0 0.0
    %1465 = vmatpush1.xpose.msra.mxu0 0.0
    %1466 = vmatprep.subr.mxu0 0.0
    %1467 = vmatpush1.xpose.msra.mxu0 0.0
    %1468 = vmatprep.subr.mxu0 0.0
    %1469 = vmatpush1.xpose.msra.mxu0 0.0
    %1470 = vmatprep.subr.mxu0 0.0
    %1471 = vmatpush1.xpose.msra.mxu0 0.0
    %1472 = vmatprep.subr.mxu0 0.0
    %1473 = vmatpush1.xpose.msra.mxu0 0.0
    %1474 = vmatprep.subr.mxu0 0.0
    %1475 = vmatpush1.xpose.msra.mxu0 0.0
    %1476 = vmatprep.subr.mxu0 0.0
    %1477 = vmatpush1.xpose.msra.mxu0 0.0
    %1478 = vmatprep.subr.mxu0 0.0
    %1479 = vmatpush1.xpose.msra.mxu0 0.0
    %1480 = vmatprep.subr.mxu0 0.0
    %1481 = vmatpush1.xpose.msra.mxu0 0.0
    %1482 = vmatprep.subr.mxu0 0.0
    %1483 = vmatpush1.xpose.msra.mxu0 0.0
    %1484 = vmatprep.subr.mxu0 0.0
    %1485 = vmatpush1.xpose.msra.mxu0 0.0
    %1486 = vmatprep.subr.mxu0 0.0
    %1487 = vmatpush1.xpose.msra.mxu0 0.0
    %1488 = vmatprep.subr.mxu0 0.0
    %1489 = vmatpush1.xpose.msra.mxu0 0.0
    %1490 = vmatprep.subr.mxu0 0.0
    %1491 = vmatpush1.xpose.msra.mxu0 0.0
    %1492 = vmatprep.subr.mxu0 0.0
    %1493 = vmatpush1.xpose.msra.mxu0 0.0
    %1494 = vmatprep.subr.mxu0 0.0
    %1495 = vmatpush1.xpose.msra.mxu0 0.0
    %1496 = vmatprep.subr.mxu0 0.0
    %1497 = vmatpush1.xpose.msra.mxu0 0.0
    %1498 = vmatprep.subr.mxu0 0.0
    %1499 = vmatpush1.xpose.msra.mxu0 0.0
    %1500 = vmatprep.subr.mxu0 0.0
    %1501 = vmatpush1.xpose.msra.mxu0 0.0
    %1502 = vmatprep.subr.mxu0 0.0
    %1503 = vmatpush1.xpose.msra.mxu0 0.0
    %1504 = vmatprep.mubr.f32.mxu0 0.0
    %v1505 = vand.u32 %v1172, 4294901760
    %v1506 = vsub.f32 %v1172, %v1505
    %v1507 = vand.u32 %v1506, 4294901760
    %1508 = vmatmul.mubr.f32.gmra.mrb[0].mxu0 %v1507
    %v1509 = vpop.f32.mrb[0].mxu0
    %v1510 = vadd.f32 %v1433, %v1509
    %v1511 = vpop.f32.mrb[0].mxu0
    %1512 = vdwg.mxu0
    %1513 = vmatprep.subr.mxu0 0.0
    %v1514 = vand.u32 %v1175, 4294901760
    %v1515 = vsub.f32 %v1175, %v1514
    %v1516 = vand.u32 %v1515, 4294901760
    %1517 = vmatpush1.xpose.msra.mxu0 %v1516
    %1518 = vmatprep.subr.mxu0 0.0
    %v1519 = vand.u32 %v1178, 4294901760
    %v1520 = vsub.f32 %v1178, %v1519
    %v1521 = vand.u32 %v1520, 4294901760
    %1522 = vmatpush1.xpose.msra.mxu0 %v1521
    %1523 = vmatprep.subr.mxu0 0.0
    %v1524 = vand.u32 %v1181, 4294901760
    %v1525 = vsub.f32 %v1181, %v1524
    %v1526 = vand.u32 %v1525, 4294901760
    %1527 = vmatpush1.xpose.msra.mxu0 %v1526
    %1528 = vmatprep.subr.mxu0 0.0
    %v1529 = vand.u32 %v1184, 4294901760
    %v1530 = vsub.f32 %v1184, %v1529
    %v1531 = vand.u32 %v1530, 4294901760
    %1532 = vmatpush1.xpose.msra.mxu0 %v1531
    %1533 = vmatprep.subr.mxu0 0.0
    %1534 = vmatpush1.xpose.msra.mxu0 0.0
    %1535 = vmatprep.subr.mxu0 0.0
    %1536 = vmatpush1.xpose.msra.mxu0 0.0
    %1537 = vmatprep.subr.mxu0 0.0
    %1538 = vmatpush1.xpose.msra.mxu0 0.0
    %1539 = vmatprep.subr.mxu0 0.0
    %1540 = vmatpush1.xpose.msra.mxu0 0.0
    %1541 = vmatprep.subr.mxu0 0.0
    %1542 = vmatpush1.xpose.msra.mxu0 0.0
    %1543 = vmatprep.subr.mxu0 0.0
    %1544 = vmatpush1.xpose.msra.mxu0 0.0
    %1545 = vmatprep.subr.mxu0 0.0
    %1546 = vmatpush1.xpose.msra.mxu0 0.0
    %1547 = vmatprep.subr.mxu0 0.0
    %1548 = vmatpush1.xpose.msra.mxu0 0.0
    %1549 = vmatprep.subr.mxu0 0.0
    %1550 = vmatpush1.xpose.msra.mxu0 0.0
    %1551 = vmatprep.subr.mxu0 0.0
    %1552 = vmatpush1.xpose.msra.mxu0 0.0
    %1553 = vmatprep.subr.mxu0 0.0
    %1554 = vmatpush1.xpose.msra.mxu0 0.0
    %1555 = vmatprep.subr.mxu0 0.0
    %1556 = vmatpush1.xpose.msra.mxu0 0.0
    %1557 = vmatprep.subr.mxu0 0.0
    %1558 = vmatpush1.xpose.msra.mxu0 0.0
    %1559 = vmatprep.subr.mxu0 0.0
    %1560 = vmatpush1.xpose.msra.mxu0 0.0
    %1561 = vmatprep.subr.mxu0 0.0
    %1562 = vmatpush1.xpose.msra.mxu0 0.0
    %1563 = vmatprep.subr.mxu0 0.0
    %1564 = vmatpush1.xpose.msra.mxu0 0.0
    %1565 = vmatprep.subr.mxu0 0.0
    %1566 = vmatpush1.xpose.msra.mxu0 0.0
    %1567 = vmatprep.subr.mxu0 0.0
    %1568 = vmatpush1.xpose.msra.mxu0 0.0
    %1569 = vmatprep.subr.mxu0 0.0
    %1570 = vmatpush1.xpose.msra.mxu0 0.0
    %1571 = vmatprep.subr.mxu0 0.0
    %1572 = vmatpush1.xpose.msra.mxu0 0.0
    %1573 = vmatprep.subr.mxu0 0.0
    %1574 = vmatpush1.xpose.msra.mxu0 0.0
    %1575 = vmatprep.subr.mxu0 0.0
    %1576 = vmatpush1.xpose.msra.mxu0 0.0
    %1577 = vmatprep.subr.mxu0 0.0
    %1578 = vmatpush1.xpose.msra.mxu0 0.0
    %1579 = vmatprep.subr.mxu0 0.0
    %1580 = vmatpush1.xpose.msra.mxu0 0.0
    %1581 = vmatprep.subr.mxu0 0.0
    %1582 = vmatpush1.xpose.msra.mxu0 0.0
    %1583 = vmatprep.subr.mxu0 0.0
    %1584 = vmatpush1.xpose.msra.mxu0 0.0
    %1585 = vmatprep.subr.mxu0 0.0
    %1586 = vmatpush1.xpose.msra.mxu0 0.0
    %1587 = vmatprep.subr.mxu0 0.0
    %1588 = vmatpush1.xpose.msra.mxu0 0.0
    %1589 = vmatprep.mubr.f32.mxu0 0.0
    %v1590 = vand.u32 %v1172, 4294901760
    %1591 = vmatmul.mubr.f32.gmra.mrb[0].mxu0 %v1590
    %v1592 = vpop.f32.mrb[0].mxu0
    %v1593 = vadd.f32 %v1510, %v1592
    %v1594 = vpop.f32.mrb[0].mxu0
    %1595 = vdwg.mxu0
    %1596 = vmatprep.subr.mxu0 0.0
    %v1597 = vand.u32 %v1175, 4294901760
    %1598 = vmatpush1.xpose.msra.mxu0 %v1597
    %1599 = vmatprep.subr.mxu0 0.0
    %v1600 = vand.u32 %v1178, 4294901760
    %1601 = vmatpush1.xpose.msra.mxu0 %v1600
    %1602 = vmatprep.subr.mxu0 0.0
    %v1603 = vand.u32 %v1181, 4294901760
    %1604 = vmatpush1.xpose.msra.mxu0 %v1603
    %1605 = vmatprep.subr.mxu0 0.0
    %v1606 = vand.u32 %v1184, 4294901760
    %1607 = vmatpush1.xpose.msra.mxu0 %v1606
    %1608 = vmatprep.subr.mxu0 0.0
    %1609 = vmatpush1.xpose.msra.mxu0 0.0
    %1610 = vmatprep.subr.mxu0 0.0
    %1611 = vmatpush1.xpose.msra.mxu0 0.0
    %1612 = vmatprep.subr.mxu0 0.0
    %1613 = vmatpush1.xpose.msra.mxu0 0.0
    %1614 = vmatprep.subr.mxu0 0.0
    %1615 = vmatpush1.xpose.msra.mxu0 0.0
    %1616 = vmatprep.subr.mxu0 0.0
    %1617 = vmatpush1.xpose.msra.mxu0 0.0
    %1618 = vmatprep.subr.mxu0 0.0
    %1619 = vmatpush1.xpose.msra.mxu0 0.0
    %1620 = vmatprep.subr.mxu0 0.0
    %1621 = vmatpush1.xpose.msra.mxu0 0.0
    %1622 = vmatprep.subr.mxu0 0.0
    %1623 = vmatpush1.xpose.msra.mxu0 0.0
    %1624 = vmatprep.subr.mxu0 0.0
    %1625 = vmatpush1.xpose.msra.mxu0 0.0
    %1626 = vmatprep.subr.mxu0 0.0
    %1627 = vmatpush1.xpose.msra.mxu0 0.0
    %1628 = vmatprep.subr.mxu0 0.0
    %1629 = vmatpush1.xpose.msra.mxu0 0.0
    %1630 = vmatprep.subr.mxu0 0.0
    %1631 = vmatpush1.xpose.msra.mxu0 0.0
    %1632 = vmatprep.subr.mxu0 0.0
    %1633 = vmatpush1.xpose.msra.mxu0 0.0
    %1634 = vmatprep.subr.mxu0 0.0
    %1635 = vmatpush1.xpose.msra.mxu0 0.0
    %1636 = vmatprep.subr.mxu0 0.0
    %1637 = vmatpush1.xpose.msra.mxu0 0.0
    %1638 = vmatprep.subr.mxu0 0.0
    %1639 = vmatpush1.xpose.msra.mxu0 0.0
    %1640 = vmatprep.subr.mxu0 0.0
    %1641 = vmatpush1.xpose.msra.mxu0 0.0
    %1642 = vmatprep.subr.mxu0 0.0
    %1643 = vmatpush1.xpose.msra.mxu0 0.0
    %1644 = vmatprep.subr.mxu0 0.0
    %1645 = vmatpush1.xpose.msra.mxu0 0.0
    %1646 = vmatprep.subr.mxu0 0.0
    %1647 = vmatpush1.xpose.msra.mxu0 0.0
    %1648 = vmatprep.subr.mxu0 0.0
    %1649 = vmatpush1.xpose.msra.mxu0 0.0
    %1650 = vmatprep.subr.mxu0 0.0
    %1651 = vmatpush1.xpose.msra.mxu0 0.0
    %1652 = vmatprep.subr.mxu0 0.0
    %1653 = vmatpush1.xpose.msra.mxu0 0.0
    %1654 = vmatprep.subr.mxu0 0.0
    %1655 = vmatpush1.xpose.msra.mxu0 0.0
    %1656 = vmatprep.subr.mxu0 0.0
    %1657 = vmatpush1.xpose.msra.mxu0 0.0
    %1658 = vmatprep.subr.mxu0 0.0
    %1659 = vmatpush1.xpose.msra.mxu0 0.0
    %1660 = vmatprep.subr.mxu0 0.0
    %1661 = vmatpush1.xpose.msra.mxu0 0.0
    %1662 = vmatprep.subr.mxu0 0.0
    %1663 = vmatpush1.xpose.msra.mxu0 0.0
    %1664 = vmatprep.mubr.f32.mxu0 0.0
    %v1665 = vand.u32 %v1172, 4294901760
    %1666 = vmatmul.mubr.f32.gmra.mrb[0].mxu0 %v1665
    %v1667 = vpop.f32.mrb[0].mxu0
    %v1668 = vadd.f32 %v1593, %v1667
    %v1669 = vpop.f32.mrb[0].mxu0
    %1670 = vdwg.mxu0
    %v1671 = vsel %vm19, %v1668, -inf
    %1672 = vmax.xlane.f32.xlu0 %v1671
    %v1673 = vpop.xlane.xlu0 %1672
    %v1674 = vmax.f32 %v1673, 1e-30
    %v1675 = vrcp.pop %v1674
    %v1676 = vmul.f32 %v1668, %v1675
    %1677 = vst.msk [vmem:[#allocation5 + $0x6] sm:$0x1] %vm19, %v1676
    %v1679 = vsel %vm37, %v1168, 0
    %1681 = vmatprep.subr.mxu0 0.0
    %v1682 = vand.u32 %v148, 4294901760
    %1683 = vmatpush1.msra.mxu0 %v1682
    %1684 = vmatprep.subr.mxu0 0.0
    %v1685 = vand.u32 %v150, 4294901760
    %1686 = vmatpush1.msra.mxu0 %v1685
    %1687 = vmatprep.subr.mxu0 0.0
    %v1688 = vand.u32 %v152, 4294901760
    %1689 = vmatpush1.msra.mxu0 %v1688
    %1690 = vmatprep.subr.mxu0 0.0
    %v1691 = vand.u32 %v154, 4294901760
    %1692 = vmatpush1.msra.mxu0 %v1691
    %1693 = vmatprep.subr.mxu0 0.0
    %1694 = vmatpush1.msra.mxu0 0.0
    %1695 = vmatprep.subr.mxu0 0.0
    %1696 = vmatpush1.msra.mxu0 0.0
    %1697 = vmatprep.subr.mxu0 0.0
    %1698 = vmatpush1.msra.mxu0 0.0
    %1699 = vmatprep.subr.mxu0 0.0
    %1700 = vmatpush1.msra.mxu0 0.0
    %1701 = vmatprep.subr.mxu0 0.0
    %1702 = vmatpush1.msra.mxu0 0.0
    %1703 = vmatprep.subr.mxu0 0.0
    %1704 = vmatpush1.msra.mxu0 0.0
    %1705 = vmatprep.subr.mxu0 0.0
    %1706 = vmatpush1.msra.mxu0 0.0
    %1707 = vmatprep.subr.mxu0 0.0
    %1708 = vmatpush1.msra.mxu0 0.0
    %1709 = vmatprep.subr.mxu0 0.0
    %1710 = vmatpush1.msra.mxu0 0.0
    %1711 = vmatprep.subr.mxu0 0.0
    %1712 = vmatpush1.msra.mxu0 0.0
    %1713 = vmatprep.subr.mxu0 0.0
    %1714 = vmatpush1.msra.mxu0 0.0
    %1715 = vmatprep.subr.mxu0 0.0
    %1716 = vmatpush1.msra.mxu0 0.0
    %1717 = vmatprep.subr.mxu0 0.0
    %1718 = vmatpush1.msra.mxu0 0.0
    %1719 = vmatprep.subr.mxu0 0.0
    %1720 = vmatpush1.msra.mxu0 0.0
    %1721 = vmatprep.subr.mxu0 0.0
    %1722 = vmatpush1.msra.mxu0 0.0
    %1723 = vmatprep.subr.mxu0 0.0
    %1724 = vmatpush1.msra.mxu0 0.0
    %1725 = vmatprep.subr.mxu0 0.0
    %1726 = vmatpush1.msra.mxu0 0.0
    %1727 = vmatprep.subr.mxu0 0.0
    %1728 = vmatpush1.msra.mxu0 0.0
    %1729 = vmatprep.subr.mxu0 0.0
    %1730 = vmatpush1.msra.mxu0 0.0
    %1731 = vmatprep.subr.mxu0 0.0
    %1732 = vmatpush1.msra.mxu0 0.0
    %1733 = vmatprep.subr.mxu0 0.0
    %1734 = vmatpush1.msra.mxu0 0.0
    %1735 = vmatprep.subr.mxu0 0.0
    %1736 = vmatpush1.msra.mxu0 0.0
    %1737 = vmatprep.subr.mxu0 0.0
    %1738 = vmatpush1.msra.mxu0 0.0
    %1739 = vmatprep.subr.mxu0 0.0
    %1740 = vmatpush1.msra.mxu0 0.0
    %1741 = vmatprep.subr.mxu0 0.0
    %1742 = vmatpush1.msra.mxu0 0.0
    %1743 = vmatprep.subr.mxu0 0.0
    %1744 = vmatpush1.msra.mxu0 0.0
    %1745 = vmatprep.subr.mxu0 0.0
    %1746 = vmatpush1.msra.mxu0 0.0
    %1747 = vmatprep.subr.mxu0 0.0
    %1748 = vmatpush1.msra.mxu0 0.0
    %1749 = vmatprep.mubr.f32.mxu0 0.0
    %v1750 = vand.u32 %v1679, 4294901760
    %v1751 = vsub.f32 %v1679, %v1750
    %v1752 = vand.u32 %v1751, 4294901760
    %v1753 = vsub.f32 %v1751, %v1752
    %v1754 = vand.u32 %v1753, 4294901760
    %1755 = vmatmul.mubr.f32.gmra.mrb[0].mxu0 %v1754
    %v1756 = vpop.f32.mrb[0].mxu0
    %v1757 = vadd.f32 0.0, %v1756
    %v1758 = vpop.f32.mrb[0].mxu0
    %1759 = vdwg.mxu0
    %1760 = vmatprep.subr.mxu0 0.0
    %v1761 = vand.u32 %v148, 4294901760
    %v1762 = vsub.f32 %v148, %v1761
    %v1763 = vand.u32 %v1762, 4294901760
    %v1764 = vsub.f32 %v1762, %v1763
    %v1765 = vand.u32 %v1764, 4294901760
    %1766 = vmatpush1.msra.mxu0 %v1765
    %1767 = vmatprep.subr.mxu0 0.0
    %v1768 = vand.u32 %v150, 4294901760
    %v1769 = vsub.f32 %v150, %v1768
    %v1770 = vand.u32 %v1769, 4294901760
    %v1771 = vsub.f32 %v1769, %v1770
    %v1772 = vand.u32 %v1771, 4294901760
    %1773 = vmatpush1.msra.mxu0 %v1772
    %1774 = vmatprep.subr.mxu0 0.0
    %v1775 = vand.u32 %v152, 4294901760
    %v1776 = vsub.f32 %v152, %v1775
    %v1777 = vand.u32 %v1776, 4294901760
    %v1778 = vsub.f32 %v1776, %v1777
    %v1779 = vand.u32 %v1778, 4294901760
    %1780 = vmatpush1.msra.mxu0 %v1779
    %1781 = vmatprep.subr.mxu0 0.0
    %v1782 = vand.u32 %v154, 4294901760
    %v1783 = vsub.f32 %v154, %v1782
    %v1784 = vand.u32 %v1783, 4294901760
    %v1785 = vsub.f32 %v1783, %v1784
    %v1786 = vand.u32 %v1785, 4294901760
    %1787 = vmatpush1.msra.mxu0 %v1786
    %1788 = vmatprep.subr.mxu0 0.0
    %1789 = vmatpush1.msra.mxu0 0.0
    %1790 = vmatprep.subr.mxu0 0.0
    %1791 = vmatpush1.msra.mxu0 0.0
    %1792 = vmatprep.subr.mxu0 0.0
    %1793 = vmatpush1.msra.mxu0 0.0
    %1794 = vmatprep.subr.mxu0 0.0
    %1795 = vmatpush1.msra.mxu0 0.0
    %1796 = vmatprep.subr.mxu0 0.0
    %1797 = vmatpush1.msra.mxu0 0.0
    %1798 = vmatprep.subr.mxu0 0.0
    %1799 = vmatpush1.msra.mxu0 0.0
    %1800 = vmatprep.subr.mxu0 0.0
    %1801 = vmatpush1.msra.mxu0 0.0
    %1802 = vmatprep.subr.mxu0 0.0
    %1803 = vmatpush1.msra.mxu0 0.0
    %1804 = vmatprep.subr.mxu0 0.0
    %1805 = vmatpush1.msra.mxu0 0.0
    %1806 = vmatprep.subr.mxu0 0.0
    %1807 = vmatpush1.msra.mxu0 0.0
    %1808 = vmatprep.subr.mxu0 0.0
    %1809 = vmatpush1.msra.mxu0 0.0
    %1810 = vmatprep.subr.mxu0 0.0
    %1811 = vmatpush1.msra.mxu0 0.0
    %1812 = vmatprep.subr.mxu0 0.0
    %1813 = vmatpush1.msra.mxu0 0.0
    %1814 = vmatprep.subr.mxu0 0.0
    %1815 = vmatpush1.msra.mxu0 0.0
    %1816 = vmatprep.subr.mxu0 0.0
    %1817 = vmatpush1.msra.mxu0 0.0
    %1818 = vmatprep.subr.mxu0 0.0
    %1819 = vmatpush1.msra.mxu0 0.0
    %1820 = vmatprep.subr.mxu0 0.0
    %1821 = vmatpush1.msra.mxu0 0.0
    %1822 = vmatprep.subr.mxu0 0.0
    %1823 = vmatpush1.msra.mxu0 0.0
    %1824 = vmatprep.subr.mxu0 0.0
    %1825 = vmatpush1.msra.mxu0 0.0
    %1826 = vmatprep.subr.mxu0 0.0
    %1827 = vmatpush1.msra.mxu0 0.0
    %1828 = vmatprep.subr.mxu0 0.0
    %1829 = vmatpush1.msra.mxu0 0.0
    %1830 = vmatprep.subr.mxu0 0.0
    %1831 = vmatpush1.msra.mxu0 0.0
    %1832 = vmatprep.subr.mxu0 0.0
    %1833 = vmatpush1.msra.mxu0 0.0
    %1834 = vmatprep.subr.mxu0 0.0
    %1835 = vmatpush1.msra.mxu0 0.0
    %1836 = vmatprep.subr.mxu0 0.0
    %1837 = vmatpush1.msra.mxu0 0.0
    %1838 = vmatprep.subr.mxu0 0.0
    %1839 = vmatpush1.msra.mxu0 0.0
    %1840 = vmatprep.subr.mxu0 0.0
    %1841 = vmatpush1.msra.mxu0 0.0
    %1842 = vmatprep.subr.mxu0 0.0
    %1843 = vmatpush1.msra.mxu0 0.0
    %1844 = vmatprep.mubr.f32.mxu0 0.0
    %v1845 = vand.u32 %v1679, 4294901760
    %1846 = vmatmul.mubr.f32.gmra.mrb[0].mxu0 %v1845
    %v1847 = vpop.f32.mrb[0].mxu0
    %v1848 = vadd.f32 %v1757, %v1847
    %v1849 = vpop.f32.mrb[0].mxu0
    %1850 = vdwg.mxu0
    %1851 = vmatprep.subr.mxu0 0.0
    %v1852 = vand.u32 %v148, 4294901760
    %v1853 = vsub.f32 %v148, %v1852
    %1854 = vmatpush1.msra.mxu0 %v1853
    %1855 = vmatprep.subr.mxu0 0.0
    %v1856 = vand.u32 %v150, 4294901760
    %v1857 = vsub.f32 %v150, %v1856
    %1858 = vmatpush1.msra.mxu0 %v1857
    %1859 = vmatprep.subr.mxu0 0.0
    %v1860 = vand.u32 %v152, 4294901760
    %v1861 = vsub.f32 %v152, %v1860
    %1862 = vmatpush1.msra.mxu0 %v1861
    %1863 = vmatprep.subr.mxu0 0.0
    %v1864 = vand.u32 %v154, 4294901760
    %v1865 = vsub.f32 %v154, %v1864
    %1866 = vmatpush1.msra.mxu0 %v1865
    %1867 = vmatprep.subr.mxu0 0.0
    %1868 = vmatpush1.msra.mxu0 0.0
    %1869 = vmatprep.subr.mxu0 0.0
    %1870 = vmatpush1.msra.mxu0 0.0
    %1871 = vmatprep.subr.mxu0 0.0
    %1872 = vmatpush1.msra.mxu0 0.0
    %1873 = vmatprep.subr.mxu0 0.0
    %1874 = vmatpush1.msra.mxu0 0.0
    %1875 = vmatprep.subr.mxu0 0.0
    %1876 = vmatpush1.msra.mxu0 0.0
    %1877 = vmatprep.subr.mxu0 0.0
    %1878 = vmatpush1.msra.mxu0 0.0
    %1879 = vmatprep.subr.mxu0 0.0
    %1880 = vmatpush1.msra.mxu0 0.0
    %1881 = vmatprep.subr.mxu0 0.0
    %1882 = vmatpush1.msra.mxu0 0.0
    %1883 = vmatprep.subr.mxu0 0.0
    %1884 = vmatpush1.msra.mxu0 0.0
    %1885 = vmatprep.subr.mxu0 0.0
    %1886 = vmatpush1.msra.mxu0 0.0
    %1887 = vmatprep.subr.mxu0 0.0
    %1888 = vmatpush1.msra.mxu0 0.0
    %1889 = vmatprep.subr.mxu0 0.0
    %1890 = vmatpush1.msra.mxu0 0.0
    %1891 = vmatprep.subr.mxu0 0.0
    %1892 = vmatpush1.msra.mxu0 0.0
    %1893 = vmatprep.subr.mxu0 0.0
    %1894 = vmatpush1.msra.mxu0 0.0
    %1895 = vmatprep.subr.mxu0 0.0
    %1896 = vmatpush1.msra.mxu0 0.0
    %1897 = vmatprep.subr.mxu0 0.0
    %1898 = vmatpush1.msra.mxu0 0.0
    %1899 = vmatprep.subr.mxu0 0.0
    %1900 = vmatpush1.msra.mxu0 0.0
    %1901 = vmatprep.subr.mxu0 0.0
    %1902 = vmatpush1.msra.mxu0 0.0
    %1903 = vmatprep.subr.mxu0 0.0
    %1904 = vmatpush1.msra.mxu0 0.0
    %1905 = vmatprep.subr.mxu0 0.0
    %1906 = vmatpush1.msra.mxu0 0.0
    %1907 = vmatprep.subr.mxu0 0.0
    %1908 = vmatpush1.msra.mxu0 0.0
    %1909 = vmatprep.subr.mxu0 0.0
    %1910 = vmatpush1.msra.mxu0 0.0
    %1911 = vmatprep.subr.mxu0 0.0
    %1912 = vmatpush1.msra.mxu0 0.0
    %1913 = vmatprep.subr.mxu0 0.0
    %1914 = vmatpush1.msra.mxu0 0.0
    %1915 = vmatprep.subr.mxu0 0.0
    %1916 = vmatpush1.msra.mxu0 0.0
    %1917 = vmatprep.subr.mxu0 0.0
    %1918 = vmatpush1.msra.mxu0 0.0
    %1919 = vmatprep.subr.mxu0 0.0
    %1920 = vmatpush1.msra.mxu0 0.0
    %1921 = vmatprep.subr.mxu0 0.0
    %1922 = vmatpush1.msra.mxu0 0.0
    %1923 = vmatprep.mubr.f32.mxu0 0.0
    %v1924 = vand.u32 %v1679, 4294901760
    %v1925 = vsub.f32 %v1679, %v1924
    %1926 = vmatmul.mubr.f32.gmra.mrb[0].mxu0 %v1925
    %v1927 = vpop.f32.mrb[0].mxu0
    %v1928 = vadd.f32 %v1848, %v1927
    %v1929 = vpop.f32.mrb[0].mxu0
    %1930 = vdwg.mxu0
    %1931 = vmatprep.subr.mxu0 0.0
    %v1932 = vand.u32 %v148, 4294901760
    %1933 = vmatpush1.msra.mxu0 %v1932
    %1934 = vmatprep.subr.mxu0 0.0
    %v1935 = vand.u32 %v150, 4294901760
    %1936 = vmatpush1.msra.mxu0 %v1935
    %1937 = vmatprep.subr.mxu0 0.0
    %v1938 = vand.u32 %v152, 4294901760
    %1939 = vmatpush1.msra.mxu0 %v1938
    %1940 = vmatprep.subr.mxu0 0.0
    %v1941 = vand.u32 %v154, 4294901760
    %1942 = vmatpush1.msra.mxu0 %v1941
    %1943 = vmatprep.subr.mxu0 0.0
    %1944 = vmatpush1.msra.mxu0 0.0
    %1945 = vmatprep.subr.mxu0 0.0
    %1946 = vmatpush1.msra.mxu0 0.0
    %1947 = vmatprep.subr.mxu0 0.0
    %1948 = vmatpush1.msra.mxu0 0.0
    %1949 = vmatprep.subr.mxu0 0.0
    %1950 = vmatpush1.msra.mxu0 0.0
    %1951 = vmatprep.subr.mxu0 0.0
    %1952 = vmatpush1.msra.mxu0 0.0
    %1953 = vmatprep.subr.mxu0 0.0
    %1954 = vmatpush1.msra.mxu0 0.0
    %1955 = vmatprep.subr.mxu0 0.0
    %1956 = vmatpush1.msra.mxu0 0.0
    %1957 = vmatprep.subr.mxu0 0.0
    %1958 = vmatpush1.msra.mxu0 0.0
    %1959 = vmatprep.subr.mxu0 0.0
    %1960 = vmatpush1.msra.mxu0 0.0
    %1961 = vmatprep.subr.mxu0 0.0
    %1962 = vmatpush1.msra.mxu0 0.0
    %1963 = vmatprep.subr.mxu0 0.0
    %1964 = vmatpush1.msra.mxu0 0.0
    %1965 = vmatprep.subr.mxu0 0.0
    %1966 = vmatpush1.msra.mxu0 0.0
    %1967 = vmatprep.subr.mxu0 0.0
    %1968 = vmatpush1.msra.mxu0 0.0
    %1969 = vmatprep.subr.mxu0 0.0
    %1970 = vmatpush1.msra.mxu0 0.0
    %1971 = vmatprep.subr.mxu0 0.0
    %1972 = vmatpush1.msra.mxu0 0.0
    %1973 = vmatprep.subr.mxu0 0.0
    %1974 = vmatpush1.msra.mxu0 0.0
    %1975 = vmatprep.subr.mxu0 0.0
    %1976 = vmatpush1.msra.mxu0 0.0
    %1977 = vmatprep.subr.mxu0 0.0
    %1978 = vmatpush1.msra.mxu0 0.0
    %1979 = vmatprep.subr.mxu0 0.0
    %1980 = vmatpush1.msra.mxu0 0.0
    %1981 = vmatprep.subr.mxu0 0.0
    %1982 = vmatpush1.msra.mxu0 0.0
    %1983 = vmatprep.subr.mxu0 0.0
    %1984 = vmatpush1.msra.mxu0 0.0
    %1985 = vmatprep.subr.mxu0 0.0
    %1986 = vmatpush1.msra.mxu0 0.0
    %1987 = vmatprep.subr.mxu0 0.0
    %1988 = vmatpush1.msra.mxu0 0.0
    %1989 = vmatprep.subr.mxu0 0.0
    %1990 = vmatpush1.msra.mxu0 0.0
    %1991 = vmatprep.subr.mxu0 0.0
    %1992 = vmatpush1.msra.mxu0 0.0
    %1993 = vmatprep.subr.mxu0 0.0
    %1994 = vmatpush1.msra.mxu0 0.0
    %1995 = vmatprep.subr.mxu0 0.0
    %1996 = vmatpush1.msra.mxu0 0.0
    %1997 = vmatprep.subr.mxu0 0.0
    %1998 = vmatpush1.msra.mxu0 0.0
    %1999 = vmatprep.mubr.f32.mxu0 0.0
    %v2000 = vand.u32 %v1679, 4294901760
    %v2001 = vsub.f32 %v1679, %v2000
    %v2002 = vand.u32 %v2001, 4294901760
    %2003 = vmatmul.mubr.f32.gmra.mrb[0].mxu0 %v2002
    %v2004 = vpop.f32.mrb[0].mxu0
    %v2005 = vadd.f32 %v1928, %v2004
    %v2006 = vpop.f32.mrb[0].mxu0
    %2007 = vdwg.mxu0
    %2008 = vmatprep.subr.mxu0 0.0
    %v2009 = vand.u32 %v148, 4294901760
    %v2010 = vsub.f32 %v148, %v2009
    %v2011 = vand.u32 %v2010, 4294901760
    %2012 = vmatpush1.msra.mxu0 %v2011
    %2013 = vmatprep.subr.mxu0 0.0
    %v2014 = vand.u32 %v150, 4294901760
    %v2015 = vsub.f32 %v150, %v2014
    %v2016 = vand.u32 %v2015, 4294901760
    %2017 = vmatpush1.msra.mxu0 %v2016
    %2018 = vmatprep.subr.mxu0 0.0
    %v2019 = vand.u32 %v152, 4294901760
    %v2020 = vsub.f32 %v152, %v2019
    %v2021 = vand.u32 %v2020, 4294901760
    %2022 = vmatpush1.msra.mxu0 %v2021
    %2023 = vmatprep.subr.mxu0 0.0
    %v2024 = vand.u32 %v154, 4294901760
    %v2025 = vsub.f32 %v154, %v2024
    %v2026 = vand.u32 %v2025, 4294901760
    %2027 = vmatpush1.msra.mxu0 %v2026
    %2028 = vmatprep.subr.mxu0 0.0
    %2029 = vmatpush1.msra.mxu0 0.0
    %2030 = vmatprep.subr.mxu0 0.0
    %2031 = vmatpush1.msra.mxu0 0.0
    %2032 = vmatprep.subr.mxu0 0.0
    %2033 = vmatpush1.msra.mxu0 0.0
    %2034 = vmatprep.subr.mxu0 0.0
    %2035 = vmatpush1.msra.mxu0 0.0
    %2036 = vmatprep.subr.mxu0 0.0
    %2037 = vmatpush1.msra.mxu0 0.0
    %2038 = vmatprep.subr.mxu0 0.0
    %2039 = vmatpush1.msra.mxu0 0.0
    %2040 = vmatprep.subr.mxu0 0.0
    %2041 = vmatpush1.msra.mxu0 0.0
    %2042 = vmatprep.subr.mxu0 0.0
    %2043 = vmatpush1.msra.mxu0 0.0
    %2044 = vmatprep.subr.mxu0 0.0
    %2045 = vmatpush1.msra.mxu0 0.0
    %2046 = vmatprep.subr.mxu0 0.0
    %2047 = vmatpush1.msra.mxu0 0.0
    %2048 = vmatprep.subr.mxu0 0.0
    %2049 = vmatpush1.msra.mxu0 0.0
    %2050 = vmatprep.subr.mxu0 0.0
    %2051 = vmatpush1.msra.mxu0 0.0
    %2052 = vmatprep.subr.mxu0 0.0
    %2053 = vmatpush1.msra.mxu0 0.0
    %2054 = vmatprep.subr.mxu0 0.0
    %2055 = vmatpush1.msra.mxu0 0.0
    %2056 = vmatprep.subr.mxu0 0.0
    %2057 = vmatpush1.msra.mxu0 0.0
    %2058 = vmatprep.subr.mxu0 0.0
    %2059 = vmatpush1.msra.mxu0 0.0
    %2060 = vmatprep.subr.mxu0 0.0
    %2061 = vmatpush1.msra.mxu0 0.0
    %2062 = vmatprep.subr.mxu0 0.0
    %2063 = vmatpush1.msra.mxu0 0.0
    %2064 = vmatprep.subr.mxu0 0.0
    %2065 = vmatpush1.msra.mxu0 0.0
    %2066 = vmatprep.subr.mxu0 0.0
    %2067 = vmatpush1.msra.mxu0 0.0
    %2068 = vmatprep.subr.mxu0 0.0
    %2069 = vmatpush1.msra.mxu0 0.0
    %2070 = vmatprep.subr.mxu0 0.0
    %2071 = vmatpush1.msra.mxu0 0.0
    %2072 = vmatprep.subr.mxu0 0.0
    %2073 = vmatpush1.msra.mxu0 0.0
    %2074 = vmatprep.subr.mxu0 0.0
    %2075 = vmatpush1.msra.mxu0 0.0
    %2076 = vmatprep.subr.mxu0 0.0
    %2077 = vmatpush1.msra.mxu0 0.0
    %2078 = vmatprep.subr.mxu0 0.0
    %2079 = vmatpush1.msra.mxu0 0.0
    %2080 = vmatprep.subr.mxu0 0.0
    %2081 = vmatpush1.msra.mxu0 0.0
    %2082 = vmatprep.subr.mxu0 0.0
    %2083 = vmatpush1.msra.mxu0 0.0
    %2084 = vmatprep.mubr.f32.mxu0 0.0
    %v2085 = vand.u32 %v1679, 4294901760
    %2086 = vmatmul.mubr.f32.gmra.mrb[0].mxu0 %v2085
    %v2087 = vpop.f32.mrb[0].mxu0
    %v2088 = vadd.f32 %v2005, %v2087
    %v2089 = vpop.f32.mrb[0].mxu0
    %2090 = vdwg.mxu0
    %2091 = vmatprep.subr.mxu0 0.0
    %v2092 = vand.u32 %v148, 4294901760
    %2093 = vmatpush1.msra.mxu0 %v2092
    %2094 = vmatprep.subr.mxu0 0.0
    %v2095 = vand.u32 %v150, 4294901760
    %2096 = vmatpush1.msra.mxu0 %v2095
    %2097 = vmatprep.subr.mxu0 0.0
    %v2098 = vand.u32 %v152, 4294901760
    %2099 = vmatpush1.msra.mxu0 %v2098
    %2100 = vmatprep.subr.mxu0 0.0
    %v2101 = vand.u32 %v154, 4294901760
    %2102 = vmatpush1.msra.mxu0 %v2101
    %2103 = vmatprep.subr.mxu0 0.0
    %2104 = vmatpush1.msra.mxu0 0.0
    %2105 = vmatprep.subr.mxu0 0.0
    %2106 = vmatpush1.msra.mxu0 0.0
    %2107 = vmatprep.subr.mxu0 0.0
    %2108 = vmatpush1.msra.mxu0 0.0
    %2109 = vmatprep.subr.mxu0 0.0
    %2110 = vmatpush1.msra.mxu0 0.0
    %2111 = vmatprep.subr.mxu0 0.0
    %2112 = vmatpush1.msra.mxu0 0.0
    %2113 = vmatprep.subr.mxu0 0.0
    %2114 = vmatpush1.msra.mxu0 0.0
    %2115 = vmatprep.subr.mxu0 0.0
    %2116 = vmatpush1.msra.mxu0 0.0
    %2117 = vmatprep.subr.mxu0 0.0
    %2118 = vmatpush1.msra.mxu0 0.0
    %2119 = vmatprep.subr.mxu0 0.0
    %2120 = vmatpush1.msra.mxu0 0.0
    %2121 = vmatprep.subr.mxu0 0.0
    %2122 = vmatpush1.msra.mxu0 0.0
    %2123 = vmatprep.subr.mxu0 0.0
    %2124 = vmatpush1.msra.mxu0 0.0
    %2125 = vmatprep.subr.mxu0 0.0
    %2126 = vmatpush1.msra.mxu0 0.0
    %2127 = vmatprep.subr.mxu0 0.0
    %2128 = vmatpush1.msra.mxu0 0.0
    %2129 = vmatprep.subr.mxu0 0.0
    %2130 = vmatpush1.msra.mxu0 0.0
    %2131 = vmatprep.subr.mxu0 0.0
    %2132 = vmatpush1.msra.mxu0 0.0
    %2133 = vmatprep.subr.mxu0 0.0
    %2134 = vmatpush1.msra.mxu0 0.0
    %2135 = vmatprep.subr.mxu0 0.0
    %2136 = vmatpush1.msra.mxu0 0.0
    %2137 = vmatprep.subr.mxu0 0.0
    %2138 = vmatpush1.msra.mxu0 0.0
    %2139 = vmatprep.subr.mxu0 0.0
    %2140 = vmatpush1.msra.mxu0 0.0
    %2141 = vmatprep.subr.mxu0 0.0
    %2142 = vmatpush1.msra.mxu0 0.0
    %2143 = vmatprep.subr.mxu0 0.0
    %2144 = vmatpush1.msra.mxu0 0.0
    %2145 = vmatprep.subr.mxu0 0.0
    %2146 = vmatpush1.msra.mxu0 0.0
    %2147 = vmatprep.subr.mxu0 0.0
    %2148 = vmatpush1.msra.mxu0 0.0
    %2149 = vmatprep.subr.mxu0 0.0
    %2150 = vmatpush1.msra.mxu0 0.0
    %2151 = vmatprep.subr.mxu0 0.0
    %2152 = vmatpush1.msra.mxu0 0.0
    %2153 = vmatprep.subr.mxu0 0.0
    %2154 = vmatpush1.msra.mxu0 0.0
    %2155 = vmatprep.subr.mxu0 0.0
    %2156 = vmatpush1.msra.mxu0 0.0
    %2157 = vmatprep.subr.mxu0 0.0
    %2158 = vmatpush1.msra.mxu0 0.0
    %2159 = vmatprep.mubr.f32.mxu0 0.0
    %v2160 = vand.u32 %v1679, 4294901760
    %2161 = vmatmul.mubr.f32.gmra.mrb[0].mxu0 %v2160
    %v2162 = vpop.f32.mrb[0].mxu0
    %v2163 = vadd.f32 %v2088, %v2162
    %v2164 = vpop.f32.mrb[0].mxu0
    %2165 = vdwg.mxu0
    %v2166 = vld [vmem:[#allocation3 + $0x2] sm:$0x1]
    %v2167 = vmul.f32 %v2163, %v2166
    %v2168 = vsel %vm19, %v2167, -inf
    %2169 = vmax.xlane.f32.xlu0 %v2168
    %v2170 = vpop.xlane.xlu0 %2169
    %v2171 = vmax.f32 %v2170, 1e-30
    %v2172 = vrcp.pop %v2171
    %v2173 = vmul.f32 %v2167, %v2172
    %2174 = vst.msk [vmem:[#allocation4 + $0x2] sm:$0x1] %vm19, %v2173
    %v2175 = vld [vmem:[#allocation3 + $0x5] sm:$0x1]
    %v2176 = vmul.f32 %v2175, %v1676
    %v2178 = vsel %vm37, %v2176, 0
    %2180 = vmatprep.subr.mxu0 0.0
    %v2181 = vand.u32 %v1175, 4294901760
    %2182 = vmatpush1.xpose.msra.mxu0 %v2181
    %2183 = vmatprep.subr.mxu0 0.0
    %v2184 = vand.u32 %v1178, 4294901760
    %2185 = vmatpush1.xpose.msra.mxu0 %v2184
    %2186 = vmatprep.subr.mxu0 0.0
    %v2187 = vand.u32 %v1181, 4294901760
    %2188 = vmatpush1.xpose.msra.mxu0 %v2187
    %2189 = vmatprep.subr.mxu0 0.0
    %v2190 = vand.u32 %v1184, 4294901760
    %2191 = vmatpush1.xpose.msra.mxu0 %v2190
    %2192 = vmatprep.subr.mxu0 0.0
    %2193 = vmatpush1.xpose.msra.mxu0 0.0
    %2194 = vmatprep.subr.mxu0 0.0
    %2195 = vmatpush1.xpose.msra.mxu0 0.0
    %2196 = vmatprep.subr.mxu0 0.0
    %2197 = vmatpush1.xpose.msra.mxu0 0.0
    %2198 = vmatprep.subr.mxu0 0.0
    %2199 = vmatpush1.xpose.msra.mxu0 0.0
    %2200 = vmatprep.subr.mxu0 0.0
    %2201 = vmatpush1.xpose.msra.mxu0 0.0
    %2202 = vmatprep.subr.mxu0 0.0
    %2203 = vmatpush1.xpose.msra.mxu0 0.0
    %2204 = vmatprep.subr.mxu0 0.0
    %2205 = vmatpush1.xpose.msra.mxu0 0.0
    %2206 = vmatprep.subr.mxu0 0.0
    %2207 = vmatpush1.xpose.msra.mxu0 0.0
    %2208 = vmatprep.subr.mxu0 0.0
    %2209 = vmatpush1.xpose.msra.mxu0 0.0
    %2210 = vmatprep.subr.mxu0 0.0
    %2211 = vmatpush1.xpose.msra.mxu0 0.0
    %2212 = vmatprep.subr.mxu0 0.0
    %2213 = vmatpush1.xpose.msra.mxu0 0.0
    %2214 = vmatprep.subr.mxu0 0.0
    %2215 = vmatpush1.xpose.msra.mxu0 0.0
    %2216 = vmatprep.subr.mxu0 0.0
    %2217 = vmatpush1.xpose.msra.mxu0 0.0
    %2218 = vmatprep.subr.mxu0 0.0
    %2219 = vmatpush1.xpose.msra.mxu0 0.0
    %2220 = vmatprep.subr.mxu0 0.0
    %2221 = vmatpush1.xpose.msra.mxu0 0.0
    %2222 = vmatprep.subr.mxu0 0.0
    %2223 = vmatpush1.xpose.msra.mxu0 0.0
    %2224 = vmatprep.subr.mxu0 0.0
    %2225 = vmatpush1.xpose.msra.mxu0 0.0
    %2226 = vmatprep.subr.mxu0 0.0
    %2227 = vmatpush1.xpose.msra.mxu0 0.0
    %2228 = vmatprep.subr.mxu0 0.0
    %2229 = vmatpush1.xpose.msra.mxu0 0.0
    %2230 = vmatprep.subr.mxu0 0.0
    %2231 = vmatpush1.xpose.msra.mxu0 0.0
    %2232 = vmatprep.subr.mxu0 0.0
    %2233 = vmatpush1.xpose.msra.mxu0 0.0
    %2234 = vmatprep.subr.mxu0 0.0
    %2235 = vmatpush1.xpose.msra.mxu0 0.0
    %2236 = vmatprep.subr.mxu0 0.0
    %2237 = vmatpush1.xpose.msra.mxu0 0.0
    %2238 = vmatprep.subr.mxu0 0.0
    %2239 = vmatpush1.xpose.msra.mxu0 0.0
    %2240 = vmatprep.subr.mxu0 0.0
    %2241 = vmatpush1.xpose.msra.mxu0 0.0
    %2242 = vmatprep.subr.mxu0 0.0
    %2243 = vmatpush1.xpose.msra.mxu0 0.0
    %2244 = vmatprep.subr.mxu0 0.0
    %2245 = vmatpush1.xpose.msra.mxu0 0.0
    %2246 = vmatprep.subr.mxu0 0.0
    %2247 = vmatpush1.xpose.msra.mxu0 0.0
    %2248 = vmatprep.mubr.f32.mxu0 0.0
    %v2249 = vand.u32 %v2178, 4294901760
    %v2250 = vsub.f32 %v2178, %v2249
    %v2251 = vand.u32 %v2250, 4294901760
    %v2252 = vsub.f32 %v2250, %v2251
    %v2253 = vand.u32 %v2252, 4294901760
    %2254 = vmatmul.mubr.f32.gmra.mrb[0].mxu0 %v2253
    %v2255 = vpop.f32.mrb[0].mxu0
    %v2256 = vadd.f32 0.0, %v2255
    %v2257 = vpop.f32.mrb[0].mxu0
    %2258 = vdwg.mxu0
    %2259 = vmatprep.subr.mxu0 0.0
    %v2260 = vand.u32 %v1175, 4294901760
    %v2261 = vsub.f32 %v1175, %v2260
    %v2262 = vand.u32 %v2261, 4294901760
    %v2263 = vsub.f32 %v2261, %v2262
    %v2264 = vand.u32 %v2263, 4294901760
    %2265 = vmatpush1.xpose.msra.mxu0 %v2264
    %2266 = vmatprep.subr.mxu0 0.0
    %v2267 = vand.u32 %v1178, 4294901760
    %v2268 = vsub.f32 %v1178, %v2267
    %v2269 = vand.u32 %v2268, 4294901760
    %v2270 = vsub.f32 %v2268, %v2269
    %v2271 = vand.u32 %v2270, 4294901760
    %2272 = vmatpush1.xpose.msra.mxu0 %v2271
    %2273 = vmatprep.subr.mxu0 0.0
    %v2274 = vand.u32 %v1181, 4294901760
    %v2275 = vsub.f32 %v1181, %v2274
    %v2276 = vand.u32 %v2275, 4294901760
    %v2277 = vsub.f32 %v2275, %v2276
    %v2278 = vand.u32 %v2277, 4294901760
    %2279 = vmatpush1.xpose.msra.mxu0 %v2278
    %2280 = vmatprep.subr.mxu0 0.0
    %v2281 = vand.u32 %v1184, 4294901760
    %v2282 = vsub.f32 %v1184, %v2281
    %v2283 = vand.u32 %v2282, 4294901760
    %v2284 = vsub.f32 %v2282, %v2283
    %v2285 = vand.u32 %v2284, 4294901760
    %2286 = vmatpush1.xpose.msra.mxu0 %v2285
    %2287 = vmatprep.subr.mxu0 0.0
    %2288 = vmatpush1.xpose.msra.mxu0 0.0
    %2289 = vmatprep.subr.mxu0 0.0
    %2290 = vmatpush1.xpose.msra.mxu0 0.0
    %2291 = vmatprep.subr.mxu0 0.0
    %2292 = vmatpush1.xpose.msra.mxu0 0.0
    %2293 = vmatprep.subr.mxu0 0.0
    %2294 = vmatpush1.xpose.msra.mxu0 0.0
    %2295 = vmatprep.subr.mxu0 0.0
    %2296 = vmatpush1.xpose.msra.mxu0 0.0
    %2297 = vmatprep.subr.mxu0 0.0
    %2298 = vmatpush1.xpose.msra.mxu0 0.0
    %2299 = vmatprep.subr.mxu0 0.0
    %2300 = vmatpush1.xpose.msra.mxu0 0.0
    %2301 = vmatprep.subr.mxu0 0.0
    %2302 = vmatpush1.xpose.msra.mxu0 0.0
    %2303 = vmatprep.subr.mxu0 0.0
    %2304 = vmatpush1.xpose.msra.mxu0 0.0
    %2305 = vmatprep.subr.mxu0 0.0
    %2306 = vmatpush1.xpose.msra.mxu0 0.0
    %2307 = vmatprep.subr.mxu0 0.0
    %2308 = vmatpush1.xpose.msra.mxu0 0.0
    %2309 = vmatprep.subr.mxu0 0.0
    %2310 = vmatpush1.xpose.msra.mxu0 0.0
    %2311 = vmatprep.subr.mxu0 0.0
    %2312 = vmatpush1.xpose.msra.mxu0 0.0
    %2313 = vmatprep.subr.mxu0 0.0
    %2314 = vmatpush1.xpose.msra.mxu0 0.0
    %2315 = vmatprep.subr.mxu0 0.0
    %2316 = vmatpush1.xpose.msra.mxu0 0.0
    %2317 = vmatprep.subr.mxu0 0.0
    %2318 = vmatpush1.xpose.msra.mxu0 0.0
    %2319 = vmatprep.subr.mxu0 0.0
    %2320 = vmatpush1.xpose.msra.mxu0 0.0
    %2321 = vmatprep.subr.mxu0 0.0
    %2322 = vmatpush1.xpose.msra.mxu0 0.0
    %2323 = vmatprep.subr.mxu0 0.0
    %2324 = vmatpush1.xpose.msra.mxu0 0.0
    %2325 = vmatprep.subr.mxu0 0.0
    %2326 = vmatpush1.xpose.msra.mxu0 0.0
    %2327 = vmatprep.subr.mxu0 0.0
    %2328 = vmatpush1.xpose.msra.mxu0 0.0
    %2329 = vmatprep.subr.mxu0 0.0
    %2330 = vmatpush1.xpose.msra.mxu0 0.0
    %2331 = vmatprep.subr.mxu0 0.0
    %2332 = vmatpush1.xpose.msra.mxu0 0.0
    %2333 = vmatprep.subr.mxu0 0.0
    %2334 = vmatpush1.xpose.msra.mxu0 0.0
    %2335 = vmatprep.subr.mxu0 0.0
    %2336 = vmatpush1.xpose.msra.mxu0 0.0
    %2337 = vmatprep.subr.mxu0 0.0
    %2338 = vmatpush1.xpose.msra.mxu0 0.0
    %2339 = vmatprep.subr.mxu0 0.0
    %2340 = vmatpush1.xpose.msra.mxu0 0.0
    %2341 = vmatprep.subr.mxu0 0.0
    %2342 = vmatpush1.xpose.msra.mxu0 0.0
    %2343 = vmatprep.mubr.f32.mxu0 0.0
    %v2344 = vand.u32 %v2178, 4294901760
    %2345 = vmatmul.mubr.f32.gmra.mrb[0].mxu0 %v2344
    %v2346 = vpop.f32.mrb[0].mxu0
    %v2347 = vadd.f32 %v2256, %v2346
    %v2348 = vpop.f32.mrb[0].mxu0
    %2349 = vdwg.mxu0
    %2350 = vmatprep.subr.mxu0 0.0
    %v2351 = vand.u32 %v1175, 4294901760
    %v2352 = vsub.f32 %v1175, %v2351
    %2353 = vmatpush1.xpose.msra.mxu0 %v2352
    %2354 = vmatprep.subr.mxu0 0.0
    %v2355 = vand.u32 %v1178, 4294901760
    %v2356 = vsub.f32 %v1178, %v2355
    %2357 = vmatpush1.xpose.msra.mxu0 %v2356
    %2358 = vmatprep.subr.mxu0 0.0
    %v2359 = vand.u32 %v1181, 4294901760
    %v2360 = vsub.f32 %v1181, %v2359
    %2361 = vmatpush1.xpose.msra.mxu0 %v2360
    %2362 = vmatprep.subr.mxu0 0.0
    %v2363 = vand.u32 %v1184, 4294901760
    %v2364 = vsub.f32 %v1184, %v2363
    %2365 = vmatpush1.xpose.msra.mxu0 %v2364
    %2366 = vmatprep.subr.mxu0 0.0
    %2367 = vmatpush1.xpose.msra.mxu0 0.0
    %2368 = vmatprep.subr.mxu0 0.0
    %2369 = vmatpush1.xpose.msra.mxu0 0.0
    %2370 = vmatprep.subr.mxu0 0.0
    %2371 = vmatpush1.xpose.msra.mxu0 0.0
    %2372 = vmatprep.subr.mxu0 0.0
    %2373 = vmatpush1.xpose.msra.mxu0 0.0
    %2374 = vmatprep.subr.mxu0 0.0
    %2375 = vmatpush1.xpose.msra.mxu0 0.0
    %2376 = vmatprep.subr.mxu0 0.0
    %2377 = vmatpush1.xpose.msra.mxu0 0.0
    %2378 = vmatprep.subr.mxu0 0.0
    %2379 = vmatpush1.xpose.msra.mxu0 0.0
    %2380 = vmatprep.subr.mxu0 0.0
    %2381 = vmatpush1.xpose.msra.mxu0 0.0
    %2382 = vmatprep.subr.mxu0 0.0
    %2383 = vmatpush1.xpose.msra.mxu0 0.0
    %2384 = vmatprep.subr.mxu0 0.0
    %2385 = vmatpush1.xpose.msra.mxu0 0.0
    %2386 = vmatprep.subr.mxu0 0.0
    %2387 = vmatpush1.xpose.msra.mxu0 0.0
    %2388 = vmatprep.subr.mxu0 0.0
    %2389 = vmatpush1.xpose.msra.mxu0 0.0
    %2390 = vmatprep.subr.mxu0 0.0
    %2391 = vmatpush1.xpose.msra.mxu0 0.0
    %2392 = vmatprep.subr.mxu0 0.0
    %2393 = vmatpush1.xpose.msra.mxu0 0.0
    %2394 = vmatprep.subr.mxu0 0.0
    %2395 = vmatpush1.xpose.msra.mxu0 0.0
    %2396 = vmatprep.subr.mxu0 0.0
    %2397 = vmatpush1.xpose.msra.mxu0 0.0
    %2398 = vmatprep.subr.mxu0 0.0
    %2399 = vmatpush1.xpose.msra.mxu0 0.0
    %2400 = vmatprep.subr.mxu0 0.0
    %2401 = vmatpush1.xpose.msra.mxu0 0.0
    %2402 = vmatprep.subr.mxu0 0.0
    %2403 = vmatpush1.xpose.msra.mxu0 0.0
    %2404 = vmatprep.subr.mxu0 0.0
    %2405 = vmatpush1.xpose.msra.mxu0 0.0
    %2406 = vmatprep.subr.mxu0 0.0
    %2407 = vmatpush1.xpose.msra.mxu0 0.0
    %2408 = vmatprep.subr.mxu0 0.0
    %2409 = vmatpush1.xpose.msra.mxu0 0.0
    %2410 = vmatprep.subr.mxu0 0.0
    %2411 = vmatpush1.xpose.msra.mxu0 0.0
    %2412 = vmatprep.subr.mxu0 0.0
    %2413 = vmatpush1.xpose.msra.mxu0 0.0
    %2414 = vmatprep.subr.mxu0 0.0
    %2415 = vmatpush1.xpose.msra.mxu0 0.0
    %2416 = vmatprep.subr.mxu0 0.0
    %2417 = vmatpush1.xpose.msra.mxu0 0.0
    %2418 = vmatprep.subr.mxu0 0.0
    %2419 = vmatpush1.xpose.msra.mxu0 0.0
    %2420 = vmatprep.subr.mxu0 0.0
    %2421 = vmatpush1.xpose.msra.mxu0 0.0
    %2422 = vmatprep.mubr.f32.mxu0 0.0
    %v2423 = vand.u32 %v2178, 4294901760
    %v2424 = vsub.f32 %v2178, %v2423
    %2425 = vmatmul.mubr.f32.gmra.mrb[0].mxu0 %v2424
    %v2426 = vpop.f32.mrb[0].mxu0
    %v2427 = vadd.f32 %v2347, %v2426
    %v2428 = vpop.f32.mrb[0].mxu0
    %2429 = vdwg.mxu0
    %2430 = vmatprep.subr.mxu0 0.0
    %v2431 = vand.u32 %v1175, 4294901760
    %2432 = vmatpush1.xpose.msra.mxu0 %v2431
    %2433 = vmatprep.subr.mxu0 0.0
    %v2434 = vand.u32 %v1178, 4294901760
    %2435 = vmatpush1.xpose.msra.mxu0 %v2434
    %2436 = vmatprep.subr.mxu0 0.0
    %v2437 = vand.u32 %v1181, 4294901760
    %2438 = vmatpush1.xpose.msra.mxu0 %v2437
    %2439 = vmatprep.subr.mxu0 0.0
    %v2440 = vand.u32 %v1184, 4294901760
    %2441 = vmatpush1.xpose.msra.mxu0 %v2440
    %2442 = vmatprep.subr.mxu0 0.0
    %2443 = vmatpush1.xpose.msra.mxu0 0.0
    %2444 = vmatprep.subr.mxu0 0.0
    %2445 = vmatpush1.xpose.msra.mxu0 0.0
    %2446 = vmatprep.subr.mxu0 0.0
    %2447 = vmatpush1.xpose.msra.mxu0 0.0
    %2448 = vmatprep.subr.mxu0 0.0
    %2449 = vmatpush1.xpose.msra.mxu0 0.0
    %2450 = vmatprep.subr.mxu0 0.0
    %2451 = vmatpush1.xpose.msra.mxu0 0.0
    %2452 = vmatprep.subr.mxu0 0.0
    %2453 = vmatpush1.xpose.msra.mxu0 0.0
    %2454 = vmatprep.subr.mxu0 0.0
    %2455 = vmatpush1.xpose.msra.mxu0 0.0
    %2456 = vmatprep.subr.mxu0 0.0
    %2457 = vmatpush1.xpose.msra.mxu0 0.0
    %2458 = vmatprep.subr.mxu0 0.0
    %2459 = vmatpush1.xpose.msra.mxu0 0.0
    %2460 = vmatprep.subr.mxu0 0.0
    %2461 = vmatpush1.xpose.msra.mxu0 0.0
    %2462 = vmatprep.subr.mxu0 0.0
    %2463 = vmatpush1.xpose.msra.mxu0 0.0
    %2464 = vmatprep.subr.mxu0 0.0
    %2465 = vmatpush1.xpose.msra.mxu0 0.0
    %2466 = vmatprep.subr.mxu0 0.0
    %2467 = vmatpush1.xpose.msra.mxu0 0.0
    %2468 = vmatprep.subr.mxu0 0.0
    %2469 = vmatpush1.xpose.msra.mxu0 0.0
    %2470 = vmatprep.subr.mxu0 0.0
    %2471 = vmatpush1.xpose.msra.mxu0 0.0
    %2472 = vmatprep.subr.mxu0 0.0
    %2473 = vmatpush1.xpose.msra.mxu0 0.0
    %2474 = vmatprep.subr.mxu0 0.0
    %2475 = vmatpush1.xpose.msra.mxu0 0.0
    %2476 = vmatprep.subr.mxu0 0.0
    %2477 = vmatpush1.xpose.msra.mxu0 0.0
    %2478 = vmatprep.subr.mxu0 0.0
    %2479 = vmatpush1.xpose.msra.mxu0 0.0
    %2480 = vmatprep.subr.mxu0 0.0
    %2481 = vmatpush1.xpose.msra.mxu0 0.0
    %2482 = vmatprep.subr.mxu0 0.0
    %2483 = vmatpush1.xpose.msra.mxu0 0.0
    %2484 = vmatprep.subr.mxu0 0.0
    %2485 = vmatpush1.xpose.msra.mxu0 0.0
    %2486 = vmatprep.subr.mxu0 0.0
    %2487 = vmatpush1.xpose.msra.mxu0 0.0
    %2488 = vmatprep.subr.mxu0 0.0
    %2489 = vmatpush1.xpose.msra.mxu0 0.0
    %2490 = vmatprep.subr.mxu0 0.0
    %2491 = vmatpush1.xpose.msra.mxu0 0.0
    %2492 = vmatprep.subr.mxu0 0.0
    %2493 = vmatpush1.xpose.msra.mxu0 0.0
    %2494 = vmatprep.subr.mxu0 0.0
    %2495 = vmatpush1.xpose.msra.mxu0 0.0
    %2496 = vmatprep.subr.mxu0 0.0
    %2497 = vmatpush1.xpose.msra.mxu0 0.0
    %2498 = vmatprep.mubr.f32.mxu0 0.0
    %v2499 = vand.u32 %v2178, 4294901760
    %v2500 = vsub.f32 %v2178, %v2499
    %v2501 = vand.u32 %v2500, 4294901760
    %2502 = vmatmul.mubr.f32.gmra.mrb[0].mxu0 %v2501
    %v2503 = vpop.f32.mrb[0].mxu0
    %v2504 = vadd.f32 %v2427, %v2503
    %v2505 = vpop.f32.mrb[0].mxu0
    %2506 = vdwg.mxu0
    %2507 = vmatprep.subr.mxu0 0.0
    %v2508 = vand.u32 %v1175, 4294901760
    %v2509 = vsub.f32 %v1175, %v2508
    %v2510 = vand.u32 %v2509, 4294901760
    %2511 = vmatpush1.xpose.msra.mxu0 %v2510
    %2512 = vmatprep.subr.mxu0 0.0
    %v2513 = vand.u32 %v1178, 4294901760
    %v2514 = vsub.f32 %v1178, %v2513
    %v2515 = vand.u32 %v2514, 4294901760
    %2516 = vmatpush1.xpose.msra.mxu0 %v2515
    %2517 = vmatprep.subr.mxu0 0.0
    %v2518 = vand.u32 %v1181, 4294901760
    %v2519 = vsub.f32 %v1181, %v2518
    %v2520 = vand.u32 %v2519, 4294901760
    %2521 = vmatpush1.xpose.msra.mxu0 %v2520
    %2522 = vmatprep.subr.mxu0 0.0
    %v2523 = vand.u32 %v1184, 4294901760
    %v2524 = vsub.f32 %v1184, %v2523
    %v2525 = vand.u32 %v2524, 4294901760
    %2526 = vmatpush1.xpose.msra.mxu0 %v2525
    %2527 = vmatprep.subr.mxu0 0.0
    %2528 = vmatpush1.xpose.msra.mxu0 0.0
    %2529 = vmatprep.subr.mxu0 0.0
    %2530 = vmatpush1.xpose.msra.mxu0 0.0
    %2531 = vmatprep.subr.mxu0 0.0
    %2532 = vmatpush1.xpose.msra.mxu0 0.0
    %2533 = vmatprep.subr.mxu0 0.0
    %2534 = vmatpush1.xpose.msra.mxu0 0.0
    %2535 = vmatprep.subr.mxu0 0.0
    %2536 = vmatpush1.xpose.msra.mxu0 0.0
    %2537 = vmatprep.subr.mxu0 0.0
    %2538 = vmatpush1.xpose.msra.mxu0 0.0
    %2539 = vmatprep.subr.mxu0 0.0
    %2540 = vmatpush1.xpose.msra.mxu0 0.0
    %2541 = vmatprep.subr.mxu0 0.0
    %2542 = vmatpush1.xpose.msra.mxu0 0.0
    %2543 = vmatprep.subr.mxu0 0.0
    %2544 = vmatpush1.xpose.msra.mxu0 0.0
    %2545 = vmatprep.subr.mxu0 0.0
    %2546 = vmatpush1.xpose.msra.mxu0 0.0
    %2547 = vmatprep.subr.mxu0 0.0
    %2548 = vmatpush1.xpose.msra.mxu0 0.0
    %2549 = vmatprep.subr.mxu0 0.0
    %2550 = vmatpush1.xpose.msra.mxu0 0.0
    %2551 = vmatprep.subr.mxu0 0.0
    %2552 = vmatpush1.xpose.msra.mxu0 0.0
    %2553 = vmatprep.subr.mxu0 0.0
    %2554 = vmatpush1.xpose.msra.mxu0 0.0
    %2555 = vmatprep.subr.mxu0 0.0
    %2556 = vmatpush1.xpose.msra.mxu0 0.0
    %2557 = vmatprep.subr.mxu0 0.0
    %2558 = vmatpush1.xpose.msra.mxu0 0.0
    %2559 = vmatprep.subr.mxu0 0.0
    %2560 = vmatpush1.xpose.msra.mxu0 0.0
    %2561 = vmatprep.subr.mxu0 0.0
    %2562 = vmatpush1.xpose.msra.mxu0 0.0
    %2563 = vmatprep.subr.mxu0 0.0
    %2564 = vmatpush1.xpose.msra.mxu0 0.0
    %2565 = vmatprep.subr.mxu0 0.0
    %2566 = vmatpush1.xpose.msra.mxu0 0.0
    %2567 = vmatprep.subr.mxu0 0.0
    %2568 = vmatpush1.xpose.msra.mxu0 0.0
    %2569 = vmatprep.subr.mxu0 0.0
    %2570 = vmatpush1.xpose.msra.mxu0 0.0
    %2571 = vmatprep.subr.mxu0 0.0
    %2572 = vmatpush1.xpose.msra.mxu0 0.0
    %2573 = vmatprep.subr.mxu0 0.0
    %2574 = vmatpush1.xpose.msra.mxu0 0.0
    %2575 = vmatprep.subr.mxu0 0.0
    %2576 = vmatpush1.xpose.msra.mxu0 0.0
    %2577 = vmatprep.subr.mxu0 0.0
    %2578 = vmatpush1.xpose.msra.mxu0 0.0
    %2579 = vmatprep.subr.mxu0 0.0
    %2580 = vmatpush1.xpose.msra.mxu0 0.0
    %2581 = vmatprep.subr.mxu0 0.0
    %2582 = vmatpush1.xpose.msra.mxu0 0.0
    %2583 = vmatprep.mubr.f32.mxu0 0.0
    %v2584 = vand.u32 %v2178, 4294901760
    %2585 = vmatmul.mubr.f32.gmra.mrb[0].mxu0 %v2584
    %v2586 = vpop.f32.mrb[0].mxu0
    %v2587 = vadd.f32 %v2504, %v2586
    %v2588 = vpop.f32.mrb[0].mxu0
    %2589 = vdwg.mxu0
    %2590 = vmatprep.subr.mxu0 0.0
    %v2591 = vand.u32 %v1175, 4294901760
    %2592 = vmatpush1.xpose.msra.mxu0 %v2591
    %2593 = vmatprep.subr.mxu0 0.0
    %v2594 = vand.u32 %v1178, 4294901760
    %2595 = vmatpush1.xpose.msra.mxu0 %v2594
    %2596 = vmatprep.subr.mxu0 0.0
    %v2597 = vand.u32 %v1181, 4294901760
    %2598 = vmatpush1.xpose.msra.mxu0 %v2597
    %2599 = vmatprep.subr.mxu0 0.0
    %v2600 = vand.u32 %v1184, 4294901760
    %2601 = vmatpush1.xpose.msra.mxu0 %v2600
    %2602 = vmatprep.subr.mxu0 0.0
    %2603 = vmatpush1.xpose.msra.mxu0 0.0
    %2604 = vmatprep.subr.mxu0 0.0
    %2605 = vmatpush1.xpose.msra.mxu0 0.0
    %2606 = vmatprep.subr.mxu0 0.0
    %2607 = vmatpush1.xpose.msra.mxu0 0.0
    %2608 = vmatprep.subr.mxu0 0.0
    %2609 = vmatpush1.xpose.msra.mxu0 0.0
    %2610 = vmatprep.subr.mxu0 0.0
    %2611 = vmatpush1.xpose.msra.mxu0 0.0
    %2612 = vmatprep.subr.mxu0 0.0
    %2613 = vmatpush1.xpose.msra.mxu0 0.0
    %2614 = vmatprep.subr.mxu0 0.0
    %2615 = vmatpush1.xpose.msra.mxu0 0.0
    %2616 = vmatprep.subr.mxu0 0.0
    %2617 = vmatpush1.xpose.msra.mxu0 0.0
    %2618 = vmatprep.subr.mxu0 0.0
    %2619 = vmatpush1.xpose.msra.mxu0 0.0
    %2620 = vmatprep.subr.mxu0 0.0
    %2621 = vmatpush1.xpose.msra.mxu0 0.0
    %2622 = vmatprep.subr.mxu0 0.0
    %2623 = vmatpush1.xpose.msra.mxu0 0.0
    %2624 = vmatprep.subr.mxu0 0.0
    %2625 = vmatpush1.xpose.msra.mxu0 0.0
    %2626 = vmatprep.subr.mxu0 0.0
    %2627 = vmatpush1.xpose.msra.mxu0 0.0
    %2628 = vmatprep.subr.mxu0 0.0
    %2629 = vmatpush1.xpose.msra.mxu0 0.0
    %2630 = vmatprep.subr.mxu0 0.0
    %2631 = vmatpush1.xpose.msra.mxu0 0.0
    %2632 = vmatprep.subr.mxu0 0.0
    %2633 = vmatpush1.xpose.msra.mxu0 0.0
    %2634 = vmatprep.subr.mxu0 0.0
    %2635 = vmatpush1.xpose.msra.mxu0 0.0
    %2636 = vmatprep.subr.mxu0 0.0
    %2637 = vmatpush1.xpose.msra.mxu0 0.0
    %2638 = vmatprep.subr.mxu0 0.0
    %2639 = vmatpush1.xpose.msra.mxu0 0.0
    %2640 = vmatprep.subr.mxu0 0.0
    %2641 = vmatpush1.xpose.msra.mxu0 0.0
    %2642 = vmatprep.subr.mxu0 0.0
    %2643 = vmatpush1.xpose.msra.mxu0 0.0
    %2644 = vmatprep.subr.mxu0 0.0
    %2645 = vmatpush1.xpose.msra.mxu0 0.0
    %2646 = vmatprep.subr.mxu0 0.0
    %2647 = vmatpush1.xpose.msra.mxu0 0.0
    %2648 = vmatprep.subr.mxu0 0.0
    %2649 = vmatpush1.xpose.msra.mxu0 0.0
    %2650 = vmatprep.subr.mxu0 0.0
    %2651 = vmatpush1.xpose.msra.mxu0 0.0
    %2652 = vmatprep.subr.mxu0 0.0
    %2653 = vmatpush1.xpose.msra.mxu0 0.0
    %2654 = vmatprep.subr.mxu0 0.0
    %2655 = vmatpush1.xpose.msra.mxu0 0.0
    %2656 = vmatprep.subr.mxu0 0.0
    %2657 = vmatpush1.xpose.msra.mxu0 0.0
    %2658 = vmatprep.mubr.f32.mxu0 0.0
    %v2659 = vand.u32 %v2178, 4294901760
    %2660 = vmatmul.mubr.f32.gmra.mrb[0].mxu0 %v2659
    %v2661 = vpop.f32.mrb[0].mxu0
    %v2662 = vadd.f32 %v2587, %v2661
    %v2663 = vpop.f32.mrb[0].mxu0
    %2664 = vdwg.mxu0
    %v2665 = vsel %vm19, %v2662, -inf
    %2666 = vmax.xlane.f32.xlu0 %v2665
    %v2667 = vpop.xlane.xlu0 %2666
    %v2668 = vmax.f32 %v2667, 1e-30
    %v2669 = vrcp.pop %v2668
    %v2670 = vmul.f32 %v2662, %v2669
    %2671 = vst.msk [vmem:[#allocation5 + $0x5] sm:$0x1] %vm19, %v2670
    %v2673 = vsel %vm37, %v2173, 0
    %2675 = vmatprep.subr.mxu0 0.0
    %v2676 = vand.u32 %v148, 4294901760
    %2677 = vmatpush1.msra.mxu0 %v2676
    %2678 = vmatprep.subr.mxu0 0.0
    %v2679 = vand.u32 %v150, 4294901760
    %2680 = vmatpush1.msra.mxu0 %v2679
    %2681 = vmatprep.subr.mxu0 0.0
    %v2682 = vand.u32 %v152, 4294901760
    %2683 = vmatpush1.msra.mxu0 %v2682
    %2684 = vmatprep.subr.mxu0 0.0
    %v2685 = vand.u32 %v154, 4294901760
    %2686 = vmatpush1.msra.mxu0 %v2685
    %2687 = vmatprep.subr.mxu0 0.0
    %2688 = vmatpush1.msra.mxu0 0.0
    %2689 = vmatprep.subr.mxu0 0.0
    %2690 = vmatpush1.msra.mxu0 0.0
    %2691 = vmatprep.subr.mxu0 0.0
    %2692 = vmatpush1.msra.mxu0 0.0
    %2693 = vmatprep.subr.mxu0 0.0
    %2694 = vmatpush1.msra.mxu0 0.0
    %2695 = vmatprep.subr.mxu0 0.0
    %2696 = vmatpush1.msra.mxu0 0.0
    %2697 = vmatprep.subr.mxu0 0.0
    %2698 = vmatpush1.msra.mxu0 0.0
    %2699 = vmatprep.subr.mxu0 0.0
    %2700 = vmatpush1.msra.mxu0 0.0
    %2701 = vmatprep.subr.mxu0 0.0
    %2702 = vmatpush1.msra.mxu0 0.0
    %2703 = vmatprep.subr.mxu0 0.0
    %2704 = vmatpush1.msra.mxu0 0.0
    %2705 = vmatprep.subr.mxu0 0.0
    %2706 = vmatpush1.msra.mxu0 0.0
    %2707 = vmatprep.subr.mxu0 0.0
    %2708 = vmatpush1.msra.mxu0 0.0
    %2709 = vmatprep.subr.mxu0 0.0
    %2710 = vmatpush1.msra.mxu0 0.0
    %2711 = vmatprep.subr.mxu0 0.0
    %2712 = vmatpush1.msra.mxu0 0.0
    %2713 = vmatprep.subr.mxu0 0.0
    %2714 = vmatpush1.msra.mxu0 0.0
    %2715 = vmatprep.subr.mxu0 0.0
    %2716 = vmatpush1.msra.mxu0 0.0
    %2717 = vmatprep.subr.mxu0 0.0
    %2718 = vmatpush1.msra.mxu0 0.0
    %2719 = vmatprep.subr.mxu0 0.0
    %2720 = vmatpush1.msra.mxu0 0.0
    %2721 = vmatprep.subr.mxu0 0.0
    %2722 = vmatpush1.msra.mxu0 0.0
    %2723 = vmatprep.subr.mxu0 0.0
    %2724 = vmatpush1.msra.mxu0 0.0
    %2725 = vmatprep.subr.mxu0 0.0
    %2726 = vmatpush1.msra.mxu0 0.0
    %2727 = vmatprep.subr.mxu0 0.0
    %2728 = vmatpush1.msra.mxu0 0.0
    %2729 = vmatprep.subr.mxu0 0.0
    %2730 = vmatpush1.msra.mxu0 0.0
    %2731 = vmatprep.subr.mxu0 0.0
    %2732 = vmatpush1.msra.mxu0 0.0
    %2733 = vmatprep.subr.mxu0 0.0
    %2734 = vmatpush1.msra.mxu0 0.0
    %2735 = vmatprep.subr.mxu0 0.0
    %2736 = vmatpush1.msra.mxu0 0.0
    %2737 = vmatprep.subr.mxu0 0.0
    %2738 = vmatpush1.msra.mxu0 0.0
    %2739 = vmatprep.subr.mxu0 0.0
    %2740 = vmatpush1.msra.mxu0 0.0
    %2741 = vmatprep.subr.mxu0 0.0
    %2742 = vmatpush1.msra.mxu0 0.0
    %2743 = vmatprep.mubr.f32.mxu0 0.0
    %v2744 = vand.u32 %v2673, 4294901760
    %v2745 = vsub.f32 %v2673, %v2744
    %v2746 = vand.u32 %v2745, 4294901760
    %v2747 = vsub.f32 %v2745, %v2746
    %v2748 = vand.u32 %v2747, 4294901760
    %2749 = vmatmul.mubr.f32.gmra.mrb[0].mxu0 %v2748
    %v2750 = vpop.f32.mrb[0].mxu0
    %v2751 = vadd.f32 0.0, %v2750
    %v2752 = vpop.f32.mrb[0].mxu0
    %2753 = vdwg.mxu0
    %2754 = vmatprep.subr.mxu0 0.0
    %v2755 = vand.u32 %v148, 4294901760
    %v2756 = vsub.f32 %v148, %v2755
    %v2757 = vand.u32 %v2756, 4294901760
    %v2758 = vsub.f32 %v2756, %v2757
    %v2759 = vand.u32 %v2758, 4294901760
    %2760 = vmatpush1.msra.mxu0 %v2759
    %2761 = vmatprep.subr.mxu0 0.0
    %v2762 = vand.u32 %v150, 4294901760
    %v2763 = vsub.f32 %v150, %v2762
    %v2764 = vand.u32 %v2763, 4294901760
    %v2765 = vsub.f32 %v2763, %v2764
    %v2766 = vand.u32 %v2765, 4294901760
    %2767 = vmatpush1.msra.mxu0 %v2766
    %2768 = vmatprep.subr.mxu0 0.0
    %v2769 = vand.u32 %v152, 4294901760
    %v2770 = vsub.f32 %v152, %v2769
    %v2771 = vand.u32 %v2770, 4294901760
    %v2772 = vsub.f32 %v2770, %v2771
    %v2773 = vand.u32 %v2772, 4294901760
    %2774 = vmatpush1.msra.mxu0 %v2773
    %2775 = vmatprep.subr.mxu0 0.0
    %v2776 = vand.u32 %v154, 4294901760
    %v2777 = vsub.f32 %v154, %v2776
    %v2778 = vand.u32 %v2777, 4294901760
    %v2779 = vsub.f32 %v2777, %v2778
    %v2780 = vand.u32 %v2779, 4294901760
    %2781 = vmatpush1.msra.mxu0 %v2780
    %2782 = vmatprep.subr.mxu0 0.0
    %2783 = vmatpush1.msra.mxu0 0.0
    %2784 = vmatprep.subr.mxu0 0.0
    %2785 = vmatpush1.msra.mxu0 0.0
    %2786 = vmatprep.subr.mxu0 0.0
    %2787 = vmatpush1.msra.mxu0 0.0
    %2788 = vmatprep.subr.mxu0 0.0
    %2789 = vmatpush1.msra.mxu0 0.0
    %2790 = vmatprep.subr.mxu0 0.0
    %2791 = vmatpush1.msra.mxu0 0.0
    %2792 = vmatprep.subr.mxu0 0.0
    %2793 = vmatpush1.msra.mxu0 0.0
    %2794 = vmatprep.subr.mxu0 0.0
    %2795 = vmatpush1.msra.mxu0 0.0
    %2796 = vmatprep.subr.mxu0 0.0
    %2797 = vmatpush1.msra.mxu0 0.0
    %2798 = vmatprep.subr.mxu0 0.0
    %2799 = vmatpush1.msra.mxu0 0.0
    %2800 = vmatprep.subr.mxu0 0.0
    %2801 = vmatpush1.msra.mxu0 0.0
    %2802 = vmatprep.subr.mxu0 0.0
    %2803 = vmatpush1.msra.mxu0 0.0
    %2804 = vmatprep.subr.mxu0 0.0
    %2805 = vmatpush1.msra.mxu0 0.0
    %2806 = vmatprep.subr.mxu0 0.0
    %2807 = vmatpush1.msra.mxu0 0.0
    %2808 = vmatprep.subr.mxu0 0.0
    %2809 = vmatpush1.msra.mxu0 0.0
    %2810 = vmatprep.subr.mxu0 0.0
    %2811 = vmatpush1.msra.mxu0 0.0
    %2812 = vmatprep.subr.mxu0 0.0
    %2813 = vmatpush1.msra.mxu0 0.0
    %2814 = vmatprep.subr.mxu0 0.0
    %2815 = vmatpush1.msra.mxu0 0.0
    %2816 = vmatprep.subr.mxu0 0.0
    %2817 = vmatpush1.msra.mxu0 0.0
    %2818 = vmatprep.subr.mxu0 0.0
    %2819 = vmatpush1.msra.mxu0 0.0
    %2820 = vmatprep.subr.mxu0 0.0
    %2821 = vmatpush1.msra.mxu0 0.0
    %2822 = vmatprep.subr.mxu0 0.0
    %2823 = vmatpush1.msra.mxu0 0.0
    %2824 = vmatprep.subr.mxu0 0.0
    %2825 = vmatpush1.msra.mxu0 0.0
    %2826 = vmatprep.subr.mxu0 0.0
    %2827 = vmatpush1.msra.mxu0 0.0
    %2828 = vmatprep.subr.mxu0 0.0
    %2829 = vmatpush1.msra.mxu0 0.0
    %2830 = vmatprep.subr.mxu0 0.0
    %2831 = vmatpush1.msra.mxu0 0.0
    %2832 = vmatprep.subr.mxu0 0.0
    %2833 = vmatpush1.msra.mxu0 0.0
    %2834 = vmatprep.subr.mxu0 0.0
    %2835 = vmatpush1.msra.mxu0 0.0
    %2836 = vmatprep.subr.mxu0 0.0
    %2837 = vmatpush1.msra.mxu0 0.0
    %2838 = vmatprep.mubr.f32.mxu0 0.0
    %v2839 = vand.u32 %v2673, 4294901760
    %2840 = vmatmul.mubr.f32.gmra.mrb[0].mxu0 %v2839
    %v2841 = vpop.f32.mrb[0].mxu0
    %v2842 = vadd.f32 %v2751, %v2841
    %v2843 = vpop.f32.mrb[0].mxu0
    %2844 = vdwg.mxu0
    %2845 = vmatprep.subr.mxu0 0.0
    %v2846 = vand.u32 %v148, 4294901760
    %v2847 = vsub.f32 %v148, %v2846
    %2848 = vmatpush1.msra.mxu0 %v2847
    %2849 = vmatprep.subr.mxu0 0.0
    %v2850 = vand.u32 %v150, 4294901760
    %v2851 = vsub.f32 %v150, %v2850
    %2852 = vmatpush1.msra.mxu0 %v2851
    %2853 = vmatprep.subr.mxu0 0.0
    %v2854 = vand.u32 %v152, 4294901760
    %v2855 = vsub.f32 %v152, %v2854
    %2856 = vmatpush1.msra.mxu0 %v2855
    %2857 = vmatprep.subr.mxu0 0.0
    %v2858 = vand.u32 %v154, 4294901760
    %v2859 = vsub.f32 %v154, %v2858
    %2860 = vmatpush1.msra.mxu0 %v2859
    %2861 = vmatprep.subr.mxu0 0.0
    %2862 = vmatpush1.msra.mxu0 0.0
    %2863 = vmatprep.subr.mxu0 0.0
    %2864 = vmatpush1.msra.mxu0 0.0
    %2865 = vmatprep.subr.mxu0 0.0
    %2866 = vmatpush1.msra.mxu0 0.0
    %2867 = vmatprep.subr.mxu0 0.0
    %2868 = vmatpush1.msra.mxu0 0.0
    %2869 = vmatprep.subr.mxu0 0.0
    %2870 = vmatpush1.msra.mxu0 0.0
    %2871 = vmatprep.subr.mxu0 0.0
    %2872 = vmatpush1.msra.mxu0 0.0
    %2873 = vmatprep.subr.mxu0 0.0
    %2874 = vmatpush1.msra.mxu0 0.0
    %2875 = vmatprep.subr.mxu0 0.0
    %2876 = vmatpush1.msra.mxu0 0.0
    %2877 = vmatprep.subr.mxu0 0.0
    %2878 = vmatpush1.msra.mxu0 0.0
    %2879 = vmatprep.subr.mxu0 0.0
    %2880 = vmatpush1.msra.mxu0 0.0
    %2881 = vmatprep.subr.mxu0 0.0
    %2882 = vmatpush1.msra.mxu0 0.0
    %2883 = vmatprep.subr.mxu0 0.0
    %2884 = vmatpush1.msra.mxu0 0.0
    %2885 = vmatprep.subr.mxu0 0.0
    %2886 = vmatpush1.msra.mxu0 0.0
    %2887 = vmatprep.subr.mxu0 0.0
    %2888 = vmatpush1.msra.mxu0 0.0
    %2889 = vmatprep.subr.mxu0 0.0
    %2890 = vmatpush1.msra.mxu0 0.0
    %2891 = vmatprep.subr.mxu0 0.0
    %2892 = vmatpush1.msra.mxu0 0.0
    %2893 = vmatprep.subr.mxu0 0.0
    %2894 = vmatpush1.msra.mxu0 0.0
    %2895 = vmatprep.subr.mxu0 0.0
    %2896 = vmatpush1.msra.mxu0 0.0
    %2897 = vmatprep.subr.mxu0 0.0
    %2898 = vmatpush1.msra.mxu0 0.0
    %2899 = vmatprep.subr.mxu0 0.0
    %2900 = vmatpush1.msra.mxu0 0.0
    %2901 = vmatprep.subr.mxu0 0.0
    %2902 = vmatpush1.msra.mxu0 0.0
    %2903 = vmatprep.subr.mxu0 0.0
    %2904 = vmatpush1.msra.mxu0 0.0
    %2905 = vmatprep.subr.mxu0 0.0
    %2906 = vmatpush1.msra.mxu0 0.0
    %2907 = vmatprep.subr.mxu0 0.0
    %2908 = vmatpush1.msra.mxu0 0.0
    %2909 = vmatprep.subr.mxu0 0.0
    %2910 = vmatpush1.msra.mxu0 0.0
    %2911 = vmatprep.subr.mxu0 0.0
    %2912 = vmatpush1.msra.mxu0 0.0
    %2913 = vmatprep.subr.mxu0 0.0
    %2914 = vmatpush1.msra.mxu0 0.0
    %2915 = vmatprep.subr.mxu0 0.0
    %2916 = vmatpush1.msra.mxu0 0.0
    %2917 = vmatprep.mubr.f32.mxu0 0.0
    %v2918 = vand.u32 %v2673, 4294901760
    %v2919 = vsub.f32 %v2673, %v2918
    %2920 = vmatmul.mubr.f32.gmra.mrb[0].mxu0 %v2919
    %v2921 = vpop.f32.mrb[0].mxu0
    %v2922 = vadd.f32 %v2842, %v2921
    %v2923 = vpop.f32.mrb[0].mxu0
    %2924 = vdwg.mxu0
    %2925 = vmatprep.subr.mxu0 0.0
    %v2926 = vand.u32 %v148, 4294901760
    %2927 = vmatpush1.msra.mxu0 %v2926
    %2928 = vmatprep.subr.mxu0 0.0
    %v2929 = vand.u32 %v150, 4294901760
    %2930 = vmatpush1.msra.mxu0 %v2929
    %2931 = vmatprep.subr.mxu0 0.0
    %v2932 = vand.u32 %v152, 4294901760
    %2933 = vmatpush1.msra.mxu0 %v2932
    %2934 = vmatprep.subr.mxu0 0.0
    %v2935 = vand.u32 %v154, 4294901760
    %2936 = vmatpush1.msra.mxu0 %v2935
    %2937 = vmatprep.subr.mxu0 0.0
    %2938 = vmatpush1.msra.mxu0 0.0
    %2939 = vmatprep.subr.mxu0 0.0
    %2940 = vmatpush1.msra.mxu0 0.0
    %2941 = vmatprep.subr.mxu0 0.0
    %2942 = vmatpush1.msra.mxu0 0.0
    %2943 = vmatprep.subr.mxu0 0.0
    %2944 = vmatpush1.msra.mxu0 0.0
    %2945 = vmatprep.subr.mxu0 0.0
    %2946 = vmatpush1.msra.mxu0 0.0
    %2947 = vmatprep.subr.mxu0 0.0
    %2948 = vmatpush1.msra.mxu0 0.0
    %2949 = vmatprep.subr.mxu0 0.0
    %2950 = vmatpush1.msra.mxu0 0.0
    %2951 = vmatprep.subr.mxu0 0.0
    %2952 = vmatpush1.msra.mxu0 0.0
    %2953 = vmatprep.subr.mxu0 0.0
    %2954 = vmatpush1.msra.mxu0 0.0
    %2955 = vmatprep.subr.mxu0 0.0
    %2956 = vmatpush1.msra.mxu0 0.0
    %2957 = vmatprep.subr.mxu0 0.0
    %2958 = vmatpush1.msra.mxu0 0.0
    %2959 = vmatprep.subr.mxu0 0.0
    %2960 = vmatpush1.msra.mxu0 0.0
    %2961 = vmatprep.subr.mxu0 0.0
    %2962 = vmatpush1.msra.mxu0 0.0
    %2963 = vmatprep.subr.mxu0 0.0
    %2964 = vmatpush1.msra.mxu0 0.0
    %2965 = vmatprep.subr.mxu0 0.0
    %2966 = vmatpush1.msra.mxu0 0.0
    %2967 = vmatprep.subr.mxu0 0.0
    %2968 = vmatpush1.msra.mxu0 0.0
    %2969 = vmatprep.subr.mxu0 0.0
    %2970 = vmatpush1.msra.mxu0 0.0
    %2971 = vmatprep.subr.mxu0 0.0
    %2972 = vmatpush1.msra.mxu0 0.0
    %2973 = vmatprep.subr.mxu0 0.0
    %2974 = vmatpush1.msra.mxu0 0.0
    %2975 = vmatprep.subr.mxu0 0.0
    %2976 = vmatpush1.msra.mxu0 0.0
    %2977 = vmatprep.subr.mxu0 0.0
    %2978 = vmatpush1.msra.mxu0 0.0
    %2979 = vmatprep.subr.mxu0 0.0
    %2980 = vmatpush1.msra.mxu0 0.0
    %2981 = vmatprep.subr.mxu0 0.0
    %2982 = vmatpush1.msra.mxu0 0.0
    %2983 = vmatprep.subr.mxu0 0.0
    %2984 = vmatpush1.msra.mxu0 0.0
    %2985 = vmatprep.subr.mxu0 0.0
    %2986 = vmatpush1.msra.mxu0 0.0
    %2987 = vmatprep.subr.mxu0 0.0
    %2988 = vmatpush1.msra.mxu0 0.0
    %2989 = vmatprep.subr.mxu0 0.0
    %2990 = vmatpush1.msra.mxu0 0.0
    %2991 = vmatprep.subr.mxu0 0.0
    %2992 = vmatpush1.msra.mxu0 0.0
    %2993 = vmatprep.mubr.f32.mxu0 0.0
    %v2994 = vand.u32 %v2673, 4294901760
    %v2995 = vsub.f32 %v2673, %v2994
    %v2996 = vand.u32 %v2995, 4294901760
    %2997 = vmatmul.mubr.f32.gmra.mrb[0].mxu0 %v2996
    %v2998 = vpop.f32.mrb[0].mxu0
    %v2999 = vadd.f32 %v2922, %v2998
    %v3000 = vpop.f32.mrb[0].mxu0
    %3001 = vdwg.mxu0
    %3002 = vmatprep.subr.mxu0 0.0
    %v3003 = vand.u32 %v148, 4294901760
    %v3004 = vsub.f32 %v148, %v3003
    %v3005 = vand.u32 %v3004, 4294901760
    %3006 = vmatpush1.msra.mxu0 %v3005
    %3007 = vmatprep.subr.mxu0 0.0
    %v3008 = vand.u32 %v150, 4294901760
    %v3009 = vsub.f32 %v150, %v3008
    %v3010 = vand.u32 %v3009, 4294901760
    %3011 = vmatpush1.msra.mxu0 %v3010
    %3012 = vmatprep.subr.mxu0 0.0
    %v3013 = vand.u32 %v152, 4294901760
    %v3014 = vsub.f32 %v152, %v3013
    %v3015 = vand.u32 %v3014, 4294901760
    %3016 = vmatpush1.msra.mxu0 %v3015
    %3017 = vmatprep.subr.mxu0 0.0
    %v3018 = vand.u32 %v154, 4294901760
    %v3019 = vsub.f32 %v154, %v3018
    %v3020 = vand.u32 %v3019, 4294901760
    %3021 = vmatpush1.msra.mxu0 %v3020
    %3022 = vmatprep.subr.mxu0 0.0
    %3023 = vmatpush1.msra.mxu0 0.0
    %3024 = vmatprep.subr.mxu0 0.0
    %3025 = vmatpush1.msra.mxu0 0.0
    %3026 = vmatprep.subr.mxu0 0.0
    %3027 = vmatpush1.msra.mxu0 0.0
    %3028 = vmatprep.subr.mxu0 0.0
    %3029 = vmatpush1.msra.mxu0 0.0
    %3030 = vmatprep.subr.mxu0 0.0
    %3031 = vmatpush1.msra.mxu0 0.0
    %3032 = vmatprep.subr.mxu0 0.0
    %3033 = vmatpush1.msra.mxu0 0.0
    %3034 = vmatprep.subr.mxu0 0.0
    %3035 = vmatpush1.msra.mxu0 0.0
    %3036 = vmatprep.subr.mxu0 0.0
    %3037 = vmatpush1.msra.mxu0 0.0
    %3038 = vmatprep.subr.mxu0 0.0
    %3039 = vmatpush1.msra.mxu0 0.0
    %3040 = vmatprep.subr.mxu0 0.0
    %3041 = vmatpush1.msra.mxu0 0.0
    %3042 = vmatprep.subr.mxu0 0.0
    %3043 = vmatpush1.msra.mxu0 0.0
    %3044 = vmatprep.subr.mxu0 0.0
    %3045 = vmatpush1.msra.mxu0 0.0
    %3046 = vmatprep.subr.mxu0 0.0
    %3047 = vmatpush1.msra.mxu0 0.0
    %3048 = vmatprep.subr.mxu0 0.0
    %3049 = vmatpush1.msra.mxu0 0.0
    %3050 = vmatprep.subr.mxu0 0.0
    %3051 = vmatpush1.msra.mxu0 0.0
    %3052 = vmatprep.subr.mxu0 0.0
    %3053 = vmatpush1.msra.mxu0 0.0
    %3054 = vmatprep.subr.mxu0 0.0
    %3055 = vmatpush1.msra.mxu0 0.0
    %3056 = vmatprep.subr.mxu0 0.0
    %3057 = vmatpush1.msra.mxu0 0.0
    %3058 = vmatprep.subr.mxu0 0.0
    %3059 = vmatpush1.msra.mxu0 0.0
    %3060 = vmatprep.subr.mxu0 0.0
    %3061 = vmatpush1.msra.mxu0 0.0
    %3062 = vmatprep.subr.mxu0 0.0
    %3063 = vmatpush1.msra.mxu0 0.0
    %3064 = vmatprep.subr.mxu0 0.0
    %3065 = vmatpush1.msra.mxu0 0.0
    %3066 = vmatprep.subr.mxu0 0.0
    %3067 = vmatpush1.msra.mxu0 0.0
    %3068 = vmatprep.subr.mxu0 0.0
    %3069 = vmatpush1.msra.mxu0 0.0
    %3070 = vmatprep.subr.mxu0 0.0
    %3071 = vmatpush1.msra.mxu0 0.0
    %3072 = vmatprep.subr.mxu0 0.0
    %3073 = vmatpush1.msra.mxu0 0.0
    %3074 = vmatprep.subr.mxu0 0.0
    %3075 = vmatpush1.msra.mxu0 0.0
    %3076 = vmatprep.subr.mxu0 0.0
    %3077 = vmatpush1.msra.mxu0 0.0
    %3078 = vmatprep.mubr.f32.mxu0 0.0
    %v3079 = vand.u32 %v2673, 4294901760
    %3080 = vmatmul.mubr.f32.gmra.mrb[0].mxu0 %v3079
    %v3081 = vpop.f32.mrb[0].mxu0
    %v3082 = vadd.f32 %v2999, %v3081
    %v3083 = vpop.f32.mrb[0].mxu0
    %3084 = vdwg.mxu0
    %3085 = vmatprep.subr.mxu0 0.0
    %v3086 = vand.u32 %v148, 4294901760
    %3087 = vmatpush1.msra.mxu0 %v3086
    %3088 = vmatprep.subr.mxu0 0.0
    %v3089 = vand.u32 %v150, 4294901760
    %3090 = vmatpush1.msra.mxu0 %v3089
    %3091 = vmatprep.subr.mxu0 0.0
    %v3092 = vand.u32 %v152, 4294901760
    %3093 = vmatpush1.msra.mxu0 %v3092
    %3094 = vmatprep.subr.mxu0 0.0
    %v3095 = vand.u32 %v154, 4294901760
    %3096 = vmatpush1.msra.mxu0 %v3095
    %3097 = vmatprep.subr.mxu0 0.0
    %3098 = vmatpush1.msra.mxu0 0.0
    %3099 = vmatprep.subr.mxu0 0.0
    %3100 = vmatpush1.msra.mxu0 0.0
    %3101 = vmatprep.subr.mxu0 0.0
    %3102 = vmatpush1.msra.mxu0 0.0
    %3103 = vmatprep.subr.mxu0 0.0
    %3104 = vmatpush1.msra.mxu0 0.0
    %3105 = vmatprep.subr.mxu0 0.0
    %3106 = vmatpush1.msra.mxu0 0.0
    %3107 = vmatprep.subr.mxu0 0.0
    %3108 = vmatpush1.msra.mxu0 0.0
    %3109 = vmatprep.subr.mxu0 0.0
    %3110 = vmatpush1.msra.mxu0 0.0
    %3111 = vmatprep.subr.mxu0 0.0
    %3112 = vmatpush1.msra.mxu0 0.0
    %3113 = vmatprep.subr.mxu0 0.0
    %3114 = vmatpush1.msra.mxu0 0.0
    %3115 = vmatprep.subr.mxu0 0.0
    %3116 = vmatpush1.msra.mxu0 0.0
    %3117 = vmatprep.subr.mxu0 0.0
    %3118 = vmatpush1.msra.mxu0 0.0
    %3119 = vmatprep.subr.mxu0 0.0
    %3120 = vmatpush1.msra.mxu0 0.0
    %3121 = vmatprep.subr.mxu0 0.0
    %3122 = vmatpush1.msra.mxu0 0.0
    %3123 = vmatprep.subr.mxu0 0.0
    %3124 = vmatpush1.msra.mxu0 0.0
    %3125 = vmatprep.subr.mxu0 0.0
    %3126 = vmatpush1.msra.mxu0 0.0
    %3127 = vmatprep.subr.mxu0 0.0
    %3128 = vmatpush1.msra.mxu0 0.0
    %3129 = vmatprep.subr.mxu0 0.0
    %3130 = vmatpush1.msra.mxu0 0.0
    %3131 = vmatprep.subr.mxu0 0.0
    %3132 = vmatpush1.msra.mxu0 0.0
    %3133 = vmatprep.subr.mxu0 0.0
    %3134 = vmatpush1.msra.mxu0 0.0
    %3135 = vmatprep.subr.mxu0 0.0
    %3136 = vmatpush1.msra.mxu0 0.0
    %3137 = vmatprep.subr.mxu0 0.0
    %3138 = vmatpush1.msra.mxu0 0.0
    %3139 = vmatprep.subr.mxu0 0.0
    %3140 = vmatpush1.msra.mxu0 0.0
    %3141 = vmatprep.subr.mxu0 0.0
    %3142 = vmatpush1.msra.mxu0 0.0
    %3143 = vmatprep.subr.mxu0 0.0
    %3144 = vmatpush1.msra.mxu0 0.0
    %3145 = vmatprep.subr.mxu0 0.0
    %3146 = vmatpush1.msra.mxu0 0.0
    %3147 = vmatprep.subr.mxu0 0.0
    %3148 = vmatpush1.msra.mxu0 0.0
    %3149 = vmatprep.subr.mxu0 0.0
    %3150 = vmatpush1.msra.mxu0 0.0
    %3151 = vmatprep.subr.mxu0 0.0
    %3152 = vmatpush1.msra.mxu0 0.0
    %3153 = vmatprep.mubr.f32.mxu0 0.0
    %v3154 = vand.u32 %v2673, 4294901760
    %3155 = vmatmul.mubr.f32.gmra.mrb[0].mxu0 %v3154
    %v3156 = vpop.f32.mrb[0].mxu0
    %v3157 = vadd.f32 %v3082, %v3156
    %v3158 = vpop.f32.mrb[0].mxu0
    %3159 = vdwg.mxu0
    %v3160 = vld [vmem:[#allocation3 + $0x3] sm:$0x1]
    %v3161 = vmul.f32 %v3157, %v3160
    %v3162 = vsel %vm19, %v3161, -inf
    %3163 = vmax.xlane.f32.xlu0 %v3162
    %v3164 = vpop.xlane.xlu0 %3163
    %v3165 = vmax.f32 %v3164, 1e-30
    %v3166 = vrcp.pop %v3165
    %v3167 = vmul.f32 %v3161, %v3166
    %3168 = vst.msk [vmem:[#allocation4 + $0x3] sm:$0x1] %vm19, %v3167
    %v3169 = vld [vmem:[#allocation3 + $0x4] sm:$0x1]
    %v3170 = vmul.f32 %v3169, %v2670
    %v3172 = vsel %vm37, %v3170, 0
    %3174 = vmatprep.subr.mxu0 0.0
    %v3175 = vand.u32 %v1175, 4294901760
    %3176 = vmatpush1.xpose.msra.mxu0 %v3175
    %3177 = vmatprep.subr.mxu0 0.0
    %v3178 = vand.u32 %v1178, 4294901760
    %3179 = vmatpush1.xpose.msra.mxu0 %v3178
    %3180 = vmatprep.subr.mxu0 0.0
    %v3181 = vand.u32 %v1181, 4294901760
    %3182 = vmatpush1.xpose.msra.mxu0 %v3181
    %3183 = vmatprep.subr.mxu0 0.0
    %v3184 = vand.u32 %v1184, 4294901760
    %3185 = vmatpush1.xpose.msra.mxu0 %v3184
    %3186 = vmatprep.subr.mxu0 0.0
    %3187 = vmatpush1.xpose.msra.mxu0 0.0
    %3188 = vmatprep.subr.mxu0 0.0
    %3189 = vmatpush1.xpose.msra.mxu0 0.0
    %3190 = vmatprep.subr.mxu0 0.0
    %3191 = vmatpush1.xpose.msra.mxu0 0.0
    %3192 = vmatprep.subr.mxu0 0.0
    %3193 = vmatpush1.xpose.msra.mxu0 0.0
    %3194 = vmatprep.subr.mxu0 0.0
    %3195 = vmatpush1.xpose.msra.mxu0 0.0
    %3196 = vmatprep.subr.mxu0 0.0
    %3197 = vmatpush1.xpose.msra.mxu0 0.0
    %3198 = vmatprep.subr.mxu0 0.0
    %3199 = vmatpush1.xpose.msra.mxu0 0.0
    %3200 = vmatprep.subr.mxu0 0.0
    %3201 = vmatpush1.xpose.msra.mxu0 0.0
    %3202 = vmatprep.subr.mxu0 0.0
    %3203 = vmatpush1.xpose.msra.mxu0 0.0
    %3204 = vmatprep.subr.mxu0 0.0
    %3205 = vmatpush1.xpose.msra.mxu0 0.0
    %3206 = vmatprep.subr.mxu0 0.0
    %3207 = vmatpush1.xpose.msra.mxu0 0.0
    %3208 = vmatprep.subr.mxu0 0.0
    %3209 = vmatpush1.xpose.msra.mxu0 0.0
    %3210 = vmatprep.subr.mxu0 0.0
    %3211 = vmatpush1.xpose.msra.mxu0 0.0
    %3212 = vmatprep.subr.mxu0 0.0
    %3213 = vmatpush1.xpose.msra.mxu0 0.0
    %3214 = vmatprep.subr.mxu0 0.0
    %3215 = vmatpush1.xpose.msra.mxu0 0.0
    %3216 = vmatprep.subr.mxu0 0.0
    %3217 = vmatpush1.xpose.msra.mxu0 0.0
    %3218 = vmatprep.subr.mxu0 0.0
    %3219 = vmatpush1.xpose.msra.mxu0 0.0
    %3220 = vmatprep.subr.mxu0 0.0
    %3221 = vmatpush1.xpose.msra.mxu0 0.0
    %3222 = vmatprep.subr.mxu0 0.0
    %3223 = vmatpush1.xpose.msra.mxu0 0.0
    %3224 = vmatprep.subr.mxu0 0.0
    %3225 = vmatpush1.xpose.msra.mxu0 0.0
    %3226 = vmatprep.subr.mxu0 0.0
    %3227 = vmatpush1.xpose.msra.mxu0 0.0
    %3228 = vmatprep.subr.mxu0 0.0
    %3229 = vmatpush1.xpose.msra.mxu0 0.0
    %3230 = vmatprep.subr.mxu0 0.0
    %3231 = vmatpush1.xpose.msra.mxu0 0.0
    %3232 = vmatprep.subr.mxu0 0.0
    %3233 = vmatpush1.xpose.msra.mxu0 0.0
    %3234 = vmatprep.subr.mxu0 0.0
    %3235 = vmatpush1.xpose.msra.mxu0 0.0
    %3236 = vmatprep.subr.mxu0 0.0
    %3237 = vmatpush1.xpose.msra.mxu0 0.0
    %3238 = vmatprep.subr.mxu0 0.0
    %3239 = vmatpush1.xpose.msra.mxu0 0.0
    %3240 = vmatprep.subr.mxu0 0.0
    %3241 = vmatpush1.xpose.msra.mxu0 0.0
    %3242 = vmatprep.mubr.f32.mxu0 0.0
    %v3243 = vand.u32 %v3172, 4294901760
    %v3244 = vsub.f32 %v3172, %v3243
    %v3245 = vand.u32 %v3244, 4294901760
    %v3246 = vsub.f32 %v3244, %v3245
    %v3247 = vand.u32 %v3246, 4294901760
    %3248 = vmatmul.mubr.f32.gmra.mrb[0].mxu0 %v3247
    %v3249 = vpop.f32.mrb[0].mxu0
    %v3250 = vadd.f32 0.0, %v3249
    %v3251 = vpop.f32.mrb[0].mxu0
    %3252 = vdwg.mxu0
    %3253 = vmatprep.subr.mxu0 0.0
    %v3254 = vand.u32 %v1175, 4294901760
    %v3255 = vsub.f32 %v1175, %v3254
    %v3256 = vand.u32 %v3255, 4294901760
    %v3257 = vsub.f32 %v3255, %v3256
    %v3258 = vand.u32 %v3257, 4294901760
    %3259 = vmatpush1.xpose.msra.mxu0 %v3258
    %3260 = vmatprep.subr.mxu0 0.0
    %v3261 = vand.u32 %v1178, 4294901760
    %v3262 = vsub.f32 %v1178, %v3261
    %v3263 = vand.u32 %v3262, 4294901760
    %v3264 = vsub.f32 %v3262, %v3263
    %v3265 = vand.u32 %v3264, 4294901760
    %3266 = vmatpush1.xpose.msra.mxu0 %v3265
    %3267 = vmatprep.subr.mxu0 0.0
    %v3268 = vand.u32 %v1181, 4294901760
    %v3269 = vsub.f32 %v1181, %v3268
    %v3270 = vand.u32 %v3269, 4294901760
    %v3271 = vsub.f32 %v3269, %v3270
    %v3272 = vand.u32 %v3271, 4294901760
    %3273 = vmatpush1.xpose.msra.mxu0 %v3272
    %3274 = vmatprep.subr.mxu0 0.0
    %v3275 = vand.u32 %v1184, 4294901760
    %v3276 = vsub.f32 %v1184, %v3275
    %v3277 = vand.u32 %v3276, 4294901760
    %v3278 = vsub.f32 %v3276, %v3277
    %v3279 = vand.u32 %v3278, 4294901760
    %3280 = vmatpush1.xpose.msra.mxu0 %v3279
    %3281 = vmatprep.subr.mxu0 0.0
    %3282 = vmatpush1.xpose.msra.mxu0 0.0
    %3283 = vmatprep.subr.mxu0 0.0
    %3284 = vmatpush1.xpose.msra.mxu0 0.0
    %3285 = vmatprep.subr.mxu0 0.0
    %3286 = vmatpush1.xpose.msra.mxu0 0.0
    %3287 = vmatprep.subr.mxu0 0.0
    %3288 = vmatpush1.xpose.msra.mxu0 0.0
    %3289 = vmatprep.subr.mxu0 0.0
    %3290 = vmatpush1.xpose.msra.mxu0 0.0
    %3291 = vmatprep.subr.mxu0 0.0
    %3292 = vmatpush1.xpose.msra.mxu0 0.0
    %3293 = vmatprep.subr.mxu0 0.0
    %3294 = vmatpush1.xpose.msra.mxu0 0.0
    %3295 = vmatprep.subr.mxu0 0.0
    %3296 = vmatpush1.xpose.msra.mxu0 0.0
    %3297 = vmatprep.subr.mxu0 0.0
    %3298 = vmatpush1.xpose.msra.mxu0 0.0
    %3299 = vmatprep.subr.mxu0 0.0
    %3300 = vmatpush1.xpose.msra.mxu0 0.0
    %3301 = vmatprep.subr.mxu0 0.0
    %3302 = vmatpush1.xpose.msra.mxu0 0.0
    %3303 = vmatprep.subr.mxu0 0.0
    %3304 = vmatpush1.xpose.msra.mxu0 0.0
    %3305 = vmatprep.subr.mxu0 0.0
    %3306 = vmatpush1.xpose.msra.mxu0 0.0
    %3307 = vmatprep.subr.mxu0 0.0
    %3308 = vmatpush1.xpose.msra.mxu0 0.0
    %3309 = vmatprep.subr.mxu0 0.0
    %3310 = vmatpush1.xpose.msra.mxu0 0.0
    %3311 = vmatprep.subr.mxu0 0.0
    %3312 = vmatpush1.xpose.msra.mxu0 0.0
    %3313 = vmatprep.subr.mxu0 0.0
    %3314 = vmatpush1.xpose.msra.mxu0 0.0
    %3315 = vmatprep.subr.mxu0 0.0
    %3316 = vmatpush1.xpose.msra.mxu0 0.0
    %3317 = vmatprep.subr.mxu0 0.0
    %3318 = vmatpush1.xpose.msra.mxu0 0.0
    %3319 = vmatprep.subr.mxu0 0.0
    %3320 = vmatpush1.xpose.msra.mxu0 0.0
    %3321 = vmatprep.subr.mxu0 0.0
    %3322 = vmatpush1.xpose.msra.mxu0 0.0
    %3323 = vmatprep.subr.mxu0 0.0
    %3324 = vmatpush1.xpose.msra.mxu0 0.0
    %3325 = vmatprep.subr.mxu0 0.0
    %3326 = vmatpush1.xpose.msra.mxu0 0.0
    %3327 = vmatprep.subr.mxu0 0.0
    %3328 = vmatpush1.xpose.msra.mxu0 0.0
    %3329 = vmatprep.subr.mxu0 0.0
    %3330 = vmatpush1.xpose.msra.mxu0 0.0
    %3331 = vmatprep.subr.mxu0 0.0
    %3332 = vmatpush1.xpose.msra.mxu0 0.0
    %3333 = vmatprep.subr.mxu0 0.0
    %3334 = vmatpush1.xpose.msra.mxu0 0.0
    %3335 = vmatprep.subr.mxu0 0.0
    %3336 = vmatpush1.xpose.msra.mxu0 0.0
    %3337 = vmatprep.mubr.f32.mxu0 0.0
    %v3338 = vand.u32 %v3172, 4294901760
    %3339 = vmatmul.mubr.f32.gmra.mrb[0].mxu0 %v3338
    %v3340 = vpop.f32.mrb[0].mxu0
    %v3341 = vadd.f32 %v3250, %v3340
    %v3342 = vpop.f32.mrb[0].mxu0
    %3343 = vdwg.mxu0
    %3344 = vmatprep.subr.mxu0 0.0
    %v3345 = vand.u32 %v1175, 4294901760
    %v3346 = vsub.f32 %v1175, %v3345
    %3347 = vmatpush1.xpose.msra.mxu0 %v3346
    %3348 = vmatprep.subr.mxu0 0.0
    %v3349 = vand.u32 %v1178, 4294901760
    %v3350 = vsub.f32 %v1178, %v3349
    %3351 = vmatpush1.xpose.msra.mxu0 %v3350
    %3352 = vmatprep.subr.mxu0 0.0
    %v3353 = vand.u32 %v1181, 4294901760
    %v3354 = vsub.f32 %v1181, %v3353
    %3355 = vmatpush1.xpose.msra.mxu0 %v3354
    %3356 = vmatprep.subr.mxu0 0.0
    %v3357 = vand.u32 %v1184, 4294901760
    %v3358 = vsub.f32 %v1184, %v3357
    %3359 = vmatpush1.xpose.msra.mxu0 %v3358
    %3360 = vmatprep.subr.mxu0 0.0
    %3361 = vmatpush1.xpose.msra.mxu0 0.0
    %3362 = vmatprep.subr.mxu0 0.0
    %3363 = vmatpush1.xpose.msra.mxu0 0.0
    %3364 = vmatprep.subr.mxu0 0.0
    %3365 = vmatpush1.xpose.msra.mxu0 0.0
    %3366 = vmatprep.subr.mxu0 0.0
    %3367 = vmatpush1.xpose.msra.mxu0 0.0
    %3368 = vmatprep.subr.mxu0 0.0
    %3369 = vmatpush1.xpose.msra.mxu0 0.0
    %3370 = vmatprep.subr.mxu0 0.0
    %3371 = vmatpush1.xpose.msra.mxu0 0.0
    %3372 = vmatprep.subr.mxu0 0.0
    %3373 = vmatpush1.xpose.msra.mxu0 0.0
    %3374 = vmatprep.subr.mxu0 0.0
    %3375 = vmatpush1.xpose.msra.mxu0 0.0
    %3376 = vmatprep.subr.mxu0 0.0
    %3377 = vmatpush1.xpose.msra.mxu0 0.0
    %3378 = vmatprep.subr.mxu0 0.0
    %3379 = vmatpush1.xpose.msra.mxu0 0.0
    %3380 = vmatprep.subr.mxu0 0.0
    %3381 = vmatpush1.xpose.msra.mxu0 0.0
    %3382 = vmatprep.subr.mxu0 0.0
    %3383 = vmatpush1.xpose.msra.mxu0 0.0
    %3384 = vmatprep.subr.mxu0 0.0
    %3385 = vmatpush1.xpose.msra.mxu0 0.0
    %3386 = vmatprep.subr.mxu0 0.0
    %3387 = vmatpush1.xpose.msra.mxu0 0.0
    %3388 = vmatprep.subr.mxu0 0.0
    %3389 = vmatpush1.xpose.msra.mxu0 0.0
    %3390 = vmatprep.subr.mxu0 0.0
    %3391 = vmatpush1.xpose.msra.mxu0 0.0
    %3392 = vmatprep.subr.mxu0 0.0
    %3393 = vmatpush1.xpose.msra.mxu0 0.0
    %3394 = vmatprep.subr.mxu0 0.0
    %3395 = vmatpush1.xpose.msra.mxu0 0.0
    %3396 = vmatprep.subr.mxu0 0.0
    %3397 = vmatpush1.xpose.msra.mxu0 0.0
    %3398 = vmatprep.subr.mxu0 0.0
    %3399 = vmatpush1.xpose.msra.mxu0 0.0
    %3400 = vmatprep.subr.mxu0 0.0
    %3401 = vmatpush1.xpose.msra.mxu0 0.0
    %3402 = vmatprep.subr.mxu0 0.0
    %3403 = vmatpush1.xpose.msra.mxu0 0.0
    %3404 = vmatprep.subr.mxu0 0.0
    %3405 = vmatpush1.xpose.msra.mxu0 0.0
    %3406 = vmatprep.subr.mxu0 0.0
    %3407 = vmatpush1.xpose.msra.mxu0 0.0
    %3408 = vmatprep.subr.mxu0 0.0
    %3409 = vmatpush1.xpose.msra.mxu0 0.0
    %3410 = vmatprep.subr.mxu0 0.0
    %3411 = vmatpush1.xpose.msra.mxu0 0.0
    %3412 = vmatprep.subr.mxu0 0.0
    %3413 = vmatpush1.xpose.msra.mxu0 0.0
    %3414 = vmatprep.subr.mxu0 0.0
    %3415 = vmatpush1.xpose.msra.mxu0 0.0
    %3416 = vmatprep.mubr.f32.mxu0 0.0
    %v3417 = vand.u32 %v3172, 4294901760
    %v3418 = vsub.f32 %v3172, %v3417
    %3419 = vmatmul.mubr.f32.gmra.mrb[0].mxu0 %v3418
    %v3420 = vpop.f32.mrb[0].mxu0
    %v3421 = vadd.f32 %v3341, %v3420
    %v3422 = vpop.f32.mrb[0].mxu0
    %3423 = vdwg.mxu0
    %3424 = vmatprep.subr.mxu0 0.0
    %v3425 = vand.u32 %v1175, 4294901760
    %3426 = vmatpush1.xpose.msra.mxu0 %v3425
    %3427 = vmatprep.subr.mxu0 0.0
    %v3428 = vand.u32 %v1178, 4294901760
    %3429 = vmatpush1.xpose.msra.mxu0 %v3428
    %3430 = vmatprep.subr.mxu0 0.0
    %v3431 = vand.u32 %v1181, 4294901760
    %3432 = vmatpush1.xpose.msra.mxu0 %v3431
    %3433 = vmatprep.subr.mxu0 0.0
    %v3434 = vand.u32 %v1184, 4294901760
    %3435 = vmatpush1.xpose.msra.mxu0 %v3434
    %3436 = vmatprep.subr.mxu0 0.0
    %3437 = vmatpush1.xpose.msra.mxu0 0.0
    %3438 = vmatprep.subr.mxu0 0.0
    %3439 = vmatpush1.xpose.msra.mxu0 0.0
    %3440 = vmatprep.subr.mxu0 0.0
    %3441 = vmatpush1.xpose.msra.mxu0 0.0
    %3442 = vmatprep.subr.mxu0 0.0
    %3443 = vmatpush1.xpose.msra.mxu0 0.0
    %3444 = vmatprep.subr.mxu0 0.0
    %3445 = vmatpush1.xpose.msra.mxu0 0.0
    %3446 = vmatprep.subr.mxu0 0.0
    %3447 = vmatpush1.xpose.msra.mxu0 0.0
    %3448 = vmatprep.subr.mxu0 0.0
    %3449 = vmatpush1.xpose.msra.mxu0 0.0
    %3450 = vmatprep.subr.mxu0 0.0
    %3451 = vmatpush1.xpose.msra.mxu0 0.0
    %3452 = vmatprep.subr.mxu0 0.0
    %3453 = vmatpush1.xpose.msra.mxu0 0.0
    %3454 = vmatprep.subr.mxu0 0.0
    %3455 = vmatpush1.xpose.msra.mxu0 0.0
    %3456 = vmatprep.subr.mxu0 0.0
    %3457 = vmatpush1.xpose.msra.mxu0 0.0
    %3458 = vmatprep.subr.mxu0 0.0
    %3459 = vmatpush1.xpose.msra.mxu0 0.0
    %3460 = vmatprep.subr.mxu0 0.0
    %3461 = vmatpush1.xpose.msra.mxu0 0.0
    %3462 = vmatprep.subr.mxu0 0.0
    %3463 = vmatpush1.xpose.msra.mxu0 0.0
    %3464 = vmatprep.subr.mxu0 0.0
    %3465 = vmatpush1.xpose.msra.mxu0 0.0
    %3466 = vmatprep.subr.mxu0 0.0
    %3467 = vmatpush1.xpose.msra.mxu0 0.0
    %3468 = vmatprep.subr.mxu0 0.0
    %3469 = vmatpush1.xpose.msra.mxu0 0.0
    %3470 = vmatprep.subr.mxu0 0.0
    %3471 = vmatpush1.xpose.msra.mxu0 0.0
    %3472 = vmatprep.subr.mxu0 0.0
    %3473 = vmatpush1.xpose.msra.mxu0 0.0
    %3474 = vmatprep.subr.mxu0 0.0
    %3475 = vmatpush1.xpose.msra.mxu0 0.0
    %3476 = vmatprep.subr.mxu0 0.0
    %3477 = vmatpush1.xpose.msra.mxu0 0.0
    %3478 = vmatprep.subr.mxu0 0.0
    %3479 = vmatpush1.xpose.msra.mxu0 0.0
    %3480 = vmatprep.subr.mxu0 0.0
    %3481 = vmatpush1.xpose.msra.mxu0 0.0
    %3482 = vmatprep.subr.mxu0 0.0
    %3483 = vmatpush1.xpose.msra.mxu0 0.0
    %3484 = vmatprep.subr.mxu0 0.0
    %3485 = vmatpush1.xpose.msra.mxu0 0.0
    %3486 = vmatprep.subr.mxu0 0.0
    %3487 = vmatpush1.xpose.msra.mxu0 0.0
    %3488 = vmatprep.subr.mxu0 0.0
    %3489 = vmatpush1.xpose.msra.mxu0 0.0
    %3490 = vmatprep.subr.mxu0 0.0
    %3491 = vmatpush1.xpose.msra.mxu0 0.0
    %3492 = vmatprep.mubr.f32.mxu0 0.0
    %v3493 = vand.u32 %v3172, 4294901760
    %v3494 = vsub.f32 %v3172, %v3493
    %v3495 = vand.u32 %v3494, 4294901760
    %3496 = vmatmul.mubr.f32.gmra.mrb[0].mxu0 %v3495
    %v3497 = vpop.f32.mrb[0].mxu0
    %v3498 = vadd.f32 %v3421, %v3497
    %v3499 = vpop.f32.mrb[0].mxu0
    %3500 = vdwg.mxu0
    %3501 = vmatprep.subr.mxu0 0.0
    %v3502 = vand.u32 %v1175, 4294901760
    %v3503 = vsub.f32 %v1175, %v3502
    %v3504 = vand.u32 %v3503, 4294901760
    %3505 = vmatpush1.xpose.msra.mxu0 %v3504
    %3506 = vmatprep.subr.mxu0 0.0
    %v3507 = vand.u32 %v1178, 4294901760
    %v3508 = vsub.f32 %v1178, %v3507
    %v3509 = vand.u32 %v3508, 4294901760
    %3510 = vmatpush1.xpose.msra.mxu0 %v3509
    %3511 = vmatprep.subr.mxu0 0.0
    %v3512 = vand.u32 %v1181, 4294901760
    %v3513 = vsub.f32 %v1181, %v3512
    %v3514 = vand.u32 %v3513, 4294901760
    %3515 = vmatpush1.xpose.msra.mxu0 %v3514
    %3516 = vmatprep.subr.mxu0 0.0
    %v3517 = vand.u32 %v1184, 4294901760
    %v3518 = vsub.f32 %v1184, %v3517
    %v3519 = vand.u32 %v3518, 4294901760
    %3520 = vmatpush1.xpose.msra.mxu0 %v3519
    %3521 = vmatprep.subr.mxu0 0.0
    %3522 = vmatpush1.xpose.msra.mxu0 0.0
    %3523 = vmatprep.subr.mxu0 0.0
    %3524 = vmatpush1.xpose.msra.mxu0 0.0
    %3525 = vmatprep.subr.mxu0 0.0
    %3526 = vmatpush1.xpose.msra.mxu0 0.0
    %3527 = vmatprep.subr.mxu0 0.0
    %3528 = vmatpush1.xpose.msra.mxu0 0.0
    %3529 = vmatprep.subr.mxu0 0.0
    %3530 = vmatpush1.xpose.msra.mxu0 0.0
    %3531 = vmatprep.subr.mxu0 0.0
    %3532 = vmatpush1.xpose.msra.mxu0 0.0
    %3533 = vmatprep.subr.mxu0 0.0
    %3534 = vmatpush1.xpose.msra.mxu0 0.0
    %3535 = vmatprep.subr.mxu0 0.0
    %3536 = vmatpush1.xpose.msra.mxu0 0.0
    %3537 = vmatprep.subr.mxu0 0.0
    %3538 = vmatpush1.xpose.msra.mxu0 0.0
    %3539 = vmatprep.subr.mxu0 0.0
    %3540 = vmatpush1.xpose.msra.mxu0 0.0
    %3541 = vmatprep.subr.mxu0 0.0
    %3542 = vmatpush1.xpose.msra.mxu0 0.0
    %3543 = vmatprep.subr.mxu0 0.0
    %3544 = vmatpush1.xpose.msra.mxu0 0.0
    %3545 = vmatprep.subr.mxu0 0.0
    %3546 = vmatpush1.xpose.msra.mxu0 0.0
    %3547 = vmatprep.subr.mxu0 0.0
    %3548 = vmatpush1.xpose.msra.mxu0 0.0
    %3549 = vmatprep.subr.mxu0 0.0
    %3550 = vmatpush1.xpose.msra.mxu0 0.0
    %3551 = vmatprep.subr.mxu0 0.0
    %3552 = vmatpush1.xpose.msra.mxu0 0.0
    %3553 = vmatprep.subr.mxu0 0.0
    %3554 = vmatpush1.xpose.msra.mxu0 0.0
    %3555 = vmatprep.subr.mxu0 0.0
    %3556 = vmatpush1.xpose.msra.mxu0 0.0
    %3557 = vmatprep.subr.mxu0 0.0
    %3558 = vmatpush1.xpose.msra.mxu0 0.0
    %3559 = vmatprep.subr.mxu0 0.0
    %3560 = vmatpush1.xpose.msra.mxu0 0.0
    %3561 = vmatprep.subr.mxu0 0.0
    %3562 = vmatpush1.xpose.msra.mxu0 0.0
    %3563 = vmatprep.subr.mxu0 0.0
    %3564 = vmatpush1.xpose.msra.mxu0 0.0
    %3565 = vmatprep.subr.mxu0 0.0
    %3566 = vmatpush1.xpose.msra.mxu0 0.0
    %3567 = vmatprep.subr.mxu0 0.0
    %3568 = vmatpush1.xpose.msra.mxu0 0.0
    %3569 = vmatprep.subr.mxu0 0.0
    %3570 = vmatpush1.xpose.msra.mxu0 0.0
    %3571 = vmatprep.subr.mxu0 0.0
    %3572 = vmatpush1.xpose.msra.mxu0 0.0
    %3573 = vmatprep.subr.mxu0 0.0
    %3574 = vmatpush1.xpose.msra.mxu0 0.0
    %3575 = vmatprep.subr.mxu0 0.0
    %3576 = vmatpush1.xpose.msra.mxu0 0.0
    %3577 = vmatprep.mubr.f32.mxu0 0.0
    %v3578 = vand.u32 %v3172, 4294901760
    %3579 = vmatmul.mubr.f32.gmra.mrb[0].mxu0 %v3578
    %v3580 = vpop.f32.mrb[0].mxu0
    %v3581 = vadd.f32 %v3498, %v3580
    %v3582 = vpop.f32.mrb[0].mxu0
    %3583 = vdwg.mxu0
    %3584 = vmatprep.subr.mxu0 0.0
    %v3585 = vand.u32 %v1175, 4294901760
    %3586 = vmatpush1.xpose.msra.mxu0 %v3585
    %3587 = vmatprep.subr.mxu0 0.0
    %v3588 = vand.u32 %v1178, 4294901760
    %3589 = vmatpush1.xpose.msra.mxu0 %v3588
    %3590 = vmatprep.subr.mxu0 0.0
    %v3591 = vand.u32 %v1181, 4294901760
    %3592 = vmatpush1.xpose.msra.mxu0 %v3591
    %3593 = vmatprep.subr.mxu0 0.0
    %v3594 = vand.u32 %v1184, 4294901760
    %3595 = vmatpush1.xpose.msra.mxu0 %v3594
    %3596 = vmatprep.subr.mxu0 0.0
    %3597 = vmatpush1.xpose.msra.mxu0 0.0
    %3598 = vmatprep.subr.mxu0 0.0
    %3599 = vmatpush1.xpose.msra.mxu0 0.0
    %3600 = vmatprep.subr.mxu0 0.0
    %3601 = vmatpush1.xpose.msra.mxu0 0.0
    %3602 = vmatprep.subr.mxu0 0.0
    %3603 = vmatpush1.xpose.msra.mxu0 0.0
    %3604 = vmatprep.subr.mxu0 0.0
    %3605 = vmatpush1.xpose.msra.mxu0 0.0
    %3606 = vmatprep.subr.mxu0 0.0
    %3607 = vmatpush1.xpose.msra.mxu0 0.0
    %3608 = vmatprep.subr.mxu0 0.0
    %3609 = vmatpush1.xpose.msra.mxu0 0.0
    %3610 = vmatprep.subr.mxu0 0.0
    %3611 = vmatpush1.xpose.msra.mxu0 0.0
    %3612 = vmatprep.subr.mxu0 0.0
    %3613 = vmatpush1.xpose.msra.mxu0 0.0
    %3614 = vmatprep.subr.mxu0 0.0
    %3615 = vmatpush1.xpose.msra.mxu0 0.0
    %3616 = vmatprep.subr.mxu0 0.0
    %3617 = vmatpush1.xpose.msra.mxu0 0.0
    %3618 = vmatprep.subr.mxu0 0.0
    %3619 = vmatpush1.xpose.msra.mxu0 0.0
    %3620 = vmatprep.subr.mxu0 0.0
    %3621 = vmatpush1.xpose.msra.mxu0 0.0
    %3622 = vmatprep.subr.mxu0 0.0
    %3623 = vmatpush1.xpose.msra.mxu0 0.0
    %3624 = vmatprep.subr.mxu0 0.0
    %3625 = vmatpush1.xpose.msra.mxu0 0.0
    %3626 = vmatprep.subr.mxu0 0.0
    %3627 = vmatpush1.xpose.msra.mxu0 0.0
    %3628 = vmatprep.subr.mxu0 0.0
    %3629 = vmatpush1.xpose.msra.mxu0 0.0
    %3630 = vmatprep.subr.mxu0 0.0
    %3631 = vmatpush1.xpose.msra.mxu0 0.0
    %3632 = vmatprep.subr.mxu0 0.0
    %3633 = vmatpush1.xpose.msra.mxu0 0.0
    %3634 = vmatprep.subr.mxu0 0.0
    %3635 = vmatpush1.xpose.msra.mxu0 0.0
    %3636 = vmatprep.subr.mxu0 0.0
    %3637 = vmatpush1.xpose.msra.mxu0 0.0
    %3638 = vmatprep.subr.mxu0 0.0
    %3639 = vmatpush1.xpose.msra.mxu0 0.0
    %3640 = vmatprep.subr.mxu0 0.0
    %3641 = vmatpush1.xpose.msra.mxu0 0.0
    %3642 = vmatprep.subr.mxu0 0.0
    %3643 = vmatpush1.xpose.msra.mxu0 0.0
    %3644 = vmatprep.subr.mxu0 0.0
    %3645 = vmatpush1.xpose.msra.mxu0 0.0
    %3646 = vmatprep.subr.mxu0 0.0
    %3647 = vmatpush1.xpose.msra.mxu0 0.0
    %3648 = vmatprep.subr.mxu0 0.0
    %3649 = vmatpush1.xpose.msra.mxu0 0.0
    %3650 = vmatprep.subr.mxu0 0.0
    %3651 = vmatpush1.xpose.msra.mxu0 0.0
    %3652 = vmatprep.mubr.f32.mxu0 0.0
    %v3653 = vand.u32 %v3172, 4294901760
    %3654 = vmatmul.mubr.f32.gmra.mrb[0].mxu0 %v3653
    %v3655 = vpop.f32.mrb[0].mxu0
    %v3656 = vadd.f32 %v3581, %v3655
    %v3657 = vpop.f32.mrb[0].mxu0
    %3658 = vdwg.mxu0
    %v3659 = vsel %vm19, %v3656, -inf
    %3660 = vmax.xlane.f32.xlu0 %v3659
    %v3661 = vpop.xlane.xlu0 %3660
    %v3662 = vmax.f32 %v3661, 1e-30
    %v3663 = vrcp.pop %v3662
    %v3664 = vmul.f32 %v3656, %v3663
    %3665 = vst.msk [vmem:[#allocation5 + $0x4] sm:$0x1] %vm19, %v3664
    %v3667 = vsel %vm37, %v3167, 0
    %3669 = vmatprep.subr.mxu0 0.0
    %v3670 = vand.u32 %v148, 4294901760
    %3671 = vmatpush1.msra.mxu0 %v3670
    %3672 = vmatprep.subr.mxu0 0.0
    %v3673 = vand.u32 %v150, 4294901760
    %3674 = vmatpush1.msra.mxu0 %v3673
    %3675 = vmatprep.subr.mxu0 0.0
    %v3676 = vand.u32 %v152, 4294901760
    %3677 = vmatpush1.msra.mxu0 %v3676
    %3678 = vmatprep.subr.mxu0 0.0
    %v3679 = vand.u32 %v154, 4294901760
    %3680 = vmatpush1.msra.mxu0 %v3679
    %3681 = vmatprep.subr.mxu0 0.0
    %3682 = vmatpush1.msra.mxu0 0.0
    %3683 = vmatprep.subr.mxu0 0.0
    %3684 = vmatpush1.msra.mxu0 0.0
    %3685 = vmatprep.subr.mxu0 0.0
    %3686 = vmatpush1.msra.mxu0 0.0
    %3687 = vmatprep.subr.mxu0 0.0
    %3688 = vmatpush1.msra.mxu0 0.0
    %3689 = vmatprep.subr.mxu0 0.0
    %3690 = vmatpush1.msra.mxu0 0.0
    %3691 = vmatprep.subr.mxu0 0.0
    %3692 = vmatpush1.msra.mxu0 0.0
    %3693 = vmatprep.subr.mxu0 0.0
    %3694 = vmatpush1.msra.mxu0 0.0
    %3695 = vmatprep.subr.mxu0 0.0
    %3696 = vmatpush1.msra.mxu0 0.0
    %3697 = vmatprep.subr.mxu0 0.0
    %3698 = vmatpush1.msra.mxu0 0.0
    %3699 = vmatprep.subr.mxu0 0.0
    %3700 = vmatpush1.msra.mxu0 0.0
    %3701 = vmatprep.subr.mxu0 0.0
    %3702 = vmatpush1.msra.mxu0 0.0
    %3703 = vmatprep.subr.mxu0 0.0
    %3704 = vmatpush1.msra.mxu0 0.0
    %3705 = vmatprep.subr.mxu0 0.0
    %3706 = vmatpush1.msra.mxu0 0.0
    %3707 = vmatprep.subr.mxu0 0.0
    %3708 = vmatpush1.msra.mxu0 0.0
    %3709 = vmatprep.subr.mxu0 0.0
    %3710 = vmatpush1.msra.mxu0 0.0
    %3711 = vmatprep.subr.mxu0 0.0
    %3712 = vmatpush1.msra.mxu0 0.0
    %3713 = vmatprep.subr.mxu0 0.0
    %3714 = vmatpush1.msra.mxu0 0.0
    %3715 = vmatprep.subr.mxu0 0.0
    %3716 = vmatpush1.msra.mxu0 0.0
    %3717 = vmatprep.subr.mxu0 0.0
    %3718 = vmatpush1.msra.mxu0 0.0
    %3719 = vmatprep.subr.mxu0 0.0
    %3720 = vmatpush1.msra.mxu0 0.0
    %3721 = vmatprep.subr.mxu0 0.0
    %3722 = vmatpush1.msra.mxu0 0.0
    %3723 = vmatprep.subr.mxu0 0.0
    %3724 = vmatpush1.msra.mxu0 0.0
    %3725 = vmatprep.subr.mxu0 0.0
    %3726 = vmatpush1.msra.mxu0 0.0
    %3727 = vmatprep.subr.mxu0 0.0
    %3728 = vmatpush1.msra.mxu0 0.0
    %3729 = vmatprep.subr.mxu0 0.0
    %3730 = vmatpush1.msra.mxu0 0.0
    %3731 = vmatprep.subr.mxu0 0.0
    %3732 = vmatpush1.msra.mxu0 0.0
    %3733 = vmatprep.subr.mxu0 0.0
    %3734 = vmatpush1.msra.mxu0 0.0
    %3735 = vmatprep.subr.mxu0 0.0
    %3736 = vmatpush1.msra.mxu0 0.0
    %3737 = vmatprep.mubr.f32.mxu0 0.0
    %v3738 = vand.u32 %v3667, 4294901760
    %v3739 = vsub.f32 %v3667, %v3738
    %v3740 = vand.u32 %v3739, 4294901760
    %v3741 = vsub.f32 %v3739, %v3740
    %v3742 = vand.u32 %v3741, 4294901760
    %3743 = vmatmul.mubr.f32.gmra.mrb[0].mxu0 %v3742
    %v3744 = vpop.f32.mrb[0].mxu0
    %v3745 = vadd.f32 0.0, %v3744
    %v3746 = vpop.f32.mrb[0].mxu0
    %3747 = vdwg.mxu0
    %3748 = vmatprep.subr.mxu0 0.0
    %v3749 = vand.u32 %v148, 4294901760
    %v3750 = vsub.f32 %v148, %v3749
    %v3751 = vand.u32 %v3750, 4294901760
    %v3752 = vsub.f32 %v3750, %v3751
    %v3753 = vand.u32 %v3752, 4294901760
    %3754 = vmatpush1.msra.mxu0 %v3753
    %3755 = vmatprep.subr.mxu0 0.0
    %v3756 = vand.u32 %v150, 4294901760
    %v3757 = vsub.f32 %v150, %v3756
    %v3758 = vand.u32 %v3757, 4294901760
    %v3759 = vsub.f32 %v3757, %v3758
    %v3760 = vand.u32 %v3759, 4294901760
    %3761 = vmatpush1.msra.mxu0 %v3760
    %3762 = vmatprep.subr.mxu0 0.0
    %v3763 = vand.u32 %v152, 4294901760
    %v3764 = vsub.f32 %v152, %v3763
    %v3765 = vand.u32 %v3764, 4294901760
    %v3766 = vsub.f32 %v3764, %v3765
    %v3767 = vand.u32 %v3766, 4294901760
    %3768 = vmatpush1.msra.mxu0 %v3767
    %3769 = vmatprep.subr.mxu0 0.0
    %v3770 = vand.u32 %v154, 4294901760
    %v3771 = vsub.f32 %v154, %v3770
    %v3772 = vand.u32 %v3771, 4294901760
    %v3773 = vsub.f32 %v3771, %v3772
    %v3774 = vand.u32 %v3773, 4294901760
    %3775 = vmatpush1.msra.mxu0 %v3774
    %3776 = vmatprep.subr.mxu0 0.0
    %3777 = vmatpush1.msra.mxu0 0.0
    %3778 = vmatprep.subr.mxu0 0.0
    %3779 = vmatpush1.msra.mxu0 0.0
    %3780 = vmatprep.subr.mxu0 0.0
    %3781 = vmatpush1.msra.mxu0 0.0
    %3782 = vmatprep.subr.mxu0 0.0
    %3783 = vmatpush1.msra.mxu0 0.0
    %3784 = vmatprep.subr.mxu0 0.0
    %3785 = vmatpush1.msra.mxu0 0.0
    %3786 = vmatprep.subr.mxu0 0.0
    %3787 = vmatpush1.msra.mxu0 0.0
    %3788 = vmatprep.subr.mxu0 0.0
    %3789 = vmatpush1.msra.mxu0 0.0
    %3790 = vmatprep.subr.mxu0 0.0
    %3791 = vmatpush1.msra.mxu0 0.0
    %3792 = vmatprep.subr.mxu0 0.0
    %3793 = vmatpush1.msra.mxu0 0.0
    %3794 = vmatprep.subr.mxu0 0.0
    %3795 = vmatpush1.msra.mxu0 0.0
    %3796 = vmatprep.subr.mxu0 0.0
    %3797 = vmatpush1.msra.mxu0 0.0
    %3798 = vmatprep.subr.mxu0 0.0
    %3799 = vmatpush1.msra.mxu0 0.0
    %3800 = vmatprep.subr.mxu0 0.0
    %3801 = vmatpush1.msra.mxu0 0.0
    %3802 = vmatprep.subr.mxu0 0.0
    %3803 = vmatpush1.msra.mxu0 0.0
    %3804 = vmatprep.subr.mxu0 0.0
    %3805 = vmatpush1.msra.mxu0 0.0
    %3806 = vmatprep.subr.mxu0 0.0
    %3807 = vmatpush1.msra.mxu0 0.0
    %3808 = vmatprep.subr.mxu0 0.0
    %3809 = vmatpush1.msra.mxu0 0.0
    %3810 = vmatprep.subr.mxu0 0.0
    %3811 = vmatpush1.msra.mxu0 0.0
    %3812 = vmatprep.subr.mxu0 0.0
    %3813 = vmatpush1.msra.mxu0 0.0
    %3814 = vmatprep.subr.mxu0 0.0
    %3815 = vmatpush1.msra.mxu0 0.0
    %3816 = vmatprep.subr.mxu0 0.0
    %3817 = vmatpush1.msra.mxu0 0.0
    %3818 = vmatprep.subr.mxu0 0.0
    %3819 = vmatpush1.msra.mxu0 0.0
    %3820 = vmatprep.subr.mxu0 0.0
    %3821 = vmatpush1.msra.mxu0 0.0
    %3822 = vmatprep.subr.mxu0 0.0
    %3823 = vmatpush1.msra.mxu0 0.0
    %3824 = vmatprep.subr.mxu0 0.0
    %3825 = vmatpush1.msra.mxu0 0.0
    %3826 = vmatprep.subr.mxu0 0.0
    %3827 = vmatpush1.msra.mxu0 0.0
    %3828 = vmatprep.subr.mxu0 0.0
    %3829 = vmatpush1.msra.mxu0 0.0
    %3830 = vmatprep.subr.mxu0 0.0
    %3831 = vmatpush1.msra.mxu0 0.0
    %3832 = vmatprep.mubr.f32.mxu0 0.0
    %v3833 = vand.u32 %v3667, 4294901760
    %3834 = vmatmul.mubr.f32.gmra.mrb[0].mxu0 %v3833
    %v3835 = vpop.f32.mrb[0].mxu0
    %v3836 = vadd.f32 %v3745, %v3835
    %v3837 = vpop.f32.mrb[0].mxu0
    %3838 = vdwg.mxu0
    %3839 = vmatprep.subr.mxu0 0.0
    %v3840 = vand.u32 %v148, 4294901760
    %v3841 = vsub.f32 %v148, %v3840
    %3842 = vmatpush1.msra.mxu0 %v3841
    %3843 = vmatprep.subr.mxu0 0.0
    %v3844 = vand.u32 %v150, 4294901760
    %v3845 = vsub.f32 %v150, %v3844
    %3846 = vmatpush1.msra.mxu0 %v3845
    %3847 = vmatprep.subr.mxu0 0.0
    %v3848 = vand.u32 %v152, 4294901760
    %v3849 = vsub.f32 %v152, %v3848
    %3850 = vmatpush1.msra.mxu0 %v3849
    %3851 = vmatprep.subr.mxu0 0.0
    %v3852 = vand.u32 %v154, 4294901760
    %v3853 = vsub.f32 %v154, %v3852
    %3854 = vmatpush1.msra.mxu0 %v3853
    %3855 = vmatprep.subr.mxu0 0.0
    %3856 = vmatpush1.msra.mxu0 0.0
    %3857 = vmatprep.subr.mxu0 0.0
    %3858 = vmatpush1.msra.mxu0 0.0
    %3859 = vmatprep.subr.mxu0 0.0
    %3860 = vmatpush1.msra.mxu0 0.0
    %3861 = vmatprep.subr.mxu0 0.0
    %3862 = vmatpush1.msra.mxu0 0.0
    %3863 = vmatprep.subr.mxu0 0.0
    %3864 = vmatpush1.msra.mxu0 0.0
    %3865 = vmatprep.subr.mxu0 0.0
    %3866 = vmatpush1.msra.mxu0 0.0
    %3867 = vmatprep.subr.mxu0 0.0
    %3868 = vmatpush1.msra.mxu0 0.0
    %3869 = vmatprep.subr.mxu0 0.0
    %3870 = vmatpush1.msra.mxu0 0.0
    %3871 = vmatprep.subr.mxu0 0.0
    %3872 = vmatpush1.msra.mxu0 0.0
    %3873 = vmatprep.subr.mxu0 0.0
    %3874 = vmatpush1.msra.mxu0 0.0
    %3875 = vmatprep.subr.mxu0 0.0
    %3876 = vmatpush1.msra.mxu0 0.0
    %3877 = vmatprep.subr.mxu0 0.0
    %3878 = vmatpush1.msra.mxu0 0.0
    %3879 = vmatprep.subr.mxu0 0.0
    %3880 = vmatpush1.msra.mxu0 0.0
    %3881 = vmatprep.subr.mxu0 0.0
    %3882 = vmatpush1.msra.mxu0 0.0
    %3883 = vmatprep.subr.mxu0 0.0
    %3884 = vmatpush1.msra.mxu0 0.0
    %3885 = vmatprep.subr.mxu0 0.0
    %3886 = vmatpush1.msra.mxu0 0.0
    %3887 = vmatprep.subr.mxu0 0.0
    %3888 = vmatpush1.msra.mxu0 0.0
    %3889 = vmatprep.subr.mxu0 0.0
    %3890 = vmatpush1.msra.mxu0 0.0
    %3891 = vmatprep.subr.mxu0 0.0
    %3892 = vmatpush1.msra.mxu0 0.0
    %3893 = vmatprep.subr.mxu0 0.0
    %3894 = vmatpush1.msra.mxu0 0.0
    %3895 = vmatprep.subr.mxu0 0.0
    %3896 = vmatpush1.msra.mxu0 0.0
    %3897 = vmatprep.subr.mxu0 0.0
    %3898 = vmatpush1.msra.mxu0 0.0
    %3899 = vmatprep.subr.mxu0 0.0
    %3900 = vmatpush1.msra.mxu0 0.0
    %3901 = vmatprep.subr.mxu0 0.0
    %3902 = vmatpush1.msra.mxu0 0.0
    %3903 = vmatprep.subr.mxu0 0.0
    %3904 = vmatpush1.msra.mxu0 0.0
    %3905 = vmatprep.subr.mxu0 0.0
    %3906 = vmatpush1.msra.mxu0 0.0
    %3907 = vmatprep.subr.mxu0 0.0
    %3908 = vmatpush1.msra.mxu0 0.0
    %3909 = vmatprep.subr.mxu0 0.0
    %3910 = vmatpush1.msra.mxu0 0.0
    %3911 = vmatprep.mubr.f32.mxu0 0.0
    %v3912 = vand.u32 %v3667, 4294901760
    %v3913 = vsub.f32 %v3667, %v3912
    %3914 = vmatmul.mubr.f32.gmra.mrb[0].mxu0 %v3913
    %v3915 = vpop.f32.mrb[0].mxu0
    %v3916 = vadd.f32 %v3836, %v3915
    %v3917 = vpop.f32.mrb[0].mxu0
    %3918 = vdwg.mxu0
    %3919 = vmatprep.subr.mxu0 0.0
    %v3920 = vand.u32 %v148, 4294901760
    %3921 = vmatpush1.msra.mxu0 %v3920
    %3922 = vmatprep.subr.mxu0 0.0
    %v3923 = vand.u32 %v150, 4294901760
    %3924 = vmatpush1.msra.mxu0 %v3923
    %3925 = vmatprep.subr.mxu0 0.0
    %v3926 = vand.u32 %v152, 4294901760
    %3927 = vmatpush1.msra.mxu0 %v3926
    %3928 = vmatprep.subr.mxu0 0.0
    %v3929 = vand.u32 %v154, 4294901760
    %3930 = vmatpush1.msra.mxu0 %v3929
    %3931 = vmatprep.subr.mxu0 0.0
    %3932 = vmatpush1.msra.mxu0 0.0
    %3933 = vmatprep.subr.mxu0 0.0
    %3934 = vmatpush1.msra.mxu0 0.0
    %3935 = vmatprep.subr.mxu0 0.0
    %3936 = vmatpush1.msra.mxu0 0.0
    %3937 = vmatprep.subr.mxu0 0.0
    %3938 = vmatpush1.msra.mxu0 0.0
    %3939 = vmatprep.subr.mxu0 0.0
    %3940 = vmatpush1.msra.mxu0 0.0
    %3941 = vmatprep.subr.mxu0 0.0
    %3942 = vmatpush1.msra.mxu0 0.0
    %3943 = vmatprep.subr.mxu0 0.0
    %3944 = vmatpush1.msra.mxu0 0.0
    %3945 = vmatprep.subr.mxu0 0.0
    %3946 = vmatpush1.msra.mxu0 0.0
    %3947 = vmatprep.subr.mxu0 0.0
    %3948 = vmatpush1.msra.mxu0 0.0
    %3949 = vmatprep.subr.mxu0 0.0
    %3950 = vmatpush1.msra.mxu0 0.0
    %3951 = vmatprep.subr.mxu0 0.0
    %3952 = vmatpush1.msra.mxu0 0.0
    %3953 = vmatprep.subr.mxu0 0.0
    %3954 = vmatpush1.msra.mxu0 0.0
    %3955 = vmatprep.subr.mxu0 0.0
    %3956 = vmatpush1.msra.mxu0 0.0
    %3957 = vmatprep.subr.mxu0 0.0
    %3958 = vmatpush1.msra.mxu0 0.0
    %3959 = vmatprep.subr.mxu0 0.0
    %3960 = vmatpush1.msra.mxu0 0.0
    %3961 = vmatprep.subr.mxu0 0.0
    %3962 = vmatpush1.msra.mxu0 0.0
    %3963 = vmatprep.subr.mxu0 0.0
    %3964 = vmatpush1.msra.mxu0 0.0
    %3965 = vmatprep.subr.mxu0 0.0
    %3966 = vmatpush1.msra.mxu0 0.0
    %3967 = vmatprep.subr.mxu0 0.0
    %3968 = vmatpush1.msra.mxu0 0.0
    %3969 = vmatprep.subr.mxu0 0.0
    %3970 = vmatpush1.msra.mxu0 0.0
    %3971 = vmatprep.subr.mxu0 0.0
    %3972 = vmatpush1.msra.mxu0 0.0
    %3973 = vmatprep.subr.mxu0 0.0
    %3974 = vmatpush1.msra.mxu0 0.0
    %3975 = vmatprep.subr.mxu0 0.0
    %3976 = vmatpush1.msra.mxu0 0.0
    %3977 = vmatprep.subr.mxu0 0.0
    %3978 = vmatpush1.msra.mxu0 0.0
    %3979 = vmatprep.subr.mxu0 0.0
    %3980 = vmatpush1.msra.mxu0 0.0
    %3981 = vmatprep.subr.mxu0 0.0
    %3982 = vmatpush1.msra.mxu0 0.0
    %3983 = vmatprep.subr.mxu0 0.0
    %3984 = vmatpush1.msra.mxu0 0.0
    %3985 = vmatprep.subr.mxu0 0.0
    %3986 = vmatpush1.msra.mxu0 0.0
    %3987 = vmatprep.mubr.f32.mxu0 0.0
    %v3988 = vand.u32 %v3667, 4294901760
    %v3989 = vsub.f32 %v3667, %v3988
    %v3990 = vand.u32 %v3989, 4294901760
    %3991 = vmatmul.mubr.f32.gmra.mrb[0].mxu0 %v3990
    %v3992 = vpop.f32.mrb[0].mxu0
    %v3993 = vadd.f32 %v3916, %v3992
    %v3994 = vpop.f32.mrb[0].mxu0
    %3995 = vdwg.mxu0
    %3996 = vmatprep.subr.mxu0 0.0
    %v3997 = vand.u32 %v148, 4294901760
    %v3998 = vsub.f32 %v148, %v3997
    %v3999 = vand.u32 %v3998, 4294901760
    %4000 = vmatpush1.msra.mxu0 %v3999
    %4001 = vmatprep.subr.mxu0 0.0
    %v4002 = vand.u32 %v150, 4294901760
    %v4003 = vsub.f32 %v150, %v4002
    %v4004 = vand.u32 %v4003, 4294901760
    %4005 = vmatpush1.msra.mxu0 %v4004
    %4006 = vmatprep.subr.mxu0 0.0
    %v4007 = vand.u32 %v152, 4294901760
    %v4008 = vsub.f32 %v152, %v4007
    %v4009 = vand.u32 %v4008, 4294901760
    %4010 = vmatpush1.msra.mxu0 %v4009
    %4011 = vmatprep.subr.mxu0 0.0
    %v4012 = vand.u32 %v154, 4294901760
    %v4013 = vsub.f32 %v154, %v4012
    %v4014 = vand.u32 %v4013, 4294901760
    %4015 = vmatpush1.msra.mxu0 %v4014
    %4016 = vmatprep.subr.mxu0 0.0
    %4017 = vmatpush1.msra.mxu0 0.0
    %4018 = vmatprep.subr.mxu0 0.0
    %4019 = vmatpush1.msra.mxu0 0.0
    %4020 = vmatprep.subr.mxu0 0.0
    %4021 = vmatpush1.msra.mxu0 0.0
    %4022 = vmatprep.subr.mxu0 0.0
    %4023 = vmatpush1.msra.mxu0 0.0
    %4024 = vmatprep.subr.mxu0 0.0
    %4025 = vmatpush1.msra.mxu0 0.0
    %4026 = vmatprep.subr.mxu0 0.0
    %4027 = vmatpush1.msra.mxu0 0.0
    %4028 = vmatprep.subr.mxu0 0.0
    %4029 = vmatpush1.msra.mxu0 0.0
    %4030 = vmatprep.subr.mxu0 0.0
    %4031 = vmatpush1.msra.mxu0 0.0
    %4032 = vmatprep.subr.mxu0 0.0
    %4033 = vmatpush1.msra.mxu0 0.0
    %4034 = vmatprep.subr.mxu0 0.0
    %4035 = vmatpush1.msra.mxu0 0.0
    %4036 = vmatprep.subr.mxu0 0.0
    %4037 = vmatpush1.msra.mxu0 0.0
    %4038 = vmatprep.subr.mxu0 0.0
    %4039 = vmatpush1.msra.mxu0 0.0
    %4040 = vmatprep.subr.mxu0 0.0
    %4041 = vmatpush1.msra.mxu0 0.0
    %4042 = vmatprep.subr.mxu0 0.0
    %4043 = vmatpush1.msra.mxu0 0.0
    %4044 = vmatprep.subr.mxu0 0.0
    %4045 = vmatpush1.msra.mxu0 0.0
    %4046 = vmatprep.subr.mxu0 0.0
    %4047 = vmatpush1.msra.mxu0 0.0
    %4048 = vmatprep.subr.mxu0 0.0
    %4049 = vmatpush1.msra.mxu0 0.0
    %4050 = vmatprep.subr.mxu0 0.0
    %4051 = vmatpush1.msra.mxu0 0.0
    %4052 = vmatprep.subr.mxu0 0.0
    %4053 = vmatpush1.msra.mxu0 0.0
    %4054 = vmatprep.subr.mxu0 0.0
    %4055 = vmatpush1.msra.mxu0 0.0
    %4056 = vmatprep.subr.mxu0 0.0
    %4057 = vmatpush1.msra.mxu0 0.0
    %4058 = vmatprep.subr.mxu0 0.0
    %4059 = vmatpush1.msra.mxu0 0.0
    %4060 = vmatprep.subr.mxu0 0.0
    %4061 = vmatpush1.msra.mxu0 0.0
    %4062 = vmatprep.subr.mxu0 0.0
    %4063 = vmatpush1.msra.mxu0 0.0
    %4064 = vmatprep.subr.mxu0 0.0
    %4065 = vmatpush1.msra.mxu0 0.0
    %4066 = vmatprep.subr.mxu0 0.0
    %4067 = vmatpush1.msra.mxu0 0.0
    %4068 = vmatprep.subr.mxu0 0.0
    %4069 = vmatpush1.msra.mxu0 0.0
    %4070 = vmatprep.subr.mxu0 0.0
    %4071 = vmatpush1.msra.mxu0 0.0
    %4072 = vmatprep.mubr.f32.mxu0 0.0
    %v4073 = vand.u32 %v3667, 4294901760
    %4074 = vmatmul.mubr.f32.gmra.mrb[0].mxu0 %v4073
    %v4075 = vpop.f32.mrb[0].mxu0
    %v4076 = vadd.f32 %v3993, %v4075
    %v4077 = vpop.f32.mrb[0].mxu0
    %4078 = vdwg.mxu0
    %4079 = vmatprep.subr.mxu0 0.0
    %v4080 = vand.u32 %v148, 4294901760
    %4081 = vmatpush1.msra.mxu0 %v4080
    %4082 = vmatprep.subr.mxu0 0.0
    %v4083 = vand.u32 %v150, 4294901760
    %4084 = vmatpush1.msra.mxu0 %v4083
    %4085 = vmatprep.subr.mxu0 0.0
    %v4086 = vand.u32 %v152, 4294901760
    %4087 = vmatpush1.msra.mxu0 %v4086
    %4088 = vmatprep.subr.mxu0 0.0
    %v4089 = vand.u32 %v154, 4294901760
    %4090 = vmatpush1.msra.mxu0 %v4089
    %4091 = vmatprep.subr.mxu0 0.0
    %4092 = vmatpush1.msra.mxu0 0.0
    %4093 = vmatprep.subr.mxu0 0.0
    %4094 = vmatpush1.msra.mxu0 0.0
    %4095 = vmatprep.subr.mxu0 0.0
    %4096 = vmatpush1.msra.mxu0 0.0
    %4097 = vmatprep.subr.mxu0 0.0
    %4098 = vmatpush1.msra.mxu0 0.0
    %4099 = vmatprep.subr.mxu0 0.0
    %4100 = vmatpush1.msra.mxu0 0.0
    %4101 = vmatprep.subr.mxu0 0.0
    %4102 = vmatpush1.msra.mxu0 0.0
    %4103 = vmatprep.subr.mxu0 0.0
    %4104 = vmatpush1.msra.mxu0 0.0
    %4105 = vmatprep.subr.mxu0 0.0
    %4106 = vmatpush1.msra.mxu0 0.0
    %4107 = vmatprep.subr.mxu0 0.0
    %4108 = vmatpush1.msra.mxu0 0.0
    %4109 = vmatprep.subr.mxu0 0.0
    %4110 = vmatpush1.msra.mxu0 0.0
    %4111 = vmatprep.subr.mxu0 0.0
    %4112 = vmatpush1.msra.mxu0 0.0
    %4113 = vmatprep.subr.mxu0 0.0
    %4114 = vmatpush1.msra.mxu0 0.0
    %4115 = vmatprep.subr.mxu0 0.0
    %4116 = vmatpush1.msra.mxu0 0.0
    %4117 = vmatprep.subr.mxu0 0.0
    %4118 = vmatpush1.msra.mxu0 0.0
    %4119 = vmatprep.subr.mxu0 0.0
    %4120 = vmatpush1.msra.mxu0 0.0
    %4121 = vmatprep.subr.mxu0 0.0
    %4122 = vmatpush1.msra.mxu0 0.0
    %4123 = vmatprep.subr.mxu0 0.0
    %4124 = vmatpush1.msra.mxu0 0.0
    %4125 = vmatprep.subr.mxu0 0.0
    %4126 = vmatpush1.msra.mxu0 0.0
    %4127 = vmatprep.subr.mxu0 0.0
    %4128 = vmatpush1.msra.mxu0 0.0
    %4129 = vmatprep.subr.mxu0 0.0
    %4130 = vmatpush1.msra.mxu0 0.0
    %4131 = vmatprep.subr.mxu0 0.0
    %4132 = vmatpush1.msra.mxu0 0.0
    %4133 = vmatprep.subr.mxu0 0.0
    %4134 = vmatpush1.msra.mxu0 0.0
    %4135 = vmatprep.subr.mxu0 0.0
    %4136 = vmatpush1.msra.mxu0 0.0
    %4137 = vmatprep.subr.mxu0 0.0
    %4138 = vmatpush1.msra.mxu0 0.0
    %4139 = vmatprep.subr.mxu0 0.0
    %4140 = vmatpush1.msra.mxu0 0.0
    %4141 = vmatprep.subr.mxu0 0.0
    %4142 = vmatpush1.msra.mxu0 0.0
    %4143 = vmatprep.subr.mxu0 0.0
    %4144 = vmatpush1.msra.mxu0 0.0
    %4145 = vmatprep.subr.mxu0 0.0
    %4146 = vmatpush1.msra.mxu0 0.0
    %4147 = vmatprep.mubr.f32.mxu0 0.0
    %v4148 = vand.u32 %v3667, 4294901760
    %4149 = vmatmul.mubr.f32.gmra.mrb[0].mxu0 %v4148
    %v4150 = vpop.f32.mrb[0].mxu0
    %v4151 = vadd.f32 %v4076, %v4150
    %v4152 = vpop.f32.mrb[0].mxu0
    %4153 = vdwg.mxu0
    %v4154 = vld [vmem:[#allocation3 + $0x4] sm:$0x1]
    %v4155 = vmul.f32 %v4151, %v4154
    %v4156 = vsel %vm19, %v4155, -inf
    %4157 = vmax.xlane.f32.xlu0 %v4156
    %v4158 = vpop.xlane.xlu0 %4157
    %v4159 = vmax.f32 %v4158, 1e-30
    %v4160 = vrcp.pop %v4159
    %v4161 = vmul.f32 %v4155, %v4160
    %4162 = vst.msk [vmem:[#allocation4 + $0x4] sm:$0x1] %vm19, %v4161
    %v4163 = vld [vmem:[#allocation3 + $0x3] sm:$0x1]
    %v4164 = vmul.f32 %v4163, %v3664
    %v4166 = vsel %vm37, %v4164, 0
    %4168 = vmatprep.subr.mxu0 0.0
    %v4169 = vand.u32 %v1175, 4294901760
    %4170 = vmatpush1.xpose.msra.mxu0 %v4169
    %4171 = vmatprep.subr.mxu0 0.0
    %v4172 = vand.u32 %v1178, 4294901760
    %4173 = vmatpush1.xpose.msra.mxu0 %v4172
    %4174 = vmatprep.subr.mxu0 0.0
    %v4175 = vand.u32 %v1181, 4294901760
    %4176 = vmatpush1.xpose.msra.mxu0 %v4175
    %4177 = vmatprep.subr.mxu0 0.0
    %v4178 = vand.u32 %v1184, 4294901760
    %4179 = vmatpush1.xpose.msra.mxu0 %v4178
    %4180 = vmatprep.subr.mxu0 0.0
    %4181 = vmatpush1.xpose.msra.mxu0 0.0
    %4182 = vmatprep.subr.mxu0 0.0
    %4183 = vmatpush1.xpose.msra.mxu0 0.0
    %4184 = vmatprep.subr.mxu0 0.0
    %4185 = vmatpush1.xpose.msra.mxu0 0.0
    %4186 = vmatprep.subr.mxu0 0.0
    %4187 = vmatpush1.xpose.msra.mxu0 0.0
    %4188 = vmatprep.subr.mxu0 0.0
    %4189 = vmatpush1.xpose.msra.mxu0 0.0
    %4190 = vmatprep.subr.mxu0 0.0
    %4191 = vmatpush1.xpose.msra.mxu0 0.0
    %4192 = vmatprep.subr.mxu0 0.0
    %4193 = vmatpush1.xpose.msra.mxu0 0.0
    %4194 = vmatprep.subr.mxu0 0.0
    %4195 = vmatpush1.xpose.msra.mxu0 0.0
    %4196 = vmatprep.subr.mxu0 0.0
    %4197 = vmatpush1.xpose.msra.mxu0 0.0
    %4198 = vmatprep.subr.mxu0 0.0
    %4199 = vmatpush1.xpose.msra.mxu0 0.0
    %4200 = vmatprep.subr.mxu0 0.0
    %4201 = vmatpush1.xpose.msra.mxu0 0.0
    %4202 = vmatprep.subr.mxu0 0.0
    %4203 = vmatpush1.xpose.msra.mxu0 0.0
    %4204 = vmatprep.subr.mxu0 0.0
    %4205 = vmatpush1.xpose.msra.mxu0 0.0
    %4206 = vmatprep.subr.mxu0 0.0
    %4207 = vmatpush1.xpose.msra.mxu0 0.0
    %4208 = vmatprep.subr.mxu0 0.0
    %4209 = vmatpush1.xpose.msra.mxu0 0.0
    %4210 = vmatprep.subr.mxu0 0.0
    %4211 = vmatpush1.xpose.msra.mxu0 0.0
    %4212 = vmatprep.subr.mxu0 0.0
    %4213 = vmatpush1.xpose.msra.mxu0 0.0
    %4214 = vmatprep.subr.mxu0 0.0
    %4215 = vmatpush1.xpose.msra.mxu0 0.0
    %4216 = vmatprep.subr.mxu0 0.0
    %4217 = vmatpush1.xpose.msra.mxu0 0.0
    %4218 = vmatprep.subr.mxu0 0.0
    %4219 = vmatpush1.xpose.msra.mxu0 0.0
    %4220 = vmatprep.subr.mxu0 0.0
    %4221 = vmatpush1.xpose.msra.mxu0 0.0
    %4222 = vmatprep.subr.mxu0 0.0
    %4223 = vmatpush1.xpose.msra.mxu0 0.0
    %4224 = vmatprep.subr.mxu0 0.0
    %4225 = vmatpush1.xpose.msra.mxu0 0.0
    %4226 = vmatprep.subr.mxu0 0.0
    %4227 = vmatpush1.xpose.msra.mxu0 0.0
    %4228 = vmatprep.subr.mxu0 0.0
    %4229 = vmatpush1.xpose.msra.mxu0 0.0
    %4230 = vmatprep.subr.mxu0 0.0
    %4231 = vmatpush1.xpose.msra.mxu0 0.0
    %4232 = vmatprep.subr.mxu0 0.0
    %4233 = vmatpush1.xpose.msra.mxu0 0.0
    %4234 = vmatprep.subr.mxu0 0.0
    %4235 = vmatpush1.xpose.msra.mxu0 0.0
    %4236 = vmatprep.mubr.f32.mxu0 0.0
    %v4237 = vand.u32 %v4166, 4294901760
    %v4238 = vsub.f32 %v4166, %v4237
    %v4239 = vand.u32 %v4238, 4294901760
    %v4240 = vsub.f32 %v4238, %v4239
    %v4241 = vand.u32 %v4240, 4294901760
    %4242 = vmatmul.mubr.f32.gmra.mrb[0].mxu0 %v4241
    %v4243 = vpop.f32.mrb[0].mxu0
    %v4244 = vadd.f32 0.0, %v4243
    %v4245 = vpop.f32.mrb[0].mxu0
    %4246 = vdwg.mxu0
    %4247 = vmatprep.subr.mxu0 0.0
    %v4248 = vand.u32 %v1175, 4294901760
    %v4249 = vsub.f32 %v1175, %v4248
    %v4250 = vand.u32 %v4249, 4294901760
    %v4251 = vsub.f32 %v4249, %v4250
    %v4252 = vand.u32 %v4251, 4294901760
    %4253 = vmatpush1.xpose.msra.mxu0 %v4252
    %4254 = vmatprep.subr.mxu0 0.0
    %v4255 = vand.u32 %v1178, 4294901760
    %v4256 = vsub.f32 %v1178, %v4255
    %v4257 = vand.u32 %v4256, 4294901760
    %v4258 = vsub.f32 %v4256, %v4257
    %v4259 = vand.u32 %v4258, 4294901760
    %4260 = vmatpush1.xpose.msra.mxu0 %v4259
    %4261 = vmatprep.subr.mxu0 0.0
    %v4262 = vand.u32 %v1181, 4294901760
    %v4263 = vsub.f32 %v1181, %v4262
    %v4264 = vand.u32 %v4263, 4294901760
    %v4265 = vsub.f32 %v4263, %v4264
    %v4266 = vand.u32 %v4265, 4294901760
    %4267 = vmatpush1.xpose.msra.mxu0 %v4266
    %4268 = vmatprep.subr.mxu0 0.0
    %v4269 = vand.u32 %v1184, 4294901760
    %v4270 = vsub.f32 %v1184, %v4269
    %v4271 = vand.u32 %v4270, 4294901760
    %v4272 = vsub.f32 %v4270, %v4271
    %v4273 = vand.u32 %v4272, 4294901760
    %4274 = vmatpush1.xpose.msra.mxu0 %v4273
    %4275 = vmatprep.subr.mxu0 0.0
    %4276 = vmatpush1.xpose.msra.mxu0 0.0
    %4277 = vmatprep.subr.mxu0 0.0
    %4278 = vmatpush1.xpose.msra.mxu0 0.0
    %4279 = vmatprep.subr.mxu0 0.0
    %4280 = vmatpush1.xpose.msra.mxu0 0.0
    %4281 = vmatprep.subr.mxu0 0.0
    %4282 = vmatpush1.xpose.msra.mxu0 0.0
    %4283 = vmatprep.subr.mxu0 0.0
    %4284 = vmatpush1.xpose.msra.mxu0 0.0
    %4285 = vmatprep.subr.mxu0 0.0
    %4286 = vmatpush1.xpose.msra.mxu0 0.0
    %4287 = vmatprep.subr.mxu0 0.0
    %4288 = vmatpush1.xpose.msra.mxu0 0.0
    %4289 = vmatprep.subr.mxu0 0.0
    %4290 = vmatpush1.xpose.msra.mxu0 0.0
    %4291 = vmatprep.subr.mxu0 0.0
    %4292 = vmatpush1.xpose.msra.mxu0 0.0
    %4293 = vmatprep.subr.mxu0 0.0
    %4294 = vmatpush1.xpose.msra.mxu0 0.0
    %4295 = vmatprep.subr.mxu0 0.0
    %4296 = vmatpush1.xpose.msra.mxu0 0.0
    %4297 = vmatprep.subr.mxu0 0.0
    %4298 = vmatpush1.xpose.msra.mxu0 0.0
    %4299 = vmatprep.subr.mxu0 0.0
    %4300 = vmatpush1.xpose.msra.mxu0 0.0
    %4301 = vmatprep.subr.mxu0 0.0
    %4302 = vmatpush1.xpose.msra.mxu0 0.0
    %4303 = vmatprep.subr.mxu0 0.0
    %4304 = vmatpush1.xpose.msra.mxu0 0.0
    %4305 = vmatprep.subr.mxu0 0.0
    %4306 = vmatpush1.xpose.msra.mxu0 0.0
    %4307 = vmatprep.subr.mxu0 0.0
    %4308 = vmatpush1.xpose.msra.mxu0 0.0
    %4309 = vmatprep.subr.mxu0 0.0
    %4310 = vmatpush1.xpose.msra.mxu0 0.0
    %4311 = vmatprep.subr.mxu0 0.0
    %4312 = vmatpush1.xpose.msra.mxu0 0.0
    %4313 = vmatprep.subr.mxu0 0.0
    %4314 = vmatpush1.xpose.msra.mxu0 0.0
    %4315 = vmatprep.subr.mxu0 0.0
    %4316 = vmatpush1.xpose.msra.mxu0 0.0
    %4317 = vmatprep.subr.mxu0 0.0
    %4318 = vmatpush1.xpose.msra.mxu0 0.0
    %4319 = vmatprep.subr.mxu0 0.0
    %4320 = vmatpush1.xpose.msra.mxu0 0.0
    %4321 = vmatprep.subr.mxu0 0.0
    %4322 = vmatpush1.xpose.msra.mxu0 0.0
    %4323 = vmatprep.subr.mxu0 0.0
    %4324 = vmatpush1.xpose.msra.mxu0 0.0
    %4325 = vmatprep.subr.mxu0 0.0
    %4326 = vmatpush1.xpose.msra.mxu0 0.0
    %4327 = vmatprep.subr.mxu0 0.0
    %4328 = vmatpush1.xpose.msra.mxu0 0.0
    %4329 = vmatprep.subr.mxu0 0.0
    %4330 = vmatpush1.xpose.msra.mxu0 0.0
    %4331 = vmatprep.mubr.f32.mxu0 0.0
    %v4332 = vand.u32 %v4166, 4294901760
    %4333 = vmatmul.mubr.f32.gmra.mrb[0].mxu0 %v4332
    %v4334 = vpop.f32.mrb[0].mxu0
    %v4335 = vadd.f32 %v4244, %v4334
    %v4336 = vpop.f32.mrb[0].mxu0
    %4337 = vdwg.mxu0
    %4338 = vmatprep.subr.mxu0 0.0
    %v4339 = vand.u32 %v1175, 4294901760
    %v4340 = vsub.f32 %v1175, %v4339
    %4341 = vmatpush1.xpose.msra.mxu0 %v4340
    %4342 = vmatprep.subr.mxu0 0.0
    %v4343 = vand.u32 %v1178, 4294901760
    %v4344 = vsub.f32 %v1178, %v4343
    %4345 = vmatpush1.xpose.msra.mxu0 %v4344
    %4346 = vmatprep.subr.mxu0 0.0
    %v4347 = vand.u32 %v1181, 4294901760
    %v4348 = vsub.f32 %v1181, %v4347
    %4349 = vmatpush1.xpose.msra.mxu0 %v4348
    %4350 = vmatprep.subr.mxu0 0.0
    %v4351 = vand.u32 %v1184, 4294901760
    %v4352 = vsub.f32 %v1184, %v4351
    %4353 = vmatpush1.xpose.msra.mxu0 %v4352
    %4354 = vmatprep.subr.mxu0 0.0
    %4355 = vmatpush1.xpose.msra.mxu0 0.0
    %4356 = vmatprep.subr.mxu0 0.0
    %4357 = vmatpush1.xpose.msra.mxu0 0.0
    %4358 = vmatprep.subr.mxu0 0.0
    %4359 = vmatpush1.xpose.msra.mxu0 0.0
    %4360 = vmatprep.subr.mxu0 0.0
    %4361 = vmatpush1.xpose.msra.mxu0 0.0
    %4362 = vmatprep.subr.mxu0 0.0
    %4363 = vmatpush1.xpose.msra.mxu0 0.0
    %4364 = vmatprep.subr.mxu0 0.0
    %4365 = vmatpush1.xpose.msra.mxu0 0.0
    %4366 = vmatprep.subr.mxu0 0.0
    %4367 = vmatpush1.xpose.msra.mxu0 0.0
    %4368 = vmatprep.subr.mxu0 0.0
    %4369 = vmatpush1.xpose.msra.mxu0 0.0
    %4370 = vmatprep.subr.mxu0 0.0
    %4371 = vmatpush1.xpose.msra.mxu0 0.0
    %4372 = vmatprep.subr.mxu0 0.0
    %4373 = vmatpush1.xpose.msra.mxu0 0.0
    %4374 = vmatprep.subr.mxu0 0.0
    %4375 = vmatpush1.xpose.msra.mxu0 0.0
    %4376 = vmatprep.subr.mxu0 0.0
    %4377 = vmatpush1.xpose.msra.mxu0 0.0
    %4378 = vmatprep.subr.mxu0 0.0
    %4379 = vmatpush1.xpose.msra.mxu0 0.0
    %4380 = vmatprep.subr.mxu0 0.0
    %4381 = vmatpush1.xpose.msra.mxu0 0.0
    %4382 = vmatprep.subr.mxu0 0.0
    %4383 = vmatpush1.xpose.msra.mxu0 0.0
    %4384 = vmatprep.subr.mxu0 0.0
    %4385 = vmatpush1.xpose.msra.mxu0 0.0
    %4386 = vmatprep.subr.mxu0 0.0
    %4387 = vmatpush1.xpose.msra.mxu0 0.0
    %4388 = vmatprep.subr.mxu0 0.0
    %4389 = vmatpush1.xpose.msra.mxu0 0.0
    %4390 = vmatprep.subr.mxu0 0.0
    %4391 = vmatpush1.xpose.msra.mxu0 0.0
    %4392 = vmatprep.subr.mxu0 0.0
    %4393 = vmatpush1.xpose.msra.mxu0 0.0
    %4394 = vmatprep.subr.mxu0 0.0
    %4395 = vmatpush1.xpose.msra.mxu0 0.0
    %4396 = vmatprep.subr.mxu0 0.0
    %4397 = vmatpush1.xpose.msra.mxu0 0.0
    %4398 = vmatprep.subr.mxu0 0.0
    %4399 = vmatpush1.xpose.msra.mxu0 0.0
    %4400 = vmatprep.subr.mxu0 0.0
    %4401 = vmatpush1.xpose.msra.mxu0 0.0
    %4402 = vmatprep.subr.mxu0 0.0
    %4403 = vmatpush1.xpose.msra.mxu0 0.0
    %4404 = vmatprep.subr.mxu0 0.0
    %4405 = vmatpush1.xpose.msra.mxu0 0.0
    %4406 = vmatprep.subr.mxu0 0.0
    %4407 = vmatpush1.xpose.msra.mxu0 0.0
    %4408 = vmatprep.subr.mxu0 0.0
    %4409 = vmatpush1.xpose.msra.mxu0 0.0
    %4410 = vmatprep.mubr.f32.mxu0 0.0
    %v4411 = vand.u32 %v4166, 4294901760
    %v4412 = vsub.f32 %v4166, %v4411
    %4413 = vmatmul.mubr.f32.gmra.mrb[0].mxu0 %v4412
    %v4414 = vpop.f32.mrb[0].mxu0
    %v4415 = vadd.f32 %v4335, %v4414
    %v4416 = vpop.f32.mrb[0].mxu0
    %4417 = vdwg.mxu0
    %4418 = vmatprep.subr.mxu0 0.0
    %v4419 = vand.u32 %v1175, 4294901760
    %4420 = vmatpush1.xpose.msra.mxu0 %v4419
    %4421 = vmatprep.subr.mxu0 0.0
    %v4422 = vand.u32 %v1178, 4294901760
    %4423 = vmatpush1.xpose.msra.mxu0 %v4422
    %4424 = vmatprep.subr.mxu0 0.0
    %v4425 = vand.u32 %v1181, 4294901760
    %4426 = vmatpush1.xpose.msra.mxu0 %v4425
    %4427 = vmatprep.subr.mxu0 0.0
    %v4428 = vand.u32 %v1184, 4294901760
    %4429 = vmatpush1.xpose.msra.mxu0 %v4428
    %4430 = vmatprep.subr.mxu0 0.0
    %4431 = vmatpush1.xpose.msra.mxu0 0.0
    %4432 = vmatprep.subr.mxu0 0.0
    %4433 = vmatpush1.xpose.msra.mxu0 0.0
    %4434 = vmatprep.subr.mxu0 0.0
    %4435 = vmatpush1.xpose.msra.mxu0 0.0
    %4436 = vmatprep.subr.mxu0 0.0
    %4437 = vmatpush1.xpose.msra.mxu0 0.0
    %4438 = vmatprep.subr.mxu0 0.0
    %4439 = vmatpush1.xpose.msra.mxu0 0.0
    %4440 = vmatprep.subr.mxu0 0.0
    %4441 = vmatpush1.xpose.msra.mxu0 0.0
    %4442 = vmatprep.subr.mxu0 0.0
    %4443 = vmatpush1.xpose.msra.mxu0 0.0
    %4444 = vmatprep.subr.mxu0 0.0
    %4445 = vmatpush1.xpose.msra.mxu0 0.0
    %4446 = vmatprep.subr.mxu0 0.0
    %4447 = vmatpush1.xpose.msra.mxu0 0.0
    %4448 = vmatprep.subr.mxu0 0.0
    %4449 = vmatpush1.xpose.msra.mxu0 0.0
    %4450 = vmatprep.subr.mxu0 0.0
    %4451 = vmatpush1.xpose.msra.mxu0 0.0
    %4452 = vmatprep.subr.mxu0 0.0
    %4453 = vmatpush1.xpose.msra.mxu0 0.0
    %4454 = vmatprep.subr.mxu0 0.0
    %4455 = vmatpush1.xpose.msra.mxu0 0.0
    %4456 = vmatprep.subr.mxu0 0.0
    %4457 = vmatpush1.xpose.msra.mxu0 0.0
    %4458 = vmatprep.subr.mxu0 0.0
    %4459 = vmatpush1.xpose.msra.mxu0 0.0
    %4460 = vmatprep.subr.mxu0 0.0
    %4461 = vmatpush1.xpose.msra.mxu0 0.0
    %4462 = vmatprep.subr.mxu0 0.0
    %4463 = vmatpush1.xpose.msra.mxu0 0.0
    %4464 = vmatprep.subr.mxu0 0.0
    %4465 = vmatpush1.xpose.msra.mxu0 0.0
    %4466 = vmatprep.subr.mxu0 0.0
    %4467 = vmatpush1.xpose.msra.mxu0 0.0
    %4468 = vmatprep.subr.mxu0 0.0
    %4469 = vmatpush1.xpose.msra.mxu0 0.0
    %4470 = vmatprep.subr.mxu0 0.0
    %4471 = vmatpush1.xpose.msra.mxu0 0.0
    %4472 = vmatprep.subr.mxu0 0.0
    %4473 = vmatpush1.xpose.msra.mxu0 0.0
    %4474 = vmatprep.subr.mxu0 0.0
    %4475 = vmatpush1.xpose.msra.mxu0 0.0
    %4476 = vmatprep.subr.mxu0 0.0
    %4477 = vmatpush1.xpose.msra.mxu0 0.0
    %4478 = vmatprep.subr.mxu0 0.0
    %4479 = vmatpush1.xpose.msra.mxu0 0.0
    %4480 = vmatprep.subr.mxu0 0.0
    %4481 = vmatpush1.xpose.msra.mxu0 0.0
    %4482 = vmatprep.subr.mxu0 0.0
    %4483 = vmatpush1.xpose.msra.mxu0 0.0
    %4484 = vmatprep.subr.mxu0 0.0
    %4485 = vmatpush1.xpose.msra.mxu0 0.0
    %4486 = vmatprep.mubr.f32.mxu0 0.0
    %v4487 = vand.u32 %v4166, 4294901760
    %v4488 = vsub.f32 %v4166, %v4487
    %v4489 = vand.u32 %v4488, 4294901760
    %4490 = vmatmul.mubr.f32.gmra.mrb[0].mxu0 %v4489
    %v4491 = vpop.f32.mrb[0].mxu0
    %v4492 = vadd.f32 %v4415, %v4491
    %v4493 = vpop.f32.mrb[0].mxu0
    %4494 = vdwg.mxu0
    %4495 = vmatprep.subr.mxu0 0.0
    %v4496 = vand.u32 %v1175, 4294901760
    %v4497 = vsub.f32 %v1175, %v4496
    %v4498 = vand.u32 %v4497, 4294901760
    %4499 = vmatpush1.xpose.msra.mxu0 %v4498
    %4500 = vmatprep.subr.mxu0 0.0
    %v4501 = vand.u32 %v1178, 4294901760
    %v4502 = vsub.f32 %v1178, %v4501
    %v4503 = vand.u32 %v4502, 4294901760
    %4504 = vmatpush1.xpose.msra.mxu0 %v4503
    %4505 = vmatprep.subr.mxu0 0.0
    %v4506 = vand.u32 %v1181, 4294901760
    %v4507 = vsub.f32 %v1181, %v4506
    %v4508 = vand.u32 %v4507, 4294901760
    %4509 = vmatpush1.xpose.msra.mxu0 %v4508
    %4510 = vmatprep.subr.mxu0 0.0
    %v4511 = vand.u32 %v1184, 4294901760
    %v4512 = vsub.f32 %v1184, %v4511
    %v4513 = vand.u32 %v4512, 4294901760
    %4514 = vmatpush1.xpose.msra.mxu0 %v4513
    %4515 = vmatprep.subr.mxu0 0.0
    %4516 = vmatpush1.xpose.msra.mxu0 0.0
    %4517 = vmatprep.subr.mxu0 0.0
    %4518 = vmatpush1.xpose.msra.mxu0 0.0
    %4519 = vmatprep.subr.mxu0 0.0
    %4520 = vmatpush1.xpose.msra.mxu0 0.0
    %4521 = vmatprep.subr.mxu0 0.0
    %4522 = vmatpush1.xpose.msra.mxu0 0.0
    %4523 = vmatprep.subr.mxu0 0.0
    %4524 = vmatpush1.xpose.msra.mxu0 0.0
    %4525 = vmatprep.subr.mxu0 0.0
    %4526 = vmatpush1.xpose.msra.mxu0 0.0
    %4527 = vmatprep.subr.mxu0 0.0
    %4528 = vmatpush1.xpose.msra.mxu0 0.0
    %4529 = vmatprep.subr.mxu0 0.0
    %4530 = vmatpush1.xpose.msra.mxu0 0.0
    %4531 = vmatprep.subr.mxu0 0.0
    %4532 = vmatpush1.xpose.msra.mxu0 0.0
    %4533 = vmatprep.subr.mxu0 0.0
    %4534 = vmatpush1.xpose.msra.mxu0 0.0
    %4535 = vmatprep.subr.mxu0 0.0
    %4536 = vmatpush1.xpose.msra.mxu0 0.0
    %4537 = vmatprep.subr.mxu0 0.0
    %4538 = vmatpush1.xpose.msra.mxu0 0.0
    %4539 = vmatprep.subr.mxu0 0.0
    %4540 = vmatpush1.xpose.msra.mxu0 0.0
    %4541 = vmatprep.subr.mxu0 0.0
    %4542 = vmatpush1.xpose.msra.mxu0 0.0
    %4543 = vmatprep.subr.mxu0 0.0
    %4544 = vmatpush1.xpose.msra.mxu0 0.0
    %4545 = vmatprep.subr.mxu0 0.0
    %4546 = vmatpush1.xpose.msra.mxu0 0.0
    %4547 = vmatprep.subr.mxu0 0.0
    %4548 = vmatpush1.xpose.msra.mxu0 0.0
    %4549 = vmatprep.subr.mxu0 0.0
    %4550 = vmatpush1.xpose.msra.mxu0 0.0
    %4551 = vmatprep.subr.mxu0 0.0
    %4552 = vmatpush1.xpose.msra.mxu0 0.0
    %4553 = vmatprep.subr.mxu0 0.0
    %4554 = vmatpush1.xpose.msra.mxu0 0.0
    %4555 = vmatprep.subr.mxu0 0.0
    %4556 = vmatpush1.xpose.msra.mxu0 0.0
    %4557 = vmatprep.subr.mxu0 0.0
    %4558 = vmatpush1.xpose.msra.mxu0 0.0
    %4559 = vmatprep.subr.mxu0 0.0
    %4560 = vmatpush1.xpose.msra.mxu0 0.0
    %4561 = vmatprep.subr.mxu0 0.0
    %4562 = vmatpush1.xpose.msra.mxu0 0.0
    %4563 = vmatprep.subr.mxu0 0.0
    %4564 = vmatpush1.xpose.msra.mxu0 0.0
    %4565 = vmatprep.subr.mxu0 0.0
    %4566 = vmatpush1.xpose.msra.mxu0 0.0
    %4567 = vmatprep.subr.mxu0 0.0
    %4568 = vmatpush1.xpose.msra.mxu0 0.0
    %4569 = vmatprep.subr.mxu0 0.0
    %4570 = vmatpush1.xpose.msra.mxu0 0.0
    %4571 = vmatprep.mubr.f32.mxu0 0.0
    %v4572 = vand.u32 %v4166, 4294901760
    %4573 = vmatmul.mubr.f32.gmra.mrb[0].mxu0 %v4572
    %v4574 = vpop.f32.mrb[0].mxu0
    %v4575 = vadd.f32 %v4492, %v4574
    %v4576 = vpop.f32.mrb[0].mxu0
    %4577 = vdwg.mxu0
    %4578 = vmatprep.subr.mxu0 0.0
    %v4579 = vand.u32 %v1175, 4294901760
    %4580 = vmatpush1.xpose.msra.mxu0 %v4579
    %4581 = vmatprep.subr.mxu0 0.0
    %v4582 = vand.u32 %v1178, 4294901760
    %4583 = vmatpush1.xpose.msra.mxu0 %v4582
    %4584 = vmatprep.subr.mxu0 0.0
    %v4585 = vand.u32 %v1181, 4294901760
    %4586 = vmatpush1.xpose.msra.mxu0 %v4585
    %4587 = vmatprep.subr.mxu0 0.0
    %v4588 = vand.u32 %v1184, 4294901760
    %4589 = vmatpush1.xpose.msra.mxu0 %v4588
    %4590 = vmatprep.subr.mxu0 0.0
    %4591 = vmatpush1.xpose.msra.mxu0 0.0
    %4592 = vmatprep.subr.mxu0 0.0
    %4593 = vmatpush1.xpose.msra.mxu0 0.0
    %4594 = vmatprep.subr.mxu0 0.0
    %4595 = vmatpush1.xpose.msra.mxu0 0.0
    %4596 = vmatprep.subr.mxu0 0.0
    %4597 = vmatpush1.xpose.msra.mxu0 0.0
    %4598 = vmatprep.subr.mxu0 0.0
    %4599 = vmatpush1.xpose.msra.mxu0 0.0
    %4600 = vmatprep.subr.mxu0 0.0
    %4601 = vmatpush1.xpose.msra.mxu0 0.0
    %4602 = vmatprep.subr.mxu0 0.0
    %4603 = vmatpush1.xpose.msra.mxu0 0.0
    %4604 = vmatprep.subr.mxu0 0.0
    %4605 = vmatpush1.xpose.msra.mxu0 0.0
    %4606 = vmatprep.subr.mxu0 0.0
    %4607 = vmatpush1.xpose.msra.mxu0 0.0
    %4608 = vmatprep.subr.mxu0 0.0
    %4609 = vmatpush1.xpose.msra.mxu0 0.0
    %4610 = vmatprep.subr.mxu0 0.0
    %4611 = vmatpush1.xpose.msra.mxu0 0.0
    %4612 = vmatprep.subr.mxu0 0.0
    %4613 = vmatpush1.xpose.msra.mxu0 0.0
    %4614 = vmatprep.subr.mxu0 0.0
    %4615 = vmatpush1.xpose.msra.mxu0 0.0
    %4616 = vmatprep.subr.mxu0 0.0
    %4617 = vmatpush1.xpose.msra.mxu0 0.0
    %4618 = vmatprep.subr.mxu0 0.0
    %4619 = vmatpush1.xpose.msra.mxu0 0.0
    %4620 = vmatprep.subr.mxu0 0.0
    %4621 = vmatpush1.xpose.msra.mxu0 0.0
    %4622 = vmatprep.subr.mxu0 0.0
    %4623 = vmatpush1.xpose.msra.mxu0 0.0
    %4624 = vmatprep.subr.mxu0 0.0
    %4625 = vmatpush1.xpose.msra.mxu0 0.0
    %4626 = vmatprep.subr.mxu0 0.0
    %4627 = vmatpush1.xpose.msra.mxu0 0.0
    %4628 = vmatprep.subr.mxu0 0.0
    %4629 = vmatpush1.xpose.msra.mxu0 0.0
    %4630 = vmatprep.subr.mxu0 0.0
    %4631 = vmatpush1.xpose.msra.mxu0 0.0
    %4632 = vmatprep.subr.mxu0 0.0
    %4633 = vmatpush1.xpose.msra.mxu0 0.0
    %4634 = vmatprep.subr.mxu0 0.0
    %4635 = vmatpush1.xpose.msra.mxu0 0.0
    %4636 = vmatprep.subr.mxu0 0.0
    %4637 = vmatpush1.xpose.msra.mxu0 0.0
    %4638 = vmatprep.subr.mxu0 0.0
    %4639 = vmatpush1.xpose.msra.mxu0 0.0
    %4640 = vmatprep.subr.mxu0 0.0
    %4641 = vmatpush1.xpose.msra.mxu0 0.0
    %4642 = vmatprep.subr.mxu0 0.0
    %4643 = vmatpush1.xpose.msra.mxu0 0.0
    %4644 = vmatprep.subr.mxu0 0.0
    %4645 = vmatpush1.xpose.msra.mxu0 0.0
    %4646 = vmatprep.mubr.f32.mxu0 0.0
    %v4647 = vand.u32 %v4166, 4294901760
    %4648 = vmatmul.mubr.f32.gmra.mrb[0].mxu0 %v4647
    %v4649 = vpop.f32.mrb[0].mxu0
    %v4650 = vadd.f32 %v4575, %v4649
    %v4651 = vpop.f32.mrb[0].mxu0
    %4652 = vdwg.mxu0
    %v4653 = vsel %vm19, %v4650, -inf
    %4654 = vmax.xlane.f32.xlu0 %v4653
    %v4655 = vpop.xlane.xlu0 %4654
    %v4656 = vmax.f32 %v4655, 1e-30
    %v4657 = vrcp.pop %v4656
    %v4658 = vmul.f32 %v4650, %v4657
    %4659 = vst.msk [vmem:[#allocation5 + $0x3] sm:$0x1] %vm19, %v4658
    %v4661 = vsel %vm37, %v4161, 0
    %4663 = vmatprep.subr.mxu0 0.0
    %v4664 = vand.u32 %v148, 4294901760
    %4665 = vmatpush1.msra.mxu0 %v4664
    %4666 = vmatprep.subr.mxu0 0.0
    %v4667 = vand.u32 %v150, 4294901760
    %4668 = vmatpush1.msra.mxu0 %v4667
    %4669 = vmatprep.subr.mxu0 0.0
    %v4670 = vand.u32 %v152, 4294901760
    %4671 = vmatpush1.msra.mxu0 %v4670
    %4672 = vmatprep.subr.mxu0 0.0
    %v4673 = vand.u32 %v154, 4294901760
    %4674 = vmatpush1.msra.mxu0 %v4673
    %4675 = vmatprep.subr.mxu0 0.0
    %4676 = vmatpush1.msra.mxu0 0.0
    %4677 = vmatprep.subr.mxu0 0.0
    %4678 = vmatpush1.msra.mxu0 0.0
    %4679 = vmatprep.subr.mxu0 0.0
    %4680 = vmatpush1.msra.mxu0 0.0
    %4681 = vmatprep.subr.mxu0 0.0
    %4682 = vmatpush1.msra.mxu0 0.0
    %4683 = vmatprep.subr.mxu0 0.0
    %4684 = vmatpush1.msra.mxu0 0.0
    %4685 = vmatprep.subr.mxu0 0.0
    %4686 = vmatpush1.msra.mxu0 0.0
    %4687 = vmatprep.subr.mxu0 0.0
    %4688 = vmatpush1.msra.mxu0 0.0
    %4689 = vmatprep.subr.mxu0 0.0
    %4690 = vmatpush1.msra.mxu0 0.0
    %4691 = vmatprep.subr.mxu0 0.0
    %4692 = vmatpush1.msra.mxu0 0.0
    %4693 = vmatprep.subr.mxu0 0.0
    %4694 = vmatpush1.msra.mxu0 0.0
    %4695 = vmatprep.subr.mxu0 0.0
    %4696 = vmatpush1.msra.mxu0 0.0
    %4697 = vmatprep.subr.mxu0 0.0
    %4698 = vmatpush1.msra.mxu0 0.0
    %4699 = vmatprep.subr.mxu0 0.0
    %4700 = vmatpush1.msra.mxu0 0.0
    %4701 = vmatprep.subr.mxu0 0.0
    %4702 = vmatpush1.msra.mxu0 0.0
    %4703 = vmatprep.subr.mxu0 0.0
    %4704 = vmatpush1.msra.mxu0 0.0
    %4705 = vmatprep.subr.mxu0 0.0
    %4706 = vmatpush1.msra.mxu0 0.0
    %4707 = vmatprep.subr.mxu0 0.0
    %4708 = vmatpush1.msra.mxu0 0.0
    %4709 = vmatprep.subr.mxu0 0.0
    %4710 = vmatpush1.msra.mxu0 0.0
    %4711 = vmatprep.subr.mxu0 0.0
    %4712 = vmatpush1.msra.mxu0 0.0
    %4713 = vmatprep.subr.mxu0 0.0
    %4714 = vmatpush1.msra.mxu0 0.0
    %4715 = vmatprep.subr.mxu0 0.0
    %4716 = vmatpush1.msra.mxu0 0.0
    %4717 = vmatprep.subr.mxu0 0.0
    %4718 = vmatpush1.msra.mxu0 0.0
    %4719 = vmatprep.subr.mxu0 0.0
    %4720 = vmatpush1.msra.mxu0 0.0
    %4721 = vmatprep.subr.mxu0 0.0
    %4722 = vmatpush1.msra.mxu0 0.0
    %4723 = vmatprep.subr.mxu0 0.0
    %4724 = vmatpush1.msra.mxu0 0.0
    %4725 = vmatprep.subr.mxu0 0.0
    %4726 = vmatpush1.msra.mxu0 0.0
    %4727 = vmatprep.subr.mxu0 0.0
    %4728 = vmatpush1.msra.mxu0 0.0
    %4729 = vmatprep.subr.mxu0 0.0
    %4730 = vmatpush1.msra.mxu0 0.0
    %4731 = vmatprep.mubr.f32.mxu0 0.0
    %v4732 = vand.u32 %v4661, 4294901760
    %v4733 = vsub.f32 %v4661, %v4732
    %v4734 = vand.u32 %v4733, 4294901760
    %v4735 = vsub.f32 %v4733, %v4734
    %v4736 = vand.u32 %v4735, 4294901760
    %4737 = vmatmul.mubr.f32.gmra.mrb[0].mxu0 %v4736
    %v4738 = vpop.f32.mrb[0].mxu0
    %v4739 = vadd.f32 0.0, %v4738
    %v4740 = vpop.f32.mrb[0].mxu0
    %4741 = vdwg.mxu0
    %4742 = vmatprep.subr.mxu0 0.0
    %v4743 = vand.u32 %v148, 4294901760
    %v4744 = vsub.f32 %v148, %v4743
    %v4745 = vand.u32 %v4744, 4294901760
    %v4746 = vsub.f32 %v4744, %v4745
    %v4747 = vand.u32 %v4746, 4294901760
    %4748 = vmatpush1.msra.mxu0 %v4747
    %4749 = vmatprep.subr.mxu0 0.0
    %v4750 = vand.u32 %v150, 4294901760
    %v4751 = vsub.f32 %v150, %v4750
    %v4752 = vand.u32 %v4751, 4294901760
    %v4753 = vsub.f32 %v4751, %v4752
    %v4754 = vand.u32 %v4753, 4294901760
    %4755 = vmatpush1.msra.mxu0 %v4754
    %4756 = vmatprep.subr.mxu0 0.0
    %v4757 = vand.u32 %v152, 4294901760
    %v4758 = vsub.f32 %v152, %v4757
    %v4759 = vand.u32 %v4758, 4294901760
    %v4760 = vsub.f32 %v4758, %v4759
    %v4761 = vand.u32 %v4760, 4294901760
    %4762 = vmatpush1.msra.mxu0 %v4761
    %4763 = vmatprep.subr.mxu0 0.0
    %v4764 = vand.u32 %v154, 4294901760
    %v4765 = vsub.f32 %v154, %v4764
    %v4766 = vand.u32 %v4765, 4294901760
    %v4767 = vsub.f32 %v4765, %v4766
    %v4768 = vand.u32 %v4767, 4294901760
    %4769 = vmatpush1.msra.mxu0 %v4768
    %4770 = vmatprep.subr.mxu0 0.0
    %4771 = vmatpush1.msra.mxu0 0.0
    %4772 = vmatprep.subr.mxu0 0.0
    %4773 = vmatpush1.msra.mxu0 0.0
    %4774 = vmatprep.subr.mxu0 0.0
    %4775 = vmatpush1.msra.mxu0 0.0
    %4776 = vmatprep.subr.mxu0 0.0
    %4777 = vmatpush1.msra.mxu0 0.0
    %4778 = vmatprep.subr.mxu0 0.0
    %4779 = vmatpush1.msra.mxu0 0.0
    %4780 = vmatprep.subr.mxu0 0.0
    %4781 = vmatpush1.msra.mxu0 0.0
    %4782 = vmatprep.subr.mxu0 0.0
    %4783 = vmatpush1.msra.mxu0 0.0
    %4784 = vmatprep.subr.mxu0 0.0
    %4785 = vmatpush1.msra.mxu0 0.0
    %4786 = vmatprep.subr.mxu0 0.0
    %4787 = vmatpush1.msra.mxu0 0.0
    %4788 = vmatprep.subr.mxu0 0.0
    %4789 = vmatpush1.msra.mxu0 0.0
    %4790 = vmatprep.subr.mxu0 0.0
    %4791 = vmatpush1.msra.mxu0 0.0
    %4792 = vmatprep.subr.mxu0 0.0
    %4793 = vmatpush1.msra.mxu0 0.0
    %4794 = vmatprep.subr.mxu0 0.0
    %4795 = vmatpush1.msra.mxu0 0.0
    %4796 = vmatprep.subr.mxu0 0.0
    %4797 = vmatpush1.msra.mxu0 0.0
    %4798 = vmatprep.subr.mxu0 0.0
    %4799 = vmatpush1.msra.mxu0 0.0
    %4800 = vmatprep.subr.mxu0 0.0
    %4801 = vmatpush1.msra.mxu0 0.0
    %4802 = vmatprep.subr.mxu0 0.0
    %4803 = vmatpush1.msra.mxu0 0.0
    %4804 = vmatprep.subr.mxu0 0.0
    %4805 = vmatpush1.msra.mxu0 0.0
    %4806 = vmatprep.subr.mxu0 0.0
    %4807 = vmatpush1.msra.mxu0 0.0
    %4808 = vmatprep.subr.mxu0 0.0
    %4809 = vmatpush1.msra.mxu0 0.0
    %4810 = vmatprep.subr.mxu0 0.0
    %4811 = vmatpush1.msra.mxu0 0.0
    %4812 = vmatprep.subr.mxu0 0.0
    %4813 = vmatpush1.msra.mxu0 0.0
    %4814 = vmatprep.subr.mxu0 0.0
    %4815 = vmatpush1.msra.mxu0 0.0
    %4816 = vmatprep.subr.mxu0 0.0
    %4817 = vmatpush1.msra.mxu0 0.0
    %4818 = vmatprep.subr.mxu0 0.0
    %4819 = vmatpush1.msra.mxu0 0.0
    %4820 = vmatprep.subr.mxu0 0.0
    %4821 = vmatpush1.msra.mxu0 0.0
    %4822 = vmatprep.subr.mxu0 0.0
    %4823 = vmatpush1.msra.mxu0 0.0
    %4824 = vmatprep.subr.mxu0 0.0
    %4825 = vmatpush1.msra.mxu0 0.0
    %4826 = vmatprep.mubr.f32.mxu0 0.0
    %v4827 = vand.u32 %v4661, 4294901760
    %4828 = vmatmul.mubr.f32.gmra.mrb[0].mxu0 %v4827
    %v4829 = vpop.f32.mrb[0].mxu0
    %v4830 = vadd.f32 %v4739, %v4829
    %v4831 = vpop.f32.mrb[0].mxu0
    %4832 = vdwg.mxu0
    %4833 = vmatprep.subr.mxu0 0.0
    %v4834 = vand.u32 %v148, 4294901760
    %v4835 = vsub.f32 %v148, %v4834
    %4836 = vmatpush1.msra.mxu0 %v4835
    %4837 = vmatprep.subr.mxu0 0.0
    %v4838 = vand.u32 %v150, 4294901760
    %v4839 = vsub.f32 %v150, %v4838
    %4840 = vmatpush1.msra.mxu0 %v4839
    %4841 = vmatprep.subr.mxu0 0.0
    %v4842 = vand.u32 %v152, 4294901760
    %v4843 = vsub.f32 %v152, %v4842
    %4844 = vmatpush1.msra.mxu0 %v4843
    %4845 = vmatprep.subr.mxu0 0.0
    %v4846 = vand.u32 %v154, 4294901760
    %v4847 = vsub.f32 %v154, %v4846
    %4848 = vmatpush1.msra.mxu0 %v4847
    %4849 = vmatprep.subr.mxu0 0.0
    %4850 = vmatpush1.msra.mxu0 0.0
    %4851 = vmatprep.subr.mxu0 0.0
    %4852 = vmatpush1.msra.mxu0 0.0
    %4853 = vmatprep.subr.mxu0 0.0
    %4854 = vmatpush1.msra.mxu0 0.0
    %4855 = vmatprep.subr.mxu0 0.0
    %4856 = vmatpush1.msra.mxu0 0.0
    %4857 = vmatprep.subr.mxu0 0.0
    %4858 = vmatpush1.msra.mxu0 0.0
    %4859 = vmatprep.subr.mxu0 0.0
    %4860 = vmatpush1.msra.mxu0 0.0
    %4861 = vmatprep.subr.mxu0 0.0
    %4862 = vmatpush1.msra.mxu0 0.0
    %4863 = vmatprep.subr.mxu0 0.0
    %4864 = vmatpush1.msra.mxu0 0.0
    %4865 = vmatprep.subr.mxu0 0.0
    %4866 = vmatpush1.msra.mxu0 0.0
    %4867 = vmatprep.subr.mxu0 0.0
    %4868 = vmatpush1.msra.mxu0 0.0
    %4869 = vmatprep.subr.mxu0 0.0
    %4870 = vmatpush1.msra.mxu0 0.0
    %4871 = vmatprep.subr.mxu0 0.0
    %4872 = vmatpush1.msra.mxu0 0.0
    %4873 = vmatprep.subr.mxu0 0.0
    %4874 = vmatpush1.msra.mxu0 0.0
    %4875 = vmatprep.subr.mxu0 0.0
    %4876 = vmatpush1.msra.mxu0 0.0
    %4877 = vmatprep.subr.mxu0 0.0
    %4878 = vmatpush1.msra.mxu0 0.0
    %4879 = vmatprep.subr.mxu0 0.0
    %4880 = vmatpush1.msra.mxu0 0.0
    %4881 = vmatprep.subr.mxu0 0.0
    %4882 = vmatpush1.msra.mxu0 0.0
    %4883 = vmatprep.subr.mxu0 0.0
    %4884 = vmatpush1.msra.mxu0 0.0
    %4885 = vmatprep.subr.mxu0 0.0
    %4886 = vmatpush1.msra.mxu0 0.0
    %4887 = vmatprep.subr.mxu0 0.0
    %4888 = vmatpush1.msra.mxu0 0.0
    %4889 = vmatprep.subr.mxu0 0.0
    %4890 = vmatpush1.msra.mxu0 0.0
    %4891 = vmatprep.subr.mxu0 0.0
    %4892 = vmatpush1.msra.mxu0 0.0
    %4893 = vmatprep.subr.mxu0 0.0
    %4894 = vmatpush1.msra.mxu0 0.0
    %4895 = vmatprep.subr.mxu0 0.0
    %4896 = vmatpush1.msra.mxu0 0.0
    %4897 = vmatprep.subr.mxu0 0.0
    %4898 = vmatpush1.msra.mxu0 0.0
    %4899 = vmatprep.subr.mxu0 0.0
    %4900 = vmatpush1.msra.mxu0 0.0
    %4901 = vmatprep.subr.mxu0 0.0
    %4902 = vmatpush1.msra.mxu0 0.0
    %4903 = vmatprep.subr.mxu0 0.0
    %4904 = vmatpush1.msra.mxu0 0.0
    %4905 = vmatprep.mubr.f32.mxu0 0.0
    %v4906 = vand.u32 %v4661, 4294901760
    %v4907 = vsub.f32 %v4661, %v4906
    %4908 = vmatmul.mubr.f32.gmra.mrb[0].mxu0 %v4907
    %v4909 = vpop.f32.mrb[0].mxu0
    %v4910 = vadd.f32 %v4830, %v4909
    %v4911 = vpop.f32.mrb[0].mxu0
    %4912 = vdwg.mxu0
    %4913 = vmatprep.subr.mxu0 0.0
    %v4914 = vand.u32 %v148, 4294901760
    %4915 = vmatpush1.msra.mxu0 %v4914
    %4916 = vmatprep.subr.mxu0 0.0
    %v4917 = vand.u32 %v150, 4294901760
    %4918 = vmatpush1.msra.mxu0 %v4917
    %4919 = vmatprep.subr.mxu0 0.0
    %v4920 = vand.u32 %v152, 4294901760
    %4921 = vmatpush1.msra.mxu0 %v4920
    %4922 = vmatprep.subr.mxu0 0.0
    %v4923 = vand.u32 %v154, 4294901760
    %4924 = vmatpush1.msra.mxu0 %v4923
    %4925 = vmatprep.subr.mxu0 0.0
    %4926 = vmatpush1.msra.mxu0 0.0
    %4927 = vmatprep.subr.mxu0 0.0
    %4928 = vmatpush1.msra.mxu0 0.0
    %4929 = vmatprep.subr.mxu0 0.0
    %4930 = vmatpush1.msra.mxu0 0.0
    %4931 = vmatprep.subr.mxu0 0.0
    %4932 = vmatpush1.msra.mxu0 0.0
    %4933 = vmatprep.subr.mxu0 0.0
    %4934 = vmatpush1.msra.mxu0 0.0
    %4935 = vmatprep.subr.mxu0 0.0
    %4936 = vmatpush1.msra.mxu0 0.0
    %4937 = vmatprep.subr.mxu0 0.0
    %4938 = vmatpush1.msra.mxu0 0.0
    %4939 = vmatprep.subr.mxu0 0.0
    %4940 = vmatpush1.msra.mxu0 0.0
    %4941 = vmatprep.subr.mxu0 0.0
    %4942 = vmatpush1.msra.mxu0 0.0
    %4943 = vmatprep.subr.mxu0 0.0
    %4944 = vmatpush1.msra.mxu0 0.0
    %4945 = vmatprep.subr.mxu0 0.0
    %4946 = vmatpush1.msra.mxu0 0.0
    %4947 = vmatprep.subr.mxu0 0.0
    %4948 = vmatpush1.msra.mxu0 0.0
    %4949 = vmatprep.subr.mxu0 0.0
    %4950 = vmatpush1.msra.mxu0 0.0
    %4951 = vmatprep.subr.mxu0 0.0
    %4952 = vmatpush1.msra.mxu0 0.0
    %4953 = vmatprep.subr.mxu0 0.0
    %4954 = vmatpush1.msra.mxu0 0.0
    %4955 = vmatprep.subr.mxu0 0.0
    %4956 = vmatpush1.msra.mxu0 0.0
    %4957 = vmatprep.subr.mxu0 0.0
    %4958 = vmatpush1.msra.mxu0 0.0
    %4959 = vmatprep.subr.mxu0 0.0
    %4960 = vmatpush1.msra.mxu0 0.0
    %4961 = vmatprep.subr.mxu0 0.0
    %4962 = vmatpush1.msra.mxu0 0.0
    %4963 = vmatprep.subr.mxu0 0.0
    %4964 = vmatpush1.msra.mxu0 0.0
    %4965 = vmatprep.subr.mxu0 0.0
    %4966 = vmatpush1.msra.mxu0 0.0
    %4967 = vmatprep.subr.mxu0 0.0
    %4968 = vmatpush1.msra.mxu0 0.0
    %4969 = vmatprep.subr.mxu0 0.0
    %4970 = vmatpush1.msra.mxu0 0.0
    %4971 = vmatprep.subr.mxu0 0.0
    %4972 = vmatpush1.msra.mxu0 0.0
    %4973 = vmatprep.subr.mxu0 0.0
    %4974 = vmatpush1.msra.mxu0 0.0
    %4975 = vmatprep.subr.mxu0 0.0
    %4976 = vmatpush1.msra.mxu0 0.0
    %4977 = vmatprep.subr.mxu0 0.0
    %4978 = vmatpush1.msra.mxu0 0.0
    %4979 = vmatprep.subr.mxu0 0.0
    %4980 = vmatpush1.msra.mxu0 0.0
    %4981 = vmatprep.mubr.f32.mxu0 0.0
    %v4982 = vand.u32 %v4661, 4294901760
    %v4983 = vsub.f32 %v4661, %v4982
    %v4984 = vand.u32 %v4983, 4294901760
    %4985 = vmatmul.mubr.f32.gmra.mrb[0].mxu0 %v4984
    %v4986 = vpop.f32.mrb[0].mxu0
    %v4987 = vadd.f32 %v4910, %v4986
    %v4988 = vpop.f32.mrb[0].mxu0
    %4989 = vdwg.mxu0
    %4990 = vmatprep.subr.mxu0 0.0
    %v4991 = vand.u32 %v148, 4294901760
    %v4992 = vsub.f32 %v148, %v4991
    %v4993 = vand.u32 %v4992, 4294901760
    %4994 = vmatpush1.msra.mxu0 %v4993
    %4995 = vmatprep.subr.mxu0 0.0
    %v4996 = vand.u32 %v150, 4294901760
    %v4997 = vsub.f32 %v150, %v4996
    %v4998 = vand.u32 %v4997, 4294901760
    %4999 = vmatpush1.msra.mxu0 %v4998
    %5000 = vmatprep.subr.mxu0 0.0
    %v5001 = vand.u32 %v152, 4294901760
    %v5002 = vsub.f32 %v152, %v5001
    %v5003 = vand.u32 %v5002, 4294901760
    %5004 = vmatpush1.msra.mxu0 %v5003
    %5005 = vmatprep.subr.mxu0 0.0
    %v5006 = vand.u32 %v154, 4294901760
    %v5007 = vsub.f32 %v154, %v5006
    %v5008 = vand.u32 %v5007, 4294901760
    %5009 = vmatpush1.msra.mxu0 %v5008
    %5010 = vmatprep.subr.mxu0 0.0
    %5011 = vmatpush1.msra.mxu0 0.0
    %5012 = vmatprep.subr.mxu0 0.0
    %5013 = vmatpush1.msra.mxu0 0.0
    %5014 = vmatprep.subr.mxu0 0.0
    %5015 = vmatpush1.msra.mxu0 0.0
    %5016 = vmatprep.subr.mxu0 0.0
    %5017 = vmatpush1.msra.mxu0 0.0
    %5018 = vmatprep.subr.mxu0 0.0
    %5019 = vmatpush1.msra.mxu0 0.0
    %5020 = vmatprep.subr.mxu0 0.0
    %5021 = vmatpush1.msra.mxu0 0.0
    %5022 = vmatprep.subr.mxu0 0.0
    %5023 = vmatpush1.msra.mxu0 0.0
    %5024 = vmatprep.subr.mxu0 0.0
    %5025 = vmatpush1.msra.mxu0 0.0
    %5026 = vmatprep.subr.mxu0 0.0
    %5027 = vmatpush1.msra.mxu0 0.0
    %5028 = vmatprep.subr.mxu0 0.0
    %5029 = vmatpush1.msra.mxu0 0.0
    %5030 = vmatprep.subr.mxu0 0.0
    %5031 = vmatpush1.msra.mxu0 0.0
    %5032 = vmatprep.subr.mxu0 0.0
    %5033 = vmatpush1.msra.mxu0 0.0
    %5034 = vmatprep.subr.mxu0 0.0
    %5035 = vmatpush1.msra.mxu0 0.0
    %5036 = vmatprep.subr.mxu0 0.0
    %5037 = vmatpush1.msra.mxu0 0.0
    %5038 = vmatprep.subr.mxu0 0.0
    %5039 = vmatpush1.msra.mxu0 0.0
    %5040 = vmatprep.subr.mxu0 0.0
    %5041 = vmatpush1.msra.mxu0 0.0
    %5042 = vmatprep.subr.mxu0 0.0
    %5043 = vmatpush1.msra.mxu0 0.0
    %5044 = vmatprep.subr.mxu0 0.0
    %5045 = vmatpush1.msra.mxu0 0.0
    %5046 = vmatprep.subr.mxu0 0.0
    %5047 = vmatpush1.msra.mxu0 0.0
    %5048 = vmatprep.subr.mxu0 0.0
    %5049 = vmatpush1.msra.mxu0 0.0
    %5050 = vmatprep.subr.mxu0 0.0
    %5051 = vmatpush1.msra.mxu0 0.0
    %5052 = vmatprep.subr.mxu0 0.0
    %5053 = vmatpush1.msra.mxu0 0.0
    %5054 = vmatprep.subr.mxu0 0.0
    %5055 = vmatpush1.msra.mxu0 0.0
    %5056 = vmatprep.subr.mxu0 0.0
    %5057 = vmatpush1.msra.mxu0 0.0
    %5058 = vmatprep.subr.mxu0 0.0
    %5059 = vmatpush1.msra.mxu0 0.0
    %5060 = vmatprep.subr.mxu0 0.0
    %5061 = vmatpush1.msra.mxu0 0.0
    %5062 = vmatprep.subr.mxu0 0.0
    %5063 = vmatpush1.msra.mxu0 0.0
    %5064 = vmatprep.subr.mxu0 0.0
    %5065 = vmatpush1.msra.mxu0 0.0
    %5066 = vmatprep.mubr.f32.mxu0 0.0
    %v5067 = vand.u32 %v4661, 4294901760
    %5068 = vmatmul.mubr.f32.gmra.mrb[0].mxu0 %v5067
    %v5069 = vpop.f32.mrb[0].mxu0
    %v5070 = vadd.f32 %v4987, %v5069
    %v5071 = vpop.f32.mrb[0].mxu0
    %5072 = vdwg.mxu0
    %5073 = vmatprep.subr.mxu0 0.0
    %v5074 = vand.u32 %v148, 4294901760
    %5075 = vmatpush1.msra.mxu0 %v5074
    %5076 = vmatprep.subr.mxu0 0.0
    %v5077 = vand.u32 %v150, 4294901760
    %5078 = vmatpush1.msra.mxu0 %v5077
    %5079 = vmatprep.subr.mxu0 0.0
    %v5080 = vand.u32 %v152, 4294901760
    %5081 = vmatpush1.msra.mxu0 %v5080
    %5082 = vmatprep.subr.mxu0 0.0
    %v5083 = vand.u32 %v154, 4294901760
    %5084 = vmatpush1.msra.mxu0 %v5083
    %5085 = vmatprep.subr.mxu0 0.0
    %5086 = vmatpush1.msra.mxu0 0.0
    %5087 = vmatprep.subr.mxu0 0.0
    %5088 = vmatpush1.msra.mxu0 0.0
    %5089 = vmatprep.subr.mxu0 0.0
    %5090 = vmatpush1.msra.mxu0 0.0
    %5091 = vmatprep.subr.mxu0 0.0
    %5092 = vmatpush1.msra.mxu0 0.0
    %5093 = vmatprep.subr.mxu0 0.0
    %5094 = vmatpush1.msra.mxu0 0.0
    %5095 = vmatprep.subr.mxu0 0.0
    %5096 = vmatpush1.msra.mxu0 0.0
    %5097 = vmatprep.subr.mxu0 0.0
    %5098 = vmatpush1.msra.mxu0 0.0
    %5099 = vmatprep.subr.mxu0 0.0
    %5100 = vmatpush1.msra.mxu0 0.0
    %5101 = vmatprep.subr.mxu0 0.0
    %5102 = vmatpush1.msra.mxu0 0.0
    %5103 = vmatprep.subr.mxu0 0.0
    %5104 = vmatpush1.msra.mxu0 0.0
    %5105 = vmatprep.subr.mxu0 0.0
    %5106 = vmatpush1.msra.mxu0 0.0
    %5107 = vmatprep.subr.mxu0 0.0
    %5108 = vmatpush1.msra.mxu0 0.0
    %5109 = vmatprep.subr.mxu0 0.0
    %5110 = vmatpush1.msra.mxu0 0.0
    %5111 = vmatprep.subr.mxu0 0.0
    %5112 = vmatpush1.msra.mxu0 0.0
    %5113 = vmatprep.subr.mxu0 0.0
    %5114 = vmatpush1.msra.mxu0 0.0
    %5115 = vmatprep.subr.mxu0 0.0
    %5116 = vmatpush1.msra.mxu0 0.0
    %5117 = vmatprep.subr.mxu0 0.0
    %5118 = vmatpush1.msra.mxu0 0.0
    %5119 = vmatprep.subr.mxu0 0.0
    %5120 = vmatpush1.msra.mxu0 0.0
    %5121 = vmatprep.subr.mxu0 0.0
    %5122 = vmatpush1.msra.mxu0 0.0
    %5123 = vmatprep.subr.mxu0 0.0
    %5124 = vmatpush1.msra.mxu0 0.0
    %5125 = vmatprep.subr.mxu0 0.0
    %5126 = vmatpush1.msra.mxu0 0.0
    %5127 = vmatprep.subr.mxu0 0.0
    %5128 = vmatpush1.msra.mxu0 0.0
    %5129 = vmatprep.subr.mxu0 0.0
    %5130 = vmatpush1.msra.mxu0 0.0
    %5131 = vmatprep.subr.mxu0 0.0
    %5132 = vmatpush1.msra.mxu0 0.0
    %5133 = vmatprep.subr.mxu0 0.0
    %5134 = vmatpush1.msra.mxu0 0.0
    %5135 = vmatprep.subr.mxu0 0.0
    %5136 = vmatpush1.msra.mxu0 0.0
    %5137 = vmatprep.subr.mxu0 0.0
    %5138 = vmatpush1.msra.mxu0 0.0
    %5139 = vmatprep.subr.mxu0 0.0
    %5140 = vmatpush1.msra.mxu0 0.0
    %5141 = vmatprep.mubr.f32.mxu0 0.0
    %v5142 = vand.u32 %v4661, 4294901760
    %5143 = vmatmul.mubr.f32.gmra.mrb[0].mxu0 %v5142
    %v5144 = vpop.f32.mrb[0].mxu0
    %v5145 = vadd.f32 %v5070, %v5144
    %v5146 = vpop.f32.mrb[0].mxu0
    %5147 = vdwg.mxu0
    %v5148 = vld [vmem:[#allocation3 + $0x5] sm:$0x1]
    %v5149 = vmul.f32 %v5145, %v5148
    %v5150 = vsel %vm19, %v5149, -inf
    %5151 = vmax.xlane.f32.xlu0 %v5150
    %v5152 = vpop.xlane.xlu0 %5151
    %v5153 = vmax.f32 %v5152, 1e-30
    %v5154 = vrcp.pop %v5153
    %v5155 = vmul.f32 %v5149, %v5154
    %5156 = vst.msk [vmem:[#allocation4 + $0x5] sm:$0x1] %vm19, %v5155
    %v5157 = vld [vmem:[#allocation3 + $0x2] sm:$0x1]
    %v5158 = vmul.f32 %v5157, %v4658
    %v5160 = vsel %vm37, %v5158, 0
    %5162 = vmatprep.subr.mxu0 0.0
    %v5163 = vand.u32 %v1175, 4294901760
    %5164 = vmatpush1.xpose.msra.mxu0 %v5163
    %5165 = vmatprep.subr.mxu0 0.0
    %v5166 = vand.u32 %v1178, 4294901760
    %5167 = vmatpush1.xpose.msra.mxu0 %v5166
    %5168 = vmatprep.subr.mxu0 0.0
    %v5169 = vand.u32 %v1181, 4294901760
    %5170 = vmatpush1.xpose.msra.mxu0 %v5169
    %5171 = vmatprep.subr.mxu0 0.0
    %v5172 = vand.u32 %v1184, 4294901760
    %5173 = vmatpush1.xpose.msra.mxu0 %v5172
    %5174 = vmatprep.subr.mxu0 0.0
    %5175 = vmatpush1.xpose.msra.mxu0 0.0
    %5176 = vmatprep.subr.mxu0 0.0
    %5177 = vmatpush1.xpose.msra.mxu0 0.0
    %5178 = vmatprep.subr.mxu0 0.0
    %5179 = vmatpush1.xpose.msra.mxu0 0.0
    %5180 = vmatprep.subr.mxu0 0.0
    %5181 = vmatpush1.xpose.msra.mxu0 0.0
    %5182 = vmatprep.subr.mxu0 0.0
    %5183 = vmatpush1.xpose.msra.mxu0 0.0
    %5184 = vmatprep.subr.mxu0 0.0
    %5185 = vmatpush1.xpose.msra.mxu0 0.0
    %5186 = vmatprep.subr.mxu0 0.0
    %5187 = vmatpush1.xpose.msra.mxu0 0.0
    %5188 = vmatprep.subr.mxu0 0.0
    %5189 = vmatpush1.xpose.msra.mxu0 0.0
    %5190 = vmatprep.subr.mxu0 0.0
    %5191 = vmatpush1.xpose.msra.mxu0 0.0
    %5192 = vmatprep.subr.mxu0 0.0
    %5193 = vmatpush1.xpose.msra.mxu0 0.0
    %5194 = vmatprep.subr.mxu0 0.0
    %5195 = vmatpush1.xpose.msra.mxu0 0.0
    %5196 = vmatprep.subr.mxu0 0.0
    %5197 = vmatpush1.xpose.msra.mxu0 0.0
    %5198 = vmatprep.subr.mxu0 0.0
    %5199 = vmatpush1.xpose.msra.mxu0 0.0
    %5200 = vmatprep.subr.mxu0 0.0
    %5201 = vmatpush1.xpose.msra.mxu0 0.0
    %5202 = vmatprep.subr.mxu0 0.0
    %5203 = vmatpush1.xpose.msra.mxu0 0.0
    %5204 = vmatprep.subr.mxu0 0.0
    %5205 = vmatpush1.xpose.msra.mxu0 0.0
    %5206 = vmatprep.subr.mxu0 0.0
    %5207 = vmatpush1.xpose.msra.mxu0 0.0
    %5208 = vmatprep.subr.mxu0 0.0
    %5209 = vmatpush1.xpose.msra.mxu0 0.0
    %5210 = vmatprep.subr.mxu0 0.0
    %5211 = vmatpush1.xpose.msra.mxu0 0.0
    %5212 = vmatprep.subr.mxu0 0.0
    %5213 = vmatpush1.xpose.msra.mxu0 0.0
    %5214 = vmatprep.subr.mxu0 0.0
    %5215 = vmatpush1.xpose.msra.mxu0 0.0
    %5216 = vmatprep.subr.mxu0 0.0
    %5217 = vmatpush1.xpose.msra.mxu0 0.0
    %5218 = vmatprep.subr.mxu0 0.0
    %5219 = vmatpush1.xpose.msra.mxu0 0.0
    %5220 = vmatprep.subr.mxu0 0.0
    %5221 = vmatpush1.xpose.msra.mxu0 0.0
    %5222 = vmatprep.subr.mxu0 0.0
    %5223 = vmatpush1.xpose.msra.mxu0 0.0
    %5224 = vmatprep.subr.mxu0 0.0
    %5225 = vmatpush1.xpose.msra.mxu0 0.0
    %5226 = vmatprep.subr.mxu0 0.0
    %5227 = vmatpush1.xpose.msra.mxu0 0.0
    %5228 = vmatprep.subr.mxu0 0.0
    %5229 = vmatpush1.xpose.msra.mxu0 0.0
    %5230 = vmatprep.mubr.f32.mxu0 0.0
    %v5231 = vand.u32 %v5160, 4294901760
    %v5232 = vsub.f32 %v5160, %v5231
    %v5233 = vand.u32 %v5232, 4294901760
    %v5234 = vsub.f32 %v5232, %v5233
    %v5235 = vand.u32 %v5234, 4294901760
    %5236 = vmatmul.mubr.f32.gmra.mrb[0].mxu0 %v5235
    %v5237 = vpop.f32.mrb[0].mxu0
    %v5238 = vadd.f32 0.0, %v5237
    %v5239 = vpop.f32.mrb[0].mxu0
    %5240 = vdwg.mxu0
    %5241 = vmatprep.subr.mxu0 0.0
    %v5242 = vand.u32 %v1175, 4294901760
    %v5243 = vsub.f32 %v1175, %v5242
    %v5244 = vand.u32 %v5243, 4294901760
    %v5245 = vsub.f32 %v5243, %v5244
    %v5246 = vand.u32 %v5245, 4294901760
    %5247 = vmatpush1.xpose.msra.mxu0 %v5246
    %5248 = vmatprep.subr.mxu0 0.0
    %v5249 = vand.u32 %v1178, 4294901760
    %v5250 = vsub.f32 %v1178, %v5249
    %v5251 = vand.u32 %v5250, 4294901760
    %v5252 = vsub.f32 %v5250, %v5251
    %v5253 = vand.u32 %v5252, 4294901760
    %5254 = vmatpush1.xpose.msra.mxu0 %v5253
    %5255 = vmatprep.subr.mxu0 0.0
    %v5256 = vand.u32 %v1181, 4294901760
    %v5257 = vsub.f32 %v1181, %v5256
    %v5258 = vand.u32 %v5257, 4294901760
    %v5259 = vsub.f32 %v5257, %v5258
    %v5260 = vand.u32 %v5259, 4294901760
    %5261 = vmatpush1.xpose.msra.mxu0 %v5260
    %5262 = vmatprep.subr.mxu0 0.0
    %v5263 = vand.u32 %v1184, 4294901760
    %v5264 = vsub.f32 %v1184, %v5263
    %v5265 = vand.u32 %v5264, 4294901760
    %v5266 = vsub.f32 %v5264, %v5265
    %v5267 = vand.u32 %v5266, 4294901760
    %5268 = vmatpush1.xpose.msra.mxu0 %v5267
    %5269 = vmatprep.subr.mxu0 0.0
    %5270 = vmatpush1.xpose.msra.mxu0 0.0
    %5271 = vmatprep.subr.mxu0 0.0
    %5272 = vmatpush1.xpose.msra.mxu0 0.0
    %5273 = vmatprep.subr.mxu0 0.0
    %5274 = vmatpush1.xpose.msra.mxu0 0.0
    %5275 = vmatprep.subr.mxu0 0.0
    %5276 = vmatpush1.xpose.msra.mxu0 0.0
    %5277 = vmatprep.subr.mxu0 0.0
    %5278 = vmatpush1.xpose.msra.mxu0 0.0
    %5279 = vmatprep.subr.mxu0 0.0
    %5280 = vmatpush1.xpose.msra.mxu0 0.0
    %5281 = vmatprep.subr.mxu0 0.0
    %5282 = vmatpush1.xpose.msra.mxu0 0.0
    %5283 = vmatprep.subr.mxu0 0.0
    %5284 = vmatpush1.xpose.msra.mxu0 0.0
    %5285 = vmatprep.subr.mxu0 0.0
    %5286 = vmatpush1.xpose.msra.mxu0 0.0
    %5287 = vmatprep.subr.mxu0 0.0
    %5288 = vmatpush1.xpose.msra.mxu0 0.0
    %5289 = vmatprep.subr.mxu0 0.0
    %5290 = vmatpush1.xpose.msra.mxu0 0.0
    %5291 = vmatprep.subr.mxu0 0.0
    %5292 = vmatpush1.xpose.msra.mxu0 0.0
    %5293 = vmatprep.subr.mxu0 0.0
    %5294 = vmatpush1.xpose.msra.mxu0 0.0
    %5295 = vmatprep.subr.mxu0 0.0
    %5296 = vmatpush1.xpose.msra.mxu0 0.0
    %5297 = vmatprep.subr.mxu0 0.0
    %5298 = vmatpush1.xpose.msra.mxu0 0.0
    %5299 = vmatprep.subr.mxu0 0.0
    %5300 = vmatpush1.xpose.msra.mxu0 0.0
    %5301 = vmatprep.subr.mxu0 0.0
    %5302 = vmatpush1.xpose.msra.mxu0 0.0
    %5303 = vmatprep.subr.mxu0 0.0
    %5304 = vmatpush1.xpose.msra.mxu0 0.0
    %5305 = vmatprep.subr.mxu0 0.0
    %5306 = vmatpush1.xpose.msra.mxu0 0.0
    %5307 = vmatprep.subr.mxu0 0.0
    %5308 = vmatpush1.xpose.msra.mxu0 0.0
    %5309 = vmatprep.subr.mxu0 0.0
    %5310 = vmatpush1.xpose.msra.mxu0 0.0
    %5311 = vmatprep.subr.mxu0 0.0
    %5312 = vmatpush1.xpose.msra.mxu0 0.0
    %5313 = vmatprep.subr.mxu0 0.0
    %5314 = vmatpush1.xpose.msra.mxu0 0.0
    %5315 = vmatprep.subr.mxu0 0.0
    %5316 = vmatpush1.xpose.msra.mxu0 0.0
    %5317 = vmatprep.subr.mxu0 0.0
    %5318 = vmatpush1.xpose.msra.mxu0 0.0
    %5319 = vmatprep.subr.mxu0 0.0
    %5320 = vmatpush1.xpose.msra.mxu0 0.0
    %5321 = vmatprep.subr.mxu0 0.0
    %5322 = vmatpush1.xpose.msra.mxu0 0.0
    %5323 = vmatprep.subr.mxu0 0.0
    %5324 = vmatpush1.xpose.msra.mxu0 0.0
    %5325 = vmatprep.mubr.f32.mxu0 0.0
    %v5326 = vand.u32 %v5160, 4294901760
    %5327 = vmatmul.mubr.f32.gmra.mrb[0].mxu0 %v5326
    %v5328 = vpop.f32.mrb[0].mxu0
    %v5329 = vadd.f32 %v5238, %v5328
    %v5330 = vpop.f32.mrb[0].mxu0
    %5331 = vdwg.mxu0
    %5332 = vmatprep.subr.mxu0 0.0
    %v5333 = vand.u32 %v1175, 4294901760
    %v5334 = vsub.f32 %v1175, %v5333
    %5335 = vmatpush1.xpose.msra.mxu0 %v5334
    %5336 = vmatprep.subr.mxu0 0.0
    %v5337 = vand.u32 %v1178, 4294901760
    %v5338 = vsub.f32 %v1178, %v5337
    %5339 = vmatpush1.xpose.msra.mxu0 %v5338
    %5340 = vmatprep.subr.mxu0 0.0
    %v5341 = vand.u32 %v1181, 4294901760
    %v5342 = vsub.f32 %v1181, %v5341
    %5343 = vmatpush1.xpose.msra.mxu0 %v5342
    %5344 = vmatprep.subr.mxu0 0.0
    %v5345 = vand.u32 %v1184, 4294901760
    %v5346 = vsub.f32 %v1184, %v5345
    %5347 = vmatpush1.xpose.msra.mxu0 %v5346
    %5348 = vmatprep.subr.mxu0 0.0
    %5349 = vmatpush1.xpose.msra.mxu0 0.0
    %5350 = vmatprep.subr.mxu0 0.0
    %5351 = vmatpush1.xpose.msra.mxu0 0.0
    %5352 = vmatprep.subr.mxu0 0.0
    %5353 = vmatpush1.xpose.msra.mxu0 0.0
    %5354 = vmatprep.subr.mxu0 0.0
    %5355 = vmatpush1.xpose.msra.mxu0 0.0
    %5356 = vmatprep.subr.mxu0 0.0
    %5357 = vmatpush1.xpose.msra.mxu0 0.0
    %5358 = vmatprep.subr.mxu0 0.0
    %5359 = vmatpush1.xpose.msra.mxu0 0.0
    %5360 = vmatprep.subr.mxu0 0.0
    %5361 = vmatpush1.xpose.msra.mxu0 0.0
    %5362 = vmatprep.subr.mxu0 0.0
    %5363 = vmatpush1.xpose.msra.mxu0 0.0
    %5364 = vmatprep.subr.mxu0 0.0
    %5365 = vmatpush1.xpose.msra.mxu0 0.0
    %5366 = vmatprep.subr.mxu0 0.0
    %5367 = vmatpush1.xpose.msra.mxu0 0.0
    %5368 = vmatprep.subr.mxu0 0.0
    %5369 = vmatpush1.xpose.msra.mxu0 0.0
    %5370 = vmatprep.subr.mxu0 0.0
    %5371 = vmatpush1.xpose.msra.mxu0 0.0
    %5372 = vmatprep.subr.mxu0 0.0
    %5373 = vmatpush1.xpose.msra.mxu0 0.0
    %5374 = vmatprep.subr.mxu0 0.0
    %5375 = vmatpush1.xpose.msra.mxu0 0.0
    %5376 = vmatprep.subr.mxu0 0.0
    %5377 = vmatpush1.xpose.msra.mxu0 0.0
    %5378 = vmatprep.subr.mxu0 0.0
    %5379 = vmatpush1.xpose.msra.mxu0 0.0
    %5380 = vmatprep.subr.mxu0 0.0
    %5381 = vmatpush1.xpose.msra.mxu0 0.0
    %5382 = vmatprep.subr.mxu0 0.0
    %5383 = vmatpush1.xpose.msra.mxu0 0.0
    %5384 = vmatprep.subr.mxu0 0.0
    %5385 = vmatpush1.xpose.msra.mxu0 0.0
    %5386 = vmatprep.subr.mxu0 0.0
    %5387 = vmatpush1.xpose.msra.mxu0 0.0
    %5388 = vmatprep.subr.mxu0 0.0
    %5389 = vmatpush1.xpose.msra.mxu0 0.0
    %5390 = vmatprep.subr.mxu0 0.0
    %5391 = vmatpush1.xpose.msra.mxu0 0.0
    %5392 = vmatprep.subr.mxu0 0.0
    %5393 = vmatpush1.xpose.msra.mxu0 0.0
    %5394 = vmatprep.subr.mxu0 0.0
    %5395 = vmatpush1.xpose.msra.mxu0 0.0
    %5396 = vmatprep.subr.mxu0 0.0
    %5397 = vmatpush1.xpose.msra.mxu0 0.0
    %5398 = vmatprep.subr.mxu0 0.0
    %5399 = vmatpush1.xpose.msra.mxu0 0.0
    %5400 = vmatprep.subr.mxu0 0.0
    %5401 = vmatpush1.xpose.msra.mxu0 0.0
    %5402 = vmatprep.subr.mxu0 0.0
    %5403 = vmatpush1.xpose.msra.mxu0 0.0
    %5404 = vmatprep.mubr.f32.mxu0 0.0
    %v5405 = vand.u32 %v5160, 4294901760
    %v5406 = vsub.f32 %v5160, %v5405
    %5407 = vmatmul.mubr.f32.gmra.mrb[0].mxu0 %v5406
    %v5408 = vpop.f32.mrb[0].mxu0
    %v5409 = vadd.f32 %v5329, %v5408
    %v5410 = vpop.f32.mrb[0].mxu0
    %5411 = vdwg.mxu0
    %5412 = vmatprep.subr.mxu0 0.0
    %v5413 = vand.u32 %v1175, 4294901760
    %5414 = vmatpush1.xpose.msra.mxu0 %v5413
    %5415 = vmatprep.subr.mxu0 0.0
    %v5416 = vand.u32 %v1178, 4294901760
    %5417 = vmatpush1.xpose.msra.mxu0 %v5416
    %5418 = vmatprep.subr.mxu0 0.0
    %v5419 = vand.u32 %v1181, 4294901760
    %5420 = vmatpush1.xpose.msra.mxu0 %v5419
    %5421 = vmatprep.subr.mxu0 0.0
    %v5422 = vand.u32 %v1184, 4294901760
    %5423 = vmatpush1.xpose.msra.mxu0 %v5422
    %5424 = vmatprep.subr.mxu0 0.0
    %5425 = vmatpush1.xpose.msra.mxu0 0.0
    %5426 = vmatprep.subr.mxu0 0.0
    %5427 = vmatpush1.xpose.msra.mxu0 0.0
    %5428 = vmatprep.subr.mxu0 0.0
    %5429 = vmatpush1.xpose.msra.mxu0 0.0
    %5430 = vmatprep.subr.mxu0 0.0
    %5431 = vmatpush1.xpose.msra.mxu0 0.0
    %5432 = vmatprep.subr.mxu0 0.0
    %5433 = vmatpush1.xpose.msra.mxu0 0.0
    %5434 = vmatprep.subr.mxu0 0.0
    %5435 = vmatpush1.xpose.msra.mxu0 0.0
    %5436 = vmatprep.subr.mxu0 0.0
    %5437 = vmatpush1.xpose.msra.mxu0 0.0
    %5438 = vmatprep.subr.mxu0 0.0
    %5439 = vmatpush1.xpose.msra.mxu0 0.0
    %5440 = vmatprep.subr.mxu0 0.0
    %5441 = vmatpush1.xpose.msra.mxu0 0.0
    %5442 = vmatprep.subr.mxu0 0.0
    %5443 = vmatpush1.xpose.msra.mxu0 0.0
    %5444 = vmatprep.subr.mxu0 0.0
    %5445 = vmatpush1.xpose.msra.mxu0 0.0
    %5446 = vmatprep.subr.mxu0 0.0
    %5447 = vmatpush1.xpose.msra.mxu0 0.0
    %5448 = vmatprep.subr.mxu0 0.0
    %5449 = vmatpush1.xpose.msra.mxu0 0.0
    %5450 = vmatprep.subr.mxu0 0.0
    %5451 = vmatpush1.xpose.msra.mxu0 0.0
    %5452 = vmatprep.subr.mxu0 0.0
    %5453 = vmatpush1.xpose.msra.mxu0 0.0
    %5454 = vmatprep.subr.mxu0 0.0
    %5455 = vmatpush1.xpose.msra.mxu0 0.0
    %5456 = vmatprep.subr.mxu0 0.0
    %5457 = vmatpush1.xpose.msra.mxu0 0.0
    %5458 = vmatprep.subr.mxu0 0.0
    %5459 = vmatpush1.xpose.msra.mxu0 0.0
    %5460 = vmatprep.subr.mxu0 0.0
    %5461 = vmatpush1.xpose.msra.mxu0 0.0
    %5462 = vmatprep.subr.mxu0 0.0
    %5463 = vmatpush1.xpose.msra.mxu0 0.0
    %5464 = vmatprep.subr.mxu0 0.0
    %5465 = vmatpush1.xpose.msra.mxu0 0.0
    %5466 = vmatprep.subr.mxu0 0.0
    %5467 = vmatpush1.xpose.msra.mxu0 0.0
    %5468 = vmatprep.subr.mxu0 0.0
    %5469 = vmatpush1.xpose.msra.mxu0 0.0
    %5470 = vmatprep.subr.mxu0 0.0
    %5471 = vmatpush1.xpose.msra.mxu0 0.0
    %5472 = vmatprep.subr.mxu0 0.0
    %5473 = vmatpush1.xpose.msra.mxu0 0.0
    %5474 = vmatprep.subr.mxu0 0.0
    %5475 = vmatpush1.xpose.msra.mxu0 0.0
    %5476 = vmatprep.subr.mxu0 0.0
    %5477 = vmatpush1.xpose.msra.mxu0 0.0
    %5478 = vmatprep.subr.mxu0 0.0
    %5479 = vmatpush1.xpose.msra.mxu0 0.0
    %5480 = vmatprep.mubr.f32.mxu0 0.0
    %v5481 = vand.u32 %v5160, 4294901760
    %v5482 = vsub.f32 %v5160, %v5481
    %v5483 = vand.u32 %v5482, 4294901760
    %5484 = vmatmul.mubr.f32.gmra.mrb[0].mxu0 %v5483
    %v5485 = vpop.f32.mrb[0].mxu0
    %v5486 = vadd.f32 %v5409, %v5485
    %v5487 = vpop.f32.mrb[0].mxu0
    %5488 = vdwg.mxu0
    %5489 = vmatprep.subr.mxu0 0.0
    %v5490 = vand.u32 %v1175, 4294901760
    %v5491 = vsub.f32 %v1175, %v5490
    %v5492 = vand.u32 %v5491, 4294901760
    %5493 = vmatpush1.xpose.msra.mxu0 %v5492
    %5494 = vmatprep.subr.mxu0 0.0
    %v5495 = vand.u32 %v1178, 4294901760
    %v5496 = vsub.f32 %v1178, %v5495
    %v5497 = vand.u32 %v5496, 4294901760
    %5498 = vmatpush1.xpose.msra.mxu0 %v5497
    %5499 = vmatprep.subr.mxu0 0.0
    %v5500 = vand.u32 %v1181, 4294901760
    %v5501 = vsub.f32 %v1181, %v5500
    %v5502 = vand.u32 %v5501, 4294901760
    %5503 = vmatpush1.xpose.msra.mxu0 %v5502
    %5504 = vmatprep.subr.mxu0 0.0
    %v5505 = vand.u32 %v1184, 4294901760
    %v5506 = vsub.f32 %v1184, %v5505
    %v5507 = vand.u32 %v5506, 4294901760
    %5508 = vmatpush1.xpose.msra.mxu0 %v5507
    %5509 = vmatprep.subr.mxu0 0.0
    %5510 = vmatpush1.xpose.msra.mxu0 0.0
    %5511 = vmatprep.subr.mxu0 0.0
    %5512 = vmatpush1.xpose.msra.mxu0 0.0
    %5513 = vmatprep.subr.mxu0 0.0
    %5514 = vmatpush1.xpose.msra.mxu0 0.0
    %5515 = vmatprep.subr.mxu0 0.0
    %5516 = vmatpush1.xpose.msra.mxu0 0.0
    %5517 = vmatprep.subr.mxu0 0.0
    %5518 = vmatpush1.xpose.msra.mxu0 0.0
    %5519 = vmatprep.subr.mxu0 0.0
    %5520 = vmatpush1.xpose.msra.mxu0 0.0
    %5521 = vmatprep.subr.mxu0 0.0
    %5522 = vmatpush1.xpose.msra.mxu0 0.0
    %5523 = vmatprep.subr.mxu0 0.0
    %5524 = vmatpush1.xpose.msra.mxu0 0.0
    %5525 = vmatprep.subr.mxu0 0.0
    %5526 = vmatpush1.xpose.msra.mxu0 0.0
    %5527 = vmatprep.subr.mxu0 0.0
    %5528 = vmatpush1.xpose.msra.mxu0 0.0
    %5529 = vmatprep.subr.mxu0 0.0
    %5530 = vmatpush1.xpose.msra.mxu0 0.0
    %5531 = vmatprep.subr.mxu0 0.0
    %5532 = vmatpush1.xpose.msra.mxu0 0.0
    %5533 = vmatprep.subr.mxu0 0.0
    %5534 = vmatpush1.xpose.msra.mxu0 0.0
    %5535 = vmatprep.subr.mxu0 0.0
    %5536 = vmatpush1.xpose.msra.mxu0 0.0
    %5537 = vmatprep.subr.mxu0 0.0
    %5538 = vmatpush1.xpose.msra.mxu0 0.0
    %5539 = vmatprep.subr.mxu0 0.0
    %5540 = vmatpush1.xpose.msra.mxu0 0.0
    %5541 = vmatprep.subr.mxu0 0.0
    %5542 = vmatpush1.xpose.msra.mxu0 0.0
    %5543 = vmatprep.subr.mxu0 0.0
    %5544 = vmatpush1.xpose.msra.mxu0 0.0
    %5545 = vmatprep.subr.mxu0 0.0
    %5546 = vmatpush1.xpose.msra.mxu0 0.0
    %5547 = vmatprep.subr.mxu0 0.0
    %5548 = vmatpush1.xpose.msra.mxu0 0.0
    %5549 = vmatprep.subr.mxu0 0.0
    %5550 = vmatpush1.xpose.msra.mxu0 0.0
    %5551 = vmatprep.subr.mxu0 0.0
    %5552 = vmatpush1.xpose.msra.mxu0 0.0
    %5553 = vmatprep.subr.mxu0 0.0
    %5554 = vmatpush1.xpose.msra.mxu0 0.0
    %5555 = vmatprep.subr.mxu0 0.0
    %5556 = vmatpush1.xpose.msra.mxu0 0.0
    %5557 = vmatprep.subr.mxu0 0.0
    %5558 = vmatpush1.xpose.msra.mxu0 0.0
    %5559 = vmatprep.subr.mxu0 0.0
    %5560 = vmatpush1.xpose.msra.mxu0 0.0
    %5561 = vmatprep.subr.mxu0 0.0
    %5562 = vmatpush1.xpose.msra.mxu0 0.0
    %5563 = vmatprep.subr.mxu0 0.0
    %5564 = vmatpush1.xpose.msra.mxu0 0.0
    %5565 = vmatprep.mubr.f32.mxu0 0.0
    %v5566 = vand.u32 %v5160, 4294901760
    %5567 = vmatmul.mubr.f32.gmra.mrb[0].mxu0 %v5566
    %v5568 = vpop.f32.mrb[0].mxu0
    %v5569 = vadd.f32 %v5486, %v5568
    %v5570 = vpop.f32.mrb[0].mxu0
    %5571 = vdwg.mxu0
    %5572 = vmatprep.subr.mxu0 0.0
    %v5573 = vand.u32 %v1175, 4294901760
    %5574 = vmatpush1.xpose.msra.mxu0 %v5573
    %5575 = vmatprep.subr.mxu0 0.0
    %v5576 = vand.u32 %v1178, 4294901760
    %5577 = vmatpush1.xpose.msra.mxu0 %v5576
    %5578 = vmatprep.subr.mxu0 0.0
    %v5579 = vand.u32 %v1181, 4294901760
    %5580 = vmatpush1.xpose.msra.mxu0 %v5579
    %5581 = vmatprep.subr.mxu0 0.0
    %v5582 = vand.u32 %v1184, 4294901760
    %5583 = vmatpush1.xpose.msra.mxu0 %v5582
    %5584 = vmatprep.subr.mxu0 0.0
    %5585 = vmatpush1.xpose.msra.mxu0 0.0
    %5586 = vmatprep.subr.mxu0 0.0
    %5587 = vmatpush1.xpose.msra.mxu0 0.0
    %5588 = vmatprep.subr.mxu0 0.0
    %5589 = vmatpush1.xpose.msra.mxu0 0.0
    %5590 = vmatprep.subr.mxu0 0.0
    %5591 = vmatpush1.xpose.msra.mxu0 0.0
    %5592 = vmatprep.subr.mxu0 0.0
    %5593 = vmatpush1.xpose.msra.mxu0 0.0
    %5594 = vmatprep.subr.mxu0 0.0
    %5595 = vmatpush1.xpose.msra.mxu0 0.0
    %5596 = vmatprep.subr.mxu0 0.0
    %5597 = vmatpush1.xpose.msra.mxu0 0.0
    %5598 = vmatprep.subr.mxu0 0.0
    %5599 = vmatpush1.xpose.msra.mxu0 0.0
    %5600 = vmatprep.subr.mxu0 0.0
    %5601 = vmatpush1.xpose.msra.mxu0 0.0
    %5602 = vmatprep.subr.mxu0 0.0
    %5603 = vmatpush1.xpose.msra.mxu0 0.0
    %5604 = vmatprep.subr.mxu0 0.0
    %5605 = vmatpush1.xpose.msra.mxu0 0.0
    %5606 = vmatprep.subr.mxu0 0.0
    %5607 = vmatpush1.xpose.msra.mxu0 0.0
    %5608 = vmatprep.subr.mxu0 0.0
    %5609 = vmatpush1.xpose.msra.mxu0 0.0
    %5610 = vmatprep.subr.mxu0 0.0
    %5611 = vmatpush1.xpose.msra.mxu0 0.0
    %5612 = vmatprep.subr.mxu0 0.0
    %5613 = vmatpush1.xpose.msra.mxu0 0.0
    %5614 = vmatprep.subr.mxu0 0.0
    %5615 = vmatpush1.xpose.msra.mxu0 0.0
    %5616 = vmatprep.subr.mxu0 0.0
    %5617 = vmatpush1.xpose.msra.mxu0 0.0
    %5618 = vmatprep.subr.mxu0 0.0
    %5619 = vmatpush1.xpose.msra.mxu0 0.0
    %5620 = vmatprep.subr.mxu0 0.0
    %5621 = vmatpush1.xpose.msra.mxu0 0.0
    %5622 = vmatprep.subr.mxu0 0.0
    %5623 = vmatpush1.xpose.msra.mxu0 0.0
    %5624 = vmatprep.subr.mxu0 0.0
    %5625 = vmatpush1.xpose.msra.mxu0 0.0
    %5626 = vmatprep.subr.mxu0 0.0
    %5627 = vmatpush1.xpose.msra.mxu0 0.0
    %5628 = vmatprep.subr.mxu0 0.0
    %5629 = vmatpush1.xpose.msra.mxu0 0.0
    %5630 = vmatprep.subr.mxu0 0.0
    %5631 = vmatpush1.xpose.msra.mxu0 0.0
    %5632 = vmatprep.subr.mxu0 0.0
    %5633 = vmatpush1.xpose.msra.mxu0 0.0
    %5634 = vmatprep.subr.mxu0 0.0
    %5635 = vmatpush1.xpose.msra.mxu0 0.0
    %5636 = vmatprep.subr.mxu0 0.0
    %5637 = vmatpush1.xpose.msra.mxu0 0.0
    %5638 = vmatprep.subr.mxu0 0.0
    %5639 = vmatpush1.xpose.msra.mxu0 0.0
    %5640 = vmatprep.mubr.f32.mxu0 0.0
    %v5641 = vand.u32 %v5160, 4294901760
    %5642 = vmatmul.mubr.f32.gmra.mrb[0].mxu0 %v5641
    %v5643 = vpop.f32.mrb[0].mxu0
    %v5644 = vadd.f32 %v5569, %v5643
    %v5645 = vpop.f32.mrb[0].mxu0
    %5646 = vdwg.mxu0
    %v5647 = vsel %vm19, %v5644, -inf
    %5648 = vmax.xlane.f32.xlu0 %v5647
    %v5649 = vpop.xlane.xlu0 %5648
    %v5650 = vmax.f32 %v5649, 1e-30
    %v5651 = vrcp.pop %v5650
    %v5652 = vmul.f32 %v5644, %v5651
    %5653 = vst.msk [vmem:[#allocation5 + $0x2] sm:$0x1] %vm19, %v5652
    %v5655 = vsel %vm37, %v5155, 0
    %5657 = vmatprep.subr.mxu0 0.0
    %v5658 = vand.u32 %v148, 4294901760
    %5659 = vmatpush1.msra.mxu0 %v5658
    %5660 = vmatprep.subr.mxu0 0.0
    %v5661 = vand.u32 %v150, 4294901760
    %5662 = vmatpush1.msra.mxu0 %v5661
    %5663 = vmatprep.subr.mxu0 0.0
    %v5664 = vand.u32 %v152, 4294901760
    %5665 = vmatpush1.msra.mxu0 %v5664
    %5666 = vmatprep.subr.mxu0 0.0
    %v5667 = vand.u32 %v154, 4294901760
    %5668 = vmatpush1.msra.mxu0 %v5667
    %5669 = vmatprep.subr.mxu0 0.0
    %5670 = vmatpush1.msra.mxu0 0.0
    %5671 = vmatprep.subr.mxu0 0.0
    %5672 = vmatpush1.msra.mxu0 0.0
    %5673 = vmatprep.subr.mxu0 0.0
    %5674 = vmatpush1.msra.mxu0 0.0
    %5675 = vmatprep.subr.mxu0 0.0
    %5676 = vmatpush1.msra.mxu0 0.0
    %5677 = vmatprep.subr.mxu0 0.0
    %5678 = vmatpush1.msra.mxu0 0.0
    %5679 = vmatprep.subr.mxu0 0.0
    %5680 = vmatpush1.msra.mxu0 0.0
    %5681 = vmatprep.subr.mxu0 0.0
    %5682 = vmatpush1.msra.mxu0 0.0
    %5683 = vmatprep.subr.mxu0 0.0
    %5684 = vmatpush1.msra.mxu0 0.0
    %5685 = vmatprep.subr.mxu0 0.0
    %5686 = vmatpush1.msra.mxu0 0.0
    %5687 = vmatprep.subr.mxu0 0.0
    %5688 = vmatpush1.msra.mxu0 0.0
    %5689 = vmatprep.subr.mxu0 0.0
    %5690 = vmatpush1.msra.mxu0 0.0
    %5691 = vmatprep.subr.mxu0 0.0
    %5692 = vmatpush1.msra.mxu0 0.0
    %5693 = vmatprep.subr.mxu0 0.0
    %5694 = vmatpush1.msra.mxu0 0.0
    %5695 = vmatprep.subr.mxu0 0.0
    %5696 = vmatpush1.msra.mxu0 0.0
    %5697 = vmatprep.subr.mxu0 0.0
    %5698 = vmatpush1.msra.mxu0 0.0
    %5699 = vmatprep.subr.mxu0 0.0
    %5700 = vmatpush1.msra.mxu0 0.0
    %5701 = vmatprep.subr.mxu0 0.0
    %5702 = vmatpush1.msra.mxu0 0.0
    %5703 = vmatprep.subr.mxu0 0.0
    %5704 = vmatpush1.msra.mxu0 0.0
    %5705 = vmatprep.subr.mxu0 0.0
    %5706 = vmatpush1.msra.mxu0 0.0
    %5707 = vmatprep.subr.mxu0 0.0
    %5708 = vmatpush1.msra.mxu0 0.0
    %5709 = vmatprep.subr.mxu0 0.0
    %5710 = vmatpush1.msra.mxu0 0.0
    %5711 = vmatprep.subr.mxu0 0.0
    %5712 = vmatpush1.msra.mxu0 0.0
    %5713 = vmatprep.subr.mxu0 0.0
    %5714 = vmatpush1.msra.mxu0 0.0
    %5715 = vmatprep.subr.mxu0 0.0
    %5716 = vmatpush1.msra.mxu0 0.0
    %5717 = vmatprep.subr.mxu0 0.0
    %5718 = vmatpush1.msra.mxu0 0.0
    %5719 = vmatprep.subr.mxu0 0.0
    %5720 = vmatpush1.msra.mxu0 0.0
    %5721 = vmatprep.subr.mxu0 0.0
    %5722 = vmatpush1.msra.mxu0 0.0
    %5723 = vmatprep.subr.mxu0 0.0
    %5724 = vmatpush1.msra.mxu0 0.0
    %5725 = vmatprep.mubr.f32.mxu0 0.0
    %v5726 = vand.u32 %v5655, 4294901760
    %v5727 = vsub.f32 %v5655, %v5726
    %v5728 = vand.u32 %v5727, 4294901760
    %v5729 = vsub.f32 %v5727, %v5728
    %v5730 = vand.u32 %v5729, 4294901760
    %5731 = vmatmul.mubr.f32.gmra.mrb[0].mxu0 %v5730
    %v5732 = vpop.f32.mrb[0].mxu0
    %v5733 = vadd.f32 0.0, %v5732
    %v5734 = vpop.f32.mrb[0].mxu0
    %5735 = vdwg.mxu0
    %5736 = vmatprep.subr.mxu0 0.0
    %v5737 = vand.u32 %v148, 4294901760
    %v5738 = vsub.f32 %v148, %v5737
    %v5739 = vand.u32 %v5738, 4294901760
    %v5740 = vsub.f32 %v5738, %v5739
    %v5741 = vand.u32 %v5740, 4294901760
    %5742 = vmatpush1.msra.mxu0 %v5741
    %5743 = vmatprep.subr.mxu0 0.0
    %v5744 = vand.u32 %v150, 4294901760
    %v5745 = vsub.f32 %v150, %v5744
    %v5746 = vand.u32 %v5745, 4294901760
    %v5747 = vsub.f32 %v5745, %v5746
    %v5748 = vand.u32 %v5747, 4294901760
    %5749 = vmatpush1.msra.mxu0 %v5748
    %5750 = vmatprep.subr.mxu0 0.0
    %v5751 = vand.u32 %v152, 4294901760
    %v5752 = vsub.f32 %v152, %v5751
    %v5753 = vand.u32 %v5752, 4294901760
    %v5754 = vsub.f32 %v5752, %v5753
    %v5755 = vand.u32 %v5754, 4294901760
    %5756 = vmatpush1.msra.mxu0 %v5755
    %5757 = vmatprep.subr.mxu0 0.0
    %v5758 = vand.u32 %v154, 4294901760
    %v5759 = vsub.f32 %v154, %v5758
    %v5760 = vand.u32 %v5759, 4294901760
    %v5761 = vsub.f32 %v5759, %v5760
    %v5762 = vand.u32 %v5761, 4294901760
    %5763 = vmatpush1.msra.mxu0 %v5762
    %5764 = vmatprep.subr.mxu0 0.0
    %5765 = vmatpush1.msra.mxu0 0.0
    %5766 = vmatprep.subr.mxu0 0.0
    %5767 = vmatpush1.msra.mxu0 0.0
    %5768 = vmatprep.subr.mxu0 0.0
    %5769 = vmatpush1.msra.mxu0 0.0
    %5770 = vmatprep.subr.mxu0 0.0
    %5771 = vmatpush1.msra.mxu0 0.0
    %5772 = vmatprep.subr.mxu0 0.0
    %5773 = vmatpush1.msra.mxu0 0.0
    %5774 = vmatprep.subr.mxu0 0.0
    %5775 = vmatpush1.msra.mxu0 0.0
    %5776 = vmatprep.subr.mxu0 0.0
    %5777 = vmatpush1.msra.mxu0 0.0
    %5778 = vmatprep.subr.mxu0 0.0
    %5779 = vmatpush1.msra.mxu0 0.0
    %5780 = vmatprep.subr.mxu0 0.0
    %5781 = vmatpush1.msra.mxu0 0.0
    %5782 = vmatprep.subr.mxu0 0.0
    %5783 = vmatpush1.msra.mxu0 0.0
    %5784 = vmatprep.subr.mxu0 0.0
    %5785 = vmatpush1.msra.mxu0 0.0
    %5786 = vmatprep.subr.mxu0 0.0
    %5787 = vmatpush1.msra.mxu0 0.0
    %5788 = vmatprep.subr.mxu0 0.0
    %5789 = vmatpush1.msra.mxu0 0.0
    %5790 = vmatprep.subr.mxu0 0.0
    %5791 = vmatpush1.msra.mxu0 0.0
    %5792 = vmatprep.subr.mxu0 0.0
    %5793 = vmatpush1.msra.mxu0 0.0
    %5794 = vmatprep.subr.mxu0 0.0
    %5795 = vmatpush1.msra.mxu0 0.0
    %5796 = vmatprep.subr.mxu0 0.0
    %5797 = vmatpush1.msra.mxu0 0.0
    %5798 = vmatprep.subr.mxu0 0.0
    %5799 = vmatpush1.msra.mxu0 0.0
    %5800 = vmatprep.subr.mxu0 0.0
    %5801 = vmatpush1.msra.mxu0 0.0
    %5802 = vmatprep.subr.mxu0 0.0
    %5803 = vmatpush1.msra.mxu0 0.0
    %5804 = vmatprep.subr.mxu0 0.0
    %5805 = vmatpush1.msra.mxu0 0.0
    %5806 = vmatprep.subr.mxu0 0.0
    %5807 = vmatpush1.msra.mxu0 0.0
    %5808 = vmatprep.subr.mxu0 0.0
    %5809 = vmatpush1.msra.mxu0 0.0
    %5810 = vmatprep.subr.mxu0 0.0
    %5811 = vmatpush1.msra.mxu0 0.0
    %5812 = vmatprep.subr.mxu0 0.0
    %5813 = vmatpush1.msra.mxu0 0.0
    %5814 = vmatprep.subr.mxu0 0.0
    %5815 = vmatpush1.msra.mxu0 0.0
    %5816 = vmatprep.subr.mxu0 0.0
    %5817 = vmatpush1.msra.mxu0 0.0
    %5818 = vmatprep.subr.mxu0 0.0
    %5819 = vmatpush1.msra.mxu0 0.0
    %5820 = vmatprep.mubr.f32.mxu0 0.0
    %v5821 = vand.u32 %v5655, 4294901760
    %5822 = vmatmul.mubr.f32.gmra.mrb[0].mxu0 %v5821
    %v5823 = vpop.f32.mrb[0].mxu0
    %v5824 = vadd.f32 %v5733, %v5823
    %v5825 = vpop.f32.mrb[0].mxu0
    %5826 = vdwg.mxu0
    %5827 = vmatprep.subr.mxu0 0.0
    %v5828 = vand.u32 %v148, 4294901760
    %v5829 = vsub.f32 %v148, %v5828
    %5830 = vmatpush1.msra.mxu0 %v5829
    %5831 = vmatprep.subr.mxu0 0.0
    %v5832 = vand.u32 %v150, 4294901760
    %v5833 = vsub.f32 %v150, %v5832
    %5834 = vmatpush1.msra.mxu0 %v5833
    %5835 = vmatprep.subr.mxu0 0.0
    %v5836 = vand.u32 %v152, 4294901760
    %v5837 = vsub.f32 %v152, %v5836
    %5838 = vmatpush1.msra.mxu0 %v5837
    %5839 = vmatprep.subr.mxu0 0.0
    %v5840 = vand.u32 %v154, 4294901760
    %v5841 = vsub.f32 %v154, %v5840
    %5842 = vmatpush1.msra.mxu0 %v5841
    %5843 = vmatprep.subr.mxu0 0.0
    %5844 = vmatpush1.msra.mxu0 0.0
    %5845 = vmatprep.subr.mxu0 0.0
    %5846 = vmatpush1.msra.mxu0 0.0
    %5847 = vmatprep.subr.mxu0 0.0
    %5848 = vmatpush1.msra.mxu0 0.0
    %5849 = vmatprep.subr.mxu0 0.0
    %5850 = vmatpush1.msra.mxu0 0.0
    %5851 = vmatprep.subr.mxu0 0.0
    %5852 = vmatpush1.msra.mxu0 0.0
    %5853 = vmatprep.subr.mxu0 0.0
    %5854 = vmatpush1.msra.mxu0 0.0
    %5855 = vmatprep.subr.mxu0 0.0
    %5856 = vmatpush1.msra.mxu0 0.0
    %5857 = vmatprep.subr.mxu0 0.0
    %5858 = vmatpush1.msra.mxu0 0.0
    %5859 = vmatprep.subr.mxu0 0.0
    %5860 = vmatpush1.msra.mxu0 0.0
    %5861 = vmatprep.subr.mxu0 0.0
    %5862 = vmatpush1.msra.mxu0 0.0
    %5863 = vmatprep.subr.mxu0 0.0
    %5864 = vmatpush1.msra.mxu0 0.0
    %5865 = vmatprep.subr.mxu0 0.0
    %5866 = vmatpush1.msra.mxu0 0.0
    %5867 = vmatprep.subr.mxu0 0.0
    %5868 = vmatpush1.msra.mxu0 0.0
    %5869 = vmatprep.subr.mxu0 0.0
    %5870 = vmatpush1.msra.mxu0 0.0
    %5871 = vmatprep.subr.mxu0 0.0
    %5872 = vmatpush1.msra.mxu0 0.0
    %5873 = vmatprep.subr.mxu0 0.0
    %5874 = vmatpush1.msra.mxu0 0.0
    %5875 = vmatprep.subr.mxu0 0.0
    %5876 = vmatpush1.msra.mxu0 0.0
    %5877 = vmatprep.subr.mxu0 0.0
    %5878 = vmatpush1.msra.mxu0 0.0
    %5879 = vmatprep.subr.mxu0 0.0
    %5880 = vmatpush1.msra.mxu0 0.0
    %5881 = vmatprep.subr.mxu0 0.0
    %5882 = vmatpush1.msra.mxu0 0.0
    %5883 = vmatprep.subr.mxu0 0.0
    %5884 = vmatpush1.msra.mxu0 0.0
    %5885 = vmatprep.subr.mxu0 0.0
    %5886 = vmatpush1.msra.mxu0 0.0
    %5887 = vmatprep.subr.mxu0 0.0
    %5888 = vmatpush1.msra.mxu0 0.0
    %5889 = vmatprep.subr.mxu0 0.0
    %5890 = vmatpush1.msra.mxu0 0.0
    %5891 = vmatprep.subr.mxu0 0.0
    %5892 = vmatpush1.msra.mxu0 0.0
    %5893 = vmatprep.subr.mxu0 0.0
    %5894 = vmatpush1.msra.mxu0 0.0
    %5895 = vmatprep.subr.mxu0 0.0
    %5896 = vmatpush1.msra.mxu0 0.0
    %5897 = vmatprep.subr.mxu0 0.0
    %5898 = vmatpush1.msra.mxu0 0.0
    %5899 = vmatprep.mubr.f32.mxu0 0.0
    %v5900 = vand.u32 %v5655, 4294901760
    %v5901 = vsub.f32 %v5655, %v5900
    %5902 = vmatmul.mubr.f32.gmra.mrb[0].mxu0 %v5901
    %v5903 = vpop.f32.mrb[0].mxu0
    %v5904 = vadd.f32 %v5824, %v5903
    %v5905 = vpop.f32.mrb[0].mxu0
    %5906 = vdwg.mxu0
    %5907 = vmatprep.subr.mxu0 0.0
    %v5908 = vand.u32 %v148, 4294901760
    %5909 = vmatpush1.msra.mxu0 %v5908
    %5910 = vmatprep.subr.mxu0 0.0
    %v5911 = vand.u32 %v150, 4294901760
    %5912 = vmatpush1.msra.mxu0 %v5911
    %5913 = vmatprep.subr.mxu0 0.0
    %v5914 = vand.u32 %v152, 4294901760
    %5915 = vmatpush1.msra.mxu0 %v5914
    %5916 = vmatprep.subr.mxu0 0.0
    %v5917 = vand.u32 %v154, 4294901760
    %5918 = vmatpush1.msra.mxu0 %v5917
    %5919 = vmatprep.subr.mxu0 0.0
    %5920 = vmatpush1.msra.mxu0 0.0
    %5921 = vmatprep.subr.mxu0 0.0
    %5922 = vmatpush1.msra.mxu0 0.0
    %5923 = vmatprep.subr.mxu0 0.0
    %5924 = vmatpush1.msra.mxu0 0.0
    %5925 = vmatprep.subr.mxu0 0.0
    %5926 = vmatpush1.msra.mxu0 0.0
    %5927 = vmatprep.subr.mxu0 0.0
    %5928 = vmatpush1.msra.mxu0 0.0
    %5929 = vmatprep.subr.mxu0 0.0
    %5930 = vmatpush1.msra.mxu0 0.0
    %5931 = vmatprep.subr.mxu0 0.0
    %5932 = vmatpush1.msra.mxu0 0.0
    %5933 = vmatprep.subr.mxu0 0.0
    %5934 = vmatpush1.msra.mxu0 0.0
    %5935 = vmatprep.subr.mxu0 0.0
    %5936 = vmatpush1.msra.mxu0 0.0
    %5937 = vmatprep.subr.mxu0 0.0
    %5938 = vmatpush1.msra.mxu0 0.0
    %5939 = vmatprep.subr.mxu0 0.0
    %5940 = vmatpush1.msra.mxu0 0.0
    %5941 = vmatprep.subr.mxu0 0.0
    %5942 = vmatpush1.msra.mxu0 0.0
    %5943 = vmatprep.subr.mxu0 0.0
    %5944 = vmatpush1.msra.mxu0 0.0
    %5945 = vmatprep.subr.mxu0 0.0
    %5946 = vmatpush1.msra.mxu0 0.0
    %5947 = vmatprep.subr.mxu0 0.0
    %5948 = vmatpush1.msra.mxu0 0.0
    %5949 = vmatprep.subr.mxu0 0.0
    %5950 = vmatpush1.msra.mxu0 0.0
    %5951 = vmatprep.subr.mxu0 0.0
    %5952 = vmatpush1.msra.mxu0 0.0
    %5953 = vmatprep.subr.mxu0 0.0
    %5954 = vmatpush1.msra.mxu0 0.0
    %5955 = vmatprep.subr.mxu0 0.0
    %5956 = vmatpush1.msra.mxu0 0.0
    %5957 = vmatprep.subr.mxu0 0.0
    %5958 = vmatpush1.msra.mxu0 0.0
    %5959 = vmatprep.subr.mxu0 0.0
    %5960 = vmatpush1.msra.mxu0 0.0
    %5961 = vmatprep.subr.mxu0 0.0
    %5962 = vmatpush1.msra.mxu0 0.0
    %5963 = vmatprep.subr.mxu0 0.0
    %5964 = vmatpush1.msra.mxu0 0.0
    %5965 = vmatprep.subr.mxu0 0.0
    %5966 = vmatpush1.msra.mxu0 0.0
    %5967 = vmatprep.subr.mxu0 0.0
    %5968 = vmatpush1.msra.mxu0 0.0
    %5969 = vmatprep.subr.mxu0 0.0
    %5970 = vmatpush1.msra.mxu0 0.0
    %5971 = vmatprep.subr.mxu0 0.0
    %5972 = vmatpush1.msra.mxu0 0.0
    %5973 = vmatprep.subr.mxu0 0.0
    %5974 = vmatpush1.msra.mxu0 0.0
    %5975 = vmatprep.mubr.f32.mxu0 0.0
    %v5976 = vand.u32 %v5655, 4294901760
    %v5977 = vsub.f32 %v5655, %v5976
    %v5978 = vand.u32 %v5977, 4294901760
    %5979 = vmatmul.mubr.f32.gmra.mrb[0].mxu0 %v5978
    %v5980 = vpop.f32.mrb[0].mxu0
    %v5981 = vadd.f32 %v5904, %v5980
    %v5982 = vpop.f32.mrb[0].mxu0
    %5983 = vdwg.mxu0
    %5984 = vmatprep.subr.mxu0 0.0
    %v5985 = vand.u32 %v148, 4294901760
    %v5986 = vsub.f32 %v148, %v5985
    %v5987 = vand.u32 %v5986, 4294901760
    %5988 = vmatpush1.msra.mxu0 %v5987
    %5989 = vmatprep.subr.mxu0 0.0
    %v5990 = vand.u32 %v150, 4294901760
    %v5991 = vsub.f32 %v150, %v5990
    %v5992 = vand.u32 %v5991, 4294901760
    %5993 = vmatpush1.msra.mxu0 %v5992
    %5994 = vmatprep.subr.mxu0 0.0
    %v5995 = vand.u32 %v152, 4294901760
    %v5996 = vsub.f32 %v152, %v5995
    %v5997 = vand.u32 %v5996, 4294901760
    %5998 = vmatpush1.msra.mxu0 %v5997
    %5999 = vmatprep.subr.mxu0 0.0
    %v6000 = vand.u32 %v154, 4294901760
    %v6001 = vsub.f32 %v154, %v6000
    %v6002 = vand.u32 %v6001, 4294901760
    %6003 = vmatpush1.msra.mxu0 %v6002
    %6004 = vmatprep.subr.mxu0 0.0
    %6005 = vmatpush1.msra.mxu0 0.0
    %6006 = vmatprep.subr.mxu0 0.0
    %6007 = vmatpush1.msra.mxu0 0.0
    %6008 = vmatprep.subr.mxu0 0.0
    %6009 = vmatpush1.msra.mxu0 0.0
    %6010 = vmatprep.subr.mxu0 0.0
    %6011 = vmatpush1.msra.mxu0 0.0
    %6012 = vmatprep.subr.mxu0 0.0
    %6013 = vmatpush1.msra.mxu0 0.0
    %6014 = vmatprep.subr.mxu0 0.0
    %6015 = vmatpush1.msra.mxu0 0.0
    %6016 = vmatprep.subr.mxu0 0.0
    %6017 = vmatpush1.msra.mxu0 0.0
    %6018 = vmatprep.subr.mxu0 0.0
    %6019 = vmatpush1.msra.mxu0 0.0
    %6020 = vmatprep.subr.mxu0 0.0
    %6021 = vmatpush1.msra.mxu0 0.0
    %6022 = vmatprep.subr.mxu0 0.0
    %6023 = vmatpush1.msra.mxu0 0.0
    %6024 = vmatprep.subr.mxu0 0.0
    %6025 = vmatpush1.msra.mxu0 0.0
    %6026 = vmatprep.subr.mxu0 0.0
    %6027 = vmatpush1.msra.mxu0 0.0
    %6028 = vmatprep.subr.mxu0 0.0
    %6029 = vmatpush1.msra.mxu0 0.0
    %6030 = vmatprep.subr.mxu0 0.0
    %6031 = vmatpush1.msra.mxu0 0.0
    %6032 = vmatprep.subr.mxu0 0.0
    %6033 = vmatpush1.msra.mxu0 0.0
    %6034 = vmatprep.subr.mxu0 0.0
    %6035 = vmatpush1.msra.mxu0 0.0
    %6036 = vmatprep.subr.mxu0 0.0
    %6037 = vmatpush1.msra.mxu0 0.0
    %6038 = vmatprep.subr.mxu0 0.0
    %6039 = vmatpush1.msra.mxu0 0.0
    %6040 = vmatprep.subr.mxu0 0.0
    %6041 = vmatpush1.msra.mxu0 0.0
    %6042 = vmatprep.subr.mxu0 0.0
    %6043 = vmatpush1.msra.mxu0 0.0
    %6044 = vmatprep.subr.mxu0 0.0
    %6045 = vmatpush1.msra.mxu0 0.0
    %6046 = vmatprep.subr.mxu0 0.0
    %6047 = vmatpush1.msra.mxu0 0.0
    %6048 = vmatprep.subr.mxu0 0.0
    %6049 = vmatpush1.msra.mxu0 0.0
    %6050 = vmatprep.subr.mxu0 0.0
    %6051 = vmatpush1.msra.mxu0 0.0
    %6052 = vmatprep.subr.mxu0 0.0
    %6053 = vmatpush1.msra.mxu0 0.0
    %6054 = vmatprep.subr.mxu0 0.0
    %6055 = vmatpush1.msra.mxu0 0.0
    %6056 = vmatprep.subr.mxu0 0.0
    %6057 = vmatpush1.msra.mxu0 0.0
    %6058 = vmatprep.subr.mxu0 0.0
    %6059 = vmatpush1.msra.mxu0 0.0
    %6060 = vmatprep.mubr.f32.mxu0 0.0
    %v6061 = vand.u32 %v5655, 4294901760
    %6062 = vmatmul.mubr.f32.gmra.mrb[0].mxu0 %v6061
    %v6063 = vpop.f32.mrb[0].mxu0
    %v6064 = vadd.f32 %v5981, %v6063
    %v6065 = vpop.f32.mrb[0].mxu0
    %6066 = vdwg.mxu0
    %6067 = vmatprep.subr.mxu0 0.0
    %v6068 = vand.u32 %v148, 4294901760
    %6069 = vmatpush1.msra.mxu0 %v6068
    %6070 = vmatprep.subr.mxu0 0.0
    %v6071 = vand.u32 %v150, 4294901760
    %6072 = vmatpush1.msra.mxu0 %v6071
    %6073 = vmatprep.subr.mxu0 0.0
    %v6074 = vand.u32 %v152, 4294901760
    %6075 = vmatpush1.msra.mxu0 %v6074
    %6076 = vmatprep.subr.mxu0 0.0
    %v6077 = vand.u32 %v154, 4294901760
    %6078 = vmatpush1.msra.mxu0 %v6077
    %6079 = vmatprep.subr.mxu0 0.0
    %6080 = vmatpush1.msra.mxu0 0.0
    %6081 = vmatprep.subr.mxu0 0.0
    %6082 = vmatpush1.msra.mxu0 0.0
    %6083 = vmatprep.subr.mxu0 0.0
    %6084 = vmatpush1.msra.mxu0 0.0
    %6085 = vmatprep.subr.mxu0 0.0
    %6086 = vmatpush1.msra.mxu0 0.0
    %6087 = vmatprep.subr.mxu0 0.0
    %6088 = vmatpush1.msra.mxu0 0.0
    %6089 = vmatprep.subr.mxu0 0.0
    %6090 = vmatpush1.msra.mxu0 0.0
    %6091 = vmatprep.subr.mxu0 0.0
    %6092 = vmatpush1.msra.mxu0 0.0
    %6093 = vmatprep.subr.mxu0 0.0
    %6094 = vmatpush1.msra.mxu0 0.0
    %6095 = vmatprep.subr.mxu0 0.0
    %6096 = vmatpush1.msra.mxu0 0.0
    %6097 = vmatprep.subr.mxu0 0.0
    %6098 = vmatpush1.msra.mxu0 0.0
    %6099 = vmatprep.subr.mxu0 0.0
    %6100 = vmatpush1.msra.mxu0 0.0
    %6101 = vmatprep.subr.mxu0 0.0
    %6102 = vmatpush1.msra.mxu0 0.0
    %6103 = vmatprep.subr.mxu0 0.0
    %6104 = vmatpush1.msra.mxu0 0.0
    %6105 = vmatprep.subr.mxu0 0.0
    %6106 = vmatpush1.msra.mxu0 0.0
    %6107 = vmatprep.subr.mxu0 0.0
    %6108 = vmatpush1.msra.mxu0 0.0
    %6109 = vmatprep.subr.mxu0 0.0
    %6110 = vmatpush1.msra.mxu0 0.0
    %6111 = vmatprep.subr.mxu0 0.0
    %6112 = vmatpush1.msra.mxu0 0.0
    %6113 = vmatprep.subr.mxu0 0.0
    %6114 = vmatpush1.msra.mxu0 0.0
    %6115 = vmatprep.subr.mxu0 0.0
    %6116 = vmatpush1.msra.mxu0 0.0
    %6117 = vmatprep.subr.mxu0 0.0
    %6118 = vmatpush1.msra.mxu0 0.0
    %6119 = vmatprep.subr.mxu0 0.0
    %6120 = vmatpush1.msra.mxu0 0.0
    %6121 = vmatprep.subr.mxu0 0.0
    %6122 = vmatpush1.msra.mxu0 0.0
    %6123 = vmatprep.subr.mxu0 0.0
    %6124 = vmatpush1.msra.mxu0 0.0
    %6125 = vmatprep.subr.mxu0 0.0
    %6126 = vmatpush1.msra.mxu0 0.0
    %6127 = vmatprep.subr.mxu0 0.0
    %6128 = vmatpush1.msra.mxu0 0.0
    %6129 = vmatprep.subr.mxu0 0.0
    %6130 = vmatpush1.msra.mxu0 0.0
    %6131 = vmatprep.subr.mxu0 0.0
    %6132 = vmatpush1.msra.mxu0 0.0
    %6133 = vmatprep.subr.mxu0 0.0
    %6134 = vmatpush1.msra.mxu0 0.0
    %6135 = vmatprep.mubr.f32.mxu0 0.0
    %v6136 = vand.u32 %v5655, 4294901760
    %6137 = vmatmul.mubr.f32.gmra.mrb[0].mxu0 %v6136
    %v6138 = vpop.f32.mrb[0].mxu0
    %v6139 = vadd.f32 %v6064, %v6138
    %v6140 = vpop.f32.mrb[0].mxu0
    %6141 = vdwg.mxu0
    %v6142 = vld [vmem:[#allocation3 + $0x6] sm:$0x1]
    %v6143 = vmul.f32 %v6139, %v6142
    %v6144 = vsel %vm19, %v6143, -inf
    %6145 = vmax.xlane.f32.xlu0 %v6144
    %v6146 = vpop.xlane.xlu0 %6145
    %v6147 = vmax.f32 %v6146, 1e-30
    %v6148 = vrcp.pop %v6147
    %v6149 = vmul.f32 %v6143, %v6148
    %6150 = vst.msk [vmem:[#allocation4 + $0x6] sm:$0x1] %vm19, %v6149
    %v6151 = vld [vmem:[#allocation3 + $0x1] sm:$0x1]
    %v6152 = vmul.f32 %v6151, %v5652
    %v6154 = vsel %vm37, %v6152, 0
    %6156 = vmatprep.subr.mxu0 0.0
    %v6157 = vand.u32 %v1175, 4294901760
    %6158 = vmatpush1.xpose.msra.mxu0 %v6157
    %6159 = vmatprep.subr.mxu0 0.0
    %v6160 = vand.u32 %v1178, 4294901760
    %6161 = vmatpush1.xpose.msra.mxu0 %v6160
    %6162 = vmatprep.subr.mxu0 0.0
    %v6163 = vand.u32 %v1181, 4294901760
    %6164 = vmatpush1.xpose.msra.mxu0 %v6163
    %6165 = vmatprep.subr.mxu0 0.0
    %v6166 = vand.u32 %v1184, 4294901760
    %6167 = vmatpush1.xpose.msra.mxu0 %v6166
    %6168 = vmatprep.subr.mxu0 0.0
    %6169 = vmatpush1.xpose.msra.mxu0 0.0
    %6170 = vmatprep.subr.mxu0 0.0
    %6171 = vmatpush1.xpose.msra.mxu0 0.0
    %6172 = vmatprep.subr.mxu0 0.0
    %6173 = vmatpush1.xpose.msra.mxu0 0.0
    %6174 = vmatprep.subr.mxu0 0.0
    %6175 = vmatpush1.xpose.msra.mxu0 0.0
    %6176 = vmatprep.subr.mxu0 0.0
    %6177 = vmatpush1.xpose.msra.mxu0 0.0
    %6178 = vmatprep.subr.mxu0 0.0
    %6179 = vmatpush1.xpose.msra.mxu0 0.0
    %6180 = vmatprep.subr.mxu0 0.0
    %6181 = vmatpush1.xpose.msra.mxu0 0.0
    %6182 = vmatprep.subr.mxu0 0.0
    %6183 = vmatpush1.xpose.msra.mxu0 0.0
    %6184 = vmatprep.subr.mxu0 0.0
    %6185 = vmatpush1.xpose.msra.mxu0 0.0
    %6186 = vmatprep.subr.mxu0 0.0
    %6187 = vmatpush1.xpose.msra.mxu0 0.0
    %6188 = vmatprep.subr.mxu0 0.0
    %6189 = vmatpush1.xpose.msra.mxu0 0.0
    %6190 = vmatprep.subr.mxu0 0.0
    %6191 = vmatpush1.xpose.msra.mxu0 0.0
    %6192 = vmatprep.subr.mxu0 0.0
    %6193 = vmatpush1.xpose.msra.mxu0 0.0
    %6194 = vmatprep.subr.mxu0 0.0
    %6195 = vmatpush1.xpose.msra.mxu0 0.0
    %6196 = vmatprep.subr.mxu0 0.0
    %6197 = vmatpush1.xpose.msra.mxu0 0.0
    %6198 = vmatprep.subr.mxu0 0.0
    %6199 = vmatpush1.xpose.msra.mxu0 0.0
    %6200 = vmatprep.subr.mxu0 0.0
    %6201 = vmatpush1.xpose.msra.mxu0 0.0
    %6202 = vmatprep.subr.mxu0 0.0
    %6203 = vmatpush1.xpose.msra.mxu0 0.0
    %6204 = vmatprep.subr.mxu0 0.0
    %6205 = vmatpush1.xpose.msra.mxu0 0.0
    %6206 = vmatprep.subr.mxu0 0.0
    %6207 = vmatpush1.xpose.msra.mxu0 0.0
    %6208 = vmatprep.subr.mxu0 0.0
    %6209 = vmatpush1.xpose.msra.mxu0 0.0
    %6210 = vmatprep.subr.mxu0 0.0
    %6211 = vmatpush1.xpose.msra.mxu0 0.0
    %6212 = vmatprep.subr.mxu0 0.0
    %6213 = vmatpush1.xpose.msra.mxu0 0.0
    %6214 = vmatprep.subr.mxu0 0.0
    %6215 = vmatpush1.xpose.msra.mxu0 0.0
    %6216 = vmatprep.subr.mxu0 0.0
    %6217 = vmatpush1.xpose.msra.mxu0 0.0
    %6218 = vmatprep.subr.mxu0 0.0
    %6219 = vmatpush1.xpose.msra.mxu0 0.0
    %6220 = vmatprep.subr.mxu0 0.0
    %6221 = vmatpush1.xpose.msra.mxu0 0.0
    %6222 = vmatprep.subr.mxu0 0.0
    %6223 = vmatpush1.xpose.msra.mxu0 0.0
    %6224 = vmatprep.mubr.f32.mxu0 0.0
    %v6225 = vand.u32 %v6154, 4294901760
    %v6226 = vsub.f32 %v6154, %v6225
    %v6227 = vand.u32 %v6226, 4294901760
    %v6228 = vsub.f32 %v6226, %v6227
    %v6229 = vand.u32 %v6228, 4294901760
    %6230 = vmatmul.mubr.f32.gmra.mrb[0].mxu0 %v6229
    %v6231 = vpop.f32.mrb[0].mxu0
    %v6232 = vadd.f32 0.0, %v6231
    %v6233 = vpop.f32.mrb[0].mxu0
    %6234 = vdwg.mxu0
    %6235 = vmatprep.subr.mxu0 0.0
    %v6236 = vand.u32 %v1175, 4294901760
    %v6237 = vsub.f32 %v1175, %v6236
    %v6238 = vand.u32 %v6237, 4294901760
    %v6239 = vsub.f32 %v6237, %v6238
    %v6240 = vand.u32 %v6239, 4294901760
    %6241 = vmatpush1.xpose.msra.mxu0 %v6240
    %6242 = vmatprep.subr.mxu0 0.0
    %v6243 = vand.u32 %v1178, 4294901760
    %v6244 = vsub.f32 %v1178, %v6243
    %v6245 = vand.u32 %v6244, 4294901760
    %v6246 = vsub.f32 %v6244, %v6245
    %v6247 = vand.u32 %v6246, 4294901760
    %6248 = vmatpush1.xpose.msra.mxu0 %v6247
    %6249 = vmatprep.subr.mxu0 0.0
    %v6250 = vand.u32 %v1181, 4294901760
    %v6251 = vsub.f32 %v1181, %v6250
    %v6252 = vand.u32 %v6251, 4294901760
    %v6253 = vsub.f32 %v6251, %v6252
    %v6254 = vand.u32 %v6253, 4294901760
    %6255 = vmatpush1.xpose.msra.mxu0 %v6254
    %6256 = vmatprep.subr.mxu0 0.0
    %v6257 = vand.u32 %v1184, 4294901760
    %v6258 = vsub.f32 %v1184, %v6257
    %v6259 = vand.u32 %v6258, 4294901760
    %v6260 = vsub.f32 %v6258, %v6259
    %v6261 = vand.u32 %v6260, 4294901760
    %6262 = vmatpush1.xpose.msra.mxu0 %v6261
    %6263 = vmatprep.subr.mxu0 0.0
    %6264 = vmatpush1.xpose.msra.mxu0 0.0
    %6265 = vmatprep.subr.mxu0 0.0
    %6266 = vmatpush1.xpose.msra.mxu0 0.0
    %6267 = vmatprep.subr.mxu0 0.0
    %6268 = vmatpush1.xpose.msra.mxu0 0.0
    %6269 = vmatprep.subr.mxu0 0.0
    %6270 = vmatpush1.xpose.msra.mxu0 0.0
    %6271 = vmatprep.subr.mxu0 0.0
    %6272 = vmatpush1.xpose.msra.mxu0 0.0
    %6273 = vmatprep.subr.mxu0 0.0
    %6274 = vmatpush1.xpose.msra.mxu0 0.0
    %6275 = vmatprep.subr.mxu0 0.0
    %6276 = vmatpush1.xpose.msra.mxu0 0.0
    %6277 = vmatprep.subr.mxu0 0.0
    %6278 = vmatpush1.xpose.msra.mxu0 0.0
    %6279 = vmatprep.subr.mxu0 0.0
    %6280 = vmatpush1.xpose.msra.mxu0 0.0
    %6281 = vmatprep.subr.mxu0 0.0
    %6282 = vmatpush1.xpose.msra.mxu0 0.0
    %6283 = vmatprep.subr.mxu0 0.0
    %6284 = vmatpush1.xpose.msra.mxu0 0.0
    %6285 = vmatprep.subr.mxu0 0.0
    %6286 = vmatpush1.xpose.msra.mxu0 0.0
    %6287 = vmatprep.subr.mxu0 0.0
    %6288 = vmatpush1.xpose.msra.mxu0 0.0
    %6289 = vmatprep.subr.mxu0 0.0
    %6290 = vmatpush1.xpose.msra.mxu0 0.0
    %6291 = vmatprep.subr.mxu0 0.0
    %6292 = vmatpush1.xpose.msra.mxu0 0.0
    %6293 = vmatprep.subr.mxu0 0.0
    %6294 = vmatpush1.xpose.msra.mxu0 0.0
    %6295 = vmatprep.subr.mxu0 0.0
    %6296 = vmatpush1.xpose.msra.mxu0 0.0
    %6297 = vmatprep.subr.mxu0 0.0
    %6298 = vmatpush1.xpose.msra.mxu0 0.0
    %6299 = vmatprep.subr.mxu0 0.0
    %6300 = vmatpush1.xpose.msra.mxu0 0.0
    %6301 = vmatprep.subr.mxu0 0.0
    %6302 = vmatpush1.xpose.msra.mxu0 0.0
    %6303 = vmatprep.subr.mxu0 0.0
    %6304 = vmatpush1.xpose.msra.mxu0 0.0
    %6305 = vmatprep.subr.mxu0 0.0
    %6306 = vmatpush1.xpose.msra.mxu0 0.0
    %6307 = vmatprep.subr.mxu0 0.0
    %6308 = vmatpush1.xpose.msra.mxu0 0.0
    %6309 = vmatprep.subr.mxu0 0.0
    %6310 = vmatpush1.xpose.msra.mxu0 0.0
    %6311 = vmatprep.subr.mxu0 0.0
    %6312 = vmatpush1.xpose.msra.mxu0 0.0
    %6313 = vmatprep.subr.mxu0 0.0
    %6314 = vmatpush1.xpose.msra.mxu0 0.0
    %6315 = vmatprep.subr.mxu0 0.0
    %6316 = vmatpush1.xpose.msra.mxu0 0.0
    %6317 = vmatprep.subr.mxu0 0.0
    %6318 = vmatpush1.xpose.msra.mxu0 0.0
    %6319 = vmatprep.mubr.f32.mxu0 0.0
    %v6320 = vand.u32 %v6154, 4294901760
    %6321 = vmatmul.mubr.f32.gmra.mrb[0].mxu0 %v6320
    %v6322 = vpop.f32.mrb[0].mxu0
    %v6323 = vadd.f32 %v6232, %v6322
    %v6324 = vpop.f32.mrb[0].mxu0
    %6325 = vdwg.mxu0
    %6326 = vmatprep.subr.mxu0 0.0
    %v6327 = vand.u32 %v1175, 4294901760
    %v6328 = vsub.f32 %v1175, %v6327
    %6329 = vmatpush1.xpose.msra.mxu0 %v6328
    %6330 = vmatprep.subr.mxu0 0.0
    %v6331 = vand.u32 %v1178, 4294901760
    %v6332 = vsub.f32 %v1178, %v6331
    %6333 = vmatpush1.xpose.msra.mxu0 %v6332
    %6334 = vmatprep.subr.mxu0 0.0
    %v6335 = vand.u32 %v1181, 4294901760
    %v6336 = vsub.f32 %v1181, %v6335
    %6337 = vmatpush1.xpose.msra.mxu0 %v6336
    %6338 = vmatprep.subr.mxu0 0.0
    %v6339 = vand.u32 %v1184, 4294901760
    %v6340 = vsub.f32 %v1184, %v6339
    %6341 = vmatpush1.xpose.msra.mxu0 %v6340
    %6342 = vmatprep.subr.mxu0 0.0
    %6343 = vmatpush1.xpose.msra.mxu0 0.0
    %6344 = vmatprep.subr.mxu0 0.0
    %6345 = vmatpush1.xpose.msra.mxu0 0.0
    %6346 = vmatprep.subr.mxu0 0.0
    %6347 = vmatpush1.xpose.msra.mxu0 0.0
    %6348 = vmatprep.subr.mxu0 0.0
    %6349 = vmatpush1.xpose.msra.mxu0 0.0
    %6350 = vmatprep.subr.mxu0 0.0
    %6351 = vmatpush1.xpose.msra.mxu0 0.0
    %6352 = vmatprep.subr.mxu0 0.0
    %6353 = vmatpush1.xpose.msra.mxu0 0.0
    %6354 = vmatprep.subr.mxu0 0.0
    %6355 = vmatpush1.xpose.msra.mxu0 0.0
    %6356 = vmatprep.subr.mxu0 0.0
    %6357 = vmatpush1.xpose.msra.mxu0 0.0
    %6358 = vmatprep.subr.mxu0 0.0
    %6359 = vmatpush1.xpose.msra.mxu0 0.0
    %6360 = vmatprep.subr.mxu0 0.0
    %6361 = vmatpush1.xpose.msra.mxu0 0.0
    %6362 = vmatprep.subr.mxu0 0.0
    %6363 = vmatpush1.xpose.msra.mxu0 0.0
    %6364 = vmatprep.subr.mxu0 0.0
    %6365 = vmatpush1.xpose.msra.mxu0 0.0
    %6366 = vmatprep.subr.mxu0 0.0
    %6367 = vmatpush1.xpose.msra.mxu0 0.0
    %6368 = vmatprep.subr.mxu0 0.0
    %6369 = vmatpush1.xpose.msra.mxu0 0.0
    %6370 = vmatprep.subr.mxu0 0.0
    %6371 = vmatpush1.xpose.msra.mxu0 0.0
    %6372 = vmatprep.subr.mxu0 0.0
    %6373 = vmatpush1.xpose.msra.mxu0 0.0
    %6374 = vmatprep.subr.mxu0 0.0
    %6375 = vmatpush1.xpose.msra.mxu0 0.0
    %6376 = vmatprep.subr.mxu0 0.0
    %6377 = vmatpush1.xpose.msra.mxu0 0.0
    %6378 = vmatprep.subr.mxu0 0.0
    %6379 = vmatpush1.xpose.msra.mxu0 0.0
    %6380 = vmatprep.subr.mxu0 0.0
    %6381 = vmatpush1.xpose.msra.mxu0 0.0
    %6382 = vmatprep.subr.mxu0 0.0
    %6383 = vmatpush1.xpose.msra.mxu0 0.0
    %6384 = vmatprep.subr.mxu0 0.0
    %6385 = vmatpush1.xpose.msra.mxu0 0.0
    %6386 = vmatprep.subr.mxu0 0.0
    %6387 = vmatpush1.xpose.msra.mxu0 0.0
    %6388 = vmatprep.subr.mxu0 0.0
    %6389 = vmatpush1.xpose.msra.mxu0 0.0
    %6390 = vmatprep.subr.mxu0 0.0
    %6391 = vmatpush1.xpose.msra.mxu0 0.0
    %6392 = vmatprep.subr.mxu0 0.0
    %6393 = vmatpush1.xpose.msra.mxu0 0.0
    %6394 = vmatprep.subr.mxu0 0.0
    %6395 = vmatpush1.xpose.msra.mxu0 0.0
    %6396 = vmatprep.subr.mxu0 0.0
    %6397 = vmatpush1.xpose.msra.mxu0 0.0
    %6398 = vmatprep.mubr.f32.mxu0 0.0
    %v6399 = vand.u32 %v6154, 4294901760
    %v6400 = vsub.f32 %v6154, %v6399
    %6401 = vmatmul.mubr.f32.gmra.mrb[0].mxu0 %v6400
    %v6402 = vpop.f32.mrb[0].mxu0
    %v6403 = vadd.f32 %v6323, %v6402
    %v6404 = vpop.f32.mrb[0].mxu0
    %6405 = vdwg.mxu0
    %6406 = vmatprep.subr.mxu0 0.0
    %v6407 = vand.u32 %v1175, 4294901760
    %6408 = vmatpush1.xpose.msra.mxu0 %v6407
    %6409 = vmatprep.subr.mxu0 0.0
    %v6410 = vand.u32 %v1178, 4294901760
    %6411 = vmatpush1.xpose.msra.mxu0 %v6410
    %6412 = vmatprep.subr.mxu0 0.0
    %v6413 = vand.u32 %v1181, 4294901760
    %6414 = vmatpush1.xpose.msra.mxu0 %v6413
    %6415 = vmatprep.subr.mxu0 0.0
    %v6416 = vand.u32 %v1184, 4294901760
    %6417 = vmatpush1.xpose.msra.mxu0 %v6416
    %6418 = vmatprep.subr.mxu0 0.0
    %6419 = vmatpush1.xpose.msra.mxu0 0.0
    %6420 = vmatprep.subr.mxu0 0.0
    %6421 = vmatpush1.xpose.msra.mxu0 0.0
    %6422 = vmatprep.subr.mxu0 0.0
    %6423 = vmatpush1.xpose.msra.mxu0 0.0
    %6424 = vmatprep.subr.mxu0 0.0
    %6425 = vmatpush1.xpose.msra.mxu0 0.0
    %6426 = vmatprep.subr.mxu0 0.0
    %6427 = vmatpush1.xpose.msra.mxu0 0.0
    %6428 = vmatprep.subr.mxu0 0.0
    %6429 = vmatpush1.xpose.msra.mxu0 0.0
    %6430 = vmatprep.subr.mxu0 0.0
    %6431 = vmatpush1.xpose.msra.mxu0 0.0
    %6432 = vmatprep.subr.mxu0 0.0
    %6433 = vmatpush1.xpose.msra.mxu0 0.0
    %6434 = vmatprep.subr.mxu0 0.0
    %6435 = vmatpush1.xpose.msra.mxu0 0.0
    %6436 = vmatprep.subr.mxu0 0.0
    %6437 = vmatpush1.xpose.msra.mxu0 0.0
    %6438 = vmatprep.subr.mxu0 0.0
    %6439 = vmatpush1.xpose.msra.mxu0 0.0
    %6440 = vmatprep.subr.mxu0 0.0
    %6441 = vmatpush1.xpose.msra.mxu0 0.0
    %6442 = vmatprep.subr.mxu0 0.0
    %6443 = vmatpush1.xpose.msra.mxu0 0.0
    %6444 = vmatprep.subr.mxu0 0.0
    %6445 = vmatpush1.xpose.msra.mxu0 0.0
    %6446 = vmatprep.subr.mxu0 0.0
    %6447 = vmatpush1.xpose.msra.mxu0 0.0
    %6448 = vmatprep.subr.mxu0 0.0
    %6449 = vmatpush1.xpose.msra.mxu0 0.0
    %6450 = vmatprep.subr.mxu0 0.0
    %6451 = vmatpush1.xpose.msra.mxu0 0.0
    %6452 = vmatprep.subr.mxu0 0.0
    %6453 = vmatpush1.xpose.msra.mxu0 0.0
    %6454 = vmatprep.subr.mxu0 0.0
    %6455 = vmatpush1.xpose.msra.mxu0 0.0
    %6456 = vmatprep.subr.mxu0 0.0
    %6457 = vmatpush1.xpose.msra.mxu0 0.0
    %6458 = vmatprep.subr.mxu0 0.0
    %6459 = vmatpush1.xpose.msra.mxu0 0.0
    %6460 = vmatprep.subr.mxu0 0.0
    %6461 = vmatpush1.xpose.msra.mxu0 0.0
    %6462 = vmatprep.subr.mxu0 0.0
    %6463 = vmatpush1.xpose.msra.mxu0 0.0
    %6464 = vmatprep.subr.mxu0 0.0
    %6465 = vmatpush1.xpose.msra.mxu0 0.0
    %6466 = vmatprep.subr.mxu0 0.0
    %6467 = vmatpush1.xpose.msra.mxu0 0.0
    %6468 = vmatprep.subr.mxu0 0.0
    %6469 = vmatpush1.xpose.msra.mxu0 0.0
    %6470 = vmatprep.subr.mxu0 0.0
    %6471 = vmatpush1.xpose.msra.mxu0 0.0
    %6472 = vmatprep.subr.mxu0 0.0
    %6473 = vmatpush1.xpose.msra.mxu0 0.0
    %6474 = vmatprep.mubr.f32.mxu0 0.0
    %v6475 = vand.u32 %v6154, 4294901760
    %v6476 = vsub.f32 %v6154, %v6475
    %v6477 = vand.u32 %v6476, 4294901760
    %6478 = vmatmul.mubr.f32.gmra.mrb[0].mxu0 %v6477
    %v6479 = vpop.f32.mrb[0].mxu0
    %v6480 = vadd.f32 %v6403, %v6479
    %v6481 = vpop.f32.mrb[0].mxu0
    %6482 = vdwg.mxu0
    %6483 = vmatprep.subr.mxu0 0.0
    %v6484 = vand.u32 %v1175, 4294901760
    %v6485 = vsub.f32 %v1175, %v6484
    %v6486 = vand.u32 %v6485, 4294901760
    %6487 = vmatpush1.xpose.msra.mxu0 %v6486
    %6488 = vmatprep.subr.mxu0 0.0
    %v6489 = vand.u32 %v1178, 4294901760
    %v6490 = vsub.f32 %v1178, %v6489
    %v6491 = vand.u32 %v6490, 4294901760
    %6492 = vmatpush1.xpose.msra.mxu0 %v6491
    %6493 = vmatprep.subr.mxu0 0.0
    %v6494 = vand.u32 %v1181, 4294901760
    %v6495 = vsub.f32 %v1181, %v6494
    %v6496 = vand.u32 %v6495, 4294901760
    %6497 = vmatpush1.xpose.msra.mxu0 %v6496
    %6498 = vmatprep.subr.mxu0 0.0
    %v6499 = vand.u32 %v1184, 4294901760
    %v6500 = vsub.f32 %v1184, %v6499
    %v6501 = vand.u32 %v6500, 4294901760
    %6502 = vmatpush1.xpose.msra.mxu0 %v6501
    %6503 = vmatprep.subr.mxu0 0.0
    %6504 = vmatpush1.xpose.msra.mxu0 0.0
    %6505 = vmatprep.subr.mxu0 0.0
    %6506 = vmatpush1.xpose.msra.mxu0 0.0
    %6507 = vmatprep.subr.mxu0 0.0
    %6508 = vmatpush1.xpose.msra.mxu0 0.0
    %6509 = vmatprep.subr.mxu0 0.0
    %6510 = vmatpush1.xpose.msra.mxu0 0.0
    %6511 = vmatprep.subr.mxu0 0.0
    %6512 = vmatpush1.xpose.msra.mxu0 0.0
    %6513 = vmatprep.subr.mxu0 0.0
    %6514 = vmatpush1.xpose.msra.mxu0 0.0
    %6515 = vmatprep.subr.mxu0 0.0
    %6516 = vmatpush1.xpose.msra.mxu0 0.0
    %6517 = vmatprep.subr.mxu0 0.0
    %6518 = vmatpush1.xpose.msra.mxu0 0.0
    %6519 = vmatprep.subr.mxu0 0.0
    %6520 = vmatpush1.xpose.msra.mxu0 0.0
    %6521 = vmatprep.subr.mxu0 0.0
    %6522 = vmatpush1.xpose.msra.mxu0 0.0
    %6523 = vmatprep.subr.mxu0 0.0
    %6524 = vmatpush1.xpose.msra.mxu0 0.0
    %6525 = vmatprep.subr.mxu0 0.0
    %6526 = vmatpush1.xpose.msra.mxu0 0.0
    %6527 = vmatprep.subr.mxu0 0.0
    %6528 = vmatpush1.xpose.msra.mxu0 0.0
    %6529 = vmatprep.subr.mxu0 0.0
    %6530 = vmatpush1.xpose.msra.mxu0 0.0
    %6531 = vmatprep.subr.mxu0 0.0
    %6532 = vmatpush1.xpose.msra.mxu0 0.0
    %6533 = vmatprep.subr.mxu0 0.0
    %6534 = vmatpush1.xpose.msra.mxu0 0.0
    %6535 = vmatprep.subr.mxu0 0.0
    %6536 = vmatpush1.xpose.msra.mxu0 0.0
    %6537 = vmatprep.subr.mxu0 0.0
    %6538 = vmatpush1.xpose.msra.mxu0 0.0
    %6539 = vmatprep.subr.mxu0 0.0
    %6540 = vmatpush1.xpose.msra.mxu0 0.0
    %6541 = vmatprep.subr.mxu0 0.0
    %6542 = vmatpush1.xpose.msra.mxu0 0.0
    %6543 = vmatprep.subr.mxu0 0.0
    %6544 = vmatpush1.xpose.msra.mxu0 0.0
    %6545 = vmatprep.subr.mxu0 0.0
    %6546 = vmatpush1.xpose.msra.mxu0 0.0
    %6547 = vmatprep.subr.mxu0 0.0
    %6548 = vmatpush1.xpose.msra.mxu0 0.0
    %6549 = vmatprep.subr.mxu0 0.0
    %6550 = vmatpush1.xpose.msra.mxu0 0.0
    %6551 = vmatprep.subr.mxu0 0.0
    %6552 = vmatpush1.xpose.msra.mxu0 0.0
    %6553 = vmatprep.subr.mxu0 0.0
    %6554 = vmatpush1.xpose.msra.mxu0 0.0
    %6555 = vmatprep.subr.mxu0 0.0
    %6556 = vmatpush1.xpose.msra.mxu0 0.0
    %6557 = vmatprep.subr.mxu0 0.0
    %6558 = vmatpush1.xpose.msra.mxu0 0.0
    %6559 = vmatprep.mubr.f32.mxu0 0.0
    %v6560 = vand.u32 %v6154, 4294901760
    %6561 = vmatmul.mubr.f32.gmra.mrb[0].mxu0 %v6560
    %v6562 = vpop.f32.mrb[0].mxu0
    %v6563 = vadd.f32 %v6480, %v6562
    %v6564 = vpop.f32.mrb[0].mxu0
    %6565 = vdwg.mxu0
    %6566 = vmatprep.subr.mxu0 0.0
    %v6567 = vand.u32 %v1175, 4294901760
    %6568 = vmatpush1.xpose.msra.mxu0 %v6567
    %6569 = vmatprep.subr.mxu0 0.0
    %v6570 = vand.u32 %v1178, 4294901760
    %6571 = vmatpush1.xpose.msra.mxu0 %v6570
    %6572 = vmatprep.subr.mxu0 0.0
    %v6573 = vand.u32 %v1181, 4294901760
    %6574 = vmatpush1.xpose.msra.mxu0 %v6573
    %6575 = vmatprep.subr.mxu0 0.0
    %v6576 = vand.u32 %v1184, 4294901760
    %6577 = vmatpush1.xpose.msra.mxu0 %v6576
    %6578 = vmatprep.subr.mxu0 0.0
    %6579 = vmatpush1.xpose.msra.mxu0 0.0
    %6580 = vmatprep.subr.mxu0 0.0
    %6581 = vmatpush1.xpose.msra.mxu0 0.0
    %6582 = vmatprep.subr.mxu0 0.0
    %6583 = vmatpush1.xpose.msra.mxu0 0.0
    %6584 = vmatprep.subr.mxu0 0.0
    %6585 = vmatpush1.xpose.msra.mxu0 0.0
    %6586 = vmatprep.subr.mxu0 0.0
    %6587 = vmatpush1.xpose.msra.mxu0 0.0
    %6588 = vmatprep.subr.mxu0 0.0
    %6589 = vmatpush1.xpose.msra.mxu0 0.0
    %6590 = vmatprep.subr.mxu0 0.0
    %6591 = vmatpush1.xpose.msra.mxu0 0.0
    %6592 = vmatprep.subr.mxu0 0.0
    %6593 = vmatpush1.xpose.msra.mxu0 0.0
    %6594 = vmatprep.subr.mxu0 0.0
    %6595 = vmatpush1.xpose.msra.mxu0 0.0
    %6596 = vmatprep.subr.mxu0 0.0
    %6597 = vmatpush1.xpose.msra.mxu0 0.0
    %6598 = vmatprep.subr.mxu0 0.0
    %6599 = vmatpush1.xpose.msra.mxu0 0.0
    %6600 = vmatprep.subr.mxu0 0.0
    %6601 = vmatpush1.xpose.msra.mxu0 0.0
    %6602 = vmatprep.subr.mxu0 0.0
    %6603 = vmatpush1.xpose.msra.mxu0 0.0
    %6604 = vmatprep.subr.mxu0 0.0
    %6605 = vmatpush1.xpose.msra.mxu0 0.0
    %6606 = vmatprep.subr.mxu0 0.0
    %6607 = vmatpush1.xpose.msra.mxu0 0.0
    %6608 = vmatprep.subr.mxu0 0.0
    %6609 = vmatpush1.xpose.msra.mxu0 0.0
    %6610 = vmatprep.subr.mxu0 0.0
    %6611 = vmatpush1.xpose.msra.mxu0 0.0
    %6612 = vmatprep.subr.mxu0 0.0
    %6613 = vmatpush1.xpose.msra.mxu0 0.0
    %6614 = vmatprep.subr.mxu0 0.0
    %6615 = vmatpush1.xpose.msra.mxu0 0.0
    %6616 = vmatprep.subr.mxu0 0.0
    %6617 = vmatpush1.xpose.msra.mxu0 0.0
    %6618 = vmatprep.subr.mxu0 0.0
    %6619 = vmatpush1.xpose.msra.mxu0 0.0
    %6620 = vmatprep.subr.mxu0 0.0
    %6621 = vmatpush1.xpose.msra.mxu0 0.0
    %6622 = vmatprep.subr.mxu0 0.0
    %6623 = vmatpush1.xpose.msra.mxu0 0.0
    %6624 = vmatprep.subr.mxu0 0.0
    %6625 = vmatpush1.xpose.msra.mxu0 0.0
    %6626 = vmatprep.subr.mxu0 0.0
    %6627 = vmatpush1.xpose.msra.mxu0 0.0
    %6628 = vmatprep.subr.mxu0 0.0
    %6629 = vmatpush1.xpose.msra.mxu0 0.0
    %6630 = vmatprep.subr.mxu0 0.0
    %6631 = vmatpush1.xpose.msra.mxu0 0.0
    %6632 = vmatprep.subr.mxu0 0.0
    %6633 = vmatpush1.xpose.msra.mxu0 0.0
    %6634 = vmatprep.mubr.f32.mxu0 0.0
    %v6635 = vand.u32 %v6154, 4294901760
    %6636 = vmatmul.mubr.f32.gmra.mrb[0].mxu0 %v6635
    %v6637 = vpop.f32.mrb[0].mxu0
    %v6638 = vadd.f32 %v6563, %v6637
    %v6639 = vpop.f32.mrb[0].mxu0
    %6640 = vdwg.mxu0
    %v6641 = vsel %vm19, %v6638, -inf
    %6642 = vmax.xlane.f32.xlu0 %v6641
    %v6643 = vpop.xlane.xlu0 %6642
    %v6644 = vmax.f32 %v6643, 1e-30
    %v6645 = vrcp.pop %v6644
    %v6646 = vmul.f32 %v6638, %v6645
    %6647 = vst.msk [vmem:[#allocation5 + $0x1] sm:$0x1] %vm19, %v6646
    %v6649 = vsel %vm37, %v6149, 0
    %6651 = vmatprep.subr.mxu0 0.0
    %v6652 = vand.u32 %v148, 4294901760
    %6653 = vmatpush1.msra.mxu0 %v6652
    %6654 = vmatprep.subr.mxu0 0.0
    %v6655 = vand.u32 %v150, 4294901760
    %6656 = vmatpush1.msra.mxu0 %v6655
    %6657 = vmatprep.subr.mxu0 0.0
    %v6658 = vand.u32 %v152, 4294901760
    %6659 = vmatpush1.msra.mxu0 %v6658
    %6660 = vmatprep.subr.mxu0 0.0
    %v6661 = vand.u32 %v154, 4294901760
    %6662 = vmatpush1.msra.mxu0 %v6661
    %6663 = vmatprep.subr.mxu0 0.0
    %6664 = vmatpush1.msra.mxu0 0.0
    %6665 = vmatprep.subr.mxu0 0.0
    %6666 = vmatpush1.msra.mxu0 0.0
    %6667 = vmatprep.subr.mxu0 0.0
    %6668 = vmatpush1.msra.mxu0 0.0
    %6669 = vmatprep.subr.mxu0 0.0
    %6670 = vmatpush1.msra.mxu0 0.0
    %6671 = vmatprep.subr.mxu0 0.0
    %6672 = vmatpush1.msra.mxu0 0.0
    %6673 = vmatprep.subr.mxu0 0.0
    %6674 = vmatpush1.msra.mxu0 0.0
    %6675 = vmatprep.subr.mxu0 0.0
    %6676 = vmatpush1.msra.mxu0 0.0
    %6677 = vmatprep.subr.mxu0 0.0
    %6678 = vmatpush1.msra.mxu0 0.0
    %6679 = vmatprep.subr.mxu0 0.0
    %6680 = vmatpush1.msra.mxu0 0.0
    %6681 = vmatprep.subr.mxu0 0.0
    %6682 = vmatpush1.msra.mxu0 0.0
    %6683 = vmatprep.subr.mxu0 0.0
    %6684 = vmatpush1.msra.mxu0 0.0
    %6685 = vmatprep.subr.mxu0 0.0
    %6686 = vmatpush1.msra.mxu0 0.0
    %6687 = vmatprep.subr.mxu0 0.0
    %6688 = vmatpush1.msra.mxu0 0.0
    %6689 = vmatprep.subr.mxu0 0.0
    %6690 = vmatpush1.msra.mxu0 0.0
    %6691 = vmatprep.subr.mxu0 0.0
    %6692 = vmatpush1.msra.mxu0 0.0
    %6693 = vmatprep.subr.mxu0 0.0
    %6694 = vmatpush1.msra.mxu0 0.0
    %6695 = vmatprep.subr.mxu0 0.0
    %6696 = vmatpush1.msra.mxu0 0.0
    %6697 = vmatprep.subr.mxu0 0.0
    %6698 = vmatpush1.msra.mxu0 0.0
    %6699 = vmatprep.subr.mxu0 0.0
    %6700 = vmatpush1.msra.mxu0 0.0
    %6701 = vmatprep.subr.mxu0 0.0
    %6702 = vmatpush1.msra.mxu0 0.0
    %6703 = vmatprep.subr.mxu0 0.0
    %6704 = vmatpush1.msra.mxu0 0.0
    %6705 = vmatprep.subr.mxu0 0.0
    %6706 = vmatpush1.msra.mxu0 0.0
    %6707 = vmatprep.subr.mxu0 0.0
    %6708 = vmatpush1.msra.mxu0 0.0
    %6709 = vmatprep.subr.mxu0 0.0
    %6710 = vmatpush1.msra.mxu0 0.0
    %6711 = vmatprep.subr.mxu0 0.0
    %6712 = vmatpush1.msra.mxu0 0.0
    %6713 = vmatprep.subr.mxu0 0.0
    %6714 = vmatpush1.msra.mxu0 0.0
    %6715 = vmatprep.subr.mxu0 0.0
    %6716 = vmatpush1.msra.mxu0 0.0
    %6717 = vmatprep.subr.mxu0 0.0
    %6718 = vmatpush1.msra.mxu0 0.0
    %6719 = vmatprep.mubr.f32.mxu0 0.0
    %v6720 = vand.u32 %v6649, 4294901760
    %v6721 = vsub.f32 %v6649, %v6720
    %v6722 = vand.u32 %v6721, 4294901760
    %v6723 = vsub.f32 %v6721, %v6722
    %v6724 = vand.u32 %v6723, 4294901760
    %6725 = vmatmul.mubr.f32.gmra.mrb[0].mxu0 %v6724
    %v6726 = vpop.f32.mrb[0].mxu0
    %v6727 = vadd.f32 0.0, %v6726
    %v6728 = vpop.f32.mrb[0].mxu0
    %6729 = vdwg.mxu0
    %6730 = vmatprep.subr.mxu0 0.0
    %v6731 = vand.u32 %v148, 4294901760
    %v6732 = vsub.f32 %v148, %v6731
    %v6733 = vand.u32 %v6732, 4294901760
    %v6734 = vsub.f32 %v6732, %v6733
    %v6735 = vand.u32 %v6734, 4294901760
    %6736 = vmatpush1.msra.mxu0 %v6735
    %6737 = vmatprep.subr.mxu0 0.0
    %v6738 = vand.u32 %v150, 4294901760
    %v6739 = vsub.f32 %v150, %v6738
    %v6740 = vand.u32 %v6739, 4294901760
    %v6741 = vsub.f32 %v6739, %v6740
    %v6742 = vand.u32 %v6741, 4294901760
    %6743 = vmatpush1.msra.mxu0 %v6742
    %6744 = vmatprep.subr.mxu0 0.0
    %v6745 = vand.u32 %v152, 4294901760
    %v6746 = vsub.f32 %v152, %v6745
    %v6747 = vand.u32 %v6746, 4294901760
    %v6748 = vsub.f32 %v6746, %v6747
    %v6749 = vand.u32 %v6748, 4294901760
    %6750 = vmatpush1.msra.mxu0 %v6749
    %6751 = vmatprep.subr.mxu0 0.0
    %v6752 = vand.u32 %v154, 4294901760
    %v6753 = vsub.f32 %v154, %v6752
    %v6754 = vand.u32 %v6753, 4294901760
    %v6755 = vsub.f32 %v6753, %v6754
    %v6756 = vand.u32 %v6755, 4294901760
    %6757 = vmatpush1.msra.mxu0 %v6756
    %6758 = vmatprep.subr.mxu0 0.0
    %6759 = vmatpush1.msra.mxu0 0.0
    %6760 = vmatprep.subr.mxu0 0.0
    %6761 = vmatpush1.msra.mxu0 0.0
    %6762 = vmatprep.subr.mxu0 0.0
    %6763 = vmatpush1.msra.mxu0 0.0
    %6764 = vmatprep.subr.mxu0 0.0
    %6765 = vmatpush1.msra.mxu0 0.0
    %6766 = vmatprep.subr.mxu0 0.0
    %6767 = vmatpush1.msra.mxu0 0.0
    %6768 = vmatprep.subr.mxu0 0.0
    %6769 = vmatpush1.msra.mxu0 0.0
    %6770 = vmatprep.subr.mxu0 0.0
    %6771 = vmatpush1.msra.mxu0 0.0
    %6772 = vmatprep.subr.mxu0 0.0
    %6773 = vmatpush1.msra.mxu0 0.0
    %6774 = vmatprep.subr.mxu0 0.0
    %6775 = vmatpush1.msra.mxu0 0.0
    %6776 = vmatprep.subr.mxu0 0.0
    %6777 = vmatpush1.msra.mxu0 0.0
    %6778 = vmatprep.subr.mxu0 0.0
    %6779 = vmatpush1.msra.mxu0 0.0
    %6780 = vmatprep.subr.mxu0 0.0
    %6781 = vmatpush1.msra.mxu0 0.0
    %6782 = vmatprep.subr.mxu0 0.0
    %6783 = vmatpush1.msra.mxu0 0.0
    %6784 = vmatprep.subr.mxu0 0.0
    %6785 = vmatpush1.msra.mxu0 0.0
    %6786 = vmatprep.subr.mxu0 0.0
    %6787 = vmatpush1.msra.mxu0 0.0
    %6788 = vmatprep.subr.mxu0 0.0
    %6789 = vmatpush1.msra.mxu0 0.0
    %6790 = vmatprep.subr.mxu0 0.0
    %6791 = vmatpush1.msra.mxu0 0.0
    %6792 = vmatprep.subr.mxu0 0.0
    %6793 = vmatpush1.msra.mxu0 0.0
    %6794 = vmatprep.subr.mxu0 0.0
    %6795 = vmatpush1.msra.mxu0 0.0
    %6796 = vmatprep.subr.mxu0 0.0
    %6797 = vmatpush1.msra.mxu0 0.0
    %6798 = vmatprep.subr.mxu0 0.0
    %6799 = vmatpush1.msra.mxu0 0.0
    %6800 = vmatprep.subr.mxu0 0.0
    %6801 = vmatpush1.msra.mxu0 0.0
    %6802 = vmatprep.subr.mxu0 0.0
    %6803 = vmatpush1.msra.mxu0 0.0
    %6804 = vmatprep.subr.mxu0 0.0
    %6805 = vmatpush1.msra.mxu0 0.0
    %6806 = vmatprep.subr.mxu0 0.0
    %6807 = vmatpush1.msra.mxu0 0.0
    %6808 = vmatprep.subr.mxu0 0.0
    %6809 = vmatpush1.msra.mxu0 0.0
    %6810 = vmatprep.subr.mxu0 0.0
    %6811 = vmatpush1.msra.mxu0 0.0
    %6812 = vmatprep.subr.mxu0 0.0
    %6813 = vmatpush1.msra.mxu0 0.0
    %6814 = vmatprep.mubr.f32.mxu0 0.0
    %v6815 = vand.u32 %v6649, 4294901760
    %6816 = vmatmul.mubr.f32.gmra.mrb[0].mxu0 %v6815
    %v6817 = vpop.f32.mrb[0].mxu0
    %v6818 = vadd.f32 %v6727, %v6817
    %v6819 = vpop.f32.mrb[0].mxu0
    %6820 = vdwg.mxu0
    %6821 = vmatprep.subr.mxu0 0.0
    %v6822 = vand.u32 %v148, 4294901760
    %v6823 = vsub.f32 %v148, %v6822
    %6824 = vmatpush1.msra.mxu0 %v6823
    %6825 = vmatprep.subr.mxu0 0.0
    %v6826 = vand.u32 %v150, 4294901760
    %v6827 = vsub.f32 %v150, %v6826
    %6828 = vmatpush1.msra.mxu0 %v6827
    %6829 = vmatprep.subr.mxu0 0.0
    %v6830 = vand.u32 %v152, 4294901760
    %v6831 = vsub.f32 %v152, %v6830
    %6832 = vmatpush1.msra.mxu0 %v6831
    %6833 = vmatprep.subr.mxu0 0.0
    %v6834 = vand.u32 %v154, 4294901760
    %v6835 = vsub.f32 %v154, %v6834
    %6836 = vmatpush1.msra.mxu0 %v6835
    %6837 = vmatprep.subr.mxu0 0.0
    %6838 = vmatpush1.msra.mxu0 0.0
    %6839 = vmatprep.subr.mxu0 0.0
    %6840 = vmatpush1.msra.mxu0 0.0
    %6841 = vmatprep.subr.mxu0 0.0
    %6842 = vmatpush1.msra.mxu0 0.0
    %6843 = vmatprep.subr.mxu0 0.0
    %6844 = vmatpush1.msra.mxu0 0.0
    %6845 = vmatprep.subr.mxu0 0.0
    %6846 = vmatpush1.msra.mxu0 0.0
    %6847 = vmatprep.subr.mxu0 0.0
    %6848 = vmatpush1.msra.mxu0 0.0
    %6849 = vmatprep.subr.mxu0 0.0
    %6850 = vmatpush1.msra.mxu0 0.0
    %6851 = vmatprep.subr.mxu0 0.0
    %6852 = vmatpush1.msra.mxu0 0.0
    %6853 = vmatprep.subr.mxu0 0.0
    %6854 = vmatpush1.msra.mxu0 0.0
    %6855 = vmatprep.subr.mxu0 0.0
    %6856 = vmatpush1.msra.mxu0 0.0
    %6857 = vmatprep.subr.mxu0 0.0
    %6858 = vmatpush1.msra.mxu0 0.0
    %6859 = vmatprep.subr.mxu0 0.0
    %6860 = vmatpush1.msra.mxu0 0.0
    %6861 = vmatprep.subr.mxu0 0.0
    %6862 = vmatpush1.msra.mxu0 0.0
    %6863 = vmatprep.subr.mxu0 0.0
    %6864 = vmatpush1.msra.mxu0 0.0
    %6865 = vmatprep.subr.mxu0 0.0
    %6866 = vmatpush1.msra.mxu0 0.0
    %6867 = vmatprep.subr.mxu0 0.0
    %6868 = vmatpush1.msra.mxu0 0.0
    %6869 = vmatprep.subr.mxu0 0.0
    %6870 = vmatpush1.msra.mxu0 0.0
    %6871 = vmatprep.subr.mxu0 0.0
    %6872 = vmatpush1.msra.mxu0 0.0
    %6873 = vmatprep.subr.mxu0 0.0
    %6874 = vmatpush1.msra.mxu0 0.0
    %6875 = vmatprep.subr.mxu0 0.0
    %6876 = vmatpush1.msra.mxu0 0.0
    %6877 = vmatprep.subr.mxu0 0.0
    %6878 = vmatpush1.msra.mxu0 0.0
    %6879 = vmatprep.subr.mxu0 0.0
    %6880 = vmatpush1.msra.mxu0 0.0
    %6881 = vmatprep.subr.mxu0 0.0
    %6882 = vmatpush1.msra.mxu0 0.0
    %6883 = vmatprep.subr.mxu0 0.0
    %6884 = vmatpush1.msra.mxu0 0.0
    %6885 = vmatprep.subr.mxu0 0.0
    %6886 = vmatpush1.msra.mxu0 0.0
    %6887 = vmatprep.subr.mxu0 0.0
    %6888 = vmatpush1.msra.mxu0 0.0
    %6889 = vmatprep.subr.mxu0 0.0
    %6890 = vmatpush1.msra.mxu0 0.0
    %6891 = vmatprep.subr.mxu0 0.0
    %6892 = vmatpush1.msra.mxu0 0.0
    %6893 = vmatprep.mubr.f32.mxu0 0.0
    %v6894 = vand.u32 %v6649, 4294901760
    %v6895 = vsub.f32 %v6649, %v6894
    %6896 = vmatmul.mubr.f32.gmra.mrb[0].mxu0 %v6895
    %v6897 = vpop.f32.mrb[0].mxu0
    %v6898 = vadd.f32 %v6818, %v6897
    %v6899 = vpop.f32.mrb[0].mxu0
    %6900 = vdwg.mxu0
    %6901 = vmatprep.subr.mxu0 0.0
    %v6902 = vand.u32 %v148, 4294901760
    %6903 = vmatpush1.msra.mxu0 %v6902
    %6904 = vmatprep.subr.mxu0 0.0
    %v6905 = vand.u32 %v150, 4294901760
    %6906 = vmatpush1.msra.mxu0 %v6905
    %6907 = vmatprep.subr.mxu0 0.0
    %v6908 = vand.u32 %v152, 4294901760
    %6909 = vmatpush1.msra.mxu0 %v6908
    %6910 = vmatprep.subr.mxu0 0.0
    %v6911 = vand.u32 %v154, 4294901760
    %6912 = vmatpush1.msra.mxu0 %v6911
    %6913 = vmatprep.subr.mxu0 0.0
    %6914 = vmatpush1.msra.mxu0 0.0
    %6915 = vmatprep.subr.mxu0 0.0
    %6916 = vmatpush1.msra.mxu0 0.0
    %6917 = vmatprep.subr.mxu0 0.0
    %6918 = vmatpush1.msra.mxu0 0.0
    %6919 = vmatprep.subr.mxu0 0.0
    %6920 = vmatpush1.msra.mxu0 0.0
    %6921 = vmatprep.subr.mxu0 0.0
    %6922 = vmatpush1.msra.mxu0 0.0
    %6923 = vmatprep.subr.mxu0 0.0
    %6924 = vmatpush1.msra.mxu0 0.0
    %6925 = vmatprep.subr.mxu0 0.0
    %6926 = vmatpush1.msra.mxu0 0.0
    %6927 = vmatprep.subr.mxu0 0.0
    %6928 = vmatpush1.msra.mxu0 0.0
    %6929 = vmatprep.subr.mxu0 0.0
    %6930 = vmatpush1.msra.mxu0 0.0
    %6931 = vmatprep.subr.mxu0 0.0
    %6932 = vmatpush1.msra.mxu0 0.0
    %6933 = vmatprep.subr.mxu0 0.0
    %6934 = vmatpush1.msra.mxu0 0.0
    %6935 = vmatprep.subr.mxu0 0.0
    %6936 = vmatpush1.msra.mxu0 0.0
    %6937 = vmatprep.subr.mxu0 0.0
    %6938 = vmatpush1.msra.mxu0 0.0
    %6939 = vmatprep.subr.mxu0 0.0
    %6940 = vmatpush1.msra.mxu0 0.0
    %6941 = vmatprep.subr.mxu0 0.0
    %6942 = vmatpush1.msra.mxu0 0.0
    %6943 = vmatprep.subr.mxu0 0.0
    %6944 = vmatpush1.msra.mxu0 0.0
    %6945 = vmatprep.subr.mxu0 0.0
    %6946 = vmatpush1.msra.mxu0 0.0
    %6947 = vmatprep.subr.mxu0 0.0
    %6948 = vmatpush1.msra.mxu0 0.0
    %6949 = vmatprep.subr.mxu0 0.0
    %6950 = vmatpush1.msra.mxu0 0.0
    %6951 = vmatprep.subr.mxu0 0.0
    %6952 = vmatpush1.msra.mxu0 0.0
    %6953 = vmatprep.subr.mxu0 0.0
    %6954 = vmatpush1.msra.mxu0 0.0
    %6955 = vmatprep.subr.mxu0 0.0
    %6956 = vmatpush1.msra.mxu0 0.0
    %6957 = vmatprep.subr.mxu0 0.0
    %6958 = vmatpush1.msra.mxu0 0.0
    %6959 = vmatprep.subr.mxu0 0.0
    %6960 = vmatpush1.msra.mxu0 0.0
    %6961 = vmatprep.subr.mxu0 0.0
    %6962 = vmatpush1.msra.mxu0 0.0
    %6963 = vmatprep.subr.mxu0 0.0
    %6964 = vmatpush1.msra.mxu0 0.0
    %6965 = vmatprep.subr.mxu0 0.0
    %6966 = vmatpush1.msra.mxu0 0.0
    %6967 = vmatprep.subr.mxu0 0.0
    %6968 = vmatpush1.msra.mxu0 0.0
    %6969 = vmatprep.mubr.f32.mxu0 0.0
    %v6970 = vand.u32 %v6649, 4294901760
    %v6971 = vsub.f32 %v6649, %v6970
    %v6972 = vand.u32 %v6971, 4294901760
    %6973 = vmatmul.mubr.f32.gmra.mrb[0].mxu0 %v6972
    %v6974 = vpop.f32.mrb[0].mxu0
    %v6975 = vadd.f32 %v6898, %v6974
    %v6976 = vpop.f32.mrb[0].mxu0
    %6977 = vdwg.mxu0
    %6978 = vmatprep.subr.mxu0 0.0
    %v6979 = vand.u32 %v148, 4294901760
    %v6980 = vsub.f32 %v148, %v6979
    %v6981 = vand.u32 %v6980, 4294901760
    %6982 = vmatpush1.msra.mxu0 %v6981
    %6983 = vmatprep.subr.mxu0 0.0
    %v6984 = vand.u32 %v150, 4294901760
    %v6985 = vsub.f32 %v150, %v6984
    %v6986 = vand.u32 %v6985, 4294901760
    %6987 = vmatpush1.msra.mxu0 %v6986
    %6988 = vmatprep.subr.mxu0 0.0
    %v6989 = vand.u32 %v152, 4294901760
    %v6990 = vsub.f32 %v152, %v6989
    %v6991 = vand.u32 %v6990, 4294901760
    %6992 = vmatpush1.msra.mxu0 %v6991
    %6993 = vmatprep.subr.mxu0 0.0
    %v6994 = vand.u32 %v154, 4294901760
    %v6995 = vsub.f32 %v154, %v6994
    %v6996 = vand.u32 %v6995, 4294901760
    %6997 = vmatpush1.msra.mxu0 %v6996
    %6998 = vmatprep.subr.mxu0 0.0
    %6999 = vmatpush1.msra.mxu0 0.0
    %7000 = vmatprep.subr.mxu0 0.0
    %7001 = vmatpush1.msra.mxu0 0.0
    %7002 = vmatprep.subr.mxu0 0.0
    %7003 = vmatpush1.msra.mxu0 0.0
    %7004 = vmatprep.subr.mxu0 0.0
    %7005 = vmatpush1.msra.mxu0 0.0
    %7006 = vmatprep.subr.mxu0 0.0
    %7007 = vmatpush1.msra.mxu0 0.0
    %7008 = vmatprep.subr.mxu0 0.0
    %7009 = vmatpush1.msra.mxu0 0.0
    %7010 = vmatprep.subr.mxu0 0.0
    %7011 = vmatpush1.msra.mxu0 0.0
    %7012 = vmatprep.subr.mxu0 0.0
    %7013 = vmatpush1.msra.mxu0 0.0
    %7014 = vmatprep.subr.mxu0 0.0
    %7015 = vmatpush1.msra.mxu0 0.0
    %7016 = vmatprep.subr.mxu0 0.0
    %7017 = vmatpush1.msra.mxu0 0.0
    %7018 = vmatprep.subr.mxu0 0.0
    %7019 = vmatpush1.msra.mxu0 0.0
    %7020 = vmatprep.subr.mxu0 0.0
    %7021 = vmatpush1.msra.mxu0 0.0
    %7022 = vmatprep.subr.mxu0 0.0
    %7023 = vmatpush1.msra.mxu0 0.0
    %7024 = vmatprep.subr.mxu0 0.0
    %7025 = vmatpush1.msra.mxu0 0.0
    %7026 = vmatprep.subr.mxu0 0.0
    %7027 = vmatpush1.msra.mxu0 0.0
    %7028 = vmatprep.subr.mxu0 0.0
    %7029 = vmatpush1.msra.mxu0 0.0
    %7030 = vmatprep.subr.mxu0 0.0
    %7031 = vmatpush1.msra.mxu0 0.0
    %7032 = vmatprep.subr.mxu0 0.0
    %7033 = vmatpush1.msra.mxu0 0.0
    %7034 = vmatprep.subr.mxu0 0.0
    %7035 = vmatpush1.msra.mxu0 0.0
    %7036 = vmatprep.subr.mxu0 0.0
    %7037 = vmatpush1.msra.mxu0 0.0
    %7038 = vmatprep.subr.mxu0 0.0
    %7039 = vmatpush1.msra.mxu0 0.0
    %7040 = vmatprep.subr.mxu0 0.0
    %7041 = vmatpush1.msra.mxu0 0.0
    %7042 = vmatprep.subr.mxu0 0.0
    %7043 = vmatpush1.msra.mxu0 0.0
    %7044 = vmatprep.subr.mxu0 0.0
    %7045 = vmatpush1.msra.mxu0 0.0
    %7046 = vmatprep.subr.mxu0 0.0
    %7047 = vmatpush1.msra.mxu0 0.0
    %7048 = vmatprep.subr.mxu0 0.0
    %7049 = vmatpush1.msra.mxu0 0.0
    %7050 = vmatprep.subr.mxu0 0.0
    %7051 = vmatpush1.msra.mxu0 0.0
    %7052 = vmatprep.subr.mxu0 0.0
    %7053 = vmatpush1.msra.mxu0 0.0
    %7054 = vmatprep.mubr.f32.mxu0 0.0
    %v7055 = vand.u32 %v6649, 4294901760
    %7056 = vmatmul.mubr.f32.gmra.mrb[0].mxu0 %v7055
    %v7057 = vpop.f32.mrb[0].mxu0
    %v7058 = vadd.f32 %v6975, %v7057
    %v7059 = vpop.f32.mrb[0].mxu0
    %7060 = vdwg.mxu0
    %7061 = vmatprep.subr.mxu0 0.0
    %v7062 = vand.u32 %v148, 4294901760
    %7063 = vmatpush1.msra.mxu0 %v7062
    %7064 = vmatprep.subr.mxu0 0.0
    %v7065 = vand.u32 %v150, 4294901760
    %7066 = vmatpush1.msra.mxu0 %v7065
    %7067 = vmatprep.subr.mxu0 0.0
    %v7068 = vand.u32 %v152, 4294901760
    %7069 = vmatpush1.msra.mxu0 %v7068
    %7070 = vmatprep.subr.mxu0 0.0
    %v7071 = vand.u32 %v154, 4294901760
    %7072 = vmatpush1.msra.mxu0 %v7071
    %7073 = vmatprep.subr.mxu0 0.0
    %7074 = vmatpush1.msra.mxu0 0.0
    %7075 = vmatprep.subr.mxu0 0.0
    %7076 = vmatpush1.msra.mxu0 0.0
    %7077 = vmatprep.subr.mxu0 0.0
    %7078 = vmatpush1.msra.mxu0 0.0
    %7079 = vmatprep.subr.mxu0 0.0
    %7080 = vmatpush1.msra.mxu0 0.0
    %7081 = vmatprep.subr.mxu0 0.0
    %7082 = vmatpush1.msra.mxu0 0.0
    %7083 = vmatprep.subr.mxu0 0.0
    %7084 = vmatpush1.msra.mxu0 0.0
    %7085 = vmatprep.subr.mxu0 0.0
    %7086 = vmatpush1.msra.mxu0 0.0
    %7087 = vmatprep.subr.mxu0 0.0
    %7088 = vmatpush1.msra.mxu0 0.0
    %7089 = vmatprep.subr.mxu0 0.0
    %7090 = vmatpush1.msra.mxu0 0.0
    %7091 = vmatprep.subr.mxu0 0.0
    %7092 = vmatpush1.msra.mxu0 0.0
    %7093 = vmatprep.subr.mxu0 0.0
    %7094 = vmatpush1.msra.mxu0 0.0
    %7095 = vmatprep.subr.mxu0 0.0
    %7096 = vmatpush1.msra.mxu0 0.0
    %7097 = vmatprep.subr.mxu0 0.0
    %7098 = vmatpush1.msra.mxu0 0.0
    %7099 = vmatprep.subr.mxu0 0.0
    %7100 = vmatpush1.msra.mxu0 0.0
    %7101 = vmatprep.subr.mxu0 0.0
    %7102 = vmatpush1.msra.mxu0 0.0
    %7103 = vmatprep.subr.mxu0 0.0
    %7104 = vmatpush1.msra.mxu0 0.0
    %7105 = vmatprep.subr.mxu0 0.0
    %7106 = vmatpush1.msra.mxu0 0.0
    %7107 = vmatprep.subr.mxu0 0.0
    %7108 = vmatpush1.msra.mxu0 0.0
    %7109 = vmatprep.subr.mxu0 0.0
    %7110 = vmatpush1.msra.mxu0 0.0
    %7111 = vmatprep.subr.mxu0 0.0
    %7112 = vmatpush1.msra.mxu0 0.0
    %7113 = vmatprep.subr.mxu0 0.0
    %7114 = vmatpush1.msra.mxu0 0.0
    %7115 = vmatprep.subr.mxu0 0.0
    %7116 = vmatpush1.msra.mxu0 0.0
    %7117 = vmatprep.subr.mxu0 0.0
    %7118 = vmatpush1.msra.mxu0 0.0
    %7119 = vmatprep.subr.mxu0 0.0
    %7120 = vmatpush1.msra.mxu0 0.0
    %7121 = vmatprep.subr.mxu0 0.0
    %7122 = vmatpush1.msra.mxu0 0.0
    %7123 = vmatprep.subr.mxu0 0.0
    %7124 = vmatpush1.msra.mxu0 0.0
    %7125 = vmatprep.subr.mxu0 0.0
    %7126 = vmatpush1.msra.mxu0 0.0
    %7127 = vmatprep.subr.mxu0 0.0
    %7128 = vmatpush1.msra.mxu0 0.0
    %7129 = vmatprep.mubr.f32.mxu0 0.0
    %v7130 = vand.u32 %v6649, 4294901760
    %7131 = vmatmul.mubr.f32.gmra.mrb[0].mxu0 %v7130
    %v7132 = vpop.f32.mrb[0].mxu0
    %v7133 = vadd.f32 %v7058, %v7132
    %v7134 = vpop.f32.mrb[0].mxu0
    %7135 = vdwg.mxu0
    %v7136 = vld [vmem:[#allocation3 + $0x7] sm:$0x1]
    %v7137 = vmul.f32 %v7133, %v7136
    %v7138 = vsel %vm19, %v7137, -inf
    %7139 = vmax.xlane.f32.xlu0 %v7138
    %v7140 = vpop.xlane.xlu0 %7139
    %v7141 = vmax.f32 %v7140, 1e-30
    %v7142 = vrcp.pop %v7141
    %v7143 = vmul.f32 %v7137, %v7142
    %7144 = vst.msk [vmem:[#allocation4 + $0x7] sm:$0x1] %vm19, %v7143
    %v7145 = vld [vmem:[#allocation3] sm:$0x1]
    %v7146 = vmul.f32 %v7145, %v6646
    %v7148 = vsel %vm37, %v7146, 0
    %7150 = vmatprep.subr.mxu0 0.0
    %v7151 = vand.u32 %v1175, 4294901760
    %7152 = vmatpush1.xpose.msra.mxu0 %v7151
    %7153 = vmatprep.subr.mxu0 0.0
    %v7154 = vand.u32 %v1178, 4294901760
    %7155 = vmatpush1.xpose.msra.mxu0 %v7154
    %7156 = vmatprep.subr.mxu0 0.0
    %v7157 = vand.u32 %v1181, 4294901760
    %7158 = vmatpush1.xpose.msra.mxu0 %v7157
    %7159 = vmatprep.subr.mxu0 0.0
    %v7160 = vand.u32 %v1184, 4294901760
    %7161 = vmatpush1.xpose.msra.mxu0 %v7160
    %7162 = vmatprep.subr.mxu0 0.0
    %7163 = vmatpush1.xpose.msra.mxu0 0.0
    %7164 = vmatprep.subr.mxu0 0.0
    %7165 = vmatpush1.xpose.msra.mxu0 0.0
    %7166 = vmatprep.subr.mxu0 0.0
    %7167 = vmatpush1.xpose.msra.mxu0 0.0
    %7168 = vmatprep.subr.mxu0 0.0
    %7169 = vmatpush1.xpose.msra.mxu0 0.0
    %7170 = vmatprep.subr.mxu0 0.0
    %7171 = vmatpush1.xpose.msra.mxu0 0.0
    %7172 = vmatprep.subr.mxu0 0.0
    %7173 = vmatpush1.xpose.msra.mxu0 0.0
    %7174 = vmatprep.subr.mxu0 0.0
    %7175 = vmatpush1.xpose.msra.mxu0 0.0
    %7176 = vmatprep.subr.mxu0 0.0
    %7177 = vmatpush1.xpose.msra.mxu0 0.0
    %7178 = vmatprep.subr.mxu0 0.0
    %7179 = vmatpush1.xpose.msra.mxu0 0.0
    %7180 = vmatprep.subr.mxu0 0.0
    %7181 = vmatpush1.xpose.msra.mxu0 0.0
    %7182 = vmatprep.subr.mxu0 0.0
    %7183 = vmatpush1.xpose.msra.mxu0 0.0
    %7184 = vmatprep.subr.mxu0 0.0
    %7185 = vmatpush1.xpose.msra.mxu0 0.0
    %7186 = vmatprep.subr.mxu0 0.0
    %7187 = vmatpush1.xpose.msra.mxu0 0.0
    %7188 = vmatprep.subr.mxu0 0.0
    %7189 = vmatpush1.xpose.msra.mxu0 0.0
    %7190 = vmatprep.subr.mxu0 0.0
    %7191 = vmatpush1.xpose.msra.mxu0 0.0
    %7192 = vmatprep.subr.mxu0 0.0
    %7193 = vmatpush1.xpose.msra.mxu0 0.0
    %7194 = vmatprep.subr.mxu0 0.0
    %7195 = vmatpush1.xpose.msra.mxu0 0.0
    %7196 = vmatprep.subr.mxu0 0.0
    %7197 = vmatpush1.xpose.msra.mxu0 0.0
    %7198 = vmatprep.subr.mxu0 0.0
    %7199 = vmatpush1.xpose.msra.mxu0 0.0
    %7200 = vmatprep.subr.mxu0 0.0
    %7201 = vmatpush1.xpose.msra.mxu0 0.0
    %7202 = vmatprep.subr.mxu0 0.0
    %7203 = vmatpush1.xpose.msra.mxu0 0.0
    %7204 = vmatprep.subr.mxu0 0.0
    %7205 = vmatpush1.xpose.msra.mxu0 0.0
    %7206 = vmatprep.subr.mxu0 0.0
    %7207 = vmatpush1.xpose.msra.mxu0 0.0
    %7208 = vmatprep.subr.mxu0 0.0
    %7209 = vmatpush1.xpose.msra.mxu0 0.0
    %7210 = vmatprep.subr.mxu0 0.0
    %7211 = vmatpush1.xpose.msra.mxu0 0.0
    %7212 = vmatprep.subr.mxu0 0.0
    %7213 = vmatpush1.xpose.msra.mxu0 0.0
    %7214 = vmatprep.subr.mxu0 0.0
    %7215 = vmatpush1.xpose.msra.mxu0 0.0
    %7216 = vmatprep.subr.mxu0 0.0
    %7217 = vmatpush1.xpose.msra.mxu0 0.0
    %7218 = vmatprep.mubr.f32.mxu0 0.0
    %v7219 = vand.u32 %v7148, 4294901760
    %v7220 = vsub.f32 %v7148, %v7219
    %v7221 = vand.u32 %v7220, 4294901760
    %v7222 = vsub.f32 %v7220, %v7221
    %v7223 = vand.u32 %v7222, 4294901760
    %7224 = vmatmul.mubr.f32.gmra.mrb[0].mxu0 %v7223
    %v7225 = vpop.f32.mrb[0].mxu0
    %v7226 = vadd.f32 0.0, %v7225
    %v7227 = vpop.f32.mrb[0].mxu0
    %7228 = vdwg.mxu0
    %7229 = vmatprep.subr.mxu0 0.0
    %v7230 = vand.u32 %v1175, 4294901760
    %v7231 = vsub.f32 %v1175, %v7230
    %v7232 = vand.u32 %v7231, 4294901760
    %v7233 = vsub.f32 %v7231, %v7232
    %v7234 = vand.u32 %v7233, 4294901760
    %7235 = vmatpush1.xpose.msra.mxu0 %v7234
    %7236 = vmatprep.subr.mxu0 0.0
    %v7237 = vand.u32 %v1178, 4294901760
    %v7238 = vsub.f32 %v1178, %v7237
    %v7239 = vand.u32 %v7238, 4294901760
    %v7240 = vsub.f32 %v7238, %v7239
    %v7241 = vand.u32 %v7240, 4294901760
    %7242 = vmatpush1.xpose.msra.mxu0 %v7241
    %7243 = vmatprep.subr.mxu0 0.0
    %v7244 = vand.u32 %v1181, 4294901760
    %v7245 = vsub.f32 %v1181, %v7244
    %v7246 = vand.u32 %v7245, 4294901760
    %v7247 = vsub.f32 %v7245, %v7246
    %v7248 = vand.u32 %v7247, 4294901760
    %7249 = vmatpush1.xpose.msra.mxu0 %v7248
    %7250 = vmatprep.subr.mxu0 0.0
    %v7251 = vand.u32 %v1184, 4294901760
    %v7252 = vsub.f32 %v1184, %v7251
    %v7253 = vand.u32 %v7252, 4294901760
    %v7254 = vsub.f32 %v7252, %v7253
    %v7255 = vand.u32 %v7254, 4294901760
    %7256 = vmatpush1.xpose.msra.mxu0 %v7255
    %7257 = vmatprep.subr.mxu0 0.0
    %7258 = vmatpush1.xpose.msra.mxu0 0.0
    %7259 = vmatprep.subr.mxu0 0.0
    %7260 = vmatpush1.xpose.msra.mxu0 0.0
    %7261 = vmatprep.subr.mxu0 0.0
    %7262 = vmatpush1.xpose.msra.mxu0 0.0
    %7263 = vmatprep.subr.mxu0 0.0
    %7264 = vmatpush1.xpose.msra.mxu0 0.0
    %7265 = vmatprep.subr.mxu0 0.0
    %7266 = vmatpush1.xpose.msra.mxu0 0.0
    %7267 = vmatprep.subr.mxu0 0.0
    %7268 = vmatpush1.xpose.msra.mxu0 0.0
    %7269 = vmatprep.subr.mxu0 0.0
    %7270 = vmatpush1.xpose.msra.mxu0 0.0
    %7271 = vmatprep.subr.mxu0 0.0
    %7272 = vmatpush1.xpose.msra.mxu0 0.0
    %7273 = vmatprep.subr.mxu0 0.0
    %7274 = vmatpush1.xpose.msra.mxu0 0.0
    %7275 = vmatprep.subr.mxu0 0.0
    %7276 = vmatpush1.xpose.msra.mxu0 0.0
    %7277 = vmatprep.subr.mxu0 0.0
    %7278 = vmatpush1.xpose.msra.mxu0 0.0
    %7279 = vmatprep.subr.mxu0 0.0
    %7280 = vmatpush1.xpose.msra.mxu0 0.0
    %7281 = vmatprep.subr.mxu0 0.0
    %7282 = vmatpush1.xpose.msra.mxu0 0.0
    %7283 = vmatprep.subr.mxu0 0.0
    %7284 = vmatpush1.xpose.msra.mxu0 0.0
    %7285 = vmatprep.subr.mxu0 0.0
    %7286 = vmatpush1.xpose.msra.mxu0 0.0
    %7287 = vmatprep.subr.mxu0 0.0
    %7288 = vmatpush1.xpose.msra.mxu0 0.0
    %7289 = vmatprep.subr.mxu0 0.0
    %7290 = vmatpush1.xpose.msra.mxu0 0.0
    %7291 = vmatprep.subr.mxu0 0.0
    %7292 = vmatpush1.xpose.msra.mxu0 0.0
    %7293 = vmatprep.subr.mxu0 0.0
    %7294 = vmatpush1.xpose.msra.mxu0 0.0
    %7295 = vmatprep.subr.mxu0 0.0
    %7296 = vmatpush1.xpose.msra.mxu0 0.0
    %7297 = vmatprep.subr.mxu0 0.0
    %7298 = vmatpush1.xpose.msra.mxu0 0.0
    %7299 = vmatprep.subr.mxu0 0.0
    %7300 = vmatpush1.xpose.msra.mxu0 0.0
    %7301 = vmatprep.subr.mxu0 0.0
    %7302 = vmatpush1.xpose.msra.mxu0 0.0
    %7303 = vmatprep.subr.mxu0 0.0
    %7304 = vmatpush1.xpose.msra.mxu0 0.0
    %7305 = vmatprep.subr.mxu0 0.0
    %7306 = vmatpush1.xpose.msra.mxu0 0.0
    %7307 = vmatprep.subr.mxu0 0.0
    %7308 = vmatpush1.xpose.msra.mxu0 0.0
    %7309 = vmatprep.subr.mxu0 0.0
    %7310 = vmatpush1.xpose.msra.mxu0 0.0
    %7311 = vmatprep.subr.mxu0 0.0
    %7312 = vmatpush1.xpose.msra.mxu0 0.0
    %7313 = vmatprep.mubr.f32.mxu0 0.0
    %v7314 = vand.u32 %v7148, 4294901760
    %7315 = vmatmul.mubr.f32.gmra.mrb[0].mxu0 %v7314
    %v7316 = vpop.f32.mrb[0].mxu0
    %v7317 = vadd.f32 %v7226, %v7316
    %v7318 = vpop.f32.mrb[0].mxu0
    %7319 = vdwg.mxu0
    %7320 = vmatprep.subr.mxu0 0.0
    %v7321 = vand.u32 %v1175, 4294901760
    %v7322 = vsub.f32 %v1175, %v7321
    %7323 = vmatpush1.xpose.msra.mxu0 %v7322
    %7324 = vmatprep.subr.mxu0 0.0
    %v7325 = vand.u32 %v1178, 4294901760
    %v7326 = vsub.f32 %v1178, %v7325
    %7327 = vmatpush1.xpose.msra.mxu0 %v7326
    %7328 = vmatprep.subr.mxu0 0.0
    %v7329 = vand.u32 %v1181, 4294901760
    %v7330 = vsub.f32 %v1181, %v7329
    %7331 = vmatpush1.xpose.msra.mxu0 %v7330
    %7332 = vmatprep.subr.mxu0 0.0
    %v7333 = vand.u32 %v1184, 4294901760
    %v7334 = vsub.f32 %v1184, %v7333
    %7335 = vmatpush1.xpose.msra.mxu0 %v7334
    %7336 = vmatprep.subr.mxu0 0.0
    %7337 = vmatpush1.xpose.msra.mxu0 0.0
    %7338 = vmatprep.subr.mxu0 0.0
    %7339 = vmatpush1.xpose.msra.mxu0 0.0
    %7340 = vmatprep.subr.mxu0 0.0
    %7341 = vmatpush1.xpose.msra.mxu0 0.0
    %7342 = vmatprep.subr.mxu0 0.0
    %7343 = vmatpush1.xpose.msra.mxu0 0.0
    %7344 = vmatprep.subr.mxu0 0.0
    %7345 = vmatpush1.xpose.msra.mxu0 0.0
    %7346 = vmatprep.subr.mxu0 0.0
    %7347 = vmatpush1.xpose.msra.mxu0 0.0
    %7348 = vmatprep.subr.mxu0 0.0
    %7349 = vmatpush1.xpose.msra.mxu0 0.0
    %7350 = vmatprep.subr.mxu0 0.0
    %7351 = vmatpush1.xpose.msra.mxu0 0.0
    %7352 = vmatprep.subr.mxu0 0.0
    %7353 = vmatpush1.xpose.msra.mxu0 0.0
    %7354 = vmatprep.subr.mxu0 0.0
    %7355 = vmatpush1.xpose.msra.mxu0 0.0
    %7356 = vmatprep.subr.mxu0 0.0
    %7357 = vmatpush1.xpose.msra.mxu0 0.0
    %7358 = vmatprep.subr.mxu0 0.0
    %7359 = vmatpush1.xpose.msra.mxu0 0.0
    %7360 = vmatprep.subr.mxu0 0.0
    %7361 = vmatpush1.xpose.msra.mxu0 0.0
    %7362 = vmatprep.subr.mxu0 0.0
    %7363 = vmatpush1.xpose.msra.mxu0 0.0
    %7364 = vmatprep.subr.mxu0 0.0
    %7365 = vmatpush1.xpose.msra.mxu0 0.0
    %7366 = vmatprep.subr.mxu0 0.0
    %7367 = vmatpush1.xpose.msra.mxu0 0.0
    %7368 = vmatprep.subr.mxu0 0.0
    %7369 = vmatpush1.xpose.msra.mxu0 0.0
    %7370 = vmatprep.subr.mxu0 0.0
    %7371 = vmatpush1.xpose.msra.mxu0 0.0
    %7372 = vmatprep.subr.mxu0 0.0
    %7373 = vmatpush1.xpose.msra.mxu0 0.0
    %7374 = vmatprep.subr.mxu0 0.0
    %7375 = vmatpush1.xpose.msra.mxu0 0.0
    %7376 = vmatprep.subr.mxu0 0.0
    %7377 = vmatpush1.xpose.msra.mxu0 0.0
    %7378 = vmatprep.subr.mxu0 0.0
    %7379 = vmatpush1.xpose.msra.mxu0 0.0
    %7380 = vmatprep.subr.mxu0 0.0
    %7381 = vmatpush1.xpose.msra.mxu0 0.0
    %7382 = vmatprep.subr.mxu0 0.0
    %7383 = vmatpush1.xpose.msra.mxu0 0.0
    %7384 = vmatprep.subr.mxu0 0.0
    %7385 = vmatpush1.xpose.msra.mxu0 0.0
    %7386 = vmatprep.subr.mxu0 0.0
    %7387 = vmatpush1.xpose.msra.mxu0 0.0
    %7388 = vmatprep.subr.mxu0 0.0
    %7389 = vmatpush1.xpose.msra.mxu0 0.0
    %7390 = vmatprep.subr.mxu0 0.0
    %7391 = vmatpush1.xpose.msra.mxu0 0.0
    %7392 = vmatprep.mubr.f32.mxu0 0.0
    %v7393 = vand.u32 %v7148, 4294901760
    %v7394 = vsub.f32 %v7148, %v7393
    %7395 = vmatmul.mubr.f32.gmra.mrb[0].mxu0 %v7394
    %v7396 = vpop.f32.mrb[0].mxu0
    %v7397 = vadd.f32 %v7317, %v7396
    %v7398 = vpop.f32.mrb[0].mxu0
    %7399 = vdwg.mxu0
    %7400 = vmatprep.subr.mxu0 0.0
    %v7401 = vand.u32 %v1175, 4294901760
    %7402 = vmatpush1.xpose.msra.mxu0 %v7401
    %7403 = vmatprep.subr.mxu0 0.0
    %v7404 = vand.u32 %v1178, 4294901760
    %7405 = vmatpush1.xpose.msra.mxu0 %v7404
    %7406 = vmatprep.subr.mxu0 0.0
    %v7407 = vand.u32 %v1181, 4294901760
    %7408 = vmatpush1.xpose.msra.mxu0 %v7407
    %7409 = vmatprep.subr.mxu0 0.0
    %v7410 = vand.u32 %v1184, 4294901760
    %7411 = vmatpush1.xpose.msra.mxu0 %v7410
    %7412 = vmatprep.subr.mxu0 0.0
    %7413 = vmatpush1.xpose.msra.mxu0 0.0
    %7414 = vmatprep.subr.mxu0 0.0
    %7415 = vmatpush1.xpose.msra.mxu0 0.0
    %7416 = vmatprep.subr.mxu0 0.0
    %7417 = vmatpush1.xpose.msra.mxu0 0.0
    %7418 = vmatprep.subr.mxu0 0.0
    %7419 = vmatpush1.xpose.msra.mxu0 0.0
    %7420 = vmatprep.subr.mxu0 0.0
    %7421 = vmatpush1.xpose.msra.mxu0 0.0
    %7422 = vmatprep.subr.mxu0 0.0
    %7423 = vmatpush1.xpose.msra.mxu0 0.0
    %7424 = vmatprep.subr.mxu0 0.0
    %7425 = vmatpush1.xpose.msra.mxu0 0.0
    %7426 = vmatprep.subr.mxu0 0.0
    %7427 = vmatpush1.xpose.msra.mxu0 0.0
    %7428 = vmatprep.subr.mxu0 0.0
    %7429 = vmatpush1.xpose.msra.mxu0 0.0
    %7430 = vmatprep.subr.mxu0 0.0
    %7431 = vmatpush1.xpose.msra.mxu0 0.0
    %7432 = vmatprep.subr.mxu0 0.0
    %7433 = vmatpush1.xpose.msra.mxu0 0.0
    %7434 = vmatprep.subr.mxu0 0.0
    %7435 = vmatpush1.xpose.msra.mxu0 0.0
    %7436 = vmatprep.subr.mxu0 0.0
    %7437 = vmatpush1.xpose.msra.mxu0 0.0
    %7438 = vmatprep.subr.mxu0 0.0
    %7439 = vmatpush1.xpose.msra.mxu0 0.0
    %7440 = vmatprep.subr.mxu0 0.0
    %7441 = vmatpush1.xpose.msra.mxu0 0.0
    %7442 = vmatprep.subr.mxu0 0.0
    %7443 = vmatpush1.xpose.msra.mxu0 0.0
    %7444 = vmatprep.subr.mxu0 0.0
    %7445 = vmatpush1.xpose.msra.mxu0 0.0
    %7446 = vmatprep.subr.mxu0 0.0
    %7447 = vmatpush1.xpose.msra.mxu0 0.0
    %7448 = vmatprep.subr.mxu0 0.0
    %7449 = vmatpush1.xpose.msra.mxu0 0.0
    %7450 = vmatprep.subr.mxu0 0.0
    %7451 = vmatpush1.xpose.msra.mxu0 0.0
    %7452 = vmatprep.subr.mxu0 0.0
    %7453 = vmatpush1.xpose.msra.mxu0 0.0
    %7454 = vmatprep.subr.mxu0 0.0
    %7455 = vmatpush1.xpose.msra.mxu0 0.0
    %7456 = vmatprep.subr.mxu0 0.0
    %7457 = vmatpush1.xpose.msra.mxu0 0.0
    %7458 = vmatprep.subr.mxu0 0.0
    %7459 = vmatpush1.xpose.msra.mxu0 0.0
    %7460 = vmatprep.subr.mxu0 0.0
    %7461 = vmatpush1.xpose.msra.mxu0 0.0
    %7462 = vmatprep.subr.mxu0 0.0
    %7463 = vmatpush1.xpose.msra.mxu0 0.0
    %7464 = vmatprep.subr.mxu0 0.0
    %7465 = vmatpush1.xpose.msra.mxu0 0.0
    %7466 = vmatprep.subr.mxu0 0.0
    %7467 = vmatpush1.xpose.msra.mxu0 0.0
    %7468 = vmatprep.mubr.f32.mxu0 0.0
    %v7469 = vand.u32 %v7148, 4294901760
    %v7470 = vsub.f32 %v7148, %v7469
    %v7471 = vand.u32 %v7470, 4294901760
    %7472 = vmatmul.mubr.f32.gmra.mrb[0].mxu0 %v7471
    %v7473 = vpop.f32.mrb[0].mxu0
    %v7474 = vadd.f32 %v7397, %v7473
    %v7475 = vpop.f32.mrb[0].mxu0
    %7476 = vdwg.mxu0
    %7477 = vmatprep.subr.mxu0 0.0
    %v7478 = vand.u32 %v1175, 4294901760
    %v7479 = vsub.f32 %v1175, %v7478
    %v7480 = vand.u32 %v7479, 4294901760
    %7481 = vmatpush1.xpose.msra.mxu0 %v7480
    %7482 = vmatprep.subr.mxu0 0.0
    %v7483 = vand.u32 %v1178, 4294901760
    %v7484 = vsub.f32 %v1178, %v7483
    %v7485 = vand.u32 %v7484, 4294901760
    %7486 = vmatpush1.xpose.msra.mxu0 %v7485
    %7487 = vmatprep.subr.mxu0 0.0
    %v7488 = vand.u32 %v1181, 4294901760
    %v7489 = vsub.f32 %v1181, %v7488
    %v7490 = vand.u32 %v7489, 4294901760
    %7491 = vmatpush1.xpose.msra.mxu0 %v7490
    %7492 = vmatprep.subr.mxu0 0.0
    %v7493 = vand.u32 %v1184, 4294901760
    %v7494 = vsub.f32 %v1184, %v7493
    %v7495 = vand.u32 %v7494, 4294901760
    %7496 = vmatpush1.xpose.msra.mxu0 %v7495
    %7497 = vmatprep.subr.mxu0 0.0
    %7498 = vmatpush1.xpose.msra.mxu0 0.0
    %7499 = vmatprep.subr.mxu0 0.0
    %7500 = vmatpush1.xpose.msra.mxu0 0.0
    %7501 = vmatprep.subr.mxu0 0.0
    %7502 = vmatpush1.xpose.msra.mxu0 0.0
    %7503 = vmatprep.subr.mxu0 0.0
    %7504 = vmatpush1.xpose.msra.mxu0 0.0
    %7505 = vmatprep.subr.mxu0 0.0
    %7506 = vmatpush1.xpose.msra.mxu0 0.0
    %7507 = vmatprep.subr.mxu0 0.0
    %7508 = vmatpush1.xpose.msra.mxu0 0.0
    %7509 = vmatprep.subr.mxu0 0.0
    %7510 = vmatpush1.xpose.msra.mxu0 0.0
    %7511 = vmatprep.subr.mxu0 0.0
    %7512 = vmatpush1.xpose.msra.mxu0 0.0
    %7513 = vmatprep.subr.mxu0 0.0
    %7514 = vmatpush1.xpose.msra.mxu0 0.0
    %7515 = vmatprep.subr.mxu0 0.0
    %7516 = vmatpush1.xpose.msra.mxu0 0.0
    %7517 = vmatprep.subr.mxu0 0.0
    %7518 = vmatpush1.xpose.msra.mxu0 0.0
    %7519 = vmatprep.subr.mxu0 0.0
    %7520 = vmatpush1.xpose.msra.mxu0 0.0
    %7521 = vmatprep.subr.mxu0 0.0
    %7522 = vmatpush1.xpose.msra.mxu0 0.0
    %7523 = vmatprep.subr.mxu0 0.0
    %7524 = vmatpush1.xpose.msra.mxu0 0.0
    %7525 = vmatprep.subr.mxu0 0.0
    %7526 = vmatpush1.xpose.msra.mxu0 0.0
    %7527 = vmatprep.subr.mxu0 0.0
    %7528 = vmatpush1.xpose.msra.mxu0 0.0
    %7529 = vmatprep.subr.mxu0 0.0
    %7530 = vmatpush1.xpose.msra.mxu0 0.0
    %7531 = vmatprep.subr.mxu0 0.0
    %7532 = vmatpush1.xpose.msra.mxu0 0.0
    %7533 = vmatprep.subr.mxu0 0.0
    %7534 = vmatpush1.xpose.msra.mxu0 0.0
    %7535 = vmatprep.subr.mxu0 0.0
    %7536 = vmatpush1.xpose.msra.mxu0 0.0
    %7537 = vmatprep.subr.mxu0 0.0
    %7538 = vmatpush1.xpose.msra.mxu0 0.0
    %7539 = vmatprep.subr.mxu0 0.0
    %7540 = vmatpush1.xpose.msra.mxu0 0.0
    %7541 = vmatprep.subr.mxu0 0.0
    %7542 = vmatpush1.xpose.msra.mxu0 0.0
    %7543 = vmatprep.subr.mxu0 0.0
    %7544 = vmatpush1.xpose.msra.mxu0 0.0
    %7545 = vmatprep.subr.mxu0 0.0
    %7546 = vmatpush1.xpose.msra.mxu0 0.0
    %7547 = vmatprep.subr.mxu0 0.0
    %7548 = vmatpush1.xpose.msra.mxu0 0.0
    %7549 = vmatprep.subr.mxu0 0.0
    %7550 = vmatpush1.xpose.msra.mxu0 0.0
    %7551 = vmatprep.subr.mxu0 0.0
    %7552 = vmatpush1.xpose.msra.mxu0 0.0
    %7553 = vmatprep.mubr.f32.mxu0 0.0
    %v7554 = vand.u32 %v7148, 4294901760
    %7555 = vmatmul.mubr.f32.gmra.mrb[0].mxu0 %v7554
    %v7556 = vpop.f32.mrb[0].mxu0
    %v7557 = vadd.f32 %v7474, %v7556
    %v7558 = vpop.f32.mrb[0].mxu0
    %7559 = vdwg.mxu0
    %7560 = vmatprep.subr.mxu0 0.0
    %v7561 = vand.u32 %v1175, 4294901760
    %7562 = vmatpush1.xpose.msra.mxu0 %v7561
    %7563 = vmatprep.subr.mxu0 0.0
    %v7564 = vand.u32 %v1178, 4294901760
    %7565 = vmatpush1.xpose.msra.mxu0 %v7564
    %7566 = vmatprep.subr.mxu0 0.0
    %v7567 = vand.u32 %v1181, 4294901760
    %7568 = vmatpush1.xpose.msra.mxu0 %v7567
    %7569 = vmatprep.subr.mxu0 0.0
    %v7570 = vand.u32 %v1184, 4294901760
    %7571 = vmatpush1.xpose.msra.mxu0 %v7570
    %7572 = vmatprep.subr.mxu0 0.0
    %7573 = vmatpush1.xpose.msra.mxu0 0.0
    %7574 = vmatprep.subr.mxu0 0.0
    %7575 = vmatpush1.xpose.msra.mxu0 0.0
    %7576 = vmatprep.subr.mxu0 0.0
    %7577 = vmatpush1.xpose.msra.mxu0 0.0
    %7578 = vmatprep.subr.mxu0 0.0
    %7579 = vmatpush1.xpose.msra.mxu0 0.0
    %7580 = vmatprep.subr.mxu0 0.0
    %7581 = vmatpush1.xpose.msra.mxu0 0.0
    %7582 = vmatprep.subr.mxu0 0.0
    %7583 = vmatpush1.xpose.msra.mxu0 0.0
    %7584 = vmatprep.subr.mxu0 0.0
    %7585 = vmatpush1.xpose.msra.mxu0 0.0
    %7586 = vmatprep.subr.mxu0 0.0
    %7587 = vmatpush1.xpose.msra.mxu0 0.0
    %7588 = vmatprep.subr.mxu0 0.0
    %7589 = vmatpush1.xpose.msra.mxu0 0.0
    %7590 = vmatprep.subr.mxu0 0.0
    %7591 = vmatpush1.xpose.msra.mxu0 0.0
    %7592 = vmatprep.subr.mxu0 0.0
    %7593 = vmatpush1.xpose.msra.mxu0 0.0
    %7594 = vmatprep.subr.mxu0 0.0
    %7595 = vmatpush1.xpose.msra.mxu0 0.0
    %7596 = vmatprep.subr.mxu0 0.0
    %7597 = vmatpush1.xpose.msra.mxu0 0.0
    %7598 = vmatprep.subr.mxu0 0.0
    %7599 = vmatpush1.xpose.msra.mxu0 0.0
    %7600 = vmatprep.subr.mxu0 0.0
    %7601 = vmatpush1.xpose.msra.mxu0 0.0
    %7602 = vmatprep.subr.mxu0 0.0
    %7603 = vmatpush1.xpose.msra.mxu0 0.0
    %7604 = vmatprep.subr.mxu0 0.0
    %7605 = vmatpush1.xpose.msra.mxu0 0.0
    %7606 = vmatprep.subr.mxu0 0.0
    %7607 = vmatpush1.xpose.msra.mxu0 0.0
    %7608 = vmatprep.subr.mxu0 0.0
    %7609 = vmatpush1.xpose.msra.mxu0 0.0
    %7610 = vmatprep.subr.mxu0 0.0
    %7611 = vmatpush1.xpose.msra.mxu0 0.0
    %7612 = vmatprep.subr.mxu0 0.0
    %7613 = vmatpush1.xpose.msra.mxu0 0.0
    %7614 = vmatprep.subr.mxu0 0.0
    %7615 = vmatpush1.xpose.msra.mxu0 0.0
    %7616 = vmatprep.subr.mxu0 0.0
    %7617 = vmatpush1.xpose.msra.mxu0 0.0
    %7618 = vmatprep.subr.mxu0 0.0
    %7619 = vmatpush1.xpose.msra.mxu0 0.0
    %7620 = vmatprep.subr.mxu0 0.0
    %7621 = vmatpush1.xpose.msra.mxu0 0.0
    %7622 = vmatprep.subr.mxu0 0.0
    %7623 = vmatpush1.xpose.msra.mxu0 0.0
    %7624 = vmatprep.subr.mxu0 0.0
    %7625 = vmatpush1.xpose.msra.mxu0 0.0
    %7626 = vmatprep.subr.mxu0 0.0
    %7627 = vmatpush1.xpose.msra.mxu0 0.0
    %7628 = vmatprep.mubr.f32.mxu0 0.0
    %v7629 = vand.u32 %v7148, 4294901760
    %7630 = vmatmul.mubr.f32.gmra.mrb[0].mxu0 %v7629
    %v7631 = vpop.f32.mrb[0].mxu0
    %v7632 = vadd.f32 %v7557, %v7631
    %v7633 = vpop.f32.mrb[0].mxu0
    %7634 = vdwg.mxu0
    %v7635 = vsel %vm19, %v7632, -inf
    %7636 = vmax.xlane.f32.xlu0 %v7635
    %v7637 = vpop.xlane.xlu0 %7636
    %v7638 = vmax.f32 %v7637, 1e-30
    %v7639 = vrcp.pop %v7638
    %v7640 = vmul.f32 %v7632, %v7639
    %7641 = vst.msk [vmem:[#allocation5] sm:$0x1] %vm19, %v7640
    %v7642 = vld [vmem:[#allocation2] sm:$0xff]
    %v7643 = vld [vmem:[#allocation3] sm:$0xff]
    %v7644 = vld [vmem:[#allocation4] sm:$0xff]
    %v7645 = vld [vmem:[#allocation5] sm:$0xff]
    %v7646 = vmul.f32 %v7644, %v7645
    %v7647 = vsel %vm37, %v7646, 0.0
    %7648 = vadd.xlane.f32.xlu0 %v7647
    %v7649 = vpop.xlane.xlu0 %7648
    %v7650 = vmax.f32 %v7649, 1e-30
    %v7651 = vrcp.pop %v7650
    %v7652 = vmul.f32 %v7646, %v7651
    %v7653 = vmul.f32 %v7652, %v32
    %v7654 = vsel %vm19, %v7653, 0.0
    %7655 = vadd.xlane.f32.xlu0 %v7654
    %v7656 = vpop.xlane.xlu0 %7655
    %v7657 = vrot.slane %v7656, 4
    %v7658 = vadd.f32 %v7656, %v7657
    %v7659 = vrot.slane %v7658, 2
    %v7660 = vadd.f32 %v7658, %v7659
    %v7661 = vrot.slane %v7660, 1
    %v7662 = vadd.f32 %v7660, %v7661
    %s7663 = vtos %v7662
    %v7664 = vstv %s7663
    %v7665 = vmul.f32 %v7652, %v7642
    %v7666 = vsel %vm37, %v7665, 0.0
    %7667 = vadd.xlane.f32.xlu0 %v7666
    %v7668 = vpop.xlane.xlu0 %7667
    %v7669 = vrot.slane %v7668, 4
    %v7670 = vadd.f32 %v7668, %v7669
    %v7671 = vrot.slane %v7670, 2
    %v7672 = vadd.f32 %v7670, %v7671
    %v7673 = vrot.slane %v7672, 1
    %v7674 = vadd.f32 %v7672, %v7673
    %s7675 = vtos %v7674
    %v7676 = vstv %s7675
    %v7677 = vmul.f32 %v148, %v86
    %v7678 = vmul.f32 %v150, %v87
    %v7679 = vmul.f32 %v152, %v88
    %v7680 = vmul.f32 %v154, %v89
    %v7681 = vmul.f32 %v7643, %v7645
    %vm7682 = vcmask 261121
    %v7683 = vsel %vm7682, %v7681, -inf
    %7684 = vmax.xlane.f32.xlu0 %v7683
    %v7685 = vpop.xlane.xlu0 %7684
    %v7686 = vmax.f32 %v7685, 1e-30
    %v7687 = vrcp.pop %v7686
    %v7688 = vmul.f32 %v7681, %v7687
    %v7690 = vsel %vm37, %v7644, 0
    %7692 = vmatprep.subr.mxu0 0.0
    %v7693 = vand.u32 %v148, 4294901760
    %7694 = vmatpush1.msra.mxu0 %v7693
    %7695 = vmatprep.subr.mxu0 0.0
    %v7696 = vand.u32 %v150, 4294901760
    %7697 = vmatpush1.msra.mxu0 %v7696
    %7698 = vmatprep.subr.mxu0 0.0
    %v7699 = vand.u32 %v152, 4294901760
    %7700 = vmatpush1.msra.mxu0 %v7699
    %7701 = vmatprep.subr.mxu0 0.0
    %v7702 = vand.u32 %v154, 4294901760
    %7703 = vmatpush1.msra.mxu0 %v7702
    %7704 = vmatprep.subr.mxu0 0.0
    %7705 = vmatpush1.msra.mxu0 0.0
    %7706 = vmatprep.subr.mxu0 0.0
    %7707 = vmatpush1.msra.mxu0 0.0
    %7708 = vmatprep.subr.mxu0 0.0
    %7709 = vmatpush1.msra.mxu0 0.0
    %7710 = vmatprep.subr.mxu0 0.0
    %7711 = vmatpush1.msra.mxu0 0.0
    %7712 = vmatprep.subr.mxu0 0.0
    %7713 = vmatpush1.msra.mxu0 0.0
    %7714 = vmatprep.subr.mxu0 0.0
    %7715 = vmatpush1.msra.mxu0 0.0
    %7716 = vmatprep.subr.mxu0 0.0
    %7717 = vmatpush1.msra.mxu0 0.0
    %7718 = vmatprep.subr.mxu0 0.0
    %7719 = vmatpush1.msra.mxu0 0.0
    %7720 = vmatprep.subr.mxu0 0.0
    %7721 = vmatpush1.msra.mxu0 0.0
    %7722 = vmatprep.subr.mxu0 0.0
    %7723 = vmatpush1.msra.mxu0 0.0
    %7724 = vmatprep.subr.mxu0 0.0
    %7725 = vmatpush1.msra.mxu0 0.0
    %7726 = vmatprep.subr.mxu0 0.0
    %7727 = vmatpush1.msra.mxu0 0.0
    %7728 = vmatprep.subr.mxu0 0.0
    %7729 = vmatpush1.msra.mxu0 0.0
    %7730 = vmatprep.subr.mxu0 0.0
    %7731 = vmatpush1.msra.mxu0 0.0
    %7732 = vmatprep.subr.mxu0 0.0
    %7733 = vmatpush1.msra.mxu0 0.0
    %7734 = vmatprep.subr.mxu0 0.0
    %7735 = vmatpush1.msra.mxu0 0.0
    %7736 = vmatprep.subr.mxu0 0.0
    %7737 = vmatpush1.msra.mxu0 0.0
    %7738 = vmatprep.subr.mxu0 0.0
    %7739 = vmatpush1.msra.mxu0 0.0
    %7740 = vmatprep.subr.mxu0 0.0
    %7741 = vmatpush1.msra.mxu0 0.0
    %7742 = vmatprep.subr.mxu0 0.0
    %7743 = vmatpush1.msra.mxu0 0.0
    %7744 = vmatprep.subr.mxu0 0.0
    %7745 = vmatpush1.msra.mxu0 0.0
    %7746 = vmatprep.subr.mxu0 0.0
    %7747 = vmatpush1.msra.mxu0 0.0
    %7748 = vmatprep.subr.mxu0 0.0
    %7749 = vmatpush1.msra.mxu0 0.0
    %7750 = vmatprep.subr.mxu0 0.0
    %7751 = vmatpush1.msra.mxu0 0.0
    %7752 = vmatprep.subr.mxu0 0.0
    %7753 = vmatpush1.msra.mxu0 0.0
    %7754 = vmatprep.subr.mxu0 0.0
    %7755 = vmatpush1.msra.mxu0 0.0
    %7756 = vmatprep.subr.mxu0 0.0
    %7757 = vmatpush1.msra.mxu0 0.0
    %7758 = vmatprep.subr.mxu0 0.0
    %7759 = vmatpush1.msra.mxu0 0.0
    %7760 = vmatprep.mubr.f32.mxu0 0.0
    %v7761 = vand.u32 %v7690, 4294901760
    %v7762 = vsub.f32 %v7690, %v7761
    %v7763 = vand.u32 %v7762, 4294901760
    %v7764 = vsub.f32 %v7762, %v7763
    %v7765 = vand.u32 %v7764, 4294901760
    %7766 = vmatmul.mubr.f32.gmra.mrb[0].mxu0 %v7765
    %v7767 = vpop.f32.mrb[0].mxu0
    %v7768 = vadd.f32 0.0, %v7767
    %v7769 = vpop.f32.mrb[0].mxu0
    %7770 = vdwg.mxu0
    %7771 = vmatprep.subr.mxu0 0.0
    %v7772 = vand.u32 %v148, 4294901760
    %v7773 = vsub.f32 %v148, %v7772
    %v7774 = vand.u32 %v7773, 4294901760
    %v7775 = vsub.f32 %v7773, %v7774
    %v7776 = vand.u32 %v7775, 4294901760
    %7777 = vmatpush1.msra.mxu0 %v7776
    %7778 = vmatprep.subr.mxu0 0.0
    %v7779 = vand.u32 %v150, 4294901760
    %v7780 = vsub.f32 %v150, %v7779
    %v7781 = vand.u32 %v7780, 4294901760
    %v7782 = vsub.f32 %v7780, %v7781
    %v7783 = vand.u32 %v7782, 4294901760
    %7784 = vmatpush1.msra.mxu0 %v7783
    %7785 = vmatprep.subr.mxu0 0.0
    %v7786 = vand.u32 %v152, 4294901760
    %v7787 = vsub.f32 %v152, %v7786
    %v7788 = vand.u32 %v7787, 4294901760
    %v7789 = vsub.f32 %v7787, %v7788
    %v7790 = vand.u32 %v7789, 4294901760
    %7791 = vmatpush1.msra.mxu0 %v7790
    %7792 = vmatprep.subr.mxu0 0.0
    %v7793 = vand.u32 %v154, 4294901760
    %v7794 = vsub.f32 %v154, %v7793
    %v7795 = vand.u32 %v7794, 4294901760
    %v7796 = vsub.f32 %v7794, %v7795
    %v7797 = vand.u32 %v7796, 4294901760
    %7798 = vmatpush1.msra.mxu0 %v7797
    %7799 = vmatprep.subr.mxu0 0.0
    %7800 = vmatpush1.msra.mxu0 0.0
    %7801 = vmatprep.subr.mxu0 0.0
    %7802 = vmatpush1.msra.mxu0 0.0
    %7803 = vmatprep.subr.mxu0 0.0
    %7804 = vmatpush1.msra.mxu0 0.0
    %7805 = vmatprep.subr.mxu0 0.0
    %7806 = vmatpush1.msra.mxu0 0.0
    %7807 = vmatprep.subr.mxu0 0.0
    %7808 = vmatpush1.msra.mxu0 0.0
    %7809 = vmatprep.subr.mxu0 0.0
    %7810 = vmatpush1.msra.mxu0 0.0
    %7811 = vmatprep.subr.mxu0 0.0
    %7812 = vmatpush1.msra.mxu0 0.0
    %7813 = vmatprep.subr.mxu0 0.0
    %7814 = vmatpush1.msra.mxu0 0.0
    %7815 = vmatprep.subr.mxu0 0.0
    %7816 = vmatpush1.msra.mxu0 0.0
    %7817 = vmatprep.subr.mxu0 0.0
    %7818 = vmatpush1.msra.mxu0 0.0
    %7819 = vmatprep.subr.mxu0 0.0
    %7820 = vmatpush1.msra.mxu0 0.0
    %7821 = vmatprep.subr.mxu0 0.0
    %7822 = vmatpush1.msra.mxu0 0.0
    %7823 = vmatprep.subr.mxu0 0.0
    %7824 = vmatpush1.msra.mxu0 0.0
    %7825 = vmatprep.subr.mxu0 0.0
    %7826 = vmatpush1.msra.mxu0 0.0
    %7827 = vmatprep.subr.mxu0 0.0
    %7828 = vmatpush1.msra.mxu0 0.0
    %7829 = vmatprep.subr.mxu0 0.0
    %7830 = vmatpush1.msra.mxu0 0.0
    %7831 = vmatprep.subr.mxu0 0.0
    %7832 = vmatpush1.msra.mxu0 0.0
    %7833 = vmatprep.subr.mxu0 0.0
    %7834 = vmatpush1.msra.mxu0 0.0
    %7835 = vmatprep.subr.mxu0 0.0
    %7836 = vmatpush1.msra.mxu0 0.0
    %7837 = vmatprep.subr.mxu0 0.0
    %7838 = vmatpush1.msra.mxu0 0.0
    %7839 = vmatprep.subr.mxu0 0.0
    %7840 = vmatpush1.msra.mxu0 0.0
    %7841 = vmatprep.subr.mxu0 0.0
    %7842 = vmatpush1.msra.mxu0 0.0
    %7843 = vmatprep.subr.mxu0 0.0
    %7844 = vmatpush1.msra.mxu0 0.0
    %7845 = vmatprep.subr.mxu0 0.0
    %7846 = vmatpush1.msra.mxu0 0.0
    %7847 = vmatprep.subr.mxu0 0.0
    %7848 = vmatpush1.msra.mxu0 0.0
    %7849 = vmatprep.subr.mxu0 0.0
    %7850 = vmatpush1.msra.mxu0 0.0
    %7851 = vmatprep.subr.mxu0 0.0
    %7852 = vmatpush1.msra.mxu0 0.0
    %7853 = vmatprep.subr.mxu0 0.0
    %7854 = vmatpush1.msra.mxu0 0.0
    %7855 = vmatprep.mubr.f32.mxu0 0.0
    %v7856 = vand.u32 %v7690, 4294901760
    %7857 = vmatmul.mubr.f32.gmra.mrb[0].mxu0 %v7856
    %v7858 = vpop.f32.mrb[0].mxu0
    %v7859 = vadd.f32 %v7768, %v7858
    %v7860 = vpop.f32.mrb[0].mxu0
    %7861 = vdwg.mxu0
    %7862 = vmatprep.subr.mxu0 0.0
    %v7863 = vand.u32 %v148, 4294901760
    %v7864 = vsub.f32 %v148, %v7863
    %7865 = vmatpush1.msra.mxu0 %v7864
    %7866 = vmatprep.subr.mxu0 0.0
    %v7867 = vand.u32 %v150, 4294901760
    %v7868 = vsub.f32 %v150, %v7867
    %7869 = vmatpush1.msra.mxu0 %v7868
    %7870 = vmatprep.subr.mxu0 0.0
    %v7871 = vand.u32 %v152, 4294901760
    %v7872 = vsub.f32 %v152, %v7871
    %7873 = vmatpush1.msra.mxu0 %v7872
    %7874 = vmatprep.subr.mxu0 0.0
    %v7875 = vand.u32 %v154, 4294901760
    %v7876 = vsub.f32 %v154, %v7875
    %7877 = vmatpush1.msra.mxu0 %v7876
    %7878 = vmatprep.subr.mxu0 0.0
    %7879 = vmatpush1.msra.mxu0 0.0
    %7880 = vmatprep.subr.mxu0 0.0
    %7881 = vmatpush1.msra.mxu0 0.0
    %7882 = vmatprep.subr.mxu0 0.0
    %7883 = vmatpush1.msra.mxu0 0.0
    %7884 = vmatprep.subr.mxu0 0.0
    %7885 = vmatpush1.msra.mxu0 0.0
    %7886 = vmatprep.subr.mxu0 0.0
    %7887 = vmatpush1.msra.mxu0 0.0
    %7888 = vmatprep.subr.mxu0 0.0
    %7889 = vmatpush1.msra.mxu0 0.0
    %7890 = vmatprep.subr.mxu0 0.0
    %7891 = vmatpush1.msra.mxu0 0.0
    %7892 = vmatprep.subr.mxu0 0.0
    %7893 = vmatpush1.msra.mxu0 0.0
    %7894 = vmatprep.subr.mxu0 0.0
    %7895 = vmatpush1.msra.mxu0 0.0
    %7896 = vmatprep.subr.mxu0 0.0
    %7897 = vmatpush1.msra.mxu0 0.0
    %7898 = vmatprep.subr.mxu0 0.0
    %7899 = vmatpush1.msra.mxu0 0.0
    %7900 = vmatprep.subr.mxu0 0.0
    %7901 = vmatpush1.msra.mxu0 0.0
    %7902 = vmatprep.subr.mxu0 0.0
    %7903 = vmatpush1.msra.mxu0 0.0
    %7904 = vmatprep.subr.mxu0 0.0
    %7905 = vmatpush1.msra.mxu0 0.0
    %7906 = vmatprep.subr.mxu0 0.0
    %7907 = vmatpush1.msra.mxu0 0.0
    %7908 = vmatprep.subr.mxu0 0.0
    %7909 = vmatpush1.msra.mxu0 0.0
    %7910 = vmatprep.subr.mxu0 0.0
    %7911 = vmatpush1.msra.mxu0 0.0
    %7912 = vmatprep.subr.mxu0 0.0
    %7913 = vmatpush1.msra.mxu0 0.0
    %7914 = vmatprep.subr.mxu0 0.0
    %7915 = vmatpush1.msra.mxu0 0.0
    %7916 = vmatprep.subr.mxu0 0.0
    %7917 = vmatpush1.msra.mxu0 0.0
    %7918 = vmatprep.subr.mxu0 0.0
    %7919 = vmatpush1.msra.mxu0 0.0
    %7920 = vmatprep.subr.mxu0 0.0
    %7921 = vmatpush1.msra.mxu0 0.0
    %7922 = vmatprep.subr.mxu0 0.0
    %7923 = vmatpush1.msra.mxu0 0.0
    %7924 = vmatprep.subr.mxu0 0.0
    %7925 = vmatpush1.msra.mxu0 0.0
    %7926 = vmatprep.subr.mxu0 0.0
    %7927 = vmatpush1.msra.mxu0 0.0
    %7928 = vmatprep.subr.mxu0 0.0
    %7929 = vmatpush1.msra.mxu0 0.0
    %7930 = vmatprep.subr.mxu0 0.0
    %7931 = vmatpush1.msra.mxu0 0.0
    %7932 = vmatprep.subr.mxu0 0.0
    %7933 = vmatpush1.msra.mxu0 0.0
    %7934 = vmatprep.mubr.f32.mxu0 0.0
    %v7935 = vand.u32 %v7690, 4294901760
    %v7936 = vsub.f32 %v7690, %v7935
    %7937 = vmatmul.mubr.f32.gmra.mrb[0].mxu0 %v7936
    %v7938 = vpop.f32.mrb[0].mxu0
    %v7939 = vadd.f32 %v7859, %v7938
    %v7940 = vpop.f32.mrb[0].mxu0
    %7941 = vdwg.mxu0
    %7942 = vmatprep.subr.mxu0 0.0
    %v7943 = vand.u32 %v148, 4294901760
    %7944 = vmatpush1.msra.mxu0 %v7943
    %7945 = vmatprep.subr.mxu0 0.0
    %v7946 = vand.u32 %v150, 4294901760
    %7947 = vmatpush1.msra.mxu0 %v7946
    %7948 = vmatprep.subr.mxu0 0.0
    %v7949 = vand.u32 %v152, 4294901760
    %7950 = vmatpush1.msra.mxu0 %v7949
    %7951 = vmatprep.subr.mxu0 0.0
    %v7952 = vand.u32 %v154, 4294901760
    %7953 = vmatpush1.msra.mxu0 %v7952
    %7954 = vmatprep.subr.mxu0 0.0
    %7955 = vmatpush1.msra.mxu0 0.0
    %7956 = vmatprep.subr.mxu0 0.0
    %7957 = vmatpush1.msra.mxu0 0.0
    %7958 = vmatprep.subr.mxu0 0.0
    %7959 = vmatpush1.msra.mxu0 0.0
    %7960 = vmatprep.subr.mxu0 0.0
    %7961 = vmatpush1.msra.mxu0 0.0
    %7962 = vmatprep.subr.mxu0 0.0
    %7963 = vmatpush1.msra.mxu0 0.0
    %7964 = vmatprep.subr.mxu0 0.0
    %7965 = vmatpush1.msra.mxu0 0.0
    %7966 = vmatprep.subr.mxu0 0.0
    %7967 = vmatpush1.msra.mxu0 0.0
    %7968 = vmatprep.subr.mxu0 0.0
    %7969 = vmatpush1.msra.mxu0 0.0
    %7970 = vmatprep.subr.mxu0 0.0
    %7971 = vmatpush1.msra.mxu0 0.0
    %7972 = vmatprep.subr.mxu0 0.0
    %7973 = vmatpush1.msra.mxu0 0.0
    %7974 = vmatprep.subr.mxu0 0.0
    %7975 = vmatpush1.msra.mxu0 0.0
    %7976 = vmatprep.subr.mxu0 0.0
    %7977 = vmatpush1.msra.mxu0 0.0
    %7978 = vmatprep.subr.mxu0 0.0
    %7979 = vmatpush1.msra.mxu0 0.0
    %7980 = vmatprep.subr.mxu0 0.0
    %7981 = vmatpush1.msra.mxu0 0.0
    %7982 = vmatprep.subr.mxu0 0.0
    %7983 = vmatpush1.msra.mxu0 0.0
    %7984 = vmatprep.subr.mxu0 0.0
    %7985 = vmatpush1.msra.mxu0 0.0
    %7986 = vmatprep.subr.mxu0 0.0
    %7987 = vmatpush1.msra.mxu0 0.0
    %7988 = vmatprep.subr.mxu0 0.0
    %7989 = vmatpush1.msra.mxu0 0.0
    %7990 = vmatprep.subr.mxu0 0.0
    %7991 = vmatpush1.msra.mxu0 0.0
    %7992 = vmatprep.subr.mxu0 0.0
    %7993 = vmatpush1.msra.mxu0 0.0
    %7994 = vmatprep.subr.mxu0 0.0
    %7995 = vmatpush1.msra.mxu0 0.0
    %7996 = vmatprep.subr.mxu0 0.0
    %7997 = vmatpush1.msra.mxu0 0.0
    %7998 = vmatprep.subr.mxu0 0.0
    %7999 = vmatpush1.msra.mxu0 0.0
    %8000 = vmatprep.subr.mxu0 0.0
    %8001 = vmatpush1.msra.mxu0 0.0
    %8002 = vmatprep.subr.mxu0 0.0
    %8003 = vmatpush1.msra.mxu0 0.0
    %8004 = vmatprep.subr.mxu0 0.0
    %8005 = vmatpush1.msra.mxu0 0.0
    %8006 = vmatprep.subr.mxu0 0.0
    %8007 = vmatpush1.msra.mxu0 0.0
    %8008 = vmatprep.subr.mxu0 0.0
    %8009 = vmatpush1.msra.mxu0 0.0
    %8010 = vmatprep.mubr.f32.mxu0 0.0
    %v8011 = vand.u32 %v7690, 4294901760
    %v8012 = vsub.f32 %v7690, %v8011
    %v8013 = vand.u32 %v8012, 4294901760
    %8014 = vmatmul.mubr.f32.gmra.mrb[0].mxu0 %v8013
    %v8015 = vpop.f32.mrb[0].mxu0
    %v8016 = vadd.f32 %v7939, %v8015
    %v8017 = vpop.f32.mrb[0].mxu0
    %8018 = vdwg.mxu0
    %8019 = vmatprep.subr.mxu0 0.0
    %v8020 = vand.u32 %v148, 4294901760
    %v8021 = vsub.f32 %v148, %v8020
    %v8022 = vand.u32 %v8021, 4294901760
    %8023 = vmatpush1.msra.mxu0 %v8022
    %8024 = vmatprep.subr.mxu0 0.0
    %v8025 = vand.u32 %v150, 4294901760
    %v8026 = vsub.f32 %v150, %v8025
    %v8027 = vand.u32 %v8026, 4294901760
    %8028 = vmatpush1.msra.mxu0 %v8027
    %8029 = vmatprep.subr.mxu0 0.0
    %v8030 = vand.u32 %v152, 4294901760
    %v8031 = vsub.f32 %v152, %v8030
    %v8032 = vand.u32 %v8031, 4294901760
    %8033 = vmatpush1.msra.mxu0 %v8032
    %8034 = vmatprep.subr.mxu0 0.0
    %v8035 = vand.u32 %v154, 4294901760
    %v8036 = vsub.f32 %v154, %v8035
    %v8037 = vand.u32 %v8036, 4294901760
    %8038 = vmatpush1.msra.mxu0 %v8037
    %8039 = vmatprep.subr.mxu0 0.0
    %8040 = vmatpush1.msra.mxu0 0.0
    %8041 = vmatprep.subr.mxu0 0.0
    %8042 = vmatpush1.msra.mxu0 0.0
    %8043 = vmatprep.subr.mxu0 0.0
    %8044 = vmatpush1.msra.mxu0 0.0
    %8045 = vmatprep.subr.mxu0 0.0
    %8046 = vmatpush1.msra.mxu0 0.0
    %8047 = vmatprep.subr.mxu0 0.0
    %8048 = vmatpush1.msra.mxu0 0.0
    %8049 = vmatprep.subr.mxu0 0.0
    %8050 = vmatpush1.msra.mxu0 0.0
    %8051 = vmatprep.subr.mxu0 0.0
    %8052 = vmatpush1.msra.mxu0 0.0
    %8053 = vmatprep.subr.mxu0 0.0
    %8054 = vmatpush1.msra.mxu0 0.0
    %8055 = vmatprep.subr.mxu0 0.0
    %8056 = vmatpush1.msra.mxu0 0.0
    %8057 = vmatprep.subr.mxu0 0.0
    %8058 = vmatpush1.msra.mxu0 0.0
    %8059 = vmatprep.subr.mxu0 0.0
    %8060 = vmatpush1.msra.mxu0 0.0
    %8061 = vmatprep.subr.mxu0 0.0
    %8062 = vmatpush1.msra.mxu0 0.0
    %8063 = vmatprep.subr.mxu0 0.0
    %8064 = vmatpush1.msra.mxu0 0.0
    %8065 = vmatprep.subr.mxu0 0.0
    %8066 = vmatpush1.msra.mxu0 0.0
    %8067 = vmatprep.subr.mxu0 0.0
    %8068 = vmatpush1.msra.mxu0 0.0
    %8069 = vmatprep.subr.mxu0 0.0
    %8070 = vmatpush1.msra.mxu0 0.0
    %8071 = vmatprep.subr.mxu0 0.0
    %8072 = vmatpush1.msra.mxu0 0.0
    %8073 = vmatprep.subr.mxu0 0.0
    %8074 = vmatpush1.msra.mxu0 0.0
    %8075 = vmatprep.subr.mxu0 0.0
    %8076 = vmatpush1.msra.mxu0 0.0
    %8077 = vmatprep.subr.mxu0 0.0
    %8078 = vmatpush1.msra.mxu0 0.0
    %8079 = vmatprep.subr.mxu0 0.0
    %8080 = vmatpush1.msra.mxu0 0.0
    %8081 = vmatprep.subr.mxu0 0.0
    %8082 = vmatpush1.msra.mxu0 0.0
    %8083 = vmatprep.subr.mxu0 0.0
    %8084 = vmatpush1.msra.mxu0 0.0
    %8085 = vmatprep.subr.mxu0 0.0
    %8086 = vmatpush1.msra.mxu0 0.0
    %8087 = vmatprep.subr.mxu0 0.0
    %8088 = vmatpush1.msra.mxu0 0.0
    %8089 = vmatprep.subr.mxu0 0.0
    %8090 = vmatpush1.msra.mxu0 0.0
    %8091 = vmatprep.subr.mxu0 0.0
    %8092 = vmatpush1.msra.mxu0 0.0
    %8093 = vmatprep.subr.mxu0 0.0
    %8094 = vmatpush1.msra.mxu0 0.0
    %8095 = vmatprep.mubr.f32.mxu0 0.0
    %v8096 = vand.u32 %v7690, 4294901760
    %8097 = vmatmul.mubr.f32.gmra.mrb[0].mxu0 %v8096
    %v8098 = vpop.f32.mrb[0].mxu0
    %v8099 = vadd.f32 %v8016, %v8098
    %v8100 = vpop.f32.mrb[0].mxu0
    %8101 = vdwg.mxu0
    %8102 = vmatprep.subr.mxu0 0.0
    %v8103 = vand.u32 %v148, 4294901760
    %8104 = vmatpush1.msra.mxu0 %v8103
    %8105 = vmatprep.subr.mxu0 0.0
    %v8106 = vand.u32 %v150, 4294901760
    %8107 = vmatpush1.msra.mxu0 %v8106
    %8108 = vmatprep.subr.mxu0 0.0
    %v8109 = vand.u32 %v152, 4294901760
    %8110 = vmatpush1.msra.mxu0 %v8109
    %8111 = vmatprep.subr.mxu0 0.0
    %v8112 = vand.u32 %v154, 4294901760
    %8113 = vmatpush1.msra.mxu0 %v8112
    %8114 = vmatprep.subr.mxu0 0.0
    %8115 = vmatpush1.msra.mxu0 0.0
    %8116 = vmatprep.subr.mxu0 0.0
    %8117 = vmatpush1.msra.mxu0 0.0
    %8118 = vmatprep.subr.mxu0 0.0
    %8119 = vmatpush1.msra.mxu0 0.0
    %8120 = vmatprep.subr.mxu0 0.0
    %8121 = vmatpush1.msra.mxu0 0.0
    %8122 = vmatprep.subr.mxu0 0.0
    %8123 = vmatpush1.msra.mxu0 0.0
    %8124 = vmatprep.subr.mxu0 0.0
    %8125 = vmatpush1.msra.mxu0 0.0
    %8126 = vmatprep.subr.mxu0 0.0
    %8127 = vmatpush1.msra.mxu0 0.0
    %8128 = vmatprep.subr.mxu0 0.0
    %8129 = vmatpush1.msra.mxu0 0.0
    %8130 = vmatprep.subr.mxu0 0.0
    %8131 = vmatpush1.msra.mxu0 0.0
    %8132 = vmatprep.subr.mxu0 0.0
    %8133 = vmatpush1.msra.mxu0 0.0
    %8134 = vmatprep.subr.mxu0 0.0
    %8135 = vmatpush1.msra.mxu0 0.0
    %8136 = vmatprep.subr.mxu0 0.0
    %8137 = vmatpush1.msra.mxu0 0.0
    %8138 = vmatprep.subr.mxu0 0.0
    %8139 = vmatpush1.msra.mxu0 0.0
    %8140 = vmatprep.subr.mxu0 0.0
    %8141 = vmatpush1.msra.mxu0 0.0
    %8142 = vmatprep.subr.mxu0 0.0
    %8143 = vmatpush1.msra.mxu0 0.0
    %8144 = vmatprep.subr.mxu0 0.0
    %8145 = vmatpush1.msra.mxu0 0.0
    %8146 = vmatprep.subr.mxu0 0.0
    %8147 = vmatpush1.msra.mxu0 0.0
    %8148 = vmatprep.subr.mxu0 0.0
    %8149 = vmatpush1.msra.mxu0 0.0
    %8150 = vmatprep.subr.mxu0 0.0
    %8151 = vmatpush1.msra.mxu0 0.0
    %8152 = vmatprep.subr.mxu0 0.0
    %8153 = vmatpush1.msra.mxu0 0.0
    %8154 = vmatprep.subr.mxu0 0.0
    %8155 = vmatpush1.msra.mxu0 0.0
    %8156 = vmatprep.subr.mxu0 0.0
    %8157 = vmatpush1.msra.mxu0 0.0
    %8158 = vmatprep.subr.mxu0 0.0
    %8159 = vmatpush1.msra.mxu0 0.0
    %8160 = vmatprep.subr.mxu0 0.0
    %8161 = vmatpush1.msra.mxu0 0.0
    %8162 = vmatprep.subr.mxu0 0.0
    %8163 = vmatpush1.msra.mxu0 0.0
    %8164 = vmatprep.subr.mxu0 0.0
    %8165 = vmatpush1.msra.mxu0 0.0
    %8166 = vmatprep.subr.mxu0 0.0
    %8167 = vmatpush1.msra.mxu0 0.0
    %8168 = vmatprep.subr.mxu0 0.0
    %8169 = vmatpush1.msra.mxu0 0.0
    %8170 = vmatprep.mubr.f32.mxu0 0.0
    %v8171 = vand.u32 %v7690, 4294901760
    %8172 = vmatmul.mubr.f32.gmra.mrb[0].mxu0 %v8171
    %v8173 = vpop.f32.mrb[0].mxu0
    %v8174 = vadd.f32 %v8099, %v8173
    %v8175 = vpop.f32.mrb[0].mxu0
    %8176 = vdwg.mxu0
    %8177 = vmatprep.subr.mxu0 0.0
    %v8178 = vand.u32 %v7677, 4294901760
    %8179 = vmatpush1.msra.mxu0 %v8178
    %8180 = vmatprep.subr.mxu0 0.0
    %v8181 = vand.u32 %v7678, 4294901760
    %8182 = vmatpush1.msra.mxu0 %v8181
    %8183 = vmatprep.subr.mxu0 0.0
    %v8184 = vand.u32 %v7679, 4294901760
    %8185 = vmatpush1.msra.mxu0 %v8184
    %8186 = vmatprep.subr.mxu0 0.0
    %v8187 = vand.u32 %v7680, 4294901760
    %8188 = vmatpush1.msra.mxu0 %v8187
    %8189 = vmatprep.subr.mxu0 0.0
    %8190 = vmatpush1.msra.mxu0 0.0
    %8191 = vmatprep.subr.mxu0 0.0
    %8192 = vmatpush1.msra.mxu0 0.0
    %8193 = vmatprep.subr.mxu0 0.0
    %8194 = vmatpush1.msra.mxu0 0.0
    %8195 = vmatprep.subr.mxu0 0.0
    %8196 = vmatpush1.msra.mxu0 0.0
    %8197 = vmatprep.subr.mxu0 0.0
    %8198 = vmatpush1.msra.mxu0 0.0
    %8199 = vmatprep.subr.mxu0 0.0
    %8200 = vmatpush1.msra.mxu0 0.0
    %8201 = vmatprep.subr.mxu0 0.0
    %8202 = vmatpush1.msra.mxu0 0.0
    %8203 = vmatprep.subr.mxu0 0.0
    %8204 = vmatpush1.msra.mxu0 0.0
    %8205 = vmatprep.subr.mxu0 0.0
    %8206 = vmatpush1.msra.mxu0 0.0
    %8207 = vmatprep.subr.mxu0 0.0
    %8208 = vmatpush1.msra.mxu0 0.0
    %8209 = vmatprep.subr.mxu0 0.0
    %8210 = vmatpush1.msra.mxu0 0.0
    %8211 = vmatprep.subr.mxu0 0.0
    %8212 = vmatpush1.msra.mxu0 0.0
    %8213 = vmatprep.subr.mxu0 0.0
    %8214 = vmatpush1.msra.mxu0 0.0
    %8215 = vmatprep.subr.mxu0 0.0
    %8216 = vmatpush1.msra.mxu0 0.0
    %8217 = vmatprep.subr.mxu0 0.0
    %8218 = vmatpush1.msra.mxu0 0.0
    %8219 = vmatprep.subr.mxu0 0.0
    %8220 = vmatpush1.msra.mxu0 0.0
    %8221 = vmatprep.subr.mxu0 0.0
    %8222 = vmatpush1.msra.mxu0 0.0
    %8223 = vmatprep.subr.mxu0 0.0
    %8224 = vmatpush1.msra.mxu0 0.0
    %8225 = vmatprep.subr.mxu0 0.0
    %8226 = vmatpush1.msra.mxu0 0.0
    %8227 = vmatprep.subr.mxu0 0.0
    %8228 = vmatpush1.msra.mxu0 0.0
    %8229 = vmatprep.subr.mxu0 0.0
    %8230 = vmatpush1.msra.mxu0 0.0
    %8231 = vmatprep.subr.mxu0 0.0
    %8232 = vmatpush1.msra.mxu0 0.0
    %8233 = vmatprep.subr.mxu0 0.0
    %8234 = vmatpush1.msra.mxu0 0.0
    %8235 = vmatprep.subr.mxu0 0.0
    %8236 = vmatpush1.msra.mxu0 0.0
    %8237 = vmatprep.subr.mxu0 0.0
    %8238 = vmatpush1.msra.mxu0 0.0
    %8239 = vmatprep.subr.mxu0 0.0
    %8240 = vmatpush1.msra.mxu0 0.0
    %8241 = vmatprep.subr.mxu0 0.0
    %8242 = vmatpush1.msra.mxu0 0.0
    %8243 = vmatprep.subr.mxu0 0.0
    %8244 = vmatpush1.msra.mxu0 0.0
    %8245 = vmatprep.mubr.f32.mxu0 0.0
    %v8246 = vand.u32 %v7690, 4294901760
    %v8247 = vsub.f32 %v7690, %v8246
    %v8248 = vand.u32 %v8247, 4294901760
    %v8249 = vsub.f32 %v8247, %v8248
    %v8250 = vand.u32 %v8249, 4294901760
    %8251 = vmatmul.mubr.f32.gmra.mrb[0].mxu0 %v8250
    %v8252 = vpop.f32.mrb[0].mxu0
    %v8253 = vadd.f32 0.0, %v8252
    %v8254 = vpop.f32.mrb[0].mxu0
    %8255 = vdwg.mxu0
    %8256 = vmatprep.subr.mxu0 0.0
    %v8257 = vand.u32 %v7677, 4294901760
    %v8258 = vsub.f32 %v7677, %v8257
    %v8259 = vand.u32 %v8258, 4294901760
    %v8260 = vsub.f32 %v8258, %v8259
    %v8261 = vand.u32 %v8260, 4294901760
    %8262 = vmatpush1.msra.mxu0 %v8261
    %8263 = vmatprep.subr.mxu0 0.0
    %v8264 = vand.u32 %v7678, 4294901760
    %v8265 = vsub.f32 %v7678, %v8264
    %v8266 = vand.u32 %v8265, 4294901760
    %v8267 = vsub.f32 %v8265, %v8266
    %v8268 = vand.u32 %v8267, 4294901760
    %8269 = vmatpush1.msra.mxu0 %v8268
    %8270 = vmatprep.subr.mxu0 0.0
    %v8271 = vand.u32 %v7679, 4294901760
    %v8272 = vsub.f32 %v7679, %v8271
    %v8273 = vand.u32 %v8272, 4294901760
    %v8274 = vsub.f32 %v8272, %v8273
    %v8275 = vand.u32 %v8274, 4294901760
    %8276 = vmatpush1.msra.mxu0 %v8275
    %8277 = vmatprep.subr.mxu0 0.0
    %v8278 = vand.u32 %v7680, 4294901760
    %v8279 = vsub.f32 %v7680, %v8278
    %v8280 = vand.u32 %v8279, 4294901760
    %v8281 = vsub.f32 %v8279, %v8280
    %v8282 = vand.u32 %v8281, 4294901760
    %8283 = vmatpush1.msra.mxu0 %v8282
    %8284 = vmatprep.subr.mxu0 0.0
    %8285 = vmatpush1.msra.mxu0 0.0
    %8286 = vmatprep.subr.mxu0 0.0
    %8287 = vmatpush1.msra.mxu0 0.0
    %8288 = vmatprep.subr.mxu0 0.0
    %8289 = vmatpush1.msra.mxu0 0.0
    %8290 = vmatprep.subr.mxu0 0.0
    %8291 = vmatpush1.msra.mxu0 0.0
    %8292 = vmatprep.subr.mxu0 0.0
    %8293 = vmatpush1.msra.mxu0 0.0
    %8294 = vmatprep.subr.mxu0 0.0
    %8295 = vmatpush1.msra.mxu0 0.0
    %8296 = vmatprep.subr.mxu0 0.0
    %8297 = vmatpush1.msra.mxu0 0.0
    %8298 = vmatprep.subr.mxu0 0.0
    %8299 = vmatpush1.msra.mxu0 0.0
    %8300 = vmatprep.subr.mxu0 0.0
    %8301 = vmatpush1.msra.mxu0 0.0
    %8302 = vmatprep.subr.mxu0 0.0
    %8303 = vmatpush1.msra.mxu0 0.0
    %8304 = vmatprep.subr.mxu0 0.0
    %8305 = vmatpush1.msra.mxu0 0.0
    %8306 = vmatprep.subr.mxu0 0.0
    %8307 = vmatpush1.msra.mxu0 0.0
    %8308 = vmatprep.subr.mxu0 0.0
    %8309 = vmatpush1.msra.mxu0 0.0
    %8310 = vmatprep.subr.mxu0 0.0
    %8311 = vmatpush1.msra.mxu0 0.0
    %8312 = vmatprep.subr.mxu0 0.0
    %8313 = vmatpush1.msra.mxu0 0.0
    %8314 = vmatprep.subr.mxu0 0.0
    %8315 = vmatpush1.msra.mxu0 0.0
    %8316 = vmatprep.subr.mxu0 0.0
    %8317 = vmatpush1.msra.mxu0 0.0
    %8318 = vmatprep.subr.mxu0 0.0
    %8319 = vmatpush1.msra.mxu0 0.0
    %8320 = vmatprep.subr.mxu0 0.0
    %8321 = vmatpush1.msra.mxu0 0.0
    %8322 = vmatprep.subr.mxu0 0.0
    %8323 = vmatpush1.msra.mxu0 0.0
    %8324 = vmatprep.subr.mxu0 0.0
    %8325 = vmatpush1.msra.mxu0 0.0
    %8326 = vmatprep.subr.mxu0 0.0
    %8327 = vmatpush1.msra.mxu0 0.0
    %8328 = vmatprep.subr.mxu0 0.0
    %8329 = vmatpush1.msra.mxu0 0.0
    %8330 = vmatprep.subr.mxu0 0.0
    %8331 = vmatpush1.msra.mxu0 0.0
    %8332 = vmatprep.subr.mxu0 0.0
    %8333 = vmatpush1.msra.mxu0 0.0
    %8334 = vmatprep.subr.mxu0 0.0
    %8335 = vmatpush1.msra.mxu0 0.0
    %8336 = vmatprep.subr.mxu0 0.0
    %8337 = vmatpush1.msra.mxu0 0.0
    %8338 = vmatprep.subr.mxu0 0.0
    %8339 = vmatpush1.msra.mxu0 0.0
    %8340 = vmatprep.mubr.f32.mxu0 0.0
    %v8341 = vand.u32 %v7690, 4294901760
    %8342 = vmatmul.mubr.f32.gmra.mrb[0].mxu0 %v8341
    %v8343 = vpop.f32.mrb[0].mxu0
    %v8344 = vadd.f32 %v8253, %v8343
    %v8345 = vpop.f32.mrb[0].mxu0
    %8346 = vdwg.mxu0
    %8347 = vmatprep.subr.mxu0 0.0
    %v8348 = vand.u32 %v7677, 4294901760
    %v8349 = vsub.f32 %v7677, %v8348
    %8350 = vmatpush1.msra.mxu0 %v8349
    %8351 = vmatprep.subr.mxu0 0.0
    %v8352 = vand.u32 %v7678, 4294901760
    %v8353 = vsub.f32 %v7678, %v8352
    %8354 = vmatpush1.msra.mxu0 %v8353
    %8355 = vmatprep.subr.mxu0 0.0
    %v8356 = vand.u32 %v7679, 4294901760
    %v8357 = vsub.f32 %v7679, %v8356
    %8358 = vmatpush1.msra.mxu0 %v8357
    %8359 = vmatprep.subr.mxu0 0.0
    %v8360 = vand.u32 %v7680, 4294901760
    %v8361 = vsub.f32 %v7680, %v8360
    %8362 = vmatpush1.msra.mxu0 %v8361
    %8363 = vmatprep.subr.mxu0 0.0
    %8364 = vmatpush1.msra.mxu0 0.0
    %8365 = vmatprep.subr.mxu0 0.0
    %8366 = vmatpush1.msra.mxu0 0.0
    %8367 = vmatprep.subr.mxu0 0.0
    %8368 = vmatpush1.msra.mxu0 0.0
    %8369 = vmatprep.subr.mxu0 0.0
    %8370 = vmatpush1.msra.mxu0 0.0
    %8371 = vmatprep.subr.mxu0 0.0
    %8372 = vmatpush1.msra.mxu0 0.0
    %8373 = vmatprep.subr.mxu0 0.0
    %8374 = vmatpush1.msra.mxu0 0.0
    %8375 = vmatprep.subr.mxu0 0.0
    %8376 = vmatpush1.msra.mxu0 0.0
    %8377 = vmatprep.subr.mxu0 0.0
    %8378 = vmatpush1.msra.mxu0 0.0
    %8379 = vmatprep.subr.mxu0 0.0
    %8380 = vmatpush1.msra.mxu0 0.0
    %8381 = vmatprep.subr.mxu0 0.0
    %8382 = vmatpush1.msra.mxu0 0.0
    %8383 = vmatprep.subr.mxu0 0.0
    %8384 = vmatpush1.msra.mxu0 0.0
    %8385 = vmatprep.subr.mxu0 0.0
    %8386 = vmatpush1.msra.mxu0 0.0
    %8387 = vmatprep.subr.mxu0 0.0
    %8388 = vmatpush1.msra.mxu0 0.0
    %8389 = vmatprep.subr.mxu0 0.0
    %8390 = vmatpush1.msra.mxu0 0.0
    %8391 = vmatprep.subr.mxu0 0.0
    %8392 = vmatpush1.msra.mxu0 0.0
    %8393 = vmatprep.subr.mxu0 0.0
    %8394 = vmatpush1.msra.mxu0 0.0
    %8395 = vmatprep.subr.mxu0 0.0
    %8396 = vmatpush1.msra.mxu0 0.0
    %8397 = vmatprep.subr.mxu0 0.0
    %8398 = vmatpush1.msra.mxu0 0.0
    %8399 = vmatprep.subr.mxu0 0.0
    %8400 = vmatpush1.msra.mxu0 0.0
    %8401 = vmatprep.subr.mxu0 0.0
    %8402 = vmatpush1.msra.mxu0 0.0
    %8403 = vmatprep.subr.mxu0 0.0
    %8404 = vmatpush1.msra.mxu0 0.0
    %8405 = vmatprep.subr.mxu0 0.0
    %8406 = vmatpush1.msra.mxu0 0.0
    %8407 = vmatprep.subr.mxu0 0.0
    %8408 = vmatpush1.msra.mxu0 0.0
    %8409 = vmatprep.subr.mxu0 0.0
    %8410 = vmatpush1.msra.mxu0 0.0
    %8411 = vmatprep.subr.mxu0 0.0
    %8412 = vmatpush1.msra.mxu0 0.0
    %8413 = vmatprep.subr.mxu0 0.0
    %8414 = vmatpush1.msra.mxu0 0.0
    %8415 = vmatprep.subr.mxu0 0.0
    %8416 = vmatpush1.msra.mxu0 0.0
    %8417 = vmatprep.subr.mxu0 0.0
    %8418 = vmatpush1.msra.mxu0 0.0
    %8419 = vmatprep.mubr.f32.mxu0 0.0
    %v8420 = vand.u32 %v7690, 4294901760
    %v8421 = vsub.f32 %v7690, %v8420
    %8422 = vmatmul.mubr.f32.gmra.mrb[0].mxu0 %v8421
    %v8423 = vpop.f32.mrb[0].mxu0
    %v8424 = vadd.f32 %v8344, %v8423
    %v8425 = vpop.f32.mrb[0].mxu0
    %8426 = vdwg.mxu0
    %8427 = vmatprep.subr.mxu0 0.0
    %v8428 = vand.u32 %v7677, 4294901760
    %8429 = vmatpush1.msra.mxu0 %v8428
    %8430 = vmatprep.subr.mxu0 0.0
    %v8431 = vand.u32 %v7678, 4294901760
    %8432 = vmatpush1.msra.mxu0 %v8431
    %8433 = vmatprep.subr.mxu0 0.0
    %v8434 = vand.u32 %v7679, 4294901760
    %8435 = vmatpush1.msra.mxu0 %v8434
    %8436 = vmatprep.subr.mxu0 0.0
    %v8437 = vand.u32 %v7680, 4294901760
    %8438 = vmatpush1.msra.mxu0 %v8437
    %8439 = vmatprep.subr.mxu0 0.0
    %8440 = vmatpush1.msra.mxu0 0.0
    %8441 = vmatprep.subr.mxu0 0.0
    %8442 = vmatpush1.msra.mxu0 0.0
    %8443 = vmatprep.subr.mxu0 0.0
    %8444 = vmatpush1.msra.mxu0 0.0
    %8445 = vmatprep.subr.mxu0 0.0
    %8446 = vmatpush1.msra.mxu0 0.0
    %8447 = vmatprep.subr.mxu0 0.0
    %8448 = vmatpush1.msra.mxu0 0.0
    %8449 = vmatprep.subr.mxu0 0.0
    %8450 = vmatpush1.msra.mxu0 0.0
    %8451 = vmatprep.subr.mxu0 0.0
    %8452 = vmatpush1.msra.mxu0 0.0
    %8453 = vmatprep.subr.mxu0 0.0
    %8454 = vmatpush1.msra.mxu0 0.0
    %8455 = vmatprep.subr.mxu0 0.0
    %8456 = vmatpush1.msra.mxu0 0.0
    %8457 = vmatprep.subr.mxu0 0.0
    %8458 = vmatpush1.msra.mxu0 0.0
    %8459 = vmatprep.subr.mxu0 0.0
    %8460 = vmatpush1.msra.mxu0 0.0
    %8461 = vmatprep.subr.mxu0 0.0
    %8462 = vmatpush1.msra.mxu0 0.0
    %8463 = vmatprep.subr.mxu0 0.0
    %8464 = vmatpush1.msra.mxu0 0.0
    %8465 = vmatprep.subr.mxu0 0.0
    %8466 = vmatpush1.msra.mxu0 0.0
    %8467 = vmatprep.subr.mxu0 0.0
    %8468 = vmatpush1.msra.mxu0 0.0
    %8469 = vmatprep.subr.mxu0 0.0
    %8470 = vmatpush1.msra.mxu0 0.0
    %8471 = vmatprep.subr.mxu0 0.0
    %8472 = vmatpush1.msra.mxu0 0.0
    %8473 = vmatprep.subr.mxu0 0.0
    %8474 = vmatpush1.msra.mxu0 0.0
    %8475 = vmatprep.subr.mxu0 0.0
    %8476 = vmatpush1.msra.mxu0 0.0
    %8477 = vmatprep.subr.mxu0 0.0
    %8478 = vmatpush1.msra.mxu0 0.0
    %8479 = vmatprep.subr.mxu0 0.0
    %8480 = vmatpush1.msra.mxu0 0.0
    %8481 = vmatprep.subr.mxu0 0.0
    %8482 = vmatpush1.msra.mxu0 0.0
    %8483 = vmatprep.subr.mxu0 0.0
    %8484 = vmatpush1.msra.mxu0 0.0
    %8485 = vmatprep.subr.mxu0 0.0
    %8486 = vmatpush1.msra.mxu0 0.0
    %8487 = vmatprep.subr.mxu0 0.0
    %8488 = vmatpush1.msra.mxu0 0.0
    %8489 = vmatprep.subr.mxu0 0.0
    %8490 = vmatpush1.msra.mxu0 0.0
    %8491 = vmatprep.subr.mxu0 0.0
    %8492 = vmatpush1.msra.mxu0 0.0
    %8493 = vmatprep.subr.mxu0 0.0
    %8494 = vmatpush1.msra.mxu0 0.0
    %8495 = vmatprep.mubr.f32.mxu0 0.0
    %v8496 = vand.u32 %v7690, 4294901760
    %v8497 = vsub.f32 %v7690, %v8496
    %v8498 = vand.u32 %v8497, 4294901760
    %8499 = vmatmul.mubr.f32.gmra.mrb[0].mxu0 %v8498
    %v8500 = vpop.f32.mrb[0].mxu0
    %v8501 = vadd.f32 %v8424, %v8500
    %v8502 = vpop.f32.mrb[0].mxu0
    %8503 = vdwg.mxu0
    %8504 = vmatprep.subr.mxu0 0.0
    %v8505 = vand.u32 %v7677, 4294901760
    %v8506 = vsub.f32 %v7677, %v8505
    %v8507 = vand.u32 %v8506, 4294901760
    %8508 = vmatpush1.msra.mxu0 %v8507
    %8509 = vmatprep.subr.mxu0 0.0
    %v8510 = vand.u32 %v7678, 4294901760
    %v8511 = vsub.f32 %v7678, %v8510
    %v8512 = vand.u32 %v8511, 4294901760
    %8513 = vmatpush1.msra.mxu0 %v8512
    %8514 = vmatprep.subr.mxu0 0.0
    %v8515 = vand.u32 %v7679, 4294901760
    %v8516 = vsub.f32 %v7679, %v8515
    %v8517 = vand.u32 %v8516, 4294901760
    %8518 = vmatpush1.msra.mxu0 %v8517
    %8519 = vmatprep.subr.mxu0 0.0
    %v8520 = vand.u32 %v7680, 4294901760
    %v8521 = vsub.f32 %v7680, %v8520
    %v8522 = vand.u32 %v8521, 4294901760
    %8523 = vmatpush1.msra.mxu0 %v8522
    %8524 = vmatprep.subr.mxu0 0.0
    %8525 = vmatpush1.msra.mxu0 0.0
    %8526 = vmatprep.subr.mxu0 0.0
    %8527 = vmatpush1.msra.mxu0 0.0
    %8528 = vmatprep.subr.mxu0 0.0
    %8529 = vmatpush1.msra.mxu0 0.0
    %8530 = vmatprep.subr.mxu0 0.0
    %8531 = vmatpush1.msra.mxu0 0.0
    %8532 = vmatprep.subr.mxu0 0.0
    %8533 = vmatpush1.msra.mxu0 0.0
    %8534 = vmatprep.subr.mxu0 0.0
    %8535 = vmatpush1.msra.mxu0 0.0
    %8536 = vmatprep.subr.mxu0 0.0
    %8537 = vmatpush1.msra.mxu0 0.0
    %8538 = vmatprep.subr.mxu0 0.0
    %8539 = vmatpush1.msra.mxu0 0.0
    %8540 = vmatprep.subr.mxu0 0.0
    %8541 = vmatpush1.msra.mxu0 0.0
    %8542 = vmatprep.subr.mxu0 0.0
    %8543 = vmatpush1.msra.mxu0 0.0
    %8544 = vmatprep.subr.mxu0 0.0
    %8545 = vmatpush1.msra.mxu0 0.0
    %8546 = vmatprep.subr.mxu0 0.0
    %8547 = vmatpush1.msra.mxu0 0.0
    %8548 = vmatprep.subr.mxu0 0.0
    %8549 = vmatpush1.msra.mxu0 0.0
    %8550 = vmatprep.subr.mxu0 0.0
    %8551 = vmatpush1.msra.mxu0 0.0
    %8552 = vmatprep.subr.mxu0 0.0
    %8553 = vmatpush1.msra.mxu0 0.0
    %8554 = vmatprep.subr.mxu0 0.0
    %8555 = vmatpush1.msra.mxu0 0.0
    %8556 = vmatprep.subr.mxu0 0.0
    %8557 = vmatpush1.msra.mxu0 0.0
    %8558 = vmatprep.subr.mxu0 0.0
    %8559 = vmatpush1.msra.mxu0 0.0
    %8560 = vmatprep.subr.mxu0 0.0
    %8561 = vmatpush1.msra.mxu0 0.0
    %8562 = vmatprep.subr.mxu0 0.0
    %8563 = vmatpush1.msra.mxu0 0.0
    %8564 = vmatprep.subr.mxu0 0.0
    %8565 = vmatpush1.msra.mxu0 0.0
    %8566 = vmatprep.subr.mxu0 0.0
    %8567 = vmatpush1.msra.mxu0 0.0
    %8568 = vmatprep.subr.mxu0 0.0
    %8569 = vmatpush1.msra.mxu0 0.0
    %8570 = vmatprep.subr.mxu0 0.0
    %8571 = vmatpush1.msra.mxu0 0.0
    %8572 = vmatprep.subr.mxu0 0.0
    %8573 = vmatpush1.msra.mxu0 0.0
    %8574 = vmatprep.subr.mxu0 0.0
    %8575 = vmatpush1.msra.mxu0 0.0
    %8576 = vmatprep.subr.mxu0 0.0
    %8577 = vmatpush1.msra.mxu0 0.0
    %8578 = vmatprep.subr.mxu0 0.0
    %8579 = vmatpush1.msra.mxu0 0.0
    %8580 = vmatprep.mubr.f32.mxu0 0.0
    %v8581 = vand.u32 %v7690, 4294901760
    %8582 = vmatmul.mubr.f32.gmra.mrb[0].mxu0 %v8581
    %v8583 = vpop.f32.mrb[0].mxu0
    %v8584 = vadd.f32 %v8501, %v8583
    %v8585 = vpop.f32.mrb[0].mxu0
    %8586 = vdwg.mxu0
    %8587 = vmatprep.subr.mxu0 0.0
    %v8588 = vand.u32 %v7677, 4294901760
    %8589 = vmatpush1.msra.mxu0 %v8588
    %8590 = vmatprep.subr.mxu0 0.0
    %v8591 = vand.u32 %v7678, 4294901760
    %8592 = vmatpush1.msra.mxu0 %v8591
    %8593 = vmatprep.subr.mxu0 0.0
    %v8594 = vand.u32 %v7679, 4294901760
    %8595 = vmatpush1.msra.mxu0 %v8594
    %8596 = vmatprep.subr.mxu0 0.0
    %v8597 = vand.u32 %v7680, 4294901760
    %8598 = vmatpush1.msra.mxu0 %v8597
    %8599 = vmatprep.subr.mxu0 0.0
    %8600 = vmatpush1.msra.mxu0 0.0
    %8601 = vmatprep.subr.mxu0 0.0
    %8602 = vmatpush1.msra.mxu0 0.0
    %8603 = vmatprep.subr.mxu0 0.0
    %8604 = vmatpush1.msra.mxu0 0.0
    %8605 = vmatprep.subr.mxu0 0.0
    %8606 = vmatpush1.msra.mxu0 0.0
    %8607 = vmatprep.subr.mxu0 0.0
    %8608 = vmatpush1.msra.mxu0 0.0
    %8609 = vmatprep.subr.mxu0 0.0
    %8610 = vmatpush1.msra.mxu0 0.0
    %8611 = vmatprep.subr.mxu0 0.0
    %8612 = vmatpush1.msra.mxu0 0.0
    %8613 = vmatprep.subr.mxu0 0.0
    %8614 = vmatpush1.msra.mxu0 0.0
    %8615 = vmatprep.subr.mxu0 0.0
    %8616 = vmatpush1.msra.mxu0 0.0
    %8617 = vmatprep.subr.mxu0 0.0
    %8618 = vmatpush1.msra.mxu0 0.0
    %8619 = vmatprep.subr.mxu0 0.0
    %8620 = vmatpush1.msra.mxu0 0.0
    %8621 = vmatprep.subr.mxu0 0.0
    %8622 = vmatpush1.msra.mxu0 0.0
    %8623 = vmatprep.subr.mxu0 0.0
    %8624 = vmatpush1.msra.mxu0 0.0
    %8625 = vmatprep.subr.mxu0 0.0
    %8626 = vmatpush1.msra.mxu0 0.0
    %8627 = vmatprep.subr.mxu0 0.0
    %8628 = vmatpush1.msra.mxu0 0.0
    %8629 = vmatprep.subr.mxu0 0.0
    %8630 = vmatpush1.msra.mxu0 0.0
    %8631 = vmatprep.subr.mxu0 0.0
    %8632 = vmatpush1.msra.mxu0 0.0
    %8633 = vmatprep.subr.mxu0 0.0
    %8634 = vmatpush1.msra.mxu0 0.0
    %8635 = vmatprep.subr.mxu0 0.0
    %8636 = vmatpush1.msra.mxu0 0.0
    %8637 = vmatprep.subr.mxu0 0.0
    %8638 = vmatpush1.msra.mxu0 0.0
    %8639 = vmatprep.subr.mxu0 0.0
    %8640 = vmatpush1.msra.mxu0 0.0
    %8641 = vmatprep.subr.mxu0 0.0
    %8642 = vmatpush1.msra.mxu0 0.0
    %8643 = vmatprep.subr.mxu0 0.0
    %8644 = vmatpush1.msra.mxu0 0.0
    %8645 = vmatprep.subr.mxu0 0.0
    %8646 = vmatpush1.msra.mxu0 0.0
    %8647 = vmatprep.subr.mxu0 0.0
    %8648 = vmatpush1.msra.mxu0 0.0
    %8649 = vmatprep.subr.mxu0 0.0
    %8650 = vmatpush1.msra.mxu0 0.0
    %8651 = vmatprep.subr.mxu0 0.0
    %8652 = vmatpush1.msra.mxu0 0.0
    %8653 = vmatprep.subr.mxu0 0.0
    %8654 = vmatpush1.msra.mxu0 0.0
    %8655 = vmatprep.mubr.f32.mxu0 0.0
    %v8656 = vand.u32 %v7690, 4294901760
    %8657 = vmatmul.mubr.f32.gmra.mrb[0].mxu0 %v8656
    %v8658 = vpop.f32.mrb[0].mxu0
    %v8659 = vadd.f32 %v8584, %v8658
    %v8660 = vpop.f32.mrb[0].mxu0
    %8661 = vdwg.mxu0
    %v8663 = vrot.slane %v7688, 1
    %v8665 = vmul.f32 %v8174, %v8663
    %vm8666 = vcmask 260096
    %v8667 = vsel %vm8666, %v8665, 0.0
    %8668 = vadd.xlane.f32.xlu0 %v8667
    %v8669 = vpop.xlane.xlu0 %8668
    %v8670 = vmax.f32 %v8669, 1e-30
    %v8671 = vmul.f32 %v8659, %v8663
    %v8672 = vsel %vm8666, %v8671, 0.0
    %8673 = vadd.xlane.f32.xlu0 %v8672
    %v8674 = vpop.xlane.xlu0 %8673
    %v8675 = vrcp.pop %v8670
    %v8676 = vmul.f32 %v8674, %v8675
    %vm8677 = vcmask 6144
    %v8678 = vsel %vm8677, %v8676, 0.0
    %8679 = vadd.xlane.f32.xlu0 %v8678
    %v8680 = vpop.xlane.xlu0 %8679
    %v8681 = vrot.slane %v8680, 4
    %v8682 = vadd.f32 %v8680, %v8681
    %v8683 = vrot.slane %v8682, 2
    %v8684 = vadd.f32 %v8682, %v8683
    %v8685 = vrot.slane %v8684, 1
    %v8686 = vadd.f32 %v8684, %v8685
    %s8687 = vtos %v8686
    %v8688 = vstv %s8687
    %v8689 = vadd.f32 %v7664, %v8688
    %v8690 = vadd.f32 %v8689, %v7676
    %vm8691 = vcmask 0
    %8692 = vst.msk [vmem:[#allocation6] sm:$0x1] %vm8691, %v8690
    // Predicated region
    $region18: #{neural_hmm_forward.1} parent=1 // pred_check
      _
    $region19: #{neural_hmm_forward.1} parent=1 // pred_check_branch
      %8694 = sbr.rel (0) target = $region21
    $region20: #{neural_hmm_forward.1} parent=1 // pred_region
      %s8696 = ssub.s32 16, 16
      %8697 = vsyncadd [#allocation7], %s8696
      %s8699 = sshll.u32 [#allocation6], 4
      %s8700 = int_to_ptr.vmem [resolvable:$true] %s8699
      %8702 = dma.vmem_to_hbm [thread:$0]  %s8700, 16, %s4, [#allocation7]
    $region21: #{neural_hmm_forward.1} parent=1 // pred_fallthru
      _
    // Predicated region
    $region22: #{neural_hmm_forward.1} parent=1 // pred_check
      _
    $region23: #{neural_hmm_forward.1} parent=1 // pred_check_branch
      %8704 = sbr.rel (0) target = $region25
    $region24: #{neural_hmm_forward.1} parent=1 // pred_region
      %8705 = dma.done [#allocation7], 16
    $region25: #{neural_hmm_forward.1} parent=1 // pred_fallthru
      _
    %8706 = vsyncpa [#allocation7], 1

</llo_original>
